<compile_context>
chip_gen: v7x
topology: tpu7x:2x2x1
jax: 0.10.0
libtpu: 0.0.40
codegen_flags: <defaults>
</compile_context>

<pallas_src>
import jax
import jax.numpy as jnp
from jax.experimental import pallas as pl
from jax.experimental.pallas import tpu as pltpu

N = 32            # n in the PyTorch module (size of U, V)
S = 3             # s == L[0]  (number of (U, V) factor pairs)
L1 = 3            # L[1]
K = L1 * S * N    # packed contraction dim of kernel 2 (288)
K_PAD = 384       # 3 * 128 — fully lane-aligned contraction dim


# ---- kernel 1 (single invocation, fully vectorized) -------------------------------
#   Q_i        = U_i @ V_i.T                                (batched MXU op)
#   out[j, i]  = Q_i + 0.01 * mean(Q_i) * noise[j, i]
def _q_noise_kernel(u_ref, v_ref, noise_ref, out_ref):
    u = u_ref[...]                                          # (S, N, N)
    v = v_ref[...]                                          # (S, N, N)
    # Batched U_i @ V_i.T : contract last dim of both operands (no transpose
    # materialized), batch over dim 0.
    q_all = jnp.einsum('sij,skj->sik', u, v,
                       preferred_element_type=jnp.float32)  # (S, N, N)
    # 0.01 * mean(Q_i), computed once per i (two chained single-axis reductions).
    row_mean = jnp.mean(q_all, axis=2, keepdims=True)       # (S, N, 1)
    scale = 0.01 * jnp.mean(row_mean, axis=1, keepdims=True)  # (S, 1, 1)
    # Single contiguous store of the whole (L1, S, N, N) block.
    out_ref[...] = q_all[None] + scale[None] * noise_ref[...]


def q_plus_noise(us, vs, noise):
    # us, vs: (S, N, N); noise: (L1, S, N, N)  ->  (L1, S, N, N)
    flops = 2 * S * N * N * N + 2 * L1 * S * N * N
    bytes_accessed = 4 * (2 * S * N * N + 2 * L1 * S * N * N)
    return pl.pallas_call(
        _q_noise_kernel,
        out_shape=jax.ShapeDtypeStruct((L1, S, N, N), jnp.float32),
        in_specs=[
            pl.BlockSpec(memory_space=pltpu.MemorySpace.VMEM),
            pl.BlockSpec(memory_space=pltpu.MemorySpace.VMEM),
            pl.BlockSpec(memory_space=pltpu.MemorySpace.VMEM),
        ],
        out_specs=pl.BlockSpec(memory_space=pltpu.MemorySpace.VMEM),
        cost_estimate=pl.CostEstimate(
            flops=flops, transcendentals=0, bytes_accessed=bytes_accessed),
    )(us, vs, noise)


# ---- kernel 2 (single invocation, one packed matmul) ------------------------------
#   out = sum_k w[k] * (Usvd_k @ diag(sigmoid(S_k)) @ Vt_k)
# packed as:  out = (U_packed * (w_row * sigmoid(s_row))) @ Vt_packed
def _recon_combine_kernel(u_ref, vt_ref, s_ref, w_ref, out_ref):
    # One EUP sigmoid stream + one (1, K_PAD) multiply; padded entries have
    # w == 0 so they contribute exactly zero.
    scale = w_ref[...] * jax.nn.sigmoid(s_ref[...])          # (1, K_PAD)
    out_ref[...] = jnp.dot(u_ref[...] * scale, vt_ref[...],
                           preferred_element_type=jnp.float32)


def recon_combine(u_svd, s_vals, vt, w):
    # u_svd: (L1*S, N, N), s_vals: (L1*S, N), vt: (L1*S, N, N), w: (L1*S,)
    pad = K_PAD - K

    # U_packed[:, k*N:(k+1)*N] = u_svd[k]   -> (N, K) then zero-pad to (N, K_PAD)
    u_packed = jnp.transpose(u_svd, (1, 0, 2)).reshape(N, K)
    u_packed = jnp.concatenate(
        [u_packed, jnp.zeros((N, pad), jnp.float32)], axis=1)

    # Vt_packed[k*N:(k+1)*N, :] = vt[k]     -> contiguous reshape, zero-pad rows.
    vt_packed = vt.reshape(K, N)
    vt_packed = jnp.concatenate(
        [vt_packed, jnp.zeros((pad, N), jnp.float32)], axis=0)

    # Lane-packed singular values and per-k alpha weights (repeated N times).
    s_row = jnp.concatenate(
        [s_vals.reshape(1, K), jnp.zeros((1, pad), jnp.float32)], axis=1)
    w_row = jnp.concatenate(
        [jnp.repeat(w, N).reshape(1, K), jnp.zeros((1, pad), jnp.float32)],
        axis=1)

    flops = 2 * N * K_PAD * N + 2 * N * K_PAD
    bytes_accessed = 4 * (2 * N * K_PAD + 2 * K_PAD + N * N)
    return pl.pallas_call(
        _recon_combine_kernel,
        out_shape=jax.ShapeDtypeStruct((N, N), jnp.float32),
        in_specs=[
            pl.BlockSpec(memory_space=pltpu.MemorySpace.VMEM),
            pl.BlockSpec(memory_space=pltpu.MemorySpace.VMEM),
            pl.BlockSpec(memory_space=pltpu.MemorySpace.VMEM),
            pl.BlockSpec(memory_space=pltpu.MemorySpace.VMEM),
        ],
        out_specs=pl.BlockSpec(memory_space=pltpu.MemorySpace.VMEM),
        cost_estimate=pl.CostEstimate(
            flops=flops, transcendentals=K_PAD, bytes_accessed=bytes_accessed),
    )(u_packed, vt_packed, s_row, w_row)


# ---------------- full forward -----------------------------------------------------
def snn_forward(us, vs, alpha0, alpha1, noise):
    # 1) Q_i = U_i @ V_i.T perturbed with an independent noise draw per (j, i)
    #    call, exactly as in the 9 non_linear_activation() calls.
    qn = q_plus_noise(us, vs, noise)                         # (L1, S, N, N)
    qn_flat = qn.reshape(L1 * S, N, N)

    # TODO(synk): torch.linalg.svd has no Pallas equivalent; use XLA's batched SVD.
    u_svd, s_vals, vt = jnp.linalg.svd(qn_flat, full_matrices=False)

    # Fold the two alpha levels into one weight per (j, i):  w[j*S + i].
    w = (alpha1[:, None] * alpha0.T).reshape(L1 * S)

    # 2+3) sigmoid-spectrum reconstruction fused with the alpha-weighted combine,
    #      expressed as a single lane-dense K=384 matmul.
    return recon_combine(u_svd.astype(jnp.float32),
                         s_vals.astype(jnp.float32),
                         vt.astype(jnp.float32),
                         w.astype(jnp.float32))


if __name__ == "__main__":
    # Deterministic parameter init matching SNN.__init__:
    #   random_init() -> U = V = eye(n) * 0.1 ; alpha = [ones(L0, L1), ones(L1)]
    us = jnp.stack([jnp.eye(N, dtype=jnp.float32) * 0.1 for _ in range(S)])
    vs = jnp.stack([jnp.eye(N, dtype=jnp.float32) * 0.1 for _ in range(S)])
    alpha0 = jnp.ones((S, L1), dtype=jnp.float32)
    alpha1 = jnp.ones((L1,), dtype=jnp.float32)

    # torch.rand_like noise: one independent uniform[0,1) draw per (j, i) call.
    key = jax.random.PRNGKey(0)
    noise = jax.random.uniform(key, (L1, S, N, N), dtype=jnp.float32)

    out = jax.jit(snn_forward)(us, vs, alpha0, alpha1, noise)
    jax.block_until_ready(out)
    assert out.shape == (N, N) and out.dtype == jnp.float32
    assert bool(jnp.all(jnp.isfinite(out)))
    print("KERNEL_OK")
</pallas_src>

<mosaic_0001>
module attributes {stable_mosaic.version = 11 : i64} {
  func.func @_q_noise_kernel(%arg0: memref<3x32x32xf32, #tpu.memory_space<vmem>>, %arg1: memref<3x32x32xf32, #tpu.memory_space<vmem>>, %arg2: memref<3x3x32x32xf32, #tpu.memory_space<vmem>>, %arg3: memref<3x3x32x32xf32, #tpu.memory_space<vmem>>) attributes {dimension_semantics = [], scalar_prefetch = 0 : i64, scratch_operands = 0 : i64, tpu.core_type = #tpu.core_type<tc>} {
    %c0 = arith.constant 0 : index
    %c0_0 = arith.constant 0 : index
    %c0_1 = arith.constant 0 : index
    %0 = vector.load %arg0[%c0, %c0_0, %c0_1] : memref<3x32x32xf32, #tpu.memory_space<vmem>>, vector<3x32x32xf32>
    %c0_2 = arith.constant 0 : index
    %c0_3 = arith.constant 0 : index
    %c0_4 = arith.constant 0 : index
    %1 = vector.load %arg1[%c0_2, %c0_3, %c0_4] : memref<3x32x32xf32, #tpu.memory_space<vmem>>, vector<3x32x32xf32>
    "tpu.trace_start"() <{level = 10 : i32, message = "sij,skj->sik"}> : () -> ()
    %cst = arith.constant dense<0.000000e+00> : vector<3x32x32xf32>
    %2 = tpu.matmul %0, %1, %cst {dimension_numbers = #tpu.dot_dimension_numbers<[2], [2], [1], [1], [0, 0, 0, 1, 1, 1], [0], [0]>} : vector<3x32x32xf32>, vector<3x32x32xf32>, vector<3x32x32xf32> -> vector<3x32x32xf32>
    "tpu.trace_stop"() : () -> ()
    %cst_5 = arith.constant dense<0.000000e+00> : vector<3x32xf32>
    %3 = vector.multi_reduction <add>, %2, %cst_5 [2] : vector<3x32x32xf32> to vector<3x32xf32>
    %4 = vector.shape_cast %3 : vector<3x32xf32> to vector<3x32x1xf32>
    %cst_6 = arith.constant 3.200000e+01 : f32
    %5 = vector.broadcast %cst_6 : f32 to vector<3x32x1xf32>
    %6 = arith.divf %4, %5 : vector<3x32x1xf32>
    %cst_7 = arith.constant dense<0.000000e+00> : vector<3x1xf32>
    %7 = vector.multi_reduction <add>, %6, %cst_7 [1] : vector<3x32x1xf32> to vector<3x1xf32>
    %8 = vector.shape_cast %7 : vector<3x1xf32> to vector<3x1x1xf32>
    %cst_8 = arith.constant 3.200000e+01 : f32
    %9 = vector.broadcast %cst_8 : f32 to vector<3x1x1xf32>
    %10 = arith.divf %8, %9 : vector<3x1x1xf32>
    %cst_9 = arith.constant 0.00999999977 : f32
    %11 = vector.broadcast %cst_9 : f32 to vector<3x1x1xf32>
    %12 = arith.mulf %11, %10 : vector<3x1x1xf32>
    %13 = vector.shape_cast %2 : vector<3x32x32xf32> to vector<1x3x32x32xf32>
    %14 = vector.shape_cast %12 : vector<3x1x1xf32> to vector<1x3x1x1xf32>
    %c0_10 = arith.constant 0 : index
    %c0_11 = arith.constant 0 : index
    %c0_12 = arith.constant 0 : index
    %c0_13 = arith.constant 0 : index
    %15 = vector.load %arg2[%c0_10, %c0_11, %c0_12, %c0_13] : memref<3x3x32x32xf32, #tpu.memory_space<vmem>>, vector<3x3x32x32xf32>
    %16 = vector.broadcast %14 : vector<1x3x1x1xf32> to vector<3x3x32x32xf32>
    %17 = arith.mulf %16, %15 : vector<3x3x32x32xf32>
    %18 = vector.broadcast %13 : vector<1x3x32x32xf32> to vector<3x3x32x32xf32>
    %19 = arith.addf %18, %17 : vector<3x3x32x32xf32>
    %c0_14 = arith.constant 0 : index
    %c0_15 = arith.constant 0 : index
    %c0_16 = arith.constant 0 : index
    %c0_17 = arith.constant 0 : index
    %20 = vector.load %arg3[%c0_14, %c0_15, %c0_16, %c0_17] : memref<3x3x32x32xf32, #tpu.memory_space<vmem>>, vector<3x3x32x32xf32>
    tpu.vector_store %arg3[%c0_14, %c0_15, %c0_16, %c0_17], %19 {strides = array<i32>} : memref<3x3x32x32xf32, #tpu.memory_space<vmem>>, vector<3x3x32x32xf32>,
    return
  }
}

module attributes {stable_mosaic.version = 11 : i64} {
  func.func @_recon_combine_kernel(%arg0: memref<32x384xf32, #tpu.memory_space<vmem>>, %arg1: memref<384x32xf32, #tpu.memory_space<vmem>>, %arg2: memref<1x384xf32, #tpu.memory_space<vmem>>, %arg3: memref<1x384xf32, #tpu.memory_space<vmem>>, %arg4: memref<32x32xf32, #tpu.memory_space<vmem>>) attributes {dimension_semantics = [], scalar_prefetch = 0 : i64, scratch_operands = 0 : i64, tpu.core_type = #tpu.core_type<tc>} {
    %c0 = arith.constant 0 : index
    %c0_0 = arith.constant 0 : index
    %0 = vector.load %arg3[%c0, %c0_0] : memref<1x384xf32, #tpu.memory_space<vmem>>, vector<1x384xf32>
    %c0_1 = arith.constant 0 : index
    %c0_2 = arith.constant 0 : index
    %1 = vector.load %arg2[%c0_1, %c0_2] : memref<1x384xf32, #tpu.memory_space<vmem>>, vector<1x384xf32>
    %2 = arith.negf %1 : vector<1x384xf32>
    %3 = math.exp %2 : vector<1x384xf32>
    %cst = arith.constant 1.000000e+00 : f32
    %4 = vector.broadcast %cst : f32 to vector<1x384xf32>
    %5 = arith.addf %4, %3 : vector<1x384xf32>
    %6 = arith.divf %4, %5 : vector<1x384xf32>
    %7 = arith.mulf %0, %6 : vector<1x384xf32>
    %c0_3 = arith.constant 0 : index
    %c0_4 = arith.constant 0 : index
    %8 = vector.load %arg0[%c0_3, %c0_4] : memref<32x384xf32, #tpu.memory_space<vmem>>, vector<32x384xf32>
    %9 = vector.broadcast %7 : vector<1x384xf32> to vector<32x384xf32>
    %10 = arith.mulf %8, %9 : vector<32x384xf32>
    %c0_5 = arith.constant 0 : index
    %c0_6 = arith.constant 0 : index
    %11 = vector.load %arg1[%c0_5, %c0_6] : memref<384x32xf32, #tpu.memory_space<vmem>>, vector<384x32xf32>
    %cst_7 = arith.constant dense<0.000000e+00> : vector<32x32xf32>
    %12 = tpu.matmul %10, %11, %cst_7 {dimension_numbers = #tpu.dot_dimension_numbers<[1], [0], [0], [1], [0, 0, 1, 1], [], []>} : vector<32x384xf32>, vector<384x32xf32>, vector<32x32xf32> -> vector<32x32xf32>
    %c0_8 = arith.constant 0 : index
    %c0_9 = arith.constant 0 : index
    %13 = vector.load %arg4[%c0_8, %c0_9] : memref<32x32xf32, #tpu.memory_space<vmem>>, vector<32x32xf32>
    tpu.vector_store %arg4[%c0_8, %c0_9], %12 {strides = array<i32>} : memref<32x32xf32, #tpu.memory_space<vmem>>, vector<32x32xf32>,
    return
  }
}

</mosaic_0001>

<llo_original>
// kernel: custom-call.57
$region0: #{custom-call.57}
  %s0 = inlined_call_operand.vmem [shape: f32[9,64,32], index: 0, kind: input, shape index: {}]
  %s1 = inlined_call_operand.vmem [shape: f32[9,64,32], index: 1, kind: output, shape index: {0}]
  %s2 = inlined_call_operand.vmem [shape: f32[9,32], index: 2, kind: output, shape index: {1}]
  %3 = xla_tuple %s1, %s2
  $region1: #{custom-call.57} parent=0
    #allocation0 [shape = 'u8[65536]{0}', space=vmem, size = 0x10000, scoped, tag = 'operand span for operand 0']
    #allocation1 [shape = 'u8[65536]{0}', space=vmem, size = 0x10000, scoped, tag = 'operand span for operand 1']
    #allocation2 [shape = 'u8[8192]{0}', space=vmem, size = 0x2000, scoped, tag = 'operand span for operand 2']
    loop: start=0, step=1, limit=11
    $region2: #{custom-call.57} parent=1 // loop_pre_header
      _
    $region3: #{custom-call.57} parent=1 // loop_header
      %s5 = sphi 0, %s9
      %p6 = scmp.ge.s32.totalorder %s5, 11
      %s12 = sphi 0, %s31
      %s13 = sphi 0, %s27
      %s14 = sphi 0, %s23
      %s15 = sphi 0, %s12
      %s16 = sphi 0, %s13
      %s17 = sphi 0, %s14
      %s18 = sphi 0, %s15
      %s19 = sphi 0, %s16
      %s20 = sphi 0, %s17
      %s46 = sphi 0, %s48
      %s49 = sphi 0, %s46
      %s50 = sphi 0, %s49
      %s66 = sphi 0, %s50
    $region4: #{custom-call.57} parent=1 // loop_header_branch
      %8 = sbr.rel (%p6) target = $region8
    $region5: #{custom-call.57} parent=1 // loop_body
      %s10 = ssub.s32 %s5, 1
      %s11 = ssub.s32 %s5, 2
      %s21 = sadd.s32 1, %s14
      %p22 = scmp.ge.s32.totalorder %s21, 1
      %s23 = scalar_select %p22, 0, %s21
      %s24 = sadd.s32 1, %s13
      %s25 = scalar_select %p22, %s24, %s13
      %p26 = scmp.ge.s32.totalorder %s25, 1
      %s27 = scalar_select %p26, 0, %s25
      %s28 = sadd.s32 1, %s12
      %s29 = scalar_select %p26, %s28, %s12
      %p30 = scmp.ge.s32.totalorder %s29, 9
      %s31 = scalar_select %p30, 0, %s29
      %p32 = scmp.lt.s32.totalorder %s12, 0
      %s33 = ssub.s32 0, %s12
      %s34 = scalar_select %p32, %s33, %s12
      %s35 = sshrl.u32 %s34, 3
      %s36 = ssub.s32 0, %s35
      %s37 = scalar_select %p32, %s36, %s35
      %p38 = scmp.lt.s32.totalorder %s31, 0
      %s39 = ssub.s32 0, %s31
      %s40 = scalar_select %p38, %s39, %s31
      %s41 = sshrl.u32 %s40, 3
      %s42 = ssub.s32 0, %s41
      %s43 = scalar_select %p38, %s42, %s41
      %s44 = ssub.s32 %s37, %s43
      %p45 = scmp.eq.s32.totalorder %s44, 0
      %s47 = sadd.s32 %s46, 1
      %s48 = scalar_select %p45, %s46, %s47
      %p51 = pneg %p45
      %p52 = scmp.eq.s32.totalorder %s5, 8
      %p53 = por %p51, %p52
      %p54 = scmp.ne.s32.totalorder %s46, %s49
      %p55 = scmp.eq.s32.totalorder %s5, 0
      %p56 = por %p54, %p55
      %p57 = scmp.ne.s32.totalorder %s46, %s49
      %p58 = scmp.eq.s32.totalorder %s10, 8
      %p59 = por %p57, %p58
      %p60 = scmp.ne.s32.totalorder %s49, %s50
      %p61 = scmp.eq.s32.totalorder %s10, 0
      %p62 = por %p60, %p61
      %p63 = scmp.ne.s32.totalorder %s49, %s50
      %p64 = scmp.eq.s32.totalorder %s11, 8
      %p65 = por %p63, %p64
      %p67 = scmp.ne.s32.totalorder %s50, %s66
      %p68 = scmp.eq.s32.totalorder %s11, 0
      %p69 = por %p67, %p68
      %p70 = scmp.le.s32.totalorder 1, %s5
      %p71 = scmp.lt.s32.totalorder %s5, 10
      %p72 = pnand %p70, %p71
      %p73 = pneg %p72
      // Predicated region
      $region9: #{custom-call.57} parent=5 // pred_check
        _
      $region10: #{custom-call.57} parent=5 // pred_check_branch
        %75 = sbr.rel (%p72) target = $region12
      $region11: #{custom-call.57} parent=5 // pred_region
        %s76 = ssub.s32 %s5, 1
      $region12: #{custom-call.57} parent=5 // pred_fallthru
        _
      %p77 = scmp.lt.s32.totalorder %s5, 9
      // Predicated region
      $region13: #{custom-call.57} parent=5 // pred_check
        %p78 = pneg %p77
      $region14: #{custom-call.57} parent=5 // pred_check_branch
        %80 = sbr.rel (%p78) target = $region16
      $region15: #{custom-call.57} parent=5 // pred_region
        %s81 = sand.u32 %s5, 1
        %s82 = sand.u32 %s5, 1
        %s83 = smul.addr %s82, 64
        %s84 = scalar_lea.vmem [#allocation0], %s83
        %s85 = smul.u32 8, %s13
        %s86 = sadd.s32 %s14, %s85
        %s87 = smul.addr %s12, 8
        %s88 = sadd.s32 %s86, %s87
        %s89 = smul.addr %s88, 8
        %s90 = scalar_lea.vmem %s0, %s89
        // Predicated region
        $region17: #{custom-call.57} parent=15 // pred_check
          _
        $region18: #{custom-call.57} parent=15 // pred_check_branch
          %92 = sbr.rel (0) target = $region20
        $region19: #{custom-call.57} parent=15 // pred_region
          // Predicated region
          $region21: #{custom-call.57} parent=19 // pred_check
            _
          $region22: #{custom-call.57} parent=19 // pred_check_branch
            %94 = sbr.rel (0) target = $region24
          $region23: #{custom-call.57} parent=19 // pred_region
            // Predicated region
            $region36: #{custom-call.57} parent=23 // pred_check
              _
            $region37: #{custom-call.57} parent=23 // pred_check_branch
              %123 = sbr.rel (0) target = $region39
            $region38: #{custom-call.57} parent=23 // pred_region
              loop: start=0, step=1, limit=1
              $region40: #{custom-call.57} parent=38 // loop_pre_header
                _
              $region41: #{custom-call.57} parent=38 // loop_header
                %s125 = sphi 0, %s129
                %p126 = scmp.ge.s32.totalorder %s125, 1
                %s130 = sphi %s90, %s90
                %s131 = sphi %s84, %s84
              $region42: #{custom-call.57} parent=38 // loop_header_branch
                %128 = sbr.rel (%p126) target = $region46
              $region43: #{custom-call.57} parent=38 // loop_body
                %v132 = vld [vmem:[%s130] sm:$0xff]
                %133 = vst [vmem:[%s131] sm:$0xff] %v132
                %v134 = vld [vmem:[%s130 + $0x8] sm:$0xff]
                %135 = vst [vmem:[%s131 + $0x8] sm:$0xff] %v134
                %v136 = vld [vmem:[%s130 + $0x10] sm:$0xff]
                %137 = vst [vmem:[%s131 + $0x10] sm:$0xff] %v136
                %v138 = vld [vmem:[%s130 + $0x18] sm:$0xff]
                %139 = vst [vmem:[%s131 + $0x18] sm:$0xff] %v138
                %v140 = vld [vmem:[%s130 + $0x20] sm:$0xff]
                %141 = vst [vmem:[%s131 + $0x20] sm:$0xff] %v140
                %v142 = vld [vmem:[%s130 + $0x28] sm:$0xff]
                %143 = vst [vmem:[%s131 + $0x28] sm:$0xff] %v142
                %v144 = vld [vmem:[%s130 + $0x30] sm:$0xff]
                %145 = vst [vmem:[%s131 + $0x30] sm:$0xff] %v144
                %v146 = vld [vmem:[%s130 + $0x38] sm:$0xff]
                %147 = vst [vmem:[%s131 + $0x38] sm:$0xff] %v146
              $region44: #{custom-call.57} parent=38 // loop_footer
                %s129 = sadd.s32 1, %s125
              $region45: #{custom-call.57} parent=38 // loop_footer_branch
                %124 = sbr.rel target = $region41
              $region46: #{custom-call.57} parent=38 // loop_exit
                _
            $region39: #{custom-call.57} parent=23 // pred_fallthru
              _
            // Predicated region
            $region47: #{custom-call.57} parent=23 // pred_check
              _
            $region48: #{custom-call.57} parent=23 // pred_check_branch
              %149 = sbr.rel target = $region50
            $region49: #{custom-call.57} parent=23 // pred_region
              _
            $region50: #{custom-call.57} parent=23 // pred_fallthru
              _
          $region24: #{custom-call.57} parent=19 // pred_fallthru
            _
          // Predicated region
          $region25: #{custom-call.57} parent=19 // pred_check
            _
          $region26: #{custom-call.57} parent=19 // pred_check_branch
            %96 = sbr.rel target = $region28
          $region27: #{custom-call.57} parent=19 // pred_region
            loop: start=0, step=1, limit=1
            $region29: #{custom-call.57} parent=27 // loop_pre_header
              _
            $region30: #{custom-call.57} parent=27 // loop_header
              %s99 = sphi 0, %s103
              %p100 = scmp.ge.s32.totalorder %s99, 1
              %s104 = sphi %s90, %s90
              %s105 = sphi %s84, %s84
            $region31: #{custom-call.57} parent=27 // loop_header_branch
              %102 = sbr.rel (%p100) target = $region35
            $region32: #{custom-call.57} parent=27 // loop_body
              %v106 = vld [vmem:[%s104] sm:$0xff]
              %107 = vst [vmem:[%s105] sm:$0xff] %v106
              %v108 = vld [vmem:[%s104 + $0x8] sm:$0xff]
              %109 = vst [vmem:[%s105 + $0x8] sm:$0xff] %v108
              %v110 = vld [vmem:[%s104 + $0x10] sm:$0xff]
              %111 = vst [vmem:[%s105 + $0x10] sm:$0xff] %v110
              %v112 = vld [vmem:[%s104 + $0x18] sm:$0xff]
              %113 = vst [vmem:[%s105 + $0x18] sm:$0xff] %v112
              %v114 = vld [vmem:[%s104 + $0x20] sm:$0xff]
              %115 = vst [vmem:[%s105 + $0x20] sm:$0xff] %v114
              %v116 = vld [vmem:[%s104 + $0x28] sm:$0xff]
              %117 = vst [vmem:[%s105 + $0x28] sm:$0xff] %v116
              %v118 = vld [vmem:[%s104 + $0x30] sm:$0xff]
              %119 = vst [vmem:[%s105 + $0x30] sm:$0xff] %v118
              %v120 = vld [vmem:[%s104 + $0x38] sm:$0xff]
              %121 = vst [vmem:[%s105 + $0x38] sm:$0xff] %v120
            $region33: #{custom-call.57} parent=27 // loop_footer
              %s103 = sadd.s32 1, %s99
            $region34: #{custom-call.57} parent=27 // loop_footer_branch
              %98 = sbr.rel target = $region30
            $region35: #{custom-call.57} parent=27 // loop_exit
              _
          $region28: #{custom-call.57} parent=19 // pred_fallthru
            _
        $region20: #{custom-call.57} parent=15 // pred_fallthru
          _
        %150 = vnop
      $region16: #{custom-call.57} parent=5 // pred_fallthru
        _
      %p151 = scmp.le.s32.totalorder 1, %s5
      %p152 = scmp.lt.s32.totalorder %s5, 10
      %p153 = pnand %p151, %p152
      %p154 = pneg %p153
      // Predicated region
      $region51: #{custom-call.57} parent=5 // pred_check
        _
      $region52: #{custom-call.57} parent=5 // pred_check_branch
        %156 = sbr.rel (%p153) target = $region54
      $region53: #{custom-call.57} parent=5 // pred_region
        #allocation3 [shape = 'f32[64,128]{1,0}', space=vmem, size = 0x8000, scoped, tag = 'scratch for Householder reflectors']
        %s157 = ssub.s32 %s5, 1
        %s158 = sand.u32 %s10, 1
        %s159 = sand.u32 %s10, 1
        %s160 = smul.addr %s159, 64
        %s161 = scalar_lea.vmem [#allocation0], %s160
        %s162 = sand.u32 %s10, 1
        %s163 = sand.u32 %s10, 1
        %s164 = smul.addr %s163, 64
        %s165 = scalar_lea.vmem [#allocation0], %s164
        %s166 = sand.u32 %s10, 1
        %s167 = sand.u32 %s10, 1
        %s168 = smul.addr %s167, 64
        %s169 = scalar_lea.vmem [#allocation1], %s168
        %p170 = pneg %p62
        %p171 = pneg %p59
        %s172 = sand.u32 %s49, 1
        %s173 = sand.u32 %s49, 1
        %s174 = smul.addr %s173, 8
        %s175 = scalar_lea.vmem [#allocation2], %s174
        %s176 = smul.u32 8, %s16
        %s177 = smul.u32 8, %s16
        %p178 = scmp.lt.s32.totalorder %s15, 0
        %s179 = ssub.s32 0, %s15
        %s180 = scalar_select %p178, %s179, %s15
        %s181 = sshrl.u32 %s180, 3
        %s182 = ssub.s32 0, %s181
        %s183 = scalar_select %p178, %s182, %s181
        %s184 = sand.u32 %s15, 7
        %s185 = scalar_lea.vmem %s175, %s184 [#allocation2]
        %v186 = vld [vmem:[%s161] sm:$0xff]
        %187 = vst [vmem:[%s169] sm:$0xff] %v186
        %s188 = scalar_lea.vmem %s169, 8 [#allocation1]
        %s189 = scalar_lea.vmem %s161, 8 [#allocation0]
        %v190 = vld [vmem:[%s189] sm:$0xff]
        %191 = vst [vmem:[%s188] sm:$0xff] %v190
        %s192 = scalar_lea.vmem %s169, 16 [#allocation1]
        %s193 = scalar_lea.vmem %s161, 16 [#allocation0]
        %v194 = vld [vmem:[%s193] sm:$0xff]
        %195 = vst [vmem:[%s192] sm:$0xff] %v194
        %s196 = scalar_lea.vmem %s169, 24 [#allocation1]
        %s197 = scalar_lea.vmem %s161, 24 [#allocation0]
        %v198 = vld [vmem:[%s197] sm:$0xff]
        %199 = vst [vmem:[%s196] sm:$0xff] %v198
        %s200 = scalar_lea.vmem %s169, 32 [#allocation1]
        %s201 = scalar_lea.vmem %s161, 32 [#allocation0]
        %v202 = vld [vmem:[%s201] sm:$0xff]
        %203 = vst [vmem:[%s200] sm:$0xff] %v202
        %s204 = scalar_lea.vmem %s169, 40 [#allocation1]
        %s205 = scalar_lea.vmem %s161, 40 [#allocation0]
        %v206 = vld [vmem:[%s205] sm:$0xff]
        %207 = vst [vmem:[%s204] sm:$0xff] %v206
        %s208 = scalar_lea.vmem %s169, 48 [#allocation1]
        %s209 = scalar_lea.vmem %s161, 48 [#allocation0]
        %v210 = vld [vmem:[%s209] sm:$0xff]
        %211 = vst [vmem:[%s208] sm:$0xff] %v210
        %s212 = scalar_lea.vmem %s169, 56 [#allocation1]
        %s213 = scalar_lea.vmem %s161, 56 [#allocation0]
        %v214 = vld [vmem:[%s213] sm:$0xff]
        %215 = vst [vmem:[%s212] sm:$0xff] %v214
        %216 = vst [vmem:[%s185] sm:$0x1] 0.0
        loop: start=0, step=1, limit=32
        $region55: #{custom-call.57} parent=53 // loop_pre_header
          _
        $region56: #{custom-call.57} parent=53 // loop_header
          %s218 = sphi 0, %s222
          %p219 = scmp.ge.s32.totalorder %s218, 32
        $region57: #{custom-call.57} parent=53 // loop_header_branch
          %221 = sbr.rel (%p219) target = $region61
        $region58: #{custom-call.57} parent=53 // loop_body
          %v223 = vld [vmem:[%s169] sm:$0xff]
          %v224 = vlaneseq
          %v225 = vshrl.u32 %v224, 7
          %v227 = vstv %s218
          %vm228 = vcmp.gt.s32.totalorder %v225, %v227
          %v229 = vsel %vm228, %v223, 0.0
          %v230 = vmul.f32 %v229, %v229
          %s231 = scalar_lea.vmem %s169, 8 [#allocation1]
          %v232 = vld [vmem:[%s231] sm:$0xff]
          %v233 = vlaneseq
          %v234 = vshrl.u32 %v233, 7
          %v235 = vadd.s32 %v234, 8
          %v236 = vstv %s218
          %vm237 = vcmp.gt.s32.totalorder %v235, %v236
          %v238 = vsel %vm237, %v232, 0.0
          %v239 = vmul.f32 %v238, %v238
          %v240 = vadd.f32 %v230, %v239
          %s241 = scalar_lea.vmem %s169, 16 [#allocation1]
          %v242 = vld [vmem:[%s241] sm:$0xff]
          %v243 = vlaneseq
          %v244 = vshrl.u32 %v243, 7
          %v245 = vadd.s32 %v244, 16
          %v246 = vstv %s218
          %vm247 = vcmp.gt.s32.totalorder %v245, %v246
          %v248 = vsel %vm247, %v242, 0.0
          %v249 = vmul.f32 %v248, %v248
          %v250 = vadd.f32 %v240, %v249
          %s251 = scalar_lea.vmem %s169, 24 [#allocation1]
          %v252 = vld [vmem:[%s251] sm:$0xff]
          %v253 = vlaneseq
          %v254 = vshrl.u32 %v253, 7
          %v255 = vadd.s32 %v254, 24
          %v256 = vstv %s218
          %vm257 = vcmp.gt.s32.totalorder %v255, %v256
          %v258 = vsel %vm257, %v252, 0.0
          %v259 = vmul.f32 %v258, %v258
          %v260 = vadd.f32 %v250, %v259
          %s261 = scalar_lea.vmem %s169, 32 [#allocation1]
          %v262 = vld [vmem:[%s261] sm:$0xff]
          %v263 = vlaneseq
          %v264 = vshrl.u32 %v263, 7
          %v265 = vadd.s32 %v264, 32
          %v266 = vstv %s218
          %vm267 = vcmp.gt.s32.totalorder %v265, %v266
          %v268 = vsel %vm267, %v262, 0.0
          %v269 = vmul.f32 %v268, %v268
          %v270 = vadd.f32 %v260, %v269
          %s271 = scalar_lea.vmem %s169, 40 [#allocation1]
          %v272 = vld [vmem:[%s271] sm:$0xff]
          %v273 = vlaneseq
          %v274 = vshrl.u32 %v273, 7
          %v275 = vadd.s32 %v274, 40
          %v276 = vstv %s218
          %vm277 = vcmp.gt.s32.totalorder %v275, %v276
          %v278 = vsel %vm277, %v272, 0.0
          %v279 = vmul.f32 %v278, %v278
          %v280 = vadd.f32 %v270, %v279
          %s281 = scalar_lea.vmem %s169, 48 [#allocation1]
          %v282 = vld [vmem:[%s281] sm:$0xff]
          %v283 = vlaneseq
          %v284 = vshrl.u32 %v283, 7
          %v285 = vadd.s32 %v284, 48
          %v286 = vstv %s218
          %vm287 = vcmp.gt.s32.totalorder %v285, %v286
          %v288 = vsel %vm287, %v282, 0.0
          %v289 = vmul.f32 %v288, %v288
          %v290 = vadd.f32 %v280, %v289
          %s291 = scalar_lea.vmem %s169, 56 [#allocation1]
          %v292 = vld [vmem:[%s291] sm:$0xff]
          %v293 = vlaneseq
          %v294 = vshrl.u32 %v293, 7
          %v295 = vadd.s32 %v294, 56
          %v296 = vstv %s218
          %vm297 = vcmp.gt.s32.totalorder %v295, %v296
          %vm298 = vcmp.lt.s32.totalorder %v295, 64
          %vm299 = vmand %vm297, %vm298
          %v300 = vsel %vm299, %v292, 0.0
          %v301 = vmul.f32 %v300, %v300
          %v302 = vadd.f32 %v290, %v301
          %v303 = vrot.slane %v302, 4
          %v304 = vadd.f32 %v302, %v303
          %v305 = vrot.slane %v304, 2
          %v306 = vadd.f32 %v304, %v305
          %v307 = vrot.slane %v306, 1
          %v308 = vadd.f32 %v306, %v307
          %v309 = vrsqrt.pop %v308
          %v310 = vmul.f32 %v308, %v309
          %vm311 = vcmp.eq.f32.partialorder %v308, inf
          %v312 = vsel %vm311, %v308, %v310
          %vm313 = vcmp.eq.f32.partialorder %v308, 0.0
          %v314 = vand.u32 %v308, 2147483648
          %v315 = vsel %vm313, %v314, %v312
          %vm316 = vcmp.eq.f32.partialorder %v308, 0.0
          %s317 = sshrl.u32 %s218, 3
          %s318 = sand.u32 %s218, 7
          %s319 = smul.addr %s317, 8
          %s320 = sadd.s32 %s318, %s319
          %s321 = scalar_lea.vmem %s169, %s320 [#allocation1]
          %v322 = vld [vmem:[%s321] ss:$0 sm:$0xff]
          %v323 = vand.u32 2147483647, %v322
          %v324 = vmax.f32 %v323, 0.0
          %v325 = vand.u32 2147483647, %v315
          %v326 = vmax.f32 %v324, %v325
          %v327 = vrcp.pop %v326
          %v328 = vmul.f32 %v323, %v327
          %v329 = vmul.f32 %v328, %v328
          %v330 = vrcp.pop %v326
          %v331 = vmul.f32 0.0, %v330
          %v332 = vmul.f32 %v331, %v331
          %v333 = vadd.f32 %v329, %v332
          %v334 = vrcp.pop %v326
          %v335 = vmul.f32 %v325, %v334
          %v336 = vmul.f32 %v335, %v335
          %v337 = vadd.f32 %v333, %v336
          %vm338 = vcmp.eq.f32.partialorder %v326, 0.0
          %v339 = vrsqrt.pop %v337
          %v340 = vmul.f32 %v337, %v339
          %vm341 = vcmp.eq.f32.partialorder %v337, inf
          %v342 = vsel %vm341, %v337, %v340
          %vm343 = vcmp.eq.f32.partialorder %v337, 0.0
          %v344 = vand.u32 %v337, 2147483648
          %v345 = vsel %vm343, %v344, %v342
          %v346 = vmul.f32 %v326, %v345
          %v347 = vsel %vm338, 0.0, %v346
          %vm348 = vcmp.lt.f32.partialorder %v322, 0.0
          %v349 = vxor.u32 %v347, 2147483648
          %v350 = vsel %vm348, %v347, %v349
          %v351 = vsub.f32 %v350, %v322
          %v352 = vrcp.pop %v350
          %v353 = vmul.f32 %v351, %v352
          %v354 = vsel %vm316, %v322, %v350
          %v355 = vsel %vm316, 0.0, %v353
          %v356 = vsub.f32 %v322, %v354
          %s357 = smov %s169
          %v358 = vlaneseq
          %v359 = vshrl.u32 %v358, 7
          %v360 = vmov %v359
          %v361 = vld [vmem:[%s357] sm:$0xff]
          %v363 = vstv %s218
          %vm364 = vcmp.gt.s32.totalorder %v360, %v363
          %v365 = vsel %vm364, %v361, 0.0
          %v366 = vrcp.pop %v356
          %v367 = vmul.f32 %v365, %v366
          %v368 = vsel %vm316, 0.0, %v367
          %v369 = vstv %s218
          %v370 = vlaneseq
          %v371 = vand.u32 %v370, 127
          %vm372 = vcmp.eq.s32.totalorder %v371, %v369
          %v373 = vsel %vm372, %v368, 0.0
          %374 = vadd.xlane.f32.xlu0 %v373
          %v375 = vpop.xlane.xlu0 %374
          %376 = vst [vmem:[#allocation3] sm:$0xff] %v375
          %s377 = scalar_lea.vmem %s357, 8
          %v378 = vld [vmem:[%s377] sm:$0xff]
          %v379 = vadd.s32 %v360, 8
          %v380 = vstv %s218
          %vm381 = vcmp.gt.s32.totalorder %v379, %v380
          %v382 = vsel %vm381, %v378, 0.0
          %v383 = vrcp.pop %v356
          %v384 = vmul.f32 %v382, %v383
          %v385 = vsel %vm316, 0.0, %v384
          %v386 = vstv %s218
          %v387 = vlaneseq
          %v388 = vand.u32 %v387, 127
          %vm389 = vcmp.eq.s32.totalorder %v388, %v386
          %v390 = vsel %vm389, %v385, 0.0
          %391 = vadd.xlane.f32.xlu0 %v390
          %v392 = vpop.xlane.xlu0 %391
          %s393 = scalar_lea.vmem [#allocation3], 8
          %394 = vst [vmem:[%s393] sm:$0xff] %v392
          %s395 = scalar_lea.vmem %s357, 16
          %v396 = vld [vmem:[%s395] sm:$0xff]
          %v397 = vadd.s32 %v360, 16
          %v398 = vstv %s218
          %vm399 = vcmp.gt.s32.totalorder %v397, %v398
          %v400 = vsel %vm399, %v396, 0.0
          %v401 = vrcp.pop %v356
          %v402 = vmul.f32 %v400, %v401
          %v403 = vsel %vm316, 0.0, %v402
          %v404 = vstv %s218
          %v405 = vlaneseq
          %v406 = vand.u32 %v405, 127
          %vm407 = vcmp.eq.s32.totalorder %v406, %v404
          %v408 = vsel %vm407, %v403, 0.0
          %409 = vadd.xlane.f32.xlu0 %v408
          %v410 = vpop.xlane.xlu0 %409
          %s411 = scalar_lea.vmem [#allocation3], 16
          %412 = vst [vmem:[%s411] sm:$0xff] %v410
          %s413 = scalar_lea.vmem %s357, 24
          %v414 = vld [vmem:[%s413] sm:$0xff]
          %v415 = vadd.s32 %v360, 24
          %v416 = vstv %s218
          %vm417 = vcmp.gt.s32.totalorder %v415, %v416
          %v418 = vsel %vm417, %v414, 0.0
          %v419 = vrcp.pop %v356
          %v420 = vmul.f32 %v418, %v419
          %v421 = vsel %vm316, 0.0, %v420
          %v422 = vstv %s218
          %v423 = vlaneseq
          %v424 = vand.u32 %v423, 127
          %vm425 = vcmp.eq.s32.totalorder %v424, %v422
          %v426 = vsel %vm425, %v421, 0.0
          %427 = vadd.xlane.f32.xlu0 %v426
          %v428 = vpop.xlane.xlu0 %427
          %s429 = scalar_lea.vmem [#allocation3], 24
          %430 = vst [vmem:[%s429] sm:$0xff] %v428
          %s431 = scalar_lea.vmem %s357, 32
          %v432 = vld [vmem:[%s431] sm:$0xff]
          %v433 = vadd.s32 %v360, 32
          %v434 = vstv %s218
          %vm435 = vcmp.gt.s32.totalorder %v433, %v434
          %v436 = vsel %vm435, %v432, 0.0
          %v437 = vrcp.pop %v356
          %v438 = vmul.f32 %v436, %v437
          %v439 = vsel %vm316, 0.0, %v438
          %v440 = vstv %s218
          %v441 = vlaneseq
          %v442 = vand.u32 %v441, 127
          %vm443 = vcmp.eq.s32.totalorder %v442, %v440
          %v444 = vsel %vm443, %v439, 0.0
          %445 = vadd.xlane.f32.xlu0 %v444
          %v446 = vpop.xlane.xlu0 %445
          %s447 = scalar_lea.vmem [#allocation3], 32
          %448 = vst [vmem:[%s447] sm:$0xff] %v446
          %s449 = scalar_lea.vmem %s357, 40
          %v450 = vld [vmem:[%s449] sm:$0xff]
          %v451 = vadd.s32 %v360, 40
          %v452 = vstv %s218
          %vm453 = vcmp.gt.s32.totalorder %v451, %v452
          %v454 = vsel %vm453, %v450, 0.0
          %v455 = vrcp.pop %v356
          %v456 = vmul.f32 %v454, %v455
          %v457 = vsel %vm316, 0.0, %v456
          %v458 = vstv %s218
          %v459 = vlaneseq
          %v460 = vand.u32 %v459, 127
          %vm461 = vcmp.eq.s32.totalorder %v460, %v458
          %v462 = vsel %vm461, %v457, 0.0
          %463 = vadd.xlane.f32.xlu0 %v462
          %v464 = vpop.xlane.xlu0 %463
          %s465 = scalar_lea.vmem [#allocation3], 40
          %466 = vst [vmem:[%s465] sm:$0xff] %v464
          %s467 = scalar_lea.vmem %s357, 48
          %v468 = vld [vmem:[%s467] sm:$0xff]
          %v469 = vadd.s32 %v360, 48
          %v470 = vstv %s218
          %vm471 = vcmp.gt.s32.totalorder %v469, %v470
          %v472 = vsel %vm471, %v468, 0.0
          %v473 = vrcp.pop %v356
          %v474 = vmul.f32 %v472, %v473
          %v475 = vsel %vm316, 0.0, %v474
          %v476 = vstv %s218
          %v477 = vlaneseq
          %v478 = vand.u32 %v477, 127
          %vm479 = vcmp.eq.s32.totalorder %v478, %v476
          %v480 = vsel %vm479, %v475, 0.0
          %481 = vadd.xlane.f32.xlu0 %v480
          %v482 = vpop.xlane.xlu0 %481
          %s483 = scalar_lea.vmem [#allocation3], 48
          %484 = vst [vmem:[%s483] sm:$0xff] %v482
          %s485 = scalar_lea.vmem %s357, 56
          %v486 = vld [vmem:[%s485] sm:$0xff]
          %v487 = vadd.s32 %v360, 56
          %v488 = vstv %s218
          %vm489 = vcmp.gt.s32.totalorder %v487, %v488
          %vm490 = vcmp.lt.s32.totalorder %v487, 64
          %vm491 = vmand %vm489, %vm490
          %v492 = vsel %vm491, %v486, 0.0
          %v493 = vrcp.pop %v356
          %v494 = vmul.f32 %v492, %v493
          %v495 = vsel %vm316, 0.0, %v494
          %v496 = vstv %s218
          %v497 = vlaneseq
          %v498 = vand.u32 %v497, 127
          %vm499 = vcmp.eq.s32.totalorder %v498, %v496
          %v500 = vsel %vm499, %v495, 0.0
          %501 = vadd.xlane.f32.xlu0 %v500
          %v502 = vpop.xlane.xlu0 %501
          %s503 = scalar_lea.vmem [#allocation3], 56
          %504 = vst [vmem:[%s503] sm:$0xff] %v502
          %s505 = scalar_lea.vmem [#allocation3], %s218
          %506 = vst [vmem:[%s505] sm:$0x1] 1.0
          %v507 = vstv %s218
          %v508 = vlaneseq
          %v509 = vand.u32 %v508, 127
          %vm510 = vcmp.eq.s32.totalorder %v509, %v507
          %v511 = vsel %vm510, %v355, 0.0
          %512 = vadd.xlane.f32.xlu0 %v511
          %v513 = vpop.xlane.xlu0 %512
          %v514 = vstv %s218
          %v515 = vlaneseq
          %v516 = vand.u32 %v515, 127
          %vm517 = vcmp.eq.s32.totalorder %v516, %v514
          %v518 = vld [vmem:[%s185] ss:$0 sm:$0xff]
          %v519 = vsel %vm517, %v513, %v518
          %520 = vst [vmem:[%s185] sm:$0x1] %v519
          %s521 = smov %s169
          %s522 = smov [#allocation3]
          %v523 = vlaneseq
          %v524 = vshrl.u32 %v523, 7
          %v525 = vmov %v524
          %v527 = vld [vmem:[%s522] sm:$0xff]
          %v528 = vld [vmem:[%s521] sm:$0xff]
          %v529 = vmul.f32 %v527, %v528
          %v530 = vadd.s32 %v525, 8
          %s531 = scalar_lea.vmem %s522, 8
          %v532 = vld [vmem:[%s531] sm:$0xff]
          %s533 = scalar_lea.vmem %s521, 8
          %v534 = vld [vmem:[%s533] sm:$0xff]
          %v535 = vmul.f32 %v532, %v534
          %v536 = vadd.f32 %v529, %v535
          %v537 = vadd.s32 %v525, 16
          %s538 = scalar_lea.vmem %s522, 16
          %v539 = vld [vmem:[%s538] sm:$0xff]
          %s540 = scalar_lea.vmem %s521, 16
          %v541 = vld [vmem:[%s540] sm:$0xff]
          %v542 = vmul.f32 %v539, %v541
          %v543 = vadd.f32 %v536, %v542
          %v544 = vadd.s32 %v525, 24
          %s545 = scalar_lea.vmem %s522, 24
          %v546 = vld [vmem:[%s545] sm:$0xff]
          %s547 = scalar_lea.vmem %s521, 24
          %v548 = vld [vmem:[%s547] sm:$0xff]
          %v549 = vmul.f32 %v546, %v548
          %v550 = vadd.f32 %v543, %v549
          %v551 = vadd.s32 %v525, 32
          %s552 = scalar_lea.vmem %s522, 32
          %v553 = vld [vmem:[%s552] sm:$0xff]
          %s554 = scalar_lea.vmem %s521, 32
          %v555 = vld [vmem:[%s554] sm:$0xff]
          %v556 = vmul.f32 %v553, %v555
          %v557 = vadd.f32 %v550, %v556
          %v558 = vadd.s32 %v525, 40
          %s559 = scalar_lea.vmem %s522, 40
          %v560 = vld [vmem:[%s559] sm:$0xff]
          %s561 = scalar_lea.vmem %s521, 40
          %v562 = vld [vmem:[%s561] sm:$0xff]
          %v563 = vmul.f32 %v560, %v562
          %v564 = vadd.f32 %v557, %v563
          %v565 = vadd.s32 %v525, 48
          %s566 = scalar_lea.vmem %s522, 48
          %v567 = vld [vmem:[%s566] sm:$0xff]
          %s568 = scalar_lea.vmem %s521, 48
          %v569 = vld [vmem:[%s568] sm:$0xff]
          %v570 = vmul.f32 %v567, %v569
          %v571 = vadd.f32 %v564, %v570
          %v572 = vadd.s32 %v525, 56
          %s573 = scalar_lea.vmem %s522, 56
          %v574 = vld [vmem:[%s573] sm:$0xff]
          %s575 = scalar_lea.vmem %s521, 56
          %v576 = vld [vmem:[%s575] sm:$0xff]
          %v577 = vmul.f32 %v574, %v576
          %vm578 = vcmp.lt.s32.totalorder %v572, 64
          %v579 = vsel %vm578, %v577, 0.0
          %v580 = vadd.f32 %v571, %v579
          %v581 = vrot.slane %v580, 4
          %v582 = vadd.f32 %v580, %v581
          %v583 = vrot.slane %v582, 2
          %v584 = vadd.f32 %v582, %v583
          %v585 = vrot.slane %v584, 1
          %v586 = vadd.f32 %v584, %v585
          %s587 = smov %s521
          %s588 = smov %s522
          %v589 = vlaneseq
          %v590 = vshrl.u32 %v589, 7
          %v591 = vmov %v590
          %v592 = vmul.f32 %v586, %v513
          %v594 = vlaneseq
          %v595 = vand.u32 %v594, 127
          %v596 = vld [vmem:[%s588] sm:$0xff]
          %v597 = vmul.f32 %v596, %v592
          %v598 = vld [vmem:[%s587] sm:$0xff]
          %v599 = vstv %s218
          %vm600 = vcmp.gt.s32.totalorder %v595, %v599
          %v601 = vsub.f32 %v598, %v597
          %v602 = vsel %vm600, %v601, %v598
          %v603 = vstv %s218
          %v604 = vlaneseq
          %v605 = vand.u32 %v604, 127
          %vm606 = vcmp.eq.s32.totalorder %v605, %v603
          %v607 = vstv %s218
          %vm608 = vcmp.ge.s32.totalorder %v591, %v607
          %vm609 = vmand %vm606, %vm608
          %v610 = vsel %vm609, %v596, %v602
          %611 = vst [vmem:[%s587] sm:$0xff] %v610
          %v612 = vadd.s32 %v591, 8
          %v613 = vlaneseq
          %v614 = vand.u32 %v613, 127
          %s615 = scalar_lea.vmem %s588, 8
          %v616 = vld [vmem:[%s615] sm:$0xff]
          %v617 = vmul.f32 %v616, %v592
          %s618 = scalar_lea.vmem %s587, 8
          %v619 = vld [vmem:[%s618] sm:$0xff]
          %v620 = vstv %s218
          %vm621 = vcmp.gt.s32.totalorder %v614, %v620
          %v622 = vsub.f32 %v619, %v617
          %v623 = vsel %vm621, %v622, %v619
          %v624 = vstv %s218
          %v625 = vlaneseq
          %v626 = vand.u32 %v625, 127
          %vm627 = vcmp.eq.s32.totalorder %v626, %v624
          %v628 = vstv %s218
          %vm629 = vcmp.ge.s32.totalorder %v612, %v628
          %vm630 = vmand %vm627, %vm629
          %v631 = vsel %vm630, %v616, %v623
          %632 = vst [vmem:[%s618] sm:$0xff] %v631
          %v633 = vadd.s32 %v591, 16
          %v634 = vlaneseq
          %v635 = vand.u32 %v634, 127
          %s636 = scalar_lea.vmem %s588, 16
          %v637 = vld [vmem:[%s636] sm:$0xff]
          %v638 = vmul.f32 %v637, %v592
          %s639 = scalar_lea.vmem %s587, 16
          %v640 = vld [vmem:[%s639] sm:$0xff]
          %v641 = vstv %s218
          %vm642 = vcmp.gt.s32.totalorder %v635, %v641
          %v643 = vsub.f32 %v640, %v638
          %v644 = vsel %vm642, %v643, %v640
          %v645 = vstv %s218
          %v646 = vlaneseq
          %v647 = vand.u32 %v646, 127
          %vm648 = vcmp.eq.s32.totalorder %v647, %v645
          %v649 = vstv %s218
          %vm650 = vcmp.ge.s32.totalorder %v633, %v649
          %vm651 = vmand %vm648, %vm650
          %v652 = vsel %vm651, %v637, %v644
          %653 = vst [vmem:[%s639] sm:$0xff] %v652
          %v654 = vadd.s32 %v591, 24
          %v655 = vlaneseq
          %v656 = vand.u32 %v655, 127
          %s657 = scalar_lea.vmem %s588, 24
          %v658 = vld [vmem:[%s657] sm:$0xff]
          %v659 = vmul.f32 %v658, %v592
          %s660 = scalar_lea.vmem %s587, 24
          %v661 = vld [vmem:[%s660] sm:$0xff]
          %v662 = vstv %s218
          %vm663 = vcmp.gt.s32.totalorder %v656, %v662
          %v664 = vsub.f32 %v661, %v659
          %v665 = vsel %vm663, %v664, %v661
          %v666 = vstv %s218
          %v667 = vlaneseq
          %v668 = vand.u32 %v667, 127
          %vm669 = vcmp.eq.s32.totalorder %v668, %v666
          %v670 = vstv %s218
          %vm671 = vcmp.ge.s32.totalorder %v654, %v670
          %vm672 = vmand %vm669, %vm671
          %v673 = vsel %vm672, %v658, %v665
          %674 = vst [vmem:[%s660] sm:$0xff] %v673
          %v675 = vadd.s32 %v591, 32
          %v676 = vlaneseq
          %v677 = vand.u32 %v676, 127
          %s678 = scalar_lea.vmem %s588, 32
          %v679 = vld [vmem:[%s678] sm:$0xff]
          %v680 = vmul.f32 %v679, %v592
          %s681 = scalar_lea.vmem %s587, 32
          %v682 = vld [vmem:[%s681] sm:$0xff]
          %v683 = vstv %s218
          %vm684 = vcmp.gt.s32.totalorder %v677, %v683
          %v685 = vsub.f32 %v682, %v680
          %v686 = vsel %vm684, %v685, %v682
          %v687 = vstv %s218
          %v688 = vlaneseq
          %v689 = vand.u32 %v688, 127
          %vm690 = vcmp.eq.s32.totalorder %v689, %v687
          %v691 = vstv %s218
          %vm692 = vcmp.ge.s32.totalorder %v675, %v691
          %vm693 = vmand %vm690, %vm692
          %v694 = vsel %vm693, %v679, %v686
          %695 = vst [vmem:[%s681] sm:$0xff] %v694
          %v696 = vadd.s32 %v591, 40
          %v697 = vlaneseq
          %v698 = vand.u32 %v697, 127
          %s699 = scalar_lea.vmem %s588, 40
          %v700 = vld [vmem:[%s699] sm:$0xff]
          %v701 = vmul.f32 %v700, %v592
          %s702 = scalar_lea.vmem %s587, 40
          %v703 = vld [vmem:[%s702] sm:$0xff]
          %v704 = vstv %s218
          %vm705 = vcmp.gt.s32.totalorder %v698, %v704
          %v706 = vsub.f32 %v703, %v701
          %v707 = vsel %vm705, %v706, %v703
          %v708 = vstv %s218
          %v709 = vlaneseq
          %v710 = vand.u32 %v709, 127
          %vm711 = vcmp.eq.s32.totalorder %v710, %v708
          %v712 = vstv %s218
          %vm713 = vcmp.ge.s32.totalorder %v696, %v712
          %vm714 = vmand %vm711, %vm713
          %v715 = vsel %vm714, %v700, %v707
          %716 = vst [vmem:[%s702] sm:$0xff] %v715
          %v717 = vadd.s32 %v591, 48
          %v718 = vlaneseq
          %v719 = vand.u32 %v718, 127
          %s720 = scalar_lea.vmem %s588, 48
          %v721 = vld [vmem:[%s720] sm:$0xff]
          %v722 = vmul.f32 %v721, %v592
          %s723 = scalar_lea.vmem %s587, 48
          %v724 = vld [vmem:[%s723] sm:$0xff]
          %v725 = vstv %s218
          %vm726 = vcmp.gt.s32.totalorder %v719, %v725
          %v727 = vsub.f32 %v724, %v722
          %v728 = vsel %vm726, %v727, %v724
          %v729 = vstv %s218
          %v730 = vlaneseq
          %v731 = vand.u32 %v730, 127
          %vm732 = vcmp.eq.s32.totalorder %v731, %v729
          %v733 = vstv %s218
          %vm734 = vcmp.ge.s32.totalorder %v717, %v733
          %vm735 = vmand %vm732, %vm734
          %v736 = vsel %vm735, %v721, %v728
          %737 = vst [vmem:[%s723] sm:$0xff] %v736
          %v738 = vadd.s32 %v591, 56
          %v739 = vlaneseq
          %v740 = vand.u32 %v739, 127
          %s741 = scalar_lea.vmem %s588, 56
          %v742 = vld [vmem:[%s741] sm:$0xff]
          %v743 = vmul.f32 %v742, %v592
          %s744 = scalar_lea.vmem %s587, 56
          %v745 = vld [vmem:[%s744] sm:$0xff]
          %v746 = vstv %s218
          %vm747 = vcmp.gt.s32.totalorder %v740, %v746
          %v748 = vsub.f32 %v745, %v743
          %v749 = vsel %vm747, %v748, %v745
          %v750 = vstv %s218
          %v751 = vlaneseq
          %v752 = vand.u32 %v751, 127
          %vm753 = vcmp.eq.s32.totalorder %v752, %v750
          %v754 = vstv %s218
          %vm755 = vcmp.ge.s32.totalorder %v738, %v754
          %vm756 = vmand %vm753, %vm755
          %v757 = vsel %vm756, %v742, %v749
          %758 = vst [vmem:[%s744] sm:$0xff] %v757
          %s759 = scalar_lea.vmem %s587, %s218
          %v760 = vld [vmem:[%s759] ss:$0 sm:$0xff]
          %v761 = vstv %s218
          %v762 = vlaneseq
          %v763 = vand.u32 %v762, 127
          %vm764 = vcmp.eq.s32.totalorder %v763, %v761
          %v765 = vsel %vm764, %v354, %v760
          %766 = vst [vmem:[%s759] sm:$0x1] %v765
        $region59: #{custom-call.57} parent=53 // loop_footer
          %s222 = sadd.s32 1, %s218
        $region60: #{custom-call.57} parent=53 // loop_footer_branch
          %217 = sbr.rel target = $region56
        $region61: #{custom-call.57} parent=53 // loop_exit
          _
        %s767 = sand.u32 %s10, 1
        %s768 = sand.u32 %s10, 1
        %s769 = smul.addr %s768, 64
        %s770 = scalar_lea.vmem [#allocation1], %s769
        %s771 = sand.u32 %s49, 1
        %s772 = sand.u32 %s49, 1
        %s773 = smul.addr %s772, 8
        %s774 = scalar_lea.vmem [#allocation2], %s773
        %s775 = smul.u32 8, %s16
        %s776 = sadd.s32 %s17, %s775
        %s777 = smul.addr %s15, 8
        %s778 = sadd.s32 %s776, %s777
        %s779 = smul.addr %s778, 8
        %s780 = scalar_lea.vmem %s1, %s779
        // Predicated region
        $region62: #{custom-call.57} parent=53 // pred_check
          _
        $region63: #{custom-call.57} parent=53 // pred_check_branch
          %782 = sbr.rel (0) target = $region65
        $region64: #{custom-call.57} parent=53 // pred_region
          // Predicated region
          $region66: #{custom-call.57} parent=64 // pred_check
            _
          $region67: #{custom-call.57} parent=64 // pred_check_branch
            %784 = sbr.rel (0) target = $region69
          $region68: #{custom-call.57} parent=64 // pred_region
            // Predicated region
            $region81: #{custom-call.57} parent=68 // pred_check
              _
            $region82: #{custom-call.57} parent=68 // pred_check_branch
              %813 = sbr.rel (0) target = $region84
            $region83: #{custom-call.57} parent=68 // pred_region
              loop: start=0, step=1, limit=1
              $region85: #{custom-call.57} parent=83 // loop_pre_header
                _
              $region86: #{custom-call.57} parent=83 // loop_header
                %s815 = sphi 0, %s819
                %p816 = scmp.ge.s32.totalorder %s815, 1
                %s820 = sphi %s770, %s770
                %s821 = sphi %s780, %s780
              $region87: #{custom-call.57} parent=83 // loop_header_branch
                %818 = sbr.rel (%p816) target = $region91
              $region88: #{custom-call.57} parent=83 // loop_body
                %v822 = vld [vmem:[%s820] sm:$0xff]
                %823 = vst [vmem:[%s821] sm:$0xff] %v822
                %v824 = vld [vmem:[%s820 + $0x8] sm:$0xff]
                %825 = vst [vmem:[%s821 + $0x8] sm:$0xff] %v824
                %v826 = vld [vmem:[%s820 + $0x10] sm:$0xff]
                %827 = vst [vmem:[%s821 + $0x10] sm:$0xff] %v826
                %v828 = vld [vmem:[%s820 + $0x18] sm:$0xff]
                %829 = vst [vmem:[%s821 + $0x18] sm:$0xff] %v828
                %v830 = vld [vmem:[%s820 + $0x20] sm:$0xff]
                %831 = vst [vmem:[%s821 + $0x20] sm:$0xff] %v830
                %v832 = vld [vmem:[%s820 + $0x28] sm:$0xff]
                %833 = vst [vmem:[%s821 + $0x28] sm:$0xff] %v832
                %v834 = vld [vmem:[%s820 + $0x30] sm:$0xff]
                %835 = vst [vmem:[%s821 + $0x30] sm:$0xff] %v834
                %v836 = vld [vmem:[%s820 + $0x38] sm:$0xff]
                %837 = vst [vmem:[%s821 + $0x38] sm:$0xff] %v836
              $region89: #{custom-call.57} parent=83 // loop_footer
                %s819 = sadd.s32 1, %s815
              $region90: #{custom-call.57} parent=83 // loop_footer_branch
                %814 = sbr.rel target = $region86
              $region91: #{custom-call.57} parent=83 // loop_exit
                _
            $region84: #{custom-call.57} parent=68 // pred_fallthru
              _
            // Predicated region
            $region92: #{custom-call.57} parent=68 // pred_check
              _
            $region93: #{custom-call.57} parent=68 // pred_check_branch
              %839 = sbr.rel target = $region95
            $region94: #{custom-call.57} parent=68 // pred_region
              _
            $region95: #{custom-call.57} parent=68 // pred_fallthru
              _
          $region69: #{custom-call.57} parent=64 // pred_fallthru
            _
          // Predicated region
          $region70: #{custom-call.57} parent=64 // pred_check
            _
          $region71: #{custom-call.57} parent=64 // pred_check_branch
            %786 = sbr.rel target = $region73
          $region72: #{custom-call.57} parent=64 // pred_region
            loop: start=0, step=1, limit=1
            $region74: #{custom-call.57} parent=72 // loop_pre_header
              _
            $region75: #{custom-call.57} parent=72 // loop_header
              %s789 = sphi 0, %s793
              %p790 = scmp.ge.s32.totalorder %s789, 1
              %s794 = sphi %s770, %s770
              %s795 = sphi %s780, %s780
            $region76: #{custom-call.57} parent=72 // loop_header_branch
              %792 = sbr.rel (%p790) target = $region80
            $region77: #{custom-call.57} parent=72 // loop_body
              %v796 = vld [vmem:[%s794] sm:$0xff]
              %797 = vst [vmem:[%s795] sm:$0xff] %v796
              %v798 = vld [vmem:[%s794 + $0x8] sm:$0xff]
              %799 = vst [vmem:[%s795 + $0x8] sm:$0xff] %v798
              %v800 = vld [vmem:[%s794 + $0x10] sm:$0xff]
              %801 = vst [vmem:[%s795 + $0x10] sm:$0xff] %v800
              %v802 = vld [vmem:[%s794 + $0x18] sm:$0xff]
              %803 = vst [vmem:[%s795 + $0x18] sm:$0xff] %v802
              %v804 = vld [vmem:[%s794 + $0x20] sm:$0xff]
              %805 = vst [vmem:[%s795 + $0x20] sm:$0xff] %v804
              %v806 = vld [vmem:[%s794 + $0x28] sm:$0xff]
              %807 = vst [vmem:[%s795 + $0x28] sm:$0xff] %v806
              %v808 = vld [vmem:[%s794 + $0x30] sm:$0xff]
              %809 = vst [vmem:[%s795 + $0x30] sm:$0xff] %v808
              %v810 = vld [vmem:[%s794 + $0x38] sm:$0xff]
              %811 = vst [vmem:[%s795 + $0x38] sm:$0xff] %v810
            $region78: #{custom-call.57} parent=72 // loop_footer
              %s793 = sadd.s32 1, %s789
            $region79: #{custom-call.57} parent=72 // loop_footer_branch
              %788 = sbr.rel target = $region75
            $region80: #{custom-call.57} parent=72 // loop_exit
              _
          $region73: #{custom-call.57} parent=64 // pred_fallthru
            _
        $region65: #{custom-call.57} parent=53 // pred_fallthru
          _
        %840 = vnop
        // Predicated region
        $region96: #{custom-call.57} parent=53 // pred_check
          %p841 = pneg %p59
        $region97: #{custom-call.57} parent=53 // pred_check_branch
          %843 = sbr.rel (%p841) target = $region99
        $region98: #{custom-call.57} parent=53 // pred_region
          %p844 = scmp.lt.s32.totalorder %s15, 0
          %s845 = ssub.s32 0, %s15
          %s846 = scalar_select %p844, %s845, %s15
          %s847 = sshrl.u32 %s846, 3
          %s848 = ssub.s32 0, %s847
          %s849 = scalar_select %p844, %s848, %s847
          %s850 = smul.addr %s849, 8
          %s851 = scalar_lea.vmem %s2, %s850
          // Predicated region
          $region100: #{custom-call.57} parent=98 // pred_check
            _
          $region101: #{custom-call.57} parent=98 // pred_check_branch
            %853 = sbr.rel (0) target = $region103
          $region102: #{custom-call.57} parent=98 // pred_region
            // Predicated region
            $region104: #{custom-call.57} parent=102 // pred_check
              _
            $region105: #{custom-call.57} parent=102 // pred_check_branch
              %855 = sbr.rel (0) target = $region107
            $region106: #{custom-call.57} parent=102 // pred_region
              // Predicated region
              $region119: #{custom-call.57} parent=106 // pred_check
                _
              $region120: #{custom-call.57} parent=106 // pred_check_branch
                %870 = sbr.rel (0) target = $region122
              $region121: #{custom-call.57} parent=106 // pred_region
                loop: start=0, step=1, limit=1
                $region123: #{custom-call.57} parent=121 // loop_pre_header
                  _
                $region124: #{custom-call.57} parent=121 // loop_header
                  %s872 = sphi 0, %s876
                  %p873 = scmp.ge.s32.totalorder %s872, 1
                  %s877 = sphi %s774, %s774
                  %s878 = sphi %s851, %s851
                $region125: #{custom-call.57} parent=121 // loop_header_branch
                  %875 = sbr.rel (%p873) target = $region129
                $region126: #{custom-call.57} parent=121 // loop_body
                  %v879 = vld [vmem:[%s877] sm:$0xff]
                  %880 = vst [vmem:[%s878] sm:$0xff] %v879
                $region127: #{custom-call.57} parent=121 // loop_footer
                  %s876 = sadd.s32 1, %s872
                $region128: #{custom-call.57} parent=121 // loop_footer_branch
                  %871 = sbr.rel target = $region124
                $region129: #{custom-call.57} parent=121 // loop_exit
                  _
              $region122: #{custom-call.57} parent=106 // pred_fallthru
                _
              // Predicated region
              $region130: #{custom-call.57} parent=106 // pred_check
                _
              $region131: #{custom-call.57} parent=106 // pred_check_branch
                %882 = sbr.rel target = $region133
              $region132: #{custom-call.57} parent=106 // pred_region
                _
              $region133: #{custom-call.57} parent=106 // pred_fallthru
                _
            $region107: #{custom-call.57} parent=102 // pred_fallthru
              _
            // Predicated region
            $region108: #{custom-call.57} parent=102 // pred_check
              _
            $region109: #{custom-call.57} parent=102 // pred_check_branch
              %857 = sbr.rel target = $region111
            $region110: #{custom-call.57} parent=102 // pred_region
              loop: start=0, step=1, limit=1
              $region112: #{custom-call.57} parent=110 // loop_pre_header
                _
              $region113: #{custom-call.57} parent=110 // loop_header
                %s860 = sphi 0, %s864
                %p861 = scmp.ge.s32.totalorder %s860, 1
                %s865 = sphi %s774, %s774
                %s866 = sphi %s851, %s851
              $region114: #{custom-call.57} parent=110 // loop_header_branch
                %863 = sbr.rel (%p861) target = $region118
              $region115: #{custom-call.57} parent=110 // loop_body
                %v867 = vld [vmem:[%s865] sm:$0xff]
                %868 = vst [vmem:[%s866] sm:$0xff] %v867
              $region116: #{custom-call.57} parent=110 // loop_footer
                %s864 = sadd.s32 1, %s860
              $region117: #{custom-call.57} parent=110 // loop_footer_branch
                %859 = sbr.rel target = $region113
              $region118: #{custom-call.57} parent=110 // loop_exit
                _
            $region111: #{custom-call.57} parent=102 // pred_fallthru
              _
          $region103: #{custom-call.57} parent=98 // pred_fallthru
            _
          %883 = vnop
        $region99: #{custom-call.57} parent=53 // pred_fallthru
          _
      $region54: #{custom-call.57} parent=5 // pred_fallthru
        _
      %p884 = scmp.le.s32.totalorder 2, %s5
      // Predicated region
      $region134: #{custom-call.57} parent=5 // pred_check
        %p885 = pneg %p884
      $region135: #{custom-call.57} parent=5 // pred_check_branch
        %887 = sbr.rel (%p885) target = $region137
      $region136: #{custom-call.57} parent=5 // pred_region
        %s888 = ssub.s32 %s5, 2
        %s889 = sand.u32 %s11, 1
        %s890 = sand.u32 %s11, 1
        %s891 = smul.addr %s890, 64
        %s892 = scalar_lea.vmem [#allocation1], %s891
        // Predicated region
        $region138: #{custom-call.57} parent=136 // pred_check
          %p893 = pneg %p65
        $region139: #{custom-call.57} parent=136 // pred_check_branch
          %895 = sbr.rel (%p893) target = $region141
        $region140: #{custom-call.57} parent=136 // pred_region
          %s896 = sand.u32 %s50, 1
          %s897 = sand.u32 %s50, 1
          %s898 = smul.addr %s897, 8
          %s899 = scalar_lea.vmem [#allocation2], %s898
        $region141: #{custom-call.57} parent=136 // pred_fallthru
          _
      $region137: #{custom-call.57} parent=5 // pred_fallthru
        _
    $region6: #{custom-call.57} parent=1 // loop_footer
      %s9 = sadd.s32 1, %s5
    $region7: #{custom-call.57} parent=1 // loop_footer_branch
      %4 = sbr.rel target = $region3
    $region8: #{custom-call.57} parent=1 // loop_exit
      _

// kernel: custom-call.58
$region0: #{custom-call.58}
  %s0 = inlined_call_operand.vmem [shape: f32[9,32,32], index: 0, kind: input, shape index: {}]
  %s1 = inlined_call_operand.vmem [shape: f32[9,32,32], index: 1, kind: output, shape index: {}]
  $region1: #{custom-call.58} parent=0
    #allocation0 [shape = 'u8[32768]{0}', space=vmem, size = 0x8000, scoped, tag = 'operand span for operand 0']
    #allocation1 [shape = 'u8[32768]{0}', space=vmem, size = 0x8000, scoped, tag = 'operand span for operand 1']
    loop: start=0, step=1, limit=11
    $region2: #{custom-call.58} parent=1 // loop_pre_header
      _
    $region3: #{custom-call.58} parent=1 // loop_header
      %s3 = sphi 0, %s7
      %p4 = scmp.ge.s32.totalorder %s3, 11
    $region4: #{custom-call.58} parent=1 // loop_header_branch
      %6 = sbr.rel (%p4) target = $region8
    $region5: #{custom-call.58} parent=1 // loop_body
      %s8 = ssub.s32 %s3, 1
      %s9 = ssub.s32 %s3, 2
      %s10 = sadd.s32 %s3, 1
      %p11 = scmp.le.s32.totalorder 1, %s3
      %p12 = scmp.lt.s32.totalorder %s3, 10
      %p13 = pnand %p11, %p12
      %p14 = pneg %p13
      // Predicated region
      $region9: #{custom-call.58} parent=5 // pred_check
        _
      $region10: #{custom-call.58} parent=5 // pred_check_branch
        %16 = sbr.rel (%p13) target = $region12
      $region11: #{custom-call.58} parent=5 // pred_region
        %s17 = ssub.s32 %s3, 1
      $region12: #{custom-call.58} parent=5 // pred_fallthru
        _
      %p18 = scmp.lt.s32.totalorder %s3, 9
      // Predicated region
      $region13: #{custom-call.58} parent=5 // pred_check
        %p19 = pneg %p18
      $region14: #{custom-call.58} parent=5 // pred_check_branch
        %21 = sbr.rel (%p19) target = $region16
      $region15: #{custom-call.58} parent=5 // pred_region
        %s22 = sand.u32 %s3, 1
        %s23 = sand.u32 %s3, 1
        %s24 = smul.addr %s23, 32
        %s25 = scalar_lea.vmem [#allocation0], %s24
        %s26 = smul.addr %s3, 32
        %s27 = scalar_lea.vmem %s0, %s26
        // Predicated region
        $region17: #{custom-call.58} parent=15 // pred_check
          _
        $region18: #{custom-call.58} parent=15 // pred_check_branch
          %29 = sbr.rel (0) target = $region20
        $region19: #{custom-call.58} parent=15 // pred_region
          // Predicated region
          $region21: #{custom-call.58} parent=19 // pred_check
            _
          $region22: #{custom-call.58} parent=19 // pred_check_branch
            %31 = sbr.rel (0) target = $region24
          $region23: #{custom-call.58} parent=19 // pred_region
            loop: start=0, step=1, limit=1
            $region25: #{custom-call.58} parent=23 // loop_pre_header
              _
            $region26: #{custom-call.58} parent=23 // loop_header
              %s33 = sphi 0, %s37
              %p34 = scmp.ge.s32.totalorder %s33, 1
              %s38 = sphi %s27, %s27
              %s39 = sphi %s25, %s25
            $region27: #{custom-call.58} parent=23 // loop_header_branch
              %36 = sbr.rel (%p34) target = $region31
            $region28: #{custom-call.58} parent=23 // loop_body
              %v40 = vld [vmem:[%s38] sm:$0xff]
              %41 = vst [vmem:[%s39] sm:$0xff] %v40
              %v42 = vld [vmem:[%s38 + $0x8] sm:$0xff]
              %43 = vst [vmem:[%s39 + $0x8] sm:$0xff] %v42
              %v44 = vld [vmem:[%s38 + $0x10] sm:$0xff]
              %45 = vst [vmem:[%s39 + $0x10] sm:$0xff] %v44
              %v46 = vld [vmem:[%s38 + $0x18] sm:$0xff]
              %47 = vst [vmem:[%s39 + $0x18] sm:$0xff] %v46
            $region29: #{custom-call.58} parent=23 // loop_footer
              %s37 = sadd.s32 1, %s33
            $region30: #{custom-call.58} parent=23 // loop_footer_branch
              %32 = sbr.rel target = $region26
            $region31: #{custom-call.58} parent=23 // loop_exit
              _
          $region24: #{custom-call.58} parent=19 // pred_fallthru
            _
          // Predicated region
          $region32: #{custom-call.58} parent=19 // pred_check
            _
          $region33: #{custom-call.58} parent=19 // pred_check_branch
            %49 = sbr.rel target = $region35
          $region34: #{custom-call.58} parent=19 // pred_region
            _
          $region35: #{custom-call.58} parent=19 // pred_fallthru
            _
        $region20: #{custom-call.58} parent=15 // pred_fallthru
          _
        %50 = vnop
      $region16: #{custom-call.58} parent=5 // pred_fallthru
        _
      %p51 = scmp.le.s32.totalorder 1, %s3
      %p52 = scmp.lt.s32.totalorder %s3, 10
      %p53 = pnand %p51, %p52
      %p54 = pneg %p53
      // Predicated region
      $region36: #{custom-call.58} parent=5 // pred_check
        _
      $region37: #{custom-call.58} parent=5 // pred_check_branch
        %56 = sbr.rel (%p53) target = $region39
      $region38: #{custom-call.58} parent=5 // pred_region
        %s57 = ssub.s32 %s3, 1
        %s58 = sand.u32 %s8, 1
        %s59 = sand.u32 %s8, 1
        %s60 = smul.addr %s59, 32
        %s61 = scalar_lea.vmem [#allocation0], %s60
        %s62 = sand.u32 %s8, 1
        %s63 = sand.u32 %s8, 1
        %s64 = smul.addr %s63, 32
        %s65 = scalar_lea.vmem [#allocation0], %s64
        %s66 = sand.u32 %s8, 1
        %s67 = sand.u32 %s8, 1
        %s68 = smul.addr %s67, 32
        %s69 = scalar_lea.vmem [#allocation1], %s68
        %v70 = vlaneseq
        %v71 = vand.u32 %v70, 127
        %v72 = vlaneseq
        %v73 = vshrl.u32 %v72, 7
        %vm75 = vcmp.eq.s32.totalorder %v71, %v73
        %v76 = vld [vmem:[%s61] sm:$0xff]
        %v77 = vlaneseq
        %v78 = vand.u32 %v77, 127
        %vm79 = vcmp.eq.s32.totalorder %v78, 0
        %v80 = vsel %vm79, %v76, 1.0
        %v81 = vsel %vm75, %v80, 0.0
        %v82 = vlaneseq
        %v83 = vand.u32 %v82, 127
        %v84 = vlaneseq
        %v85 = vshrl.u32 %v84, 7
        %v86 = vadd.s32 %v85, 8
        %vm87 = vcmp.eq.s32.totalorder %v83, %v86
        %v88 = vsel %vm87, 1.0, 0.0
        %v89 = vlaneseq
        %v90 = vand.u32 %v89, 127
        %v91 = vlaneseq
        %v92 = vshrl.u32 %v91, 7
        %v93 = vadd.s32 %v92, 16
        %vm94 = vcmp.eq.s32.totalorder %v90, %v93
        %v95 = vsel %vm94, 1.0, 0.0
        %v96 = vlaneseq
        %v97 = vand.u32 %v96, 127
        %v98 = vlaneseq
        %v99 = vshrl.u32 %v98, 7
        %v100 = vadd.s32 %v99, 24
        %vm101 = vcmp.eq.s32.totalorder %v97, %v100
        %v102 = vsel %vm101, 1.0, 0.0
        %s103 = scalar_lea.vmem %s61, 1 [#allocation0]
        %v104 = vld [vmem:[%s103] ss:$0 sm:$0xff]
        %vm105 = vcmask 261120
        %v106 = vsel %vm105, %v104, 0.0
        %v107 = vlaneseq
        %v108 = vand.u32 %v107, 127
        %vm109 = vcmp.eq.s32.totalorder %v108, 1
        %v110 = vmul.f32 %v106, %v81
        %111 = vadd.xlane.f32.xlu0 %v110
        %v112 = vpop.xlane.xlu0 %111
        %v113 = vsel %vm109, %v112, %v81
        %s114 = scalar_lea.vmem %s61, 2 [#allocation0]
        %v115 = vld [vmem:[%s114] ss:$0 sm:$0xff]
        %vm116 = vcmask 261120
        %v117 = vsel %vm116, %v115, 0.0
        %v118 = vlaneseq
        %v119 = vand.u32 %v118, 127
        %vm120 = vcmp.eq.s32.totalorder %v119, 2
        %v121 = vmul.f32 %v117, %v113
        %122 = vadd.xlane.f32.xlu0 %v121
        %v123 = vpop.xlane.xlu0 %122
        %v124 = vsel %vm120, %v123, %v113
        %s125 = scalar_lea.vmem %s61, 3 [#allocation0]
        %v126 = vld [vmem:[%s125] ss:$0 sm:$0xff]
        %vm127 = vcmask 261120
        %v128 = vsel %vm127, %v126, 0.0
        %v129 = vlaneseq
        %v130 = vand.u32 %v129, 127
        %vm131 = vcmp.eq.s32.totalorder %v130, 3
        %v132 = vmul.f32 %v128, %v124
        %133 = vadd.xlane.f32.xlu0 %v132
        %v134 = vpop.xlane.xlu0 %133
        %v135 = vsel %vm131, %v134, %v124
        %s136 = scalar_lea.vmem %s61, 4 [#allocation0]
        %v137 = vld [vmem:[%s136] ss:$0 sm:$0xff]
        %vm138 = vcmask 261120
        %v139 = vsel %vm138, %v137, 0.0
        %v140 = vlaneseq
        %v141 = vand.u32 %v140, 127
        %vm142 = vcmp.eq.s32.totalorder %v141, 4
        %v143 = vmul.f32 %v139, %v135
        %144 = vadd.xlane.f32.xlu0 %v143
        %v145 = vpop.xlane.xlu0 %144
        %v146 = vsel %vm142, %v145, %v135
        %s147 = scalar_lea.vmem %s61, 5 [#allocation0]
        %v148 = vld [vmem:[%s147] ss:$0 sm:$0xff]
        %vm149 = vcmask 261120
        %v150 = vsel %vm149, %v148, 0.0
        %v151 = vlaneseq
        %v152 = vand.u32 %v151, 127
        %vm153 = vcmp.eq.s32.totalorder %v152, 5
        %v154 = vmul.f32 %v150, %v146
        %155 = vadd.xlane.f32.xlu0 %v154
        %v156 = vpop.xlane.xlu0 %155
        %v157 = vsel %vm153, %v156, %v146
        %s158 = scalar_lea.vmem %s61, 6 [#allocation0]
        %v159 = vld [vmem:[%s158] ss:$0 sm:$0xff]
        %vm160 = vcmask 261120
        %v161 = vsel %vm160, %v159, 0.0
        %v162 = vlaneseq
        %v163 = vand.u32 %v162, 127
        %vm164 = vcmp.eq.s32.totalorder %v163, 6
        %v165 = vmul.f32 %v161, %v157
        %166 = vadd.xlane.f32.xlu0 %v165
        %v167 = vpop.xlane.xlu0 %166
        %v168 = vsel %vm164, %v167, %v157
        %s169 = scalar_lea.vmem %s61, 7 [#allocation0]
        %v170 = vld [vmem:[%s169] ss:$0 sm:$0xff]
        %vm171 = vcmask 261120
        %v172 = vsel %vm171, %v170, 0.0
        %v173 = vlaneseq
        %v174 = vand.u32 %v173, 127
        %vm175 = vcmp.eq.s32.totalorder %v174, 7
        %v176 = vmul.f32 %v172, %v168
        %177 = vadd.xlane.f32.xlu0 %v176
        %v178 = vpop.xlane.xlu0 %177
        %v179 = vsel %vm175, %v178, %v168
        %s180 = scalar_lea.vmem %s61, 8 [#allocation0]
        %v181 = vld [vmem:[%s180] ss:$0 sm:$0xff]
        %vm182 = vcmask 261120
        %v183 = vsel %vm182, %v181, 0.0
        %v184 = vlaneseq
        %v185 = vand.u32 %v184, 127
        %vm186 = vcmp.eq.s32.totalorder %v185, 8
        %v187 = vmul.f32 %v183, %v179
        %188 = vadd.xlane.f32.xlu0 %v187
        %v189 = vpop.xlane.xlu0 %188
        %v190 = vsel %vm186, %v189, %v179
        %v191 = vmul.f32 %v183, %v88
        %192 = vadd.xlane.f32.xlu0 %v191
        %v193 = vpop.xlane.xlu0 %192
        %v194 = vsel %vm186, %v193, %v88
        %s195 = scalar_lea.vmem %s61, 9 [#allocation0]
        %v196 = vld [vmem:[%s195] ss:$0 sm:$0xff]
        %vm197 = vcmask 261120
        %v198 = vsel %vm197, %v196, 0.0
        %v199 = vlaneseq
        %v200 = vand.u32 %v199, 127
        %vm201 = vcmp.eq.s32.totalorder %v200, 9
        %v202 = vmul.f32 %v198, %v190
        %203 = vadd.xlane.f32.xlu0 %v202
        %v204 = vpop.xlane.xlu0 %203
        %v205 = vsel %vm201, %v204, %v190
        %v206 = vmul.f32 %v198, %v194
        %207 = vadd.xlane.f32.xlu0 %v206
        %v208 = vpop.xlane.xlu0 %207
        %v209 = vsel %vm201, %v208, %v194
        %s210 = scalar_lea.vmem %s61, 10 [#allocation0]
        %v211 = vld [vmem:[%s210] ss:$0 sm:$0xff]
        %vm212 = vcmask 261120
        %v213 = vsel %vm212, %v211, 0.0
        %v214 = vlaneseq
        %v215 = vand.u32 %v214, 127
        %vm216 = vcmp.eq.s32.totalorder %v215, 10
        %v217 = vmul.f32 %v213, %v205
        %218 = vadd.xlane.f32.xlu0 %v217
        %v219 = vpop.xlane.xlu0 %218
        %v220 = vsel %vm216, %v219, %v205
        %v221 = vmul.f32 %v213, %v209
        %222 = vadd.xlane.f32.xlu0 %v221
        %v223 = vpop.xlane.xlu0 %222
        %v224 = vsel %vm216, %v223, %v209
        %s225 = scalar_lea.vmem %s61, 11 [#allocation0]
        %v226 = vld [vmem:[%s225] ss:$0 sm:$0xff]
        %vm227 = vcmask 261120
        %v228 = vsel %vm227, %v226, 0.0
        %v229 = vlaneseq
        %v230 = vand.u32 %v229, 127
        %vm231 = vcmp.eq.s32.totalorder %v230, 11
        %v232 = vmul.f32 %v228, %v220
        %233 = vadd.xlane.f32.xlu0 %v232
        %v234 = vpop.xlane.xlu0 %233
        %v235 = vsel %vm231, %v234, %v220
        %v236 = vmul.f32 %v228, %v224
        %237 = vadd.xlane.f32.xlu0 %v236
        %v238 = vpop.xlane.xlu0 %237
        %v239 = vsel %vm231, %v238, %v224
        %s240 = scalar_lea.vmem %s61, 12 [#allocation0]
        %v241 = vld [vmem:[%s240] ss:$0 sm:$0xff]
        %vm242 = vcmask 261120
        %v243 = vsel %vm242, %v241, 0.0
        %v244 = vlaneseq
        %v245 = vand.u32 %v244, 127
        %vm246 = vcmp.eq.s32.totalorder %v245, 12
        %v247 = vmul.f32 %v243, %v235
        %248 = vadd.xlane.f32.xlu0 %v247
        %v249 = vpop.xlane.xlu0 %248
        %v250 = vsel %vm246, %v249, %v235
        %v251 = vmul.f32 %v243, %v239
        %252 = vadd.xlane.f32.xlu0 %v251
        %v253 = vpop.xlane.xlu0 %252
        %v254 = vsel %vm246, %v253, %v239
        %s255 = scalar_lea.vmem %s61, 13 [#allocation0]
        %v256 = vld [vmem:[%s255] ss:$0 sm:$0xff]
        %vm257 = vcmask 261120
        %v258 = vsel %vm257, %v256, 0.0
        %v259 = vlaneseq
        %v260 = vand.u32 %v259, 127
        %vm261 = vcmp.eq.s32.totalorder %v260, 13
        %v262 = vmul.f32 %v258, %v250
        %263 = vadd.xlane.f32.xlu0 %v262
        %v264 = vpop.xlane.xlu0 %263
        %v265 = vsel %vm261, %v264, %v250
        %v266 = vmul.f32 %v258, %v254
        %267 = vadd.xlane.f32.xlu0 %v266
        %v268 = vpop.xlane.xlu0 %267
        %v269 = vsel %vm261, %v268, %v254
        %s270 = scalar_lea.vmem %s61, 14 [#allocation0]
        %v271 = vld [vmem:[%s270] ss:$0 sm:$0xff]
        %vm272 = vcmask 261120
        %v273 = vsel %vm272, %v271, 0.0
        %v274 = vlaneseq
        %v275 = vand.u32 %v274, 127
        %vm276 = vcmp.eq.s32.totalorder %v275, 14
        %v277 = vmul.f32 %v273, %v265
        %278 = vadd.xlane.f32.xlu0 %v277
        %v279 = vpop.xlane.xlu0 %278
        %v280 = vsel %vm276, %v279, %v265
        %v281 = vmul.f32 %v273, %v269
        %282 = vadd.xlane.f32.xlu0 %v281
        %v283 = vpop.xlane.xlu0 %282
        %v284 = vsel %vm276, %v283, %v269
        %s285 = scalar_lea.vmem %s61, 15 [#allocation0]
        %v286 = vld [vmem:[%s285] ss:$0 sm:$0xff]
        %vm287 = vcmask 261120
        %v288 = vsel %vm287, %v286, 0.0
        %v289 = vlaneseq
        %v290 = vand.u32 %v289, 127
        %vm291 = vcmp.eq.s32.totalorder %v290, 15
        %v292 = vmul.f32 %v288, %v280
        %293 = vadd.xlane.f32.xlu0 %v292
        %v294 = vpop.xlane.xlu0 %293
        %v295 = vsel %vm291, %v294, %v280
        %v296 = vmul.f32 %v288, %v284
        %297 = vadd.xlane.f32.xlu0 %v296
        %v298 = vpop.xlane.xlu0 %297
        %v299 = vsel %vm291, %v298, %v284
        %s300 = scalar_lea.vmem %s61, 16 [#allocation0]
        %v301 = vld [vmem:[%s300] ss:$0 sm:$0xff]
        %vm302 = vcmask 261120
        %v303 = vsel %vm302, %v301, 0.0
        %v304 = vlaneseq
        %v305 = vand.u32 %v304, 127
        %vm306 = vcmp.eq.s32.totalorder %v305, 16
        %v307 = vmul.f32 %v303, %v295
        %308 = vadd.xlane.f32.xlu0 %v307
        %v309 = vpop.xlane.xlu0 %308
        %v310 = vsel %vm306, %v309, %v295
        %v311 = vmul.f32 %v303, %v299
        %312 = vadd.xlane.f32.xlu0 %v311
        %v313 = vpop.xlane.xlu0 %312
        %v314 = vsel %vm306, %v313, %v299
        %v315 = vmul.f32 %v303, %v95
        %316 = vadd.xlane.f32.xlu0 %v315
        %v317 = vpop.xlane.xlu0 %316
        %v318 = vsel %vm306, %v317, %v95
        %s319 = scalar_lea.vmem %s61, 17 [#allocation0]
        %v320 = vld [vmem:[%s319] ss:$0 sm:$0xff]
        %vm321 = vcmask 261120
        %v322 = vsel %vm321, %v320, 0.0
        %v323 = vlaneseq
        %v324 = vand.u32 %v323, 127
        %vm325 = vcmp.eq.s32.totalorder %v324, 17
        %v326 = vmul.f32 %v322, %v310
        %327 = vadd.xlane.f32.xlu0 %v326
        %v328 = vpop.xlane.xlu0 %327
        %v329 = vsel %vm325, %v328, %v310
        %v330 = vmul.f32 %v322, %v314
        %331 = vadd.xlane.f32.xlu0 %v330
        %v332 = vpop.xlane.xlu0 %331
        %v333 = vsel %vm325, %v332, %v314
        %v334 = vmul.f32 %v322, %v318
        %335 = vadd.xlane.f32.xlu0 %v334
        %v336 = vpop.xlane.xlu0 %335
        %v337 = vsel %vm325, %v336, %v318
        %s338 = scalar_lea.vmem %s61, 18 [#allocation0]
        %v339 = vld [vmem:[%s338] ss:$0 sm:$0xff]
        %vm340 = vcmask 261120
        %v341 = vsel %vm340, %v339, 0.0
        %v342 = vlaneseq
        %v343 = vand.u32 %v342, 127
        %vm344 = vcmp.eq.s32.totalorder %v343, 18
        %v345 = vmul.f32 %v341, %v329
        %346 = vadd.xlane.f32.xlu0 %v345
        %v347 = vpop.xlane.xlu0 %346
        %v348 = vsel %vm344, %v347, %v329
        %v349 = vmul.f32 %v341, %v333
        %350 = vadd.xlane.f32.xlu0 %v349
        %v351 = vpop.xlane.xlu0 %350
        %v352 = vsel %vm344, %v351, %v333
        %v353 = vmul.f32 %v341, %v337
        %354 = vadd.xlane.f32.xlu0 %v353
        %v355 = vpop.xlane.xlu0 %354
        %v356 = vsel %vm344, %v355, %v337
        %s357 = scalar_lea.vmem %s61, 19 [#allocation0]
        %v358 = vld [vmem:[%s357] ss:$0 sm:$0xff]
        %vm359 = vcmask 261120
        %v360 = vsel %vm359, %v358, 0.0
        %v361 = vlaneseq
        %v362 = vand.u32 %v361, 127
        %vm363 = vcmp.eq.s32.totalorder %v362, 19
        %v364 = vmul.f32 %v360, %v348
        %365 = vadd.xlane.f32.xlu0 %v364
        %v366 = vpop.xlane.xlu0 %365
        %v367 = vsel %vm363, %v366, %v348
        %v368 = vmul.f32 %v360, %v352
        %369 = vadd.xlane.f32.xlu0 %v368
        %v370 = vpop.xlane.xlu0 %369
        %v371 = vsel %vm363, %v370, %v352
        %v372 = vmul.f32 %v360, %v356
        %373 = vadd.xlane.f32.xlu0 %v372
        %v374 = vpop.xlane.xlu0 %373
        %v375 = vsel %vm363, %v374, %v356
        %s376 = scalar_lea.vmem %s61, 20 [#allocation0]
        %v377 = vld [vmem:[%s376] ss:$0 sm:$0xff]
        %vm378 = vcmask 261120
        %v379 = vsel %vm378, %v377, 0.0
        %v380 = vlaneseq
        %v381 = vand.u32 %v380, 127
        %vm382 = vcmp.eq.s32.totalorder %v381, 20
        %v383 = vmul.f32 %v379, %v367
        %384 = vadd.xlane.f32.xlu0 %v383
        %v385 = vpop.xlane.xlu0 %384
        %v386 = vsel %vm382, %v385, %v367
        %v387 = vmul.f32 %v379, %v371
        %388 = vadd.xlane.f32.xlu0 %v387
        %v389 = vpop.xlane.xlu0 %388
        %v390 = vsel %vm382, %v389, %v371
        %v391 = vmul.f32 %v379, %v375
        %392 = vadd.xlane.f32.xlu0 %v391
        %v393 = vpop.xlane.xlu0 %392
        %v394 = vsel %vm382, %v393, %v375
        %s395 = scalar_lea.vmem %s61, 21 [#allocation0]
        %v396 = vld [vmem:[%s395] ss:$0 sm:$0xff]
        %vm397 = vcmask 261120
        %v398 = vsel %vm397, %v396, 0.0
        %v399 = vlaneseq
        %v400 = vand.u32 %v399, 127
        %vm401 = vcmp.eq.s32.totalorder %v400, 21
        %v402 = vmul.f32 %v398, %v386
        %403 = vadd.xlane.f32.xlu0 %v402
        %v404 = vpop.xlane.xlu0 %403
        %v405 = vsel %vm401, %v404, %v386
        %v406 = vmul.f32 %v398, %v390
        %407 = vadd.xlane.f32.xlu0 %v406
        %v408 = vpop.xlane.xlu0 %407
        %v409 = vsel %vm401, %v408, %v390
        %v410 = vmul.f32 %v398, %v394
        %411 = vadd.xlane.f32.xlu0 %v410
        %v412 = vpop.xlane.xlu0 %411
        %v413 = vsel %vm401, %v412, %v394
        %s414 = scalar_lea.vmem %s61, 22 [#allocation0]
        %v415 = vld [vmem:[%s414] ss:$0 sm:$0xff]
        %vm416 = vcmask 261120
        %v417 = vsel %vm416, %v415, 0.0
        %v418 = vlaneseq
        %v419 = vand.u32 %v418, 127
        %vm420 = vcmp.eq.s32.totalorder %v419, 22
        %v421 = vmul.f32 %v417, %v405
        %422 = vadd.xlane.f32.xlu0 %v421
        %v423 = vpop.xlane.xlu0 %422
        %v424 = vsel %vm420, %v423, %v405
        %v425 = vmul.f32 %v417, %v409
        %426 = vadd.xlane.f32.xlu0 %v425
        %v427 = vpop.xlane.xlu0 %426
        %v428 = vsel %vm420, %v427, %v409
        %v429 = vmul.f32 %v417, %v413
        %430 = vadd.xlane.f32.xlu0 %v429
        %v431 = vpop.xlane.xlu0 %430
        %v432 = vsel %vm420, %v431, %v413
        %s433 = scalar_lea.vmem %s61, 23 [#allocation0]
        %v434 = vld [vmem:[%s433] ss:$0 sm:$0xff]
        %vm435 = vcmask 261120
        %v436 = vsel %vm435, %v434, 0.0
        %v437 = vlaneseq
        %v438 = vand.u32 %v437, 127
        %vm439 = vcmp.eq.s32.totalorder %v438, 23
        %v440 = vmul.f32 %v436, %v424
        %441 = vadd.xlane.f32.xlu0 %v440
        %v442 = vpop.xlane.xlu0 %441
        %v443 = vsel %vm439, %v442, %v424
        %v444 = vmul.f32 %v436, %v428
        %445 = vadd.xlane.f32.xlu0 %v444
        %v446 = vpop.xlane.xlu0 %445
        %v447 = vsel %vm439, %v446, %v428
        %v448 = vmul.f32 %v436, %v432
        %449 = vadd.xlane.f32.xlu0 %v448
        %v450 = vpop.xlane.xlu0 %449
        %v451 = vsel %vm439, %v450, %v432
        %s452 = scalar_lea.vmem %s61, 24 [#allocation0]
        %v453 = vld [vmem:[%s452] ss:$0 sm:$0xff]
        %vm454 = vcmask 261120
        %v455 = vsel %vm454, %v453, 0.0
        %v456 = vlaneseq
        %v457 = vand.u32 %v456, 127
        %vm458 = vcmp.eq.s32.totalorder %v457, 24
        %v459 = vmul.f32 %v455, %v443
        %460 = vadd.xlane.f32.xlu0 %v459
        %v461 = vpop.xlane.xlu0 %460
        %v462 = vsel %vm458, %v461, %v443
        %v463 = vmul.f32 %v455, %v447
        %464 = vadd.xlane.f32.xlu0 %v463
        %v465 = vpop.xlane.xlu0 %464
        %v466 = vsel %vm458, %v465, %v447
        %v467 = vmul.f32 %v455, %v451
        %468 = vadd.xlane.f32.xlu0 %v467
        %v469 = vpop.xlane.xlu0 %468
        %v470 = vsel %vm458, %v469, %v451
        %v471 = vmul.f32 %v455, %v102
        %472 = vadd.xlane.f32.xlu0 %v471
        %v473 = vpop.xlane.xlu0 %472
        %v474 = vsel %vm458, %v473, %v102
        %s475 = scalar_lea.vmem %s61, 25 [#allocation0]
        %v476 = vld [vmem:[%s475] ss:$0 sm:$0xff]
        %vm477 = vcmask 261120
        %v478 = vsel %vm477, %v476, 0.0
        %v479 = vlaneseq
        %v480 = vand.u32 %v479, 127
        %vm481 = vcmp.eq.s32.totalorder %v480, 25
        %v482 = vmul.f32 %v478, %v462
        %483 = vadd.xlane.f32.xlu0 %v482
        %v484 = vpop.xlane.xlu0 %483
        %v485 = vsel %vm481, %v484, %v462
        %v486 = vmul.f32 %v478, %v466
        %487 = vadd.xlane.f32.xlu0 %v486
        %v488 = vpop.xlane.xlu0 %487
        %v489 = vsel %vm481, %v488, %v466
        %v490 = vmul.f32 %v478, %v470
        %491 = vadd.xlane.f32.xlu0 %v490
        %v492 = vpop.xlane.xlu0 %491
        %v493 = vsel %vm481, %v492, %v470
        %v494 = vmul.f32 %v478, %v474
        %495 = vadd.xlane.f32.xlu0 %v494
        %v496 = vpop.xlane.xlu0 %495
        %v497 = vsel %vm481, %v496, %v474
        %s498 = scalar_lea.vmem %s61, 26 [#allocation0]
        %v499 = vld [vmem:[%s498] ss:$0 sm:$0xff]
        %vm500 = vcmask 261120
        %v501 = vsel %vm500, %v499, 0.0
        %v502 = vlaneseq
        %v503 = vand.u32 %v502, 127
        %vm504 = vcmp.eq.s32.totalorder %v503, 26
        %v505 = vmul.f32 %v501, %v485
        %506 = vadd.xlane.f32.xlu0 %v505
        %v507 = vpop.xlane.xlu0 %506
        %v508 = vsel %vm504, %v507, %v485
        %v509 = vmul.f32 %v501, %v489
        %510 = vadd.xlane.f32.xlu0 %v509
        %v511 = vpop.xlane.xlu0 %510
        %v512 = vsel %vm504, %v511, %v489
        %v513 = vmul.f32 %v501, %v493
        %514 = vadd.xlane.f32.xlu0 %v513
        %v515 = vpop.xlane.xlu0 %514
        %v516 = vsel %vm504, %v515, %v493
        %v517 = vmul.f32 %v501, %v497
        %518 = vadd.xlane.f32.xlu0 %v517
        %v519 = vpop.xlane.xlu0 %518
        %v520 = vsel %vm504, %v519, %v497
        %s521 = scalar_lea.vmem %s61, 27 [#allocation0]
        %v522 = vld [vmem:[%s521] ss:$0 sm:$0xff]
        %vm523 = vcmask 261120
        %v524 = vsel %vm523, %v522, 0.0
        %v525 = vlaneseq
        %v526 = vand.u32 %v525, 127
        %vm527 = vcmp.eq.s32.totalorder %v526, 27
        %v528 = vmul.f32 %v524, %v508
        %529 = vadd.xlane.f32.xlu0 %v528
        %v530 = vpop.xlane.xlu0 %529
        %v531 = vsel %vm527, %v530, %v508
        %v532 = vmul.f32 %v524, %v512
        %533 = vadd.xlane.f32.xlu0 %v532
        %v534 = vpop.xlane.xlu0 %533
        %v535 = vsel %vm527, %v534, %v512
        %v536 = vmul.f32 %v524, %v516
        %537 = vadd.xlane.f32.xlu0 %v536
        %v538 = vpop.xlane.xlu0 %537
        %v539 = vsel %vm527, %v538, %v516
        %v540 = vmul.f32 %v524, %v520
        %541 = vadd.xlane.f32.xlu0 %v540
        %v542 = vpop.xlane.xlu0 %541
        %v543 = vsel %vm527, %v542, %v520
        %s544 = scalar_lea.vmem %s61, 28 [#allocation0]
        %v545 = vld [vmem:[%s544] ss:$0 sm:$0xff]
        %vm546 = vcmask 261120
        %v547 = vsel %vm546, %v545, 0.0
        %v548 = vlaneseq
        %v549 = vand.u32 %v548, 127
        %vm550 = vcmp.eq.s32.totalorder %v549, 28
        %v551 = vmul.f32 %v547, %v531
        %552 = vadd.xlane.f32.xlu0 %v551
        %v553 = vpop.xlane.xlu0 %552
        %v554 = vsel %vm550, %v553, %v531
        %v555 = vmul.f32 %v547, %v535
        %556 = vadd.xlane.f32.xlu0 %v555
        %v557 = vpop.xlane.xlu0 %556
        %v558 = vsel %vm550, %v557, %v535
        %v559 = vmul.f32 %v547, %v539
        %560 = vadd.xlane.f32.xlu0 %v559
        %v561 = vpop.xlane.xlu0 %560
        %v562 = vsel %vm550, %v561, %v539
        %v563 = vmul.f32 %v547, %v543
        %564 = vadd.xlane.f32.xlu0 %v563
        %v565 = vpop.xlane.xlu0 %564
        %v566 = vsel %vm550, %v565, %v543
        %s567 = scalar_lea.vmem %s61, 29 [#allocation0]
        %v568 = vld [vmem:[%s567] ss:$0 sm:$0xff]
        %vm569 = vcmask 261120
        %v570 = vsel %vm569, %v568, 0.0
        %v571 = vlaneseq
        %v572 = vand.u32 %v571, 127
        %vm573 = vcmp.eq.s32.totalorder %v572, 29
        %v574 = vmul.f32 %v570, %v554
        %575 = vadd.xlane.f32.xlu0 %v574
        %v576 = vpop.xlane.xlu0 %575
        %v577 = vsel %vm573, %v576, %v554
        %v578 = vmul.f32 %v570, %v558
        %579 = vadd.xlane.f32.xlu0 %v578
        %v580 = vpop.xlane.xlu0 %579
        %v581 = vsel %vm573, %v580, %v558
        %v582 = vmul.f32 %v570, %v562
        %583 = vadd.xlane.f32.xlu0 %v582
        %v584 = vpop.xlane.xlu0 %583
        %v585 = vsel %vm573, %v584, %v562
        %v586 = vmul.f32 %v570, %v566
        %587 = vadd.xlane.f32.xlu0 %v586
        %v588 = vpop.xlane.xlu0 %587
        %v589 = vsel %vm573, %v588, %v566
        %s590 = scalar_lea.vmem %s61, 30 [#allocation0]
        %v591 = vld [vmem:[%s590] ss:$0 sm:$0xff]
        %vm592 = vcmask 261120
        %v593 = vsel %vm592, %v591, 0.0
        %v594 = vlaneseq
        %v595 = vand.u32 %v594, 127
        %vm596 = vcmp.eq.s32.totalorder %v595, 30
        %v597 = vmul.f32 %v593, %v577
        %598 = vadd.xlane.f32.xlu0 %v597
        %v599 = vpop.xlane.xlu0 %598
        %v600 = vsel %vm596, %v599, %v577
        %v601 = vmul.f32 %v593, %v581
        %602 = vadd.xlane.f32.xlu0 %v601
        %v603 = vpop.xlane.xlu0 %602
        %v604 = vsel %vm596, %v603, %v581
        %v605 = vmul.f32 %v593, %v585
        %606 = vadd.xlane.f32.xlu0 %v605
        %v607 = vpop.xlane.xlu0 %606
        %v608 = vsel %vm596, %v607, %v585
        %v609 = vmul.f32 %v593, %v589
        %610 = vadd.xlane.f32.xlu0 %v609
        %v611 = vpop.xlane.xlu0 %610
        %v612 = vsel %vm596, %v611, %v589
        %s613 = scalar_lea.vmem %s61, 31 [#allocation0]
        %v614 = vld [vmem:[%s613] ss:$0 sm:$0xff]
        %vm615 = vcmask 261120
        %v616 = vsel %vm615, %v614, 0.0
        %v617 = vlaneseq
        %v618 = vand.u32 %v617, 127
        %vm619 = vcmp.eq.s32.totalorder %v618, 31
        %v620 = vmul.f32 %v616, %v600
        %621 = vadd.xlane.f32.xlu0 %v620
        %v622 = vpop.xlane.xlu0 %621
        %v623 = vsel %vm619, %v622, %v600
        %v624 = vmul.f32 %v616, %v604
        %625 = vadd.xlane.f32.xlu0 %v624
        %v626 = vpop.xlane.xlu0 %625
        %v627 = vsel %vm619, %v626, %v604
        %v628 = vmul.f32 %v616, %v608
        %629 = vadd.xlane.f32.xlu0 %v628
        %v630 = vpop.xlane.xlu0 %629
        %v631 = vsel %vm619, %v630, %v608
        %v632 = vmul.f32 %v616, %v612
        %633 = vadd.xlane.f32.xlu0 %v632
        %v634 = vpop.xlane.xlu0 %633
        %v635 = vsel %vm619, %v634, %v612
        %636 = vst [vmem:[%s69] sm:$0xff] %v623
        %s637 = scalar_lea.vmem %s69, 8 [#allocation1]
        %638 = vst [vmem:[%s637] sm:$0xff] %v627
        %s639 = scalar_lea.vmem %s69, 16 [#allocation1]
        %640 = vst [vmem:[%s639] sm:$0xff] %v631
        %s641 = scalar_lea.vmem %s69, 24 [#allocation1]
        %642 = vst [vmem:[%s641] sm:$0xff] %v635
        %s643 = sand.u32 %s8, 1
        %s644 = sand.u32 %s8, 1
        %s645 = smul.addr %s644, 32
        %s646 = scalar_lea.vmem [#allocation1], %s645
        %s647 = smul.addr %s8, 32
        %s648 = scalar_lea.vmem %s1, %s647
        // Predicated region
        $region40: #{custom-call.58} parent=38 // pred_check
          _
        $region41: #{custom-call.58} parent=38 // pred_check_branch
          %650 = sbr.rel (0) target = $region43
        $region42: #{custom-call.58} parent=38 // pred_region
          // Predicated region
          $region44: #{custom-call.58} parent=42 // pred_check
            _
          $region45: #{custom-call.58} parent=42 // pred_check_branch
            %652 = sbr.rel (0) target = $region47
          $region46: #{custom-call.58} parent=42 // pred_region
            loop: start=0, step=1, limit=1
            $region48: #{custom-call.58} parent=46 // loop_pre_header
              _
            $region49: #{custom-call.58} parent=46 // loop_header
              %s654 = sphi 0, %s658
              %p655 = scmp.ge.s32.totalorder %s654, 1
              %s659 = sphi %s646, %s646
              %s660 = sphi %s648, %s648
            $region50: #{custom-call.58} parent=46 // loop_header_branch
              %657 = sbr.rel (%p655) target = $region54
            $region51: #{custom-call.58} parent=46 // loop_body
              %v661 = vld [vmem:[%s659] sm:$0xff]
              %662 = vst [vmem:[%s660] sm:$0xff] %v661
              %v663 = vld [vmem:[%s659 + $0x8] sm:$0xff]
              %664 = vst [vmem:[%s660 + $0x8] sm:$0xff] %v663
              %v665 = vld [vmem:[%s659 + $0x10] sm:$0xff]
              %666 = vst [vmem:[%s660 + $0x10] sm:$0xff] %v665
              %v667 = vld [vmem:[%s659 + $0x18] sm:$0xff]
              %668 = vst [vmem:[%s660 + $0x18] sm:$0xff] %v667
            $region52: #{custom-call.58} parent=46 // loop_footer
              %s658 = sadd.s32 1, %s654
            $region53: #{custom-call.58} parent=46 // loop_footer_branch
              %653 = sbr.rel target = $region49
            $region54: #{custom-call.58} parent=46 // loop_exit
              _
          $region47: #{custom-call.58} parent=42 // pred_fallthru
            _
          // Predicated region
          $region55: #{custom-call.58} parent=42 // pred_check
            _
          $region56: #{custom-call.58} parent=42 // pred_check_branch
            %670 = sbr.rel target = $region58
          $region57: #{custom-call.58} parent=42 // pred_region
            _
          $region58: #{custom-call.58} parent=42 // pred_fallthru
            _
        $region43: #{custom-call.58} parent=38 // pred_fallthru
          _
        %671 = vnop
      $region39: #{custom-call.58} parent=5 // pred_fallthru
        _
      %p672 = scmp.le.s32.totalorder 2, %s3
      // Predicated region
      $region59: #{custom-call.58} parent=5 // pred_check
        %p673 = pneg %p672
      $region60: #{custom-call.58} parent=5 // pred_check_branch
        %675 = sbr.rel (%p673) target = $region62
      $region61: #{custom-call.58} parent=5 // pred_region
        %s676 = ssub.s32 %s3, 2
        %s677 = sand.u32 %s9, 1
        %s678 = sand.u32 %s9, 1
        %s679 = smul.addr %s678, 32
        %s680 = scalar_lea.vmem [#allocation1], %s679
      $region62: #{custom-call.58} parent=5 // pred_fallthru
        _
    $region6: #{custom-call.58} parent=1 // loop_footer
      %s7 = sadd.s32 1, %s3
    $region7: #{custom-call.58} parent=1 // loop_footer_branch
      %2 = sbr.rel target = $region3
    $region8: #{custom-call.58} parent=1 // loop_exit
      _

// kernel: snn_forward.2
$region0: #{snn_forward.2}
  #allocation0 [shape = 'u32[]', space=smem, size = 0x4, offset = 0x4, fixed_abs, tag = 'smem constant byte address 0x4 - core index']
  #allocation1 [shape = 'u32[144,128]{1,0:T(1,128)}', space=vmem, size = 0x12000, scoped, tag = 'internal scratch']
  %s0 = inlined_call_operand.hbm [shape: f32[3,32,32], index: 0, kind: input, shape index: {}]
  %s1 = inlined_call_operand.hbm [shape: f32[3,32,32], index: 1, kind: input, shape index: {}]
  %s2 = inlined_call_operand.hbm [shape: f32[3,3,32,32], index: 2, kind: input, shape index: {}]
  %s3 = inlined_call_operand.vmem [shape: f32[3,3,32,32], index: 3, kind: output, shape index: {}]
  %s4 = sld [smem:[#allocation0]]
  $region34: #{snn_forward.2} parent=0
    _
  %s6 = ssub.s32 1, %s4
  %s7 = scalar_select 0, %s6, %s4
  $region1: #{snn_forward.2} parent=0
    #allocation2 [shape = 'u8[49152]{0}', space=vmem, size = 0xc000, scoped, tag = 'input window, operand 0, single buffered']
    #allocation3 [shape = 's32[1]{0}', space=sflag, size = 0x4, scoped, tag = 'scoped memory for snn_forward.2']
    #allocation4 [shape = 'u8[49152]{0}', space=vmem, size = 0xc000, scoped, tag = 'input window, operand 1, single buffered']
    #allocation5 [shape = 's32[1]{0}', space=sflag, size = 0x4, scoped, tag = 'scoped memory for snn_forward.2']
    #allocation6 [shape = 'u8[147456]{0}', space=vmem, size = 0x24000, scoped, tag = 'input window, operand 2, single buffered']
    %8 = vsyncpa [#allocation3], 0
    %9 = vsyncpa [#allocation5], 0
    // Predicated region
    $region2: #{snn_forward.2} parent=1 // pred_check
      _
    $region3: #{snn_forward.2} parent=1 // pred_check_branch
      %11 = sbr.rel (0) target = $region5
    $region4: #{snn_forward.2} parent=1 // pred_region
      %s13 = ssub.s32 1536, 1536
      %14 = vsyncadd [#allocation3], %s13
      %s15 = sshll.u32 [#allocation2], 4
      %s16 = int_to_ptr.vmem [resolvable:$true] %s15
      %21 = dma.hbm_to_vmem [thread:$0]  %s0, 1536, %s16, [#allocation3], 128, 128, 8
    $region5: #{snn_forward.2} parent=1 // pred_fallthru
      _
    // Predicated region
    $region6: #{snn_forward.2} parent=1 // pred_check
      _
    $region7: #{snn_forward.2} parent=1 // pred_check_branch
      %23 = sbr.rel (0) target = $region9
    $region8: #{snn_forward.2} parent=1 // pred_region
      %s25 = ssub.s32 1536, 1536
      %26 = vsyncadd [#allocation5], %s25
      %s27 = sshll.u32 [#allocation4], 4
      %s28 = int_to_ptr.vmem [resolvable:$true] %s27
      %33 = dma.hbm_to_vmem [thread:$0]  %s1, 1536, %s28, [#allocation5], 128, 128, 8
    $region9: #{snn_forward.2} parent=1 // pred_fallthru
      _
    // Predicated region
    $region10: #{snn_forward.2} parent=1 // pred_check
      _
    $region11: #{snn_forward.2} parent=1 // pred_check_branch
      %35 = sbr.rel (0) target = $region13
    $region12: #{snn_forward.2} parent=1 // pred_region
      %s37 = ssub.s32 4608, 4608
      %38 = vsyncadd [#allocation5], %s37
      %s39 = sshll.u32 [#allocation6], 4
      %s40 = int_to_ptr.vmem [resolvable:$true] %s39
      %45 = dma.hbm_to_vmem [thread:$0]  %s2, 4608, %s40, [#allocation5], 128, 128, 8
    $region13: #{snn_forward.2} parent=1 // pred_fallthru
      _
    // Predicated region
    $region14: #{snn_forward.2} parent=1 // pred_check
      _
    $region15: #{snn_forward.2} parent=1 // pred_check_branch
      %47 = sbr.rel (0) target = $region17
    $region16: #{snn_forward.2} parent=1 // pred_region
      %48 = dma.done [#allocation3], 1536
    $region17: #{snn_forward.2} parent=1 // pred_fallthru
      _
    // Predicated region
    $region18: #{snn_forward.2} parent=1 // pred_check
      _
    $region19: #{snn_forward.2} parent=1 // pred_check_branch
      %50 = sbr.rel (0) target = $region21
    $region20: #{snn_forward.2} parent=1 // pred_region
      %51 = dma.done [#allocation5], 1536
    $region21: #{snn_forward.2} parent=1 // pred_fallthru
      _
    // Predicated region
    $region22: #{snn_forward.2} parent=1 // pred_check
      _
    $region23: #{snn_forward.2} parent=1 // pred_check_branch
      %53 = sbr.rel (0) target = $region25
    $region24: #{snn_forward.2} parent=1 // pred_region
      %54 = dma.done [#allocation5], 4608
    $region25: #{snn_forward.2} parent=1 // pred_fallthru
      _
    %v55 = vld [vmem:[#allocation2] sm:$0xff]
    %v56 = vld [vmem:[#allocation2 + $0x8] sm:$0xff]
    %v57 = vld [vmem:[#allocation2 + $0x10] sm:$0xff]
    %v58 = vld [vmem:[#allocation2 + $0x18] sm:$0xff]
    %v59 = vld [vmem:[#allocation2 + $0x20] sm:$0xff]
    %v60 = vld [vmem:[#allocation2 + $0x28] sm:$0xff]
    %v61 = vld [vmem:[#allocation2 + $0x30] sm:$0xff]
    %v62 = vld [vmem:[#allocation2 + $0x38] sm:$0xff]
    %v63 = vld [vmem:[#allocation2 + $0x40] sm:$0xff]
    %v64 = vld [vmem:[#allocation2 + $0x48] sm:$0xff]
    %v65 = vld [vmem:[#allocation2 + $0x50] sm:$0xff]
    %v66 = vld [vmem:[#allocation2 + $0x58] sm:$0xff]
    %v67 = vld [vmem:[#allocation4] sm:$0xff]
    %v68 = vld [vmem:[#allocation4 + $0x8] sm:$0xff]
    %v69 = vld [vmem:[#allocation4 + $0x10] sm:$0xff]
    %v70 = vld [vmem:[#allocation4 + $0x18] sm:$0xff]
    %v71 = vld [vmem:[#allocation4 + $0x20] sm:$0xff]
    %v72 = vld [vmem:[#allocation4 + $0x28] sm:$0xff]
    %v73 = vld [vmem:[#allocation4 + $0x30] sm:$0xff]
    %v74 = vld [vmem:[#allocation4 + $0x38] sm:$0xff]
    %v75 = vld [vmem:[#allocation4 + $0x40] sm:$0xff]
    %v76 = vld [vmem:[#allocation4 + $0x48] sm:$0xff]
    %v77 = vld [vmem:[#allocation4 + $0x50] sm:$0xff]
    %v78 = vld [vmem:[#allocation4 + $0x58] sm:$0xff]
    %vm79 = vcmask 261120
    %v81 = vsel %vm79, %v55, 0
    %v84 = vsel %vm79, %v56, 0
    %v87 = vsel %vm79, %v57, 0
    %v90 = vsel %vm79, %v58, 0
    %v93 = vsel %vm79, %v67, 0
    %v96 = vsel %vm79, %v68, 0
    %v99 = vsel %vm79, %v69, 0
    %v102 = vsel %vm79, %v70, 0
    %104 = vmatprep.subr.mxu0 0.0
    %105 = vmatpush1.xpose.msra.mxu0 %v93
    %106 = vmatprep.subr.mxu0 0.0
    %107 = vmatpush1.xpose.msra.mxu0 %v96
    %108 = vmatprep.subr.mxu0 0.0
    %109 = vmatpush1.xpose.msra.mxu0 %v99
    %110 = vmatprep.subr.mxu0 0.0
    %111 = vmatpush1.xpose.msra.mxu0 %v102
    %112 = vmatprep.subr.mxu0 0.0
    %113 = vmatpush1.xpose.msra.mxu0 0.0
    %114 = vmatprep.subr.mxu0 0.0
    %115 = vmatpush1.xpose.msra.mxu0 0.0
    %116 = vmatprep.subr.mxu0 0.0
    %117 = vmatpush1.xpose.msra.mxu0 0.0
    %118 = vmatprep.subr.mxu0 0.0
    %119 = vmatpush1.xpose.msra.mxu0 0.0
    %120 = vmatprep.subr.mxu0 0.0
    %121 = vmatpush1.xpose.msra.mxu0 0.0
    %122 = vmatprep.subr.mxu0 0.0
    %123 = vmatpush1.xpose.msra.mxu0 0.0
    %124 = vmatprep.subr.mxu0 0.0
    %125 = vmatpush1.xpose.msra.mxu0 0.0
    %126 = vmatprep.subr.mxu0 0.0
    %127 = vmatpush1.xpose.msra.mxu0 0.0
    %128 = vmatprep.subr.mxu0 0.0
    %129 = vmatpush1.xpose.msra.mxu0 0.0
    %130 = vmatprep.subr.mxu0 0.0
    %131 = vmatpush1.xpose.msra.mxu0 0.0
    %132 = vmatprep.subr.mxu0 0.0
    %133 = vmatpush1.xpose.msra.mxu0 0.0
    %134 = vmatprep.subr.mxu0 0.0
    %135 = vmatpush1.xpose.msra.mxu0 0.0
    %136 = vmatprep.subr.mxu0 0.0
    %137 = vmatpush1.xpose.msra.mxu0 0.0
    %138 = vmatprep.subr.mxu0 0.0
    %139 = vmatpush1.xpose.msra.mxu0 0.0
    %140 = vmatprep.subr.mxu0 0.0
    %141 = vmatpush1.xpose.msra.mxu0 0.0
    %142 = vmatprep.subr.mxu0 0.0
    %143 = vmatpush1.xpose.msra.mxu0 0.0
    %144 = vmatprep.subr.mxu0 0.0
    %145 = vmatpush1.xpose.msra.mxu0 0.0
    %146 = vmatprep.subr.mxu0 0.0
    %147 = vmatpush1.xpose.msra.mxu0 0.0
    %148 = vmatprep.subr.mxu0 0.0
    %149 = vmatpush1.xpose.msra.mxu0 0.0
    %150 = vmatprep.subr.mxu0 0.0
    %151 = vmatpush1.xpose.msra.mxu0 0.0
    %152 = vmatprep.subr.mxu0 0.0
    %153 = vmatpush1.xpose.msra.mxu0 0.0
    %154 = vmatprep.subr.mxu0 0.0
    %155 = vmatpush1.xpose.msra.mxu0 0.0
    %156 = vmatprep.subr.mxu0 0.0
    %157 = vmatpush1.xpose.msra.mxu0 0.0
    %158 = vmatprep.subr.mxu0 0.0
    %159 = vmatpush1.xpose.msra.mxu0 0.0
    %160 = vmatprep.subr.mxu0 0.0
    %161 = vmatpush1.xpose.msra.mxu0 0.0
    %162 = vmatprep.subr.mxu0 0.0
    %163 = vmatpush1.xpose.msra.mxu0 0.0
    %164 = vmatprep.subr.mxu0 0.0
    %165 = vmatpush1.xpose.msra.mxu0 0.0
    %166 = vmatprep.subr.mxu0 0.0
    %167 = vmatpush1.xpose.msra.mxu0 0.0
    %168 = vmatprep.mubr.f32.mxu0 0.0
    %169 = vmatmul.mubr.f32.gmra.mrb[0].mxu0 %v81
    %v170 = vpop.f32.mrb[0].mxu0
    %v171 = vadd.f32 0.0, %v170
    %v172 = vpop.f32.mrb[0].mxu0
    %173 = vmatprep.mubr.f32.mxu0 0.0
    %174 = vmatmul.mubr.f32.gmra.mrb[0].mxu0 %v84
    %v175 = vpop.f32.mrb[0].mxu0
    %v176 = vadd.f32 0.0, %v175
    %v177 = vpop.f32.mrb[0].mxu0
    %178 = vmatprep.mubr.f32.mxu0 0.0
    %179 = vmatmul.mubr.f32.gmra.mrb[0].mxu0 %v87
    %v180 = vpop.f32.mrb[0].mxu0
    %v181 = vadd.f32 0.0, %v180
    %v182 = vpop.f32.mrb[0].mxu0
    %183 = vmatprep.mubr.f32.mxu0 0.0
    %184 = vmatmul.mubr.f32.gmra.mrb[0].mxu0 %v90
    %v185 = vpop.f32.mrb[0].mxu0
    %v186 = vadd.f32 0.0, %v185
    %v187 = vpop.f32.mrb[0].mxu0
    %188 = vdwg.mxu0
    %v190 = vsel %vm79, %v59, 0
    %v193 = vsel %vm79, %v60, 0
    %v196 = vsel %vm79, %v61, 0
    %v199 = vsel %vm79, %v62, 0
    %v202 = vsel %vm79, %v71, 0
    %v205 = vsel %vm79, %v72, 0
    %v208 = vsel %vm79, %v73, 0
    %v211 = vsel %vm79, %v74, 0
    %213 = vmatprep.subr.mxu0 0.0
    %214 = vmatpush1.xpose.msra.mxu0 %v202
    %215 = vmatprep.subr.mxu0 0.0
    %216 = vmatpush1.xpose.msra.mxu0 %v205
    %217 = vmatprep.subr.mxu0 0.0
    %218 = vmatpush1.xpose.msra.mxu0 %v208
    %219 = vmatprep.subr.mxu0 0.0
    %220 = vmatpush1.xpose.msra.mxu0 %v211
    %221 = vmatprep.subr.mxu0 0.0
    %222 = vmatpush1.xpose.msra.mxu0 0.0
    %223 = vmatprep.subr.mxu0 0.0
    %224 = vmatpush1.xpose.msra.mxu0 0.0
    %225 = vmatprep.subr.mxu0 0.0
    %226 = vmatpush1.xpose.msra.mxu0 0.0
    %227 = vmatprep.subr.mxu0 0.0
    %228 = vmatpush1.xpose.msra.mxu0 0.0
    %229 = vmatprep.subr.mxu0 0.0
    %230 = vmatpush1.xpose.msra.mxu0 0.0
    %231 = vmatprep.subr.mxu0 0.0
    %232 = vmatpush1.xpose.msra.mxu0 0.0
    %233 = vmatprep.subr.mxu0 0.0
    %234 = vmatpush1.xpose.msra.mxu0 0.0
    %235 = vmatprep.subr.mxu0 0.0
    %236 = vmatpush1.xpose.msra.mxu0 0.0
    %237 = vmatprep.subr.mxu0 0.0
    %238 = vmatpush1.xpose.msra.mxu0 0.0
    %239 = vmatprep.subr.mxu0 0.0
    %240 = vmatpush1.xpose.msra.mxu0 0.0
    %241 = vmatprep.subr.mxu0 0.0
    %242 = vmatpush1.xpose.msra.mxu0 0.0
    %243 = vmatprep.subr.mxu0 0.0
    %244 = vmatpush1.xpose.msra.mxu0 0.0
    %245 = vmatprep.subr.mxu0 0.0
    %246 = vmatpush1.xpose.msra.mxu0 0.0
    %247 = vmatprep.subr.mxu0 0.0
    %248 = vmatpush1.xpose.msra.mxu0 0.0
    %249 = vmatprep.subr.mxu0 0.0
    %250 = vmatpush1.xpose.msra.mxu0 0.0
    %251 = vmatprep.subr.mxu0 0.0
    %252 = vmatpush1.xpose.msra.mxu0 0.0
    %253 = vmatprep.subr.mxu0 0.0
    %254 = vmatpush1.xpose.msra.mxu0 0.0
    %255 = vmatprep.subr.mxu0 0.0
    %256 = vmatpush1.xpose.msra.mxu0 0.0
    %257 = vmatprep.subr.mxu0 0.0
    %258 = vmatpush1.xpose.msra.mxu0 0.0
    %259 = vmatprep.subr.mxu0 0.0
    %260 = vmatpush1.xpose.msra.mxu0 0.0
    %261 = vmatprep.subr.mxu0 0.0
    %262 = vmatpush1.xpose.msra.mxu0 0.0
    %263 = vmatprep.subr.mxu0 0.0
    %264 = vmatpush1.xpose.msra.mxu0 0.0
    %265 = vmatprep.subr.mxu0 0.0
    %266 = vmatpush1.xpose.msra.mxu0 0.0
    %267 = vmatprep.subr.mxu0 0.0
    %268 = vmatpush1.xpose.msra.mxu0 0.0
    %269 = vmatprep.subr.mxu0 0.0
    %270 = vmatpush1.xpose.msra.mxu0 0.0
    %271 = vmatprep.subr.mxu0 0.0
    %272 = vmatpush1.xpose.msra.mxu0 0.0
    %273 = vmatprep.subr.mxu0 0.0
    %274 = vmatpush1.xpose.msra.mxu0 0.0
    %275 = vmatprep.subr.mxu0 0.0
    %276 = vmatpush1.xpose.msra.mxu0 0.0
    %277 = vmatprep.mubr.f32.mxu0 0.0
    %278 = vmatmul.mubr.f32.gmra.mrb[0].mxu0 %v190
    %v279 = vpop.f32.mrb[0].mxu0
    %v280 = vadd.f32 0.0, %v279
    %v281 = vpop.f32.mrb[0].mxu0
    %282 = vmatprep.mubr.f32.mxu0 0.0
    %283 = vmatmul.mubr.f32.gmra.mrb[0].mxu0 %v193
    %v284 = vpop.f32.mrb[0].mxu0
    %v285 = vadd.f32 0.0, %v284
    %v286 = vpop.f32.mrb[0].mxu0
    %287 = vmatprep.mubr.f32.mxu0 0.0
    %288 = vmatmul.mubr.f32.gmra.mrb[0].mxu0 %v196
    %v289 = vpop.f32.mrb[0].mxu0
    %v290 = vadd.f32 0.0, %v289
    %v291 = vpop.f32.mrb[0].mxu0
    %292 = vmatprep.mubr.f32.mxu0 0.0
    %293 = vmatmul.mubr.f32.gmra.mrb[0].mxu0 %v199
    %v294 = vpop.f32.mrb[0].mxu0
    %v295 = vadd.f32 0.0, %v294
    %v296 = vpop.f32.mrb[0].mxu0
    %297 = vdwg.mxu0
    %v299 = vsel %vm79, %v63, 0
    %v302 = vsel %vm79, %v64, 0
    %v305 = vsel %vm79, %v65, 0
    %v308 = vsel %vm79, %v66, 0
    %v311 = vsel %vm79, %v75, 0
    %v314 = vsel %vm79, %v76, 0
    %v317 = vsel %vm79, %v77, 0
    %v320 = vsel %vm79, %v78, 0
    %322 = vmatprep.subr.mxu0 0.0
    %323 = vmatpush1.xpose.msra.mxu0 %v311
    %324 = vmatprep.subr.mxu0 0.0
    %325 = vmatpush1.xpose.msra.mxu0 %v314
    %326 = vmatprep.subr.mxu0 0.0
    %327 = vmatpush1.xpose.msra.mxu0 %v317
    %328 = vmatprep.subr.mxu0 0.0
    %329 = vmatpush1.xpose.msra.mxu0 %v320
    %330 = vmatprep.subr.mxu0 0.0
    %331 = vmatpush1.xpose.msra.mxu0 0.0
    %332 = vmatprep.subr.mxu0 0.0
    %333 = vmatpush1.xpose.msra.mxu0 0.0
    %334 = vmatprep.subr.mxu0 0.0
    %335 = vmatpush1.xpose.msra.mxu0 0.0
    %336 = vmatprep.subr.mxu0 0.0
    %337 = vmatpush1.xpose.msra.mxu0 0.0
    %338 = vmatprep.subr.mxu0 0.0
    %339 = vmatpush1.xpose.msra.mxu0 0.0
    %340 = vmatprep.subr.mxu0 0.0
    %341 = vmatpush1.xpose.msra.mxu0 0.0
    %342 = vmatprep.subr.mxu0 0.0
    %343 = vmatpush1.xpose.msra.mxu0 0.0
    %344 = vmatprep.subr.mxu0 0.0
    %345 = vmatpush1.xpose.msra.mxu0 0.0
    %346 = vmatprep.subr.mxu0 0.0
    %347 = vmatpush1.xpose.msra.mxu0 0.0
    %348 = vmatprep.subr.mxu0 0.0
    %349 = vmatpush1.xpose.msra.mxu0 0.0
    %350 = vmatprep.subr.mxu0 0.0
    %351 = vmatpush1.xpose.msra.mxu0 0.0
    %352 = vmatprep.subr.mxu0 0.0
    %353 = vmatpush1.xpose.msra.mxu0 0.0
    %354 = vmatprep.subr.mxu0 0.0
    %355 = vmatpush1.xpose.msra.mxu0 0.0
    %356 = vmatprep.subr.mxu0 0.0
    %357 = vmatpush1.xpose.msra.mxu0 0.0
    %358 = vmatprep.subr.mxu0 0.0
    %359 = vmatpush1.xpose.msra.mxu0 0.0
    %360 = vmatprep.subr.mxu0 0.0
    %361 = vmatpush1.xpose.msra.mxu0 0.0
    %362 = vmatprep.subr.mxu0 0.0
    %363 = vmatpush1.xpose.msra.mxu0 0.0
    %364 = vmatprep.subr.mxu0 0.0
    %365 = vmatpush1.xpose.msra.mxu0 0.0
    %366 = vmatprep.subr.mxu0 0.0
    %367 = vmatpush1.xpose.msra.mxu0 0.0
    %368 = vmatprep.subr.mxu0 0.0
    %369 = vmatpush1.xpose.msra.mxu0 0.0
    %370 = vmatprep.subr.mxu0 0.0
    %371 = vmatpush1.xpose.msra.mxu0 0.0
    %372 = vmatprep.subr.mxu0 0.0
    %373 = vmatpush1.xpose.msra.mxu0 0.0
    %374 = vmatprep.subr.mxu0 0.0
    %375 = vmatpush1.xpose.msra.mxu0 0.0
    %376 = vmatprep.subr.mxu0 0.0
    %377 = vmatpush1.xpose.msra.mxu0 0.0
    %378 = vmatprep.subr.mxu0 0.0
    %379 = vmatpush1.xpose.msra.mxu0 0.0
    %380 = vmatprep.subr.mxu0 0.0
    %381 = vmatpush1.xpose.msra.mxu0 0.0
    %382 = vmatprep.subr.mxu0 0.0
    %383 = vmatpush1.xpose.msra.mxu0 0.0
    %384 = vmatprep.subr.mxu0 0.0
    %385 = vmatpush1.xpose.msra.mxu0 0.0
    %386 = vmatprep.mubr.f32.mxu0 0.0
    %387 = vmatmul.mubr.f32.gmra.mrb[0].mxu0 %v299
    %v388 = vpop.f32.mrb[0].mxu0
    %v389 = vadd.f32 0.0, %v388
    %v390 = vpop.f32.mrb[0].mxu0
    %391 = vmatprep.mubr.f32.mxu0 0.0
    %392 = vmatmul.mubr.f32.gmra.mrb[0].mxu0 %v302
    %v393 = vpop.f32.mrb[0].mxu0
    %v394 = vadd.f32 0.0, %v393
    %v395 = vpop.f32.mrb[0].mxu0
    %396 = vmatprep.mubr.f32.mxu0 0.0
    %397 = vmatmul.mubr.f32.gmra.mrb[0].mxu0 %v305
    %v398 = vpop.f32.mrb[0].mxu0
    %v399 = vadd.f32 0.0, %v398
    %v400 = vpop.f32.mrb[0].mxu0
    %401 = vmatprep.mubr.f32.mxu0 0.0
    %402 = vmatmul.mubr.f32.gmra.mrb[0].mxu0 %v308
    %v403 = vpop.f32.mrb[0].mxu0
    %v404 = vadd.f32 0.0, %v403
    %v405 = vpop.f32.mrb[0].mxu0
    %406 = vdwg.mxu0
    %v407 = vsel %vm79, %v171, 0.0
    %408 = vadd.xlane.f32.xlu0 %v407
    %v409 = vpop.xlane.xlu0 %408
    %v410 = vsel %vm79, %v176, 0.0
    %411 = vadd.xlane.f32.xlu0 %v410
    %v412 = vpop.xlane.xlu0 %411
    %v413 = vsel %vm79, %v181, 0.0
    %414 = vadd.xlane.f32.xlu0 %v413
    %v415 = vpop.xlane.xlu0 %414
    %v416 = vsel %vm79, %v186, 0.0
    %417 = vadd.xlane.f32.xlu0 %v416
    %v418 = vpop.xlane.xlu0 %417
    %v419 = vsel %vm79, %v280, 0.0
    %420 = vadd.xlane.f32.xlu0 %v419
    %v421 = vpop.xlane.xlu0 %420
    %v422 = vsel %vm79, %v285, 0.0
    %423 = vadd.xlane.f32.xlu0 %v422
    %v424 = vpop.xlane.xlu0 %423
    %v425 = vsel %vm79, %v290, 0.0
    %426 = vadd.xlane.f32.xlu0 %v425
    %v427 = vpop.xlane.xlu0 %426
    %v428 = vsel %vm79, %v295, 0.0
    %429 = vadd.xlane.f32.xlu0 %v428
    %v430 = vpop.xlane.xlu0 %429
    %v431 = vsel %vm79, %v389, 0.0
    %432 = vadd.xlane.f32.xlu0 %v431
    %v433 = vpop.xlane.xlu0 %432
    %v434 = vsel %vm79, %v394, 0.0
    %435 = vadd.xlane.f32.xlu0 %v434
    %v436 = vpop.xlane.xlu0 %435
    %v437 = vsel %vm79, %v399, 0.0
    %438 = vadd.xlane.f32.xlu0 %v437
    %v439 = vpop.xlane.xlu0 %438
    %v440 = vsel %vm79, %v404, 0.0
    %441 = vadd.xlane.f32.xlu0 %v440
    %v442 = vpop.xlane.xlu0 %441
    %v443 = vrcp.pop 32.0
    %v444 = vmul.f32 %v409, %v443
    %v445 = vmul.f32 %v412, %v443
    %v446 = vmul.f32 %v415, %v443
    %v447 = vmul.f32 %v418, %v443
    %v448 = vmul.f32 %v421, %v443
    %v449 = vmul.f32 %v424, %v443
    %v450 = vmul.f32 %v427, %v443
    %v451 = vmul.f32 %v430, %v443
    %v452 = vmul.f32 %v433, %v443
    %v453 = vmul.f32 %v436, %v443
    %v454 = vmul.f32 %v439, %v443
    %v455 = vmul.f32 %v442, %v443
    %v456 = vadd.f32 %v444, %v445
    %v457 = vadd.f32 %v456, %v446
    %v458 = vadd.f32 %v457, %v447
    %v459 = vrot.slane %v458, 4
    %v460 = vadd.f32 %v458, %v459
    %v461 = vrot.slane %v460, 2
    %v462 = vadd.f32 %v460, %v461
    %v463 = vrot.slane %v462, 1
    %v464 = vadd.f32 %v462, %v463
    %v465 = vadd.f32 %v448, %v449
    %v466 = vadd.f32 %v465, %v450
    %v467 = vadd.f32 %v466, %v451
    %v468 = vrot.slane %v467, 4
    %v469 = vadd.f32 %v467, %v468
    %v470 = vrot.slane %v469, 2
    %v471 = vadd.f32 %v469, %v470
    %v472 = vrot.slane %v471, 1
    %v473 = vadd.f32 %v471, %v472
    %v474 = vadd.f32 %v452, %v453
    %v475 = vadd.f32 %v474, %v454
    %v476 = vadd.f32 %v475, %v455
    %v477 = vrot.slane %v476, 4
    %v478 = vadd.f32 %v476, %v477
    %v479 = vrot.slane %v478, 2
    %v480 = vadd.f32 %v478, %v479
    %v481 = vrot.slane %v480, 1
    %v482 = vadd.f32 %v480, %v481
    %v483 = vmul.f32 %v464, %v443
    %v484 = vmul.f32 %v473, %v443
    %v485 = vmul.f32 %v482, %v443
    %v486 = vmul.f32 %v483, 0.01
    %v487 = vmul.f32 %v484, 0.01
    %v488 = vmul.f32 %v485, 0.01
    %v489 = vld [vmem:[#allocation6] sm:$0xff]
    %v490 = vld [vmem:[#allocation6 + $0x8] sm:$0xff]
    %v491 = vld [vmem:[#allocation6 + $0x10] sm:$0xff]
    %v492 = vld [vmem:[#allocation6 + $0x18] sm:$0xff]
    %v493 = vld [vmem:[#allocation6 + $0x20] sm:$0xff]
    %v494 = vld [vmem:[#allocation6 + $0x28] sm:$0xff]
    %v495 = vld [vmem:[#allocation6 + $0x30] sm:$0xff]
    %v496 = vld [vmem:[#allocation6 + $0x38] sm:$0xff]
    %v497 = vld [vmem:[#allocation6 + $0x40] sm:$0xff]
    %v498 = vld [vmem:[#allocation6 + $0x48] sm:$0xff]
    %v499 = vld [vmem:[#allocation6 + $0x50] sm:$0xff]
    %v500 = vld [vmem:[#allocation6 + $0x58] sm:$0xff]
    %v501 = vld [vmem:[#allocation6 + $0x60] sm:$0xff]
    %v502 = vld [vmem:[#allocation6 + $0x68] sm:$0xff]
    %v503 = vld [vmem:[#allocation6 + $0x70] sm:$0xff]
    %v504 = vld [vmem:[#allocation6 + $0x78] sm:$0xff]
    %v505 = vld [vmem:[#allocation6 + $0x80] sm:$0xff]
    %v506 = vld [vmem:[#allocation6 + $0x88] sm:$0xff]
    %v507 = vld [vmem:[#allocation6 + $0x90] sm:$0xff]
    %v508 = vld [vmem:[#allocation6 + $0x98] sm:$0xff]
    %v509 = vld [vmem:[#allocation6 + $0xa0] sm:$0xff]
    %v510 = vld [vmem:[#allocation6 + $0xa8] sm:$0xff]
    %v511 = vld [vmem:[#allocation6 + $0xb0] sm:$0xff]
    %v512 = vld [vmem:[#allocation6 + $0xb8] sm:$0xff]
    %v513 = vld [vmem:[#allocation6 + $0xc0] sm:$0xff]
    %v514 = vld [vmem:[#allocation6 + $0xc8] sm:$0xff]
    %v515 = vld [vmem:[#allocation6 + $0xd0] sm:$0xff]
    %v516 = vld [vmem:[#allocation6 + $0xd8] sm:$0xff]
    %v517 = vld [vmem:[#allocation6 + $0xe0] sm:$0xff]
    %v518 = vld [vmem:[#allocation6 + $0xe8] sm:$0xff]
    %v519 = vld [vmem:[#allocation6 + $0xf0] sm:$0xff]
    %v520 = vld [vmem:[#allocation6 + $0xf8] sm:$0xff]
    %v521 = vld [vmem:[#allocation6 + $0x100] sm:$0xff]
    %v522 = vld [vmem:[#allocation6 + $0x108] sm:$0xff]
    %v523 = vld [vmem:[#allocation6 + $0x110] sm:$0xff]
    %v524 = vld [vmem:[#allocation6 + $0x118] sm:$0xff]
    %v525 = vmul.f32 %v486, %v489
    %v526 = vmul.f32 %v486, %v490
    %v527 = vmul.f32 %v486, %v491
    %v528 = vmul.f32 %v486, %v492
    %v529 = vmul.f32 %v487, %v493
    %v530 = vmul.f32 %v487, %v494
    %v531 = vmul.f32 %v487, %v495
    %v532 = vmul.f32 %v487, %v496
    %v533 = vmul.f32 %v488, %v497
    %v534 = vmul.f32 %v488, %v498
    %v535 = vmul.f32 %v488, %v499
    %v536 = vmul.f32 %v488, %v500
    %v537 = vmul.f32 %v486, %v501
    %v538 = vmul.f32 %v486, %v502
    %v539 = vmul.f32 %v486, %v503
    %v540 = vmul.f32 %v486, %v504
    %v541 = vmul.f32 %v487, %v505
    %v542 = vmul.f32 %v487, %v506
    %v543 = vmul.f32 %v487, %v507
    %v544 = vmul.f32 %v487, %v508
    %v545 = vmul.f32 %v488, %v509
    %v546 = vmul.f32 %v488, %v510
    %v547 = vmul.f32 %v488, %v511
    %v548 = vmul.f32 %v488, %v512
    %v549 = vmul.f32 %v486, %v513
    %v550 = vmul.f32 %v486, %v514
    %v551 = vmul.f32 %v486, %v515
    %v552 = vmul.f32 %v486, %v516
    %v553 = vmul.f32 %v487, %v517
    %v554 = vmul.f32 %v487, %v518
    %v555 = vmul.f32 %v487, %v519
    %v556 = vmul.f32 %v487, %v520
    %v557 = vmul.f32 %v488, %v521
    %v558 = vmul.f32 %v488, %v522
    %v559 = vmul.f32 %v488, %v523
    %v560 = vmul.f32 %v488, %v524
    %v561 = vadd.f32 %v171, %v525
    %v562 = vadd.f32 %v176, %v526
    %v563 = vadd.f32 %v181, %v527
    %v564 = vadd.f32 %v186, %v528
    %v565 = vadd.f32 %v280, %v529
    %v566 = vadd.f32 %v285, %v530
    %v567 = vadd.f32 %v290, %v531
    %v568 = vadd.f32 %v295, %v532
    %v569 = vadd.f32 %v389, %v533
    %v570 = vadd.f32 %v394, %v534
    %v571 = vadd.f32 %v399, %v535
    %v572 = vadd.f32 %v404, %v536
    %v573 = vadd.f32 %v171, %v537
    %v574 = vadd.f32 %v176, %v538
    %v575 = vadd.f32 %v181, %v539
    %v576 = vadd.f32 %v186, %v540
    %v577 = vadd.f32 %v280, %v541
    %v578 = vadd.f32 %v285, %v542
    %v579 = vadd.f32 %v290, %v543
    %v580 = vadd.f32 %v295, %v544
    %v581 = vadd.f32 %v389, %v545
    %v582 = vadd.f32 %v394, %v546
    %v583 = vadd.f32 %v399, %v547
    %v584 = vadd.f32 %v404, %v548
    %v585 = vadd.f32 %v171, %v549
    %v586 = vadd.f32 %v176, %v550
    %v587 = vadd.f32 %v181, %v551
    %v588 = vadd.f32 %v186, %v552
    %v589 = vadd.f32 %v280, %v553
    %v590 = vadd.f32 %v285, %v554
    %v591 = vadd.f32 %v290, %v555
    %v592 = vadd.f32 %v295, %v556
    %v593 = vadd.f32 %v389, %v557
    %v594 = vadd.f32 %v394, %v558
    %v595 = vadd.f32 %v399, %v559
    %v596 = vadd.f32 %v404, %v560
    %597 = vst.msk [vmem:[%s3] sm:$0xff] %vm79, %v561
    %598 = vst.msk [vmem:[%s3 + $0x8] sm:$0xff] %vm79, %v562
    %599 = vst.msk [vmem:[%s3 + $0x10] sm:$0xff] %vm79, %v563
    %600 = vst.msk [vmem:[%s3 + $0x18] sm:$0xff] %vm79, %v564
    %601 = vst.msk [vmem:[%s3 + $0x20] sm:$0xff] %vm79, %v565
    %602 = vst.msk [vmem:[%s3 + $0x28] sm:$0xff] %vm79, %v566
    %603 = vst.msk [vmem:[%s3 + $0x30] sm:$0xff] %vm79, %v567
    %604 = vst.msk [vmem:[%s3 + $0x38] sm:$0xff] %vm79, %v568
    %605 = vst.msk [vmem:[%s3 + $0x40] sm:$0xff] %vm79, %v569
    %606 = vst.msk [vmem:[%s3 + $0x48] sm:$0xff] %vm79, %v570
    %607 = vst.msk [vmem:[%s3 + $0x50] sm:$0xff] %vm79, %v571
    %608 = vst.msk [vmem:[%s3 + $0x58] sm:$0xff] %vm79, %v572
    %609 = vst.msk [vmem:[%s3 + $0x60] sm:$0xff] %vm79, %v573
    %610 = vst.msk [vmem:[%s3 + $0x68] sm:$0xff] %vm79, %v574
    %611 = vst.msk [vmem:[%s3 + $0x70] sm:$0xff] %vm79, %v575
    %612 = vst.msk [vmem:[%s3 + $0x78] sm:$0xff] %vm79, %v576
    %613 = vst.msk [vmem:[%s3 + $0x80] sm:$0xff] %vm79, %v577
    %614 = vst.msk [vmem:[%s3 + $0x88] sm:$0xff] %vm79, %v578
    %615 = vst.msk [vmem:[%s3 + $0x90] sm:$0xff] %vm79, %v579
    %616 = vst.msk [vmem:[%s3 + $0x98] sm:$0xff] %vm79, %v580
    %617 = vst.msk [vmem:[%s3 + $0xa0] sm:$0xff] %vm79, %v581
    %618 = vst.msk [vmem:[%s3 + $0xa8] sm:$0xff] %vm79, %v582
    %619 = vst.msk [vmem:[%s3 + $0xb0] sm:$0xff] %vm79, %v583
    %620 = vst.msk [vmem:[%s3 + $0xb8] sm:$0xff] %vm79, %v584
    %621 = vst.msk [vmem:[%s3 + $0xc0] sm:$0xff] %vm79, %v585
    %622 = vst.msk [vmem:[%s3 + $0xc8] sm:$0xff] %vm79, %v586
    %623 = vst.msk [vmem:[%s3 + $0xd0] sm:$0xff] %vm79, %v587
    %624 = vst.msk [vmem:[%s3 + $0xd8] sm:$0xff] %vm79, %v588
    %625 = vst.msk [vmem:[%s3 + $0xe0] sm:$0xff] %vm79, %v589
    %626 = vst.msk [vmem:[%s3 + $0xe8] sm:$0xff] %vm79, %v590
    %627 = vst.msk [vmem:[%s3 + $0xf0] sm:$0xff] %vm79, %v591
    %628 = vst.msk [vmem:[%s3 + $0xf8] sm:$0xff] %vm79, %v592
    %629 = vst.msk [vmem:[%s3 + $0x100] sm:$0xff] %vm79, %v593
    %630 = vst.msk [vmem:[%s3 + $0x108] sm:$0xff] %vm79, %v594
    %631 = vst.msk [vmem:[%s3 + $0x110] sm:$0xff] %vm79, %v595
    %632 = vst.msk [vmem:[%s3 + $0x118] sm:$0xff] %vm79, %v596
    // Predicated region
    $region26: #{snn_forward.2} parent=1 // pred_check
      _
    $region27: #{snn_forward.2} parent=1 // pred_check_branch
      %634 = sbr.rel (0) target = $region29
    $region28: #{snn_forward.2} parent=1 // pred_region
      _
    $region29: #{snn_forward.2} parent=1 // pred_fallthru
      _
    // Predicated region
    $region30: #{snn_forward.2} parent=1 // pred_check
      _
    $region31: #{snn_forward.2} parent=1 // pred_check_branch
      %636 = sbr.rel (0) target = $region33
    $region32: #{snn_forward.2} parent=1 // pred_region
      _
    $region33: #{snn_forward.2} parent=1 // pred_fallthru
      _
    %637 = vsyncpa [#allocation3], 1
    %638 = vsyncpa [#allocation5], 1

// kernel: custom-call.50
$region0: #{custom-call.50}
  %s0 = inlined_call_operand.hbm [shape: pred[9], index: 0, kind: output, shape index: {}]

// kernel: custom-call.55
$region0: #{custom-call.55}
  %s0 = inlined_call_operand.vmem [shape: f32[9,32,32], index: 0, kind: input, shape index: {}]
  %s1 = inlined_call_operand.vmem [shape: f32[9,32,32], index: 1, kind: output, shape index: {}]
  $region1: #{custom-call.55} parent=0
    #allocation0 [shape = 'u8[32768]{0}', space=vmem, size = 0x8000, scoped, tag = 'operand span for operand 0']
    #allocation1 [shape = 'u8[32768]{0}', space=vmem, size = 0x8000, scoped, tag = 'operand span for operand 1']
    loop: start=0, step=1, limit=11
    $region2: #{custom-call.55} parent=1 // loop_pre_header
      _
    $region3: #{custom-call.55} parent=1 // loop_header
      %s3 = sphi 0, %s7
      %p4 = scmp.ge.s32.totalorder %s3, 11
      %s10 = sphi 0, %s29
      %s11 = sphi 0, %s25
      %s12 = sphi 0, %s21
      %s13 = sphi 0, %s10
      %s14 = sphi 0, %s11
      %s15 = sphi 0, %s12
      %s16 = sphi 0, %s13
      %s17 = sphi 0, %s14
      %s18 = sphi 0, %s15
    $region4: #{custom-call.55} parent=1 // loop_header_branch
      %6 = sbr.rel (%p4) target = $region8
    $region5: #{custom-call.55} parent=1 // loop_body
      %s8 = ssub.s32 %s3, 1
      %s9 = ssub.s32 %s3, 2
      %s19 = sadd.s32 1, %s12
      %p20 = scmp.ge.s32.totalorder %s19, 1
      %s21 = scalar_select %p20, 0, %s19
      %s22 = sadd.s32 1, %s11
      %s23 = scalar_select %p20, %s22, %s11
      %p24 = scmp.ge.s32.totalorder %s23, 1
      %s25 = scalar_select %p24, 0, %s23
      %s26 = sadd.s32 1, %s10
      %s27 = scalar_select %p24, %s26, %s10
      %p28 = scmp.ge.s32.totalorder %s27, 9
      %s29 = scalar_select %p28, 0, %s27
      %p30 = scmp.le.s32.totalorder 1, %s3
      %p31 = scmp.lt.s32.totalorder %s3, 10
      %p32 = pnand %p30, %p31
      %p33 = pneg %p32
      // Predicated region
      $region9: #{custom-call.55} parent=5 // pred_check
        _
      $region10: #{custom-call.55} parent=5 // pred_check_branch
        %35 = sbr.rel (%p32) target = $region12
      $region11: #{custom-call.55} parent=5 // pred_region
        %s36 = ssub.s32 %s3, 1
      $region12: #{custom-call.55} parent=5 // pred_fallthru
        _
      %p37 = scmp.lt.s32.totalorder %s3, 9
      // Predicated region
      $region13: #{custom-call.55} parent=5 // pred_check
        %p38 = pneg %p37
      $region14: #{custom-call.55} parent=5 // pred_check_branch
        %40 = sbr.rel (%p38) target = $region16
      $region15: #{custom-call.55} parent=5 // pred_region
        %s41 = sand.u32 %s3, 1
        %s42 = sand.u32 %s3, 1
        %s43 = smul.addr %s42, 32
        %s44 = scalar_lea.vmem [#allocation0], %s43
        %s45 = sadd.s32 %s12, %s11
        %s46 = smul.addr %s10, 4
        %s47 = sadd.s32 %s45, %s46
        %s48 = smul.addr %s47, 8
        %s49 = scalar_lea.vmem %s0, %s48
        // Predicated region
        $region17: #{custom-call.55} parent=15 // pred_check
          _
        $region18: #{custom-call.55} parent=15 // pred_check_branch
          %51 = sbr.rel (0) target = $region20
        $region19: #{custom-call.55} parent=15 // pred_region
          // Predicated region
          $region21: #{custom-call.55} parent=19 // pred_check
            _
          $region22: #{custom-call.55} parent=19 // pred_check_branch
            %53 = sbr.rel (0) target = $region24
          $region23: #{custom-call.55} parent=19 // pred_region
            // Predicated region
            $region36: #{custom-call.55} parent=23 // pred_check
              _
            $region37: #{custom-call.55} parent=23 // pred_check_branch
              %74 = sbr.rel (0) target = $region39
            $region38: #{custom-call.55} parent=23 // pred_region
              loop: start=0, step=1, limit=1
              $region40: #{custom-call.55} parent=38 // loop_pre_header
                _
              $region41: #{custom-call.55} parent=38 // loop_header
                %s76 = sphi 0, %s80
                %p77 = scmp.ge.s32.totalorder %s76, 1
                %s81 = sphi %s49, %s49
                %s82 = sphi %s44, %s44
              $region42: #{custom-call.55} parent=38 // loop_header_branch
                %79 = sbr.rel (%p77) target = $region46
              $region43: #{custom-call.55} parent=38 // loop_body
                %v83 = vld [vmem:[%s81] sm:$0xff]
                %84 = vst [vmem:[%s82] sm:$0xff] %v83
                %v85 = vld [vmem:[%s81 + $0x8] sm:$0xff]
                %86 = vst [vmem:[%s82 + $0x8] sm:$0xff] %v85
                %v87 = vld [vmem:[%s81 + $0x10] sm:$0xff]
                %88 = vst [vmem:[%s82 + $0x10] sm:$0xff] %v87
                %v89 = vld [vmem:[%s81 + $0x18] sm:$0xff]
                %90 = vst [vmem:[%s82 + $0x18] sm:$0xff] %v89
              $region44: #{custom-call.55} parent=38 // loop_footer
                %s80 = sadd.s32 1, %s76
              $region45: #{custom-call.55} parent=38 // loop_footer_branch
                %75 = sbr.rel target = $region41
              $region46: #{custom-call.55} parent=38 // loop_exit
                _
            $region39: #{custom-call.55} parent=23 // pred_fallthru
              _
            // Predicated region
            $region47: #{custom-call.55} parent=23 // pred_check
              _
            $region48: #{custom-call.55} parent=23 // pred_check_branch
              %92 = sbr.rel target = $region50
            $region49: #{custom-call.55} parent=23 // pred_region
              _
            $region50: #{custom-call.55} parent=23 // pred_fallthru
              _
          $region24: #{custom-call.55} parent=19 // pred_fallthru
            _
          // Predicated region
          $region25: #{custom-call.55} parent=19 // pred_check
            _
          $region26: #{custom-call.55} parent=19 // pred_check_branch
            %55 = sbr.rel target = $region28
          $region27: #{custom-call.55} parent=19 // pred_region
            loop: start=0, step=1, limit=1
            $region29: #{custom-call.55} parent=27 // loop_pre_header
              _
            $region30: #{custom-call.55} parent=27 // loop_header
              %s58 = sphi 0, %s62
              %p59 = scmp.ge.s32.totalorder %s58, 1
              %s63 = sphi %s49, %s49
              %s64 = sphi %s44, %s44
            $region31: #{custom-call.55} parent=27 // loop_header_branch
              %61 = sbr.rel (%p59) target = $region35
            $region32: #{custom-call.55} parent=27 // loop_body
              %v65 = vld [vmem:[%s63] sm:$0xff]
              %66 = vst [vmem:[%s64] sm:$0xff] %v65
              %v67 = vld [vmem:[%s63 + $0x8] sm:$0xff]
              %68 = vst [vmem:[%s64 + $0x8] sm:$0xff] %v67
              %v69 = vld [vmem:[%s63 + $0x10] sm:$0xff]
              %70 = vst [vmem:[%s64 + $0x10] sm:$0xff] %v69
              %v71 = vld [vmem:[%s63 + $0x18] sm:$0xff]
              %72 = vst [vmem:[%s64 + $0x18] sm:$0xff] %v71
            $region33: #{custom-call.55} parent=27 // loop_footer
              %s62 = sadd.s32 1, %s58
            $region34: #{custom-call.55} parent=27 // loop_footer_branch
              %57 = sbr.rel target = $region30
            $region35: #{custom-call.55} parent=27 // loop_exit
              _
          $region28: #{custom-call.55} parent=19 // pred_fallthru
            _
        $region20: #{custom-call.55} parent=15 // pred_fallthru
          _
        %93 = vnop
      $region16: #{custom-call.55} parent=5 // pred_fallthru
        _
      %p94 = scmp.le.s32.totalorder 1, %s3
      %p95 = scmp.lt.s32.totalorder %s3, 10
      %p96 = pnand %p94, %p95
      %p97 = pneg %p96
      // Predicated region
      $region51: #{custom-call.55} parent=5 // pred_check
        _
      $region52: #{custom-call.55} parent=5 // pred_check_branch
        %99 = sbr.rel (%p96) target = $region54
      $region53: #{custom-call.55} parent=5 // pred_region
        %s100 = ssub.s32 %s3, 1
        %s101 = sand.u32 %s8, 1
        %s102 = sand.u32 %s8, 1
        %s103 = smul.addr %s102, 32
        %s104 = scalar_lea.vmem [#allocation0], %s103
        %s105 = sand.u32 %s8, 1
        %s106 = sand.u32 %s8, 1
        %s107 = smul.addr %s106, 32
        %s108 = scalar_lea.vmem [#allocation0], %s107
        %s109 = sand.u32 %s8, 1
        %s110 = sand.u32 %s8, 1
        %s111 = smul.addr %s110, 32
        %s112 = scalar_lea.vmem [#allocation1], %s111
        %113 = vst [vmem:[%s112] sm:$0xff] 0.0
        %s114 = scalar_lea.vmem %s112, 8 [#allocation1]
        %115 = vst [vmem:[%s114] sm:$0xff] 0.0
        %s116 = scalar_lea.vmem %s112, 16 [#allocation1]
        %117 = vst [vmem:[%s116] sm:$0xff] 0.0
        %s118 = scalar_lea.vmem %s112, 24 [#allocation1]
        %119 = vst [vmem:[%s118] sm:$0xff] 0.0
        %vm120 = vcmask 7168
        %v121 = vld [vmem:[%s112] ss:$0 sm:$0xff]
        %v122 = vld [vmem:[%s104] ss:$0 sm:$0xff]
        %v123 = vmul.f32 %v121, %v121
        %124 = vadd.xlane.f32.xlu0 %v123
        %v125 = vpop.xlane.xlu0 %124
        %v126 = vsub.f32 %v122, %v125
        %v127 = vrsqrt.pop %v126
        %v128 = vld [vmem:[%s104] sm:$0xff]
        %v129 = vld [vmem:[%s112] sm:$0xff]
        %v130 = vmul.f32 %v129, %v121
        %131 = vadd.xlane.f32.xlu0 %v130
        %v132 = vpop.xlane.xlu0 %131
        %v133 = vsub.f32 %v128, %v132
        %v134 = vmul.f32 %v133, %v127
        %v135 = vsel %vm120, %v134, 0.0
        %v136 = vadd.f32 %v129, %v135
        %137 = vst [vmem:[%s112] sm:$0xff] %v136
        %s138 = scalar_lea.vmem %s104, 8 [#allocation0]
        %v139 = vld [vmem:[%s138] sm:$0xff]
        %s140 = scalar_lea.vmem %s112, 8 [#allocation1]
        %v141 = vld [vmem:[%s140] sm:$0xff]
        %v142 = vmul.f32 %v141, %v121
        %143 = vadd.xlane.f32.xlu0 %v142
        %v144 = vpop.xlane.xlu0 %143
        %v145 = vsub.f32 %v139, %v144
        %v146 = vmul.f32 %v145, %v127
        %v147 = vsel %vm120, %v146, 0.0
        %v148 = vadd.f32 %v141, %v147
        %s149 = scalar_lea.vmem %s112, 8 [#allocation1]
        %150 = vst [vmem:[%s149] sm:$0xff] %v148
        %s151 = scalar_lea.vmem %s104, 16 [#allocation0]
        %v152 = vld [vmem:[%s151] sm:$0xff]
        %s153 = scalar_lea.vmem %s112, 16 [#allocation1]
        %v154 = vld [vmem:[%s153] sm:$0xff]
        %v155 = vmul.f32 %v154, %v121
        %156 = vadd.xlane.f32.xlu0 %v155
        %v157 = vpop.xlane.xlu0 %156
        %v158 = vsub.f32 %v152, %v157
        %v159 = vmul.f32 %v158, %v127
        %v160 = vsel %vm120, %v159, 0.0
        %v161 = vadd.f32 %v154, %v160
        %s162 = scalar_lea.vmem %s112, 16 [#allocation1]
        %163 = vst [vmem:[%s162] sm:$0xff] %v161
        %s164 = scalar_lea.vmem %s104, 24 [#allocation0]
        %v165 = vld [vmem:[%s164] sm:$0xff]
        %s166 = scalar_lea.vmem %s112, 24 [#allocation1]
        %v167 = vld [vmem:[%s166] sm:$0xff]
        %v168 = vmul.f32 %v167, %v121
        %169 = vadd.xlane.f32.xlu0 %v168
        %v170 = vpop.xlane.xlu0 %169
        %v171 = vsub.f32 %v165, %v170
        %v172 = vmul.f32 %v171, %v127
        %v173 = vsel %vm120, %v172, 0.0
        %v174 = vadd.f32 %v167, %v173
        %s175 = scalar_lea.vmem %s112, 24 [#allocation1]
        %176 = vst [vmem:[%s175] sm:$0xff] %v174
        %vm177 = vcmask 15368
        %s178 = scalar_lea.vmem %s112, 1 [#allocation1]
        %v179 = vld [vmem:[%s178] ss:$0 sm:$0xff]
        %s180 = scalar_lea.vmem %s104, 1 [#allocation0]
        %v181 = vld [vmem:[%s180] ss:$0 sm:$0xff]
        %v182 = vmul.f32 %v179, %v179
        %183 = vadd.xlane.f32.xlu0 %v182
        %v184 = vpop.xlane.xlu0 %183
        %v185 = vsub.f32 %v181, %v184
        %v186 = vrsqrt.pop %v185
        %v187 = vld [vmem:[%s104] sm:$0xff]
        %v188 = vld [vmem:[%s112] sm:$0xff]
        %v189 = vmul.f32 %v188, %v179
        %190 = vadd.xlane.f32.xlu0 %v189
        %v191 = vpop.xlane.xlu0 %190
        %v192 = vsub.f32 %v187, %v191
        %v193 = vmul.f32 %v192, %v186
        %vm194 = vcmask 1047553
        %vm195 = vmand %vm177, %vm194
        %v196 = vsel %vm195, %v193, 0.0
        %v197 = vadd.f32 %v188, %v196
        %198 = vst [vmem:[%s112] sm:$0xff] %v197
        %s199 = scalar_lea.vmem %s104, 8 [#allocation0]
        %v200 = vld [vmem:[%s199] sm:$0xff]
        %s201 = scalar_lea.vmem %s112, 8 [#allocation1]
        %v202 = vld [vmem:[%s201] sm:$0xff]
        %v203 = vmul.f32 %v202, %v179
        %204 = vadd.xlane.f32.xlu0 %v203
        %v205 = vpop.xlane.xlu0 %204
        %v206 = vsub.f32 %v200, %v205
        %v207 = vmul.f32 %v206, %v186
        %v208 = vsel %vm177, %v207, 0.0
        %v209 = vadd.f32 %v202, %v208
        %s210 = scalar_lea.vmem %s112, 8 [#allocation1]
        %211 = vst [vmem:[%s210] sm:$0xff] %v209
        %s212 = scalar_lea.vmem %s104, 16 [#allocation0]
        %v213 = vld [vmem:[%s212] sm:$0xff]
        %s214 = scalar_lea.vmem %s112, 16 [#allocation1]
        %v215 = vld [vmem:[%s214] sm:$0xff]
        %v216 = vmul.f32 %v215, %v179
        %217 = vadd.xlane.f32.xlu0 %v216
        %v218 = vpop.xlane.xlu0 %217
        %v219 = vsub.f32 %v213, %v218
        %v220 = vmul.f32 %v219, %v186
        %v221 = vsel %vm177, %v220, 0.0
        %v222 = vadd.f32 %v215, %v221
        %s223 = scalar_lea.vmem %s112, 16 [#allocation1]
        %224 = vst [vmem:[%s223] sm:$0xff] %v222
        %s225 = scalar_lea.vmem %s104, 24 [#allocation0]
        %v226 = vld [vmem:[%s225] sm:$0xff]
        %s227 = scalar_lea.vmem %s112, 24 [#allocation1]
        %v228 = vld [vmem:[%s227] sm:$0xff]
        %v229 = vmul.f32 %v228, %v179
        %230 = vadd.xlane.f32.xlu0 %v229
        %v231 = vpop.xlane.xlu0 %230
        %v232 = vsub.f32 %v226, %v231
        %v233 = vmul.f32 %v232, %v186
        %v234 = vsel %vm177, %v233, 0.0
        %v235 = vadd.f32 %v228, %v234
        %s236 = scalar_lea.vmem %s112, 24 [#allocation1]
        %237 = vst [vmem:[%s236] sm:$0xff] %v235
        %vm238 = vcmask 23568
        %s239 = scalar_lea.vmem %s112, 2 [#allocation1]
        %v240 = vld [vmem:[%s239] ss:$0 sm:$0xff]
        %s241 = scalar_lea.vmem %s104, 2 [#allocation0]
        %v242 = vld [vmem:[%s241] ss:$0 sm:$0xff]
        %v243 = vmul.f32 %v240, %v240
        %244 = vadd.xlane.f32.xlu0 %v243
        %v245 = vpop.xlane.xlu0 %244
        %v246 = vsub.f32 %v242, %v245
        %v247 = vrsqrt.pop %v246
        %v248 = vld [vmem:[%s104] sm:$0xff]
        %v249 = vld [vmem:[%s112] sm:$0xff]
        %v250 = vmul.f32 %v249, %v240
        %251 = vadd.xlane.f32.xlu0 %v250
        %v252 = vpop.xlane.xlu0 %251
        %v253 = vsub.f32 %v248, %v252
        %v254 = vmul.f32 %v253, %v247
        %vm255 = vcmask 1047554
        %vm256 = vmand %vm238, %vm255
        %v257 = vsel %vm256, %v254, 0.0
        %v258 = vadd.f32 %v249, %v257
        %259 = vst [vmem:[%s112] sm:$0xff] %v258
        %s260 = scalar_lea.vmem %s104, 8 [#allocation0]
        %v261 = vld [vmem:[%s260] sm:$0xff]
        %s262 = scalar_lea.vmem %s112, 8 [#allocation1]
        %v263 = vld [vmem:[%s262] sm:$0xff]
        %v264 = vmul.f32 %v263, %v240
        %265 = vadd.xlane.f32.xlu0 %v264
        %v266 = vpop.xlane.xlu0 %265
        %v267 = vsub.f32 %v261, %v266
        %v268 = vmul.f32 %v267, %v247
        %v269 = vsel %vm238, %v268, 0.0
        %v270 = vadd.f32 %v263, %v269
        %s271 = scalar_lea.vmem %s112, 8 [#allocation1]
        %272 = vst [vmem:[%s271] sm:$0xff] %v270
        %s273 = scalar_lea.vmem %s104, 16 [#allocation0]
        %v274 = vld [vmem:[%s273] sm:$0xff]
        %s275 = scalar_lea.vmem %s112, 16 [#allocation1]
        %v276 = vld [vmem:[%s275] sm:$0xff]
        %v277 = vmul.f32 %v276, %v240
        %278 = vadd.xlane.f32.xlu0 %v277
        %v279 = vpop.xlane.xlu0 %278
        %v280 = vsub.f32 %v274, %v279
        %v281 = vmul.f32 %v280, %v247
        %v282 = vsel %vm238, %v281, 0.0
        %v283 = vadd.f32 %v276, %v282
        %s284 = scalar_lea.vmem %s112, 16 [#allocation1]
        %285 = vst [vmem:[%s284] sm:$0xff] %v283
        %s286 = scalar_lea.vmem %s104, 24 [#allocation0]
        %v287 = vld [vmem:[%s286] sm:$0xff]
        %s288 = scalar_lea.vmem %s112, 24 [#allocation1]
        %v289 = vld [vmem:[%s288] sm:$0xff]
        %v290 = vmul.f32 %v289, %v240
        %291 = vadd.xlane.f32.xlu0 %v290
        %v292 = vpop.xlane.xlu0 %291
        %v293 = vsub.f32 %v287, %v292
        %v294 = vmul.f32 %v293, %v247
        %v295 = vsel %vm238, %v294, 0.0
        %v296 = vadd.f32 %v289, %v295
        %s297 = scalar_lea.vmem %s112, 24 [#allocation1]
        %298 = vst [vmem:[%s297] sm:$0xff] %v296
        %vm299 = vcmask 31768
        %s300 = scalar_lea.vmem %s112, 3 [#allocation1]
        %v301 = vld [vmem:[%s300] ss:$0 sm:$0xff]
        %s302 = scalar_lea.vmem %s104, 3 [#allocation0]
        %v303 = vld [vmem:[%s302] ss:$0 sm:$0xff]
        %v304 = vmul.f32 %v301, %v301
        %305 = vadd.xlane.f32.xlu0 %v304
        %v306 = vpop.xlane.xlu0 %305
        %v307 = vsub.f32 %v303, %v306
        %v308 = vrsqrt.pop %v307
        %v309 = vld [vmem:[%s104] sm:$0xff]
        %v310 = vld [vmem:[%s112] sm:$0xff]
        %v311 = vmul.f32 %v310, %v301
        %312 = vadd.xlane.f32.xlu0 %v311
        %v313 = vpop.xlane.xlu0 %312
        %v314 = vsub.f32 %v309, %v313
        %v315 = vmul.f32 %v314, %v308
        %vm316 = vcmask 1047555
        %vm317 = vmand %vm299, %vm316
        %v318 = vsel %vm317, %v315, 0.0
        %v319 = vadd.f32 %v310, %v318
        %320 = vst [vmem:[%s112] sm:$0xff] %v319
        %s321 = scalar_lea.vmem %s104, 8 [#allocation0]
        %v322 = vld [vmem:[%s321] sm:$0xff]
        %s323 = scalar_lea.vmem %s112, 8 [#allocation1]
        %v324 = vld [vmem:[%s323] sm:$0xff]
        %v325 = vmul.f32 %v324, %v301
        %326 = vadd.xlane.f32.xlu0 %v325
        %v327 = vpop.xlane.xlu0 %326
        %v328 = vsub.f32 %v322, %v327
        %v329 = vmul.f32 %v328, %v308
        %v330 = vsel %vm299, %v329, 0.0
        %v331 = vadd.f32 %v324, %v330
        %s332 = scalar_lea.vmem %s112, 8 [#allocation1]
        %333 = vst [vmem:[%s332] sm:$0xff] %v331
        %s334 = scalar_lea.vmem %s104, 16 [#allocation0]
        %v335 = vld [vmem:[%s334] sm:$0xff]
        %s336 = scalar_lea.vmem %s112, 16 [#allocation1]
        %v337 = vld [vmem:[%s336] sm:$0xff]
        %v338 = vmul.f32 %v337, %v301
        %339 = vadd.xlane.f32.xlu0 %v338
        %v340 = vpop.xlane.xlu0 %339
        %v341 = vsub.f32 %v335, %v340
        %v342 = vmul.f32 %v341, %v308
        %v343 = vsel %vm299, %v342, 0.0
        %v344 = vadd.f32 %v337, %v343
        %s345 = scalar_lea.vmem %s112, 16 [#allocation1]
        %346 = vst [vmem:[%s345] sm:$0xff] %v344
        %s347 = scalar_lea.vmem %s104, 24 [#allocation0]
        %v348 = vld [vmem:[%s347] sm:$0xff]
        %s349 = scalar_lea.vmem %s112, 24 [#allocation1]
        %v350 = vld [vmem:[%s349] sm:$0xff]
        %v351 = vmul.f32 %v350, %v301
        %352 = vadd.xlane.f32.xlu0 %v351
        %v353 = vpop.xlane.xlu0 %352
        %v354 = vsub.f32 %v348, %v353
        %v355 = vmul.f32 %v354, %v308
        %v356 = vsel %vm299, %v355, 0.0
        %v357 = vadd.f32 %v350, %v356
        %s358 = scalar_lea.vmem %s112, 24 [#allocation1]
        %359 = vst [vmem:[%s358] sm:$0xff] %v357
        %vm360 = vcmask 39968
        %s361 = scalar_lea.vmem %s112, 4 [#allocation1]
        %v362 = vld [vmem:[%s361] ss:$0 sm:$0xff]
        %s363 = scalar_lea.vmem %s104, 4 [#allocation0]
        %v364 = vld [vmem:[%s363] ss:$0 sm:$0xff]
        %v365 = vmul.f32 %v362, %v362
        %366 = vadd.xlane.f32.xlu0 %v365
        %v367 = vpop.xlane.xlu0 %366
        %v368 = vsub.f32 %v364, %v367
        %v369 = vrsqrt.pop %v368
        %v370 = vld [vmem:[%s104] sm:$0xff]
        %v371 = vld [vmem:[%s112] sm:$0xff]
        %v372 = vmul.f32 %v371, %v362
        %373 = vadd.xlane.f32.xlu0 %v372
        %v374 = vpop.xlane.xlu0 %373
        %v375 = vsub.f32 %v370, %v374
        %v376 = vmul.f32 %v375, %v369
        %vm377 = vcmask 1047556
        %vm378 = vmand %vm360, %vm377
        %v379 = vsel %vm378, %v376, 0.0
        %v380 = vadd.f32 %v371, %v379
        %381 = vst [vmem:[%s112] sm:$0xff] %v380
        %s382 = scalar_lea.vmem %s104, 8 [#allocation0]
        %v383 = vld [vmem:[%s382] sm:$0xff]
        %s384 = scalar_lea.vmem %s112, 8 [#allocation1]
        %v385 = vld [vmem:[%s384] sm:$0xff]
        %v386 = vmul.f32 %v385, %v362
        %387 = vadd.xlane.f32.xlu0 %v386
        %v388 = vpop.xlane.xlu0 %387
        %v389 = vsub.f32 %v383, %v388
        %v390 = vmul.f32 %v389, %v369
        %v391 = vsel %vm360, %v390, 0.0
        %v392 = vadd.f32 %v385, %v391
        %s393 = scalar_lea.vmem %s112, 8 [#allocation1]
        %394 = vst [vmem:[%s393] sm:$0xff] %v392
        %s395 = scalar_lea.vmem %s104, 16 [#allocation0]
        %v396 = vld [vmem:[%s395] sm:$0xff]
        %s397 = scalar_lea.vmem %s112, 16 [#allocation1]
        %v398 = vld [vmem:[%s397] sm:$0xff]
        %v399 = vmul.f32 %v398, %v362
        %400 = vadd.xlane.f32.xlu0 %v399
        %v401 = vpop.xlane.xlu0 %400
        %v402 = vsub.f32 %v396, %v401
        %v403 = vmul.f32 %v402, %v369
        %v404 = vsel %vm360, %v403, 0.0
        %v405 = vadd.f32 %v398, %v404
        %s406 = scalar_lea.vmem %s112, 16 [#allocation1]
        %407 = vst [vmem:[%s406] sm:$0xff] %v405
        %s408 = scalar_lea.vmem %s104, 24 [#allocation0]
        %v409 = vld [vmem:[%s408] sm:$0xff]
        %s410 = scalar_lea.vmem %s112, 24 [#allocation1]
        %v411 = vld [vmem:[%s410] sm:$0xff]
        %v412 = vmul.f32 %v411, %v362
        %413 = vadd.xlane.f32.xlu0 %v412
        %v414 = vpop.xlane.xlu0 %413
        %v415 = vsub.f32 %v409, %v414
        %v416 = vmul.f32 %v415, %v369
        %v417 = vsel %vm360, %v416, 0.0
        %v418 = vadd.f32 %v411, %v417
        %s419 = scalar_lea.vmem %s112, 24 [#allocation1]
        %420 = vst [vmem:[%s419] sm:$0xff] %v418
        %vm421 = vcmask 48168
        %s422 = scalar_lea.vmem %s112, 5 [#allocation1]
        %v423 = vld [vmem:[%s422] ss:$0 sm:$0xff]
        %s424 = scalar_lea.vmem %s104, 5 [#allocation0]
        %v425 = vld [vmem:[%s424] ss:$0 sm:$0xff]
        %v426 = vmul.f32 %v423, %v423
        %427 = vadd.xlane.f32.xlu0 %v426
        %v428 = vpop.xlane.xlu0 %427
        %v429 = vsub.f32 %v425, %v428
        %v430 = vrsqrt.pop %v429
        %v431 = vld [vmem:[%s104] sm:$0xff]
        %v432 = vld [vmem:[%s112] sm:$0xff]
        %v433 = vmul.f32 %v432, %v423
        %434 = vadd.xlane.f32.xlu0 %v433
        %v435 = vpop.xlane.xlu0 %434
        %v436 = vsub.f32 %v431, %v435
        %v437 = vmul.f32 %v436, %v430
        %vm438 = vcmask 1047557
        %vm439 = vmand %vm421, %vm438
        %v440 = vsel %vm439, %v437, 0.0
        %v441 = vadd.f32 %v432, %v440
        %442 = vst [vmem:[%s112] sm:$0xff] %v441
        %s443 = scalar_lea.vmem %s104, 8 [#allocation0]
        %v444 = vld [vmem:[%s443] sm:$0xff]
        %s445 = scalar_lea.vmem %s112, 8 [#allocation1]
        %v446 = vld [vmem:[%s445] sm:$0xff]
        %v447 = vmul.f32 %v446, %v423
        %448 = vadd.xlane.f32.xlu0 %v447
        %v449 = vpop.xlane.xlu0 %448
        %v450 = vsub.f32 %v444, %v449
        %v451 = vmul.f32 %v450, %v430
        %v452 = vsel %vm421, %v451, 0.0
        %v453 = vadd.f32 %v446, %v452
        %s454 = scalar_lea.vmem %s112, 8 [#allocation1]
        %455 = vst [vmem:[%s454] sm:$0xff] %v453
        %s456 = scalar_lea.vmem %s104, 16 [#allocation0]
        %v457 = vld [vmem:[%s456] sm:$0xff]
        %s458 = scalar_lea.vmem %s112, 16 [#allocation1]
        %v459 = vld [vmem:[%s458] sm:$0xff]
        %v460 = vmul.f32 %v459, %v423
        %461 = vadd.xlane.f32.xlu0 %v460
        %v462 = vpop.xlane.xlu0 %461
        %v463 = vsub.f32 %v457, %v462
        %v464 = vmul.f32 %v463, %v430
        %v465 = vsel %vm421, %v464, 0.0
        %v466 = vadd.f32 %v459, %v465
        %s467 = scalar_lea.vmem %s112, 16 [#allocation1]
        %468 = vst [vmem:[%s467] sm:$0xff] %v466
        %s469 = scalar_lea.vmem %s104, 24 [#allocation0]
        %v470 = vld [vmem:[%s469] sm:$0xff]
        %s471 = scalar_lea.vmem %s112, 24 [#allocation1]
        %v472 = vld [vmem:[%s471] sm:$0xff]
        %v473 = vmul.f32 %v472, %v423
        %474 = vadd.xlane.f32.xlu0 %v473
        %v475 = vpop.xlane.xlu0 %474
        %v476 = vsub.f32 %v470, %v475
        %v477 = vmul.f32 %v476, %v430
        %v478 = vsel %vm421, %v477, 0.0
        %v479 = vadd.f32 %v472, %v478
        %s480 = scalar_lea.vmem %s112, 24 [#allocation1]
        %481 = vst [vmem:[%s480] sm:$0xff] %v479
        %vm482 = vcmask 56368
        %s483 = scalar_lea.vmem %s112, 6 [#allocation1]
        %v484 = vld [vmem:[%s483] ss:$0 sm:$0xff]
        %s485 = scalar_lea.vmem %s104, 6 [#allocation0]
        %v486 = vld [vmem:[%s485] ss:$0 sm:$0xff]
        %v487 = vmul.f32 %v484, %v484
        %488 = vadd.xlane.f32.xlu0 %v487
        %v489 = vpop.xlane.xlu0 %488
        %v490 = vsub.f32 %v486, %v489
        %v491 = vrsqrt.pop %v490
        %v492 = vld [vmem:[%s104] sm:$0xff]
        %v493 = vld [vmem:[%s112] sm:$0xff]
        %v494 = vmul.f32 %v493, %v484
        %495 = vadd.xlane.f32.xlu0 %v494
        %v496 = vpop.xlane.xlu0 %495
        %v497 = vsub.f32 %v492, %v496
        %v498 = vmul.f32 %v497, %v491
        %vm499 = vcmask 1047558
        %vm500 = vmand %vm482, %vm499
        %v501 = vsel %vm500, %v498, 0.0
        %v502 = vadd.f32 %v493, %v501
        %503 = vst [vmem:[%s112] sm:$0xff] %v502
        %s504 = scalar_lea.vmem %s104, 8 [#allocation0]
        %v505 = vld [vmem:[%s504] sm:$0xff]
        %s506 = scalar_lea.vmem %s112, 8 [#allocation1]
        %v507 = vld [vmem:[%s506] sm:$0xff]
        %v508 = vmul.f32 %v507, %v484
        %509 = vadd.xlane.f32.xlu0 %v508
        %v510 = vpop.xlane.xlu0 %509
        %v511 = vsub.f32 %v505, %v510
        %v512 = vmul.f32 %v511, %v491
        %v513 = vsel %vm482, %v512, 0.0
        %v514 = vadd.f32 %v507, %v513
        %s515 = scalar_lea.vmem %s112, 8 [#allocation1]
        %516 = vst [vmem:[%s515] sm:$0xff] %v514
        %s517 = scalar_lea.vmem %s104, 16 [#allocation0]
        %v518 = vld [vmem:[%s517] sm:$0xff]
        %s519 = scalar_lea.vmem %s112, 16 [#allocation1]
        %v520 = vld [vmem:[%s519] sm:$0xff]
        %v521 = vmul.f32 %v520, %v484
        %522 = vadd.xlane.f32.xlu0 %v521
        %v523 = vpop.xlane.xlu0 %522
        %v524 = vsub.f32 %v518, %v523
        %v525 = vmul.f32 %v524, %v491
        %v526 = vsel %vm482, %v525, 0.0
        %v527 = vadd.f32 %v520, %v526
        %s528 = scalar_lea.vmem %s112, 16 [#allocation1]
        %529 = vst [vmem:[%s528] sm:$0xff] %v527
        %s530 = scalar_lea.vmem %s104, 24 [#allocation0]
        %v531 = vld [vmem:[%s530] sm:$0xff]
        %s532 = scalar_lea.vmem %s112, 24 [#allocation1]
        %v533 = vld [vmem:[%s532] sm:$0xff]
        %v534 = vmul.f32 %v533, %v484
        %535 = vadd.xlane.f32.xlu0 %v534
        %v536 = vpop.xlane.xlu0 %535
        %v537 = vsub.f32 %v531, %v536
        %v538 = vmul.f32 %v537, %v491
        %v539 = vsel %vm482, %v538, 0.0
        %v540 = vadd.f32 %v533, %v539
        %s541 = scalar_lea.vmem %s112, 24 [#allocation1]
        %542 = vst [vmem:[%s541] sm:$0xff] %v540
        %vm543 = vcmask 64568
        %s544 = scalar_lea.vmem %s112, 7 [#allocation1]
        %v545 = vld [vmem:[%s544] ss:$0 sm:$0xff]
        %s546 = scalar_lea.vmem %s104, 7 [#allocation0]
        %v547 = vld [vmem:[%s546] ss:$0 sm:$0xff]
        %v548 = vmul.f32 %v545, %v545
        %549 = vadd.xlane.f32.xlu0 %v548
        %v550 = vpop.xlane.xlu0 %549
        %v551 = vsub.f32 %v547, %v550
        %v552 = vrsqrt.pop %v551
        %v553 = vld [vmem:[%s104] sm:$0xff]
        %v554 = vld [vmem:[%s112] sm:$0xff]
        %v555 = vmul.f32 %v554, %v545
        %556 = vadd.xlane.f32.xlu0 %v555
        %v557 = vpop.xlane.xlu0 %556
        %v558 = vsub.f32 %v553, %v557
        %v559 = vmul.f32 %v558, %v552
        %vm560 = vcmask 1047559
        %vm561 = vmand %vm543, %vm560
        %v562 = vsel %vm561, %v559, 0.0
        %v563 = vadd.f32 %v554, %v562
        %564 = vst [vmem:[%s112] sm:$0xff] %v563
        %s565 = scalar_lea.vmem %s104, 8 [#allocation0]
        %v566 = vld [vmem:[%s565] sm:$0xff]
        %s567 = scalar_lea.vmem %s112, 8 [#allocation1]
        %v568 = vld [vmem:[%s567] sm:$0xff]
        %v569 = vmul.f32 %v568, %v545
        %570 = vadd.xlane.f32.xlu0 %v569
        %v571 = vpop.xlane.xlu0 %570
        %v572 = vsub.f32 %v566, %v571
        %v573 = vmul.f32 %v572, %v552
        %v574 = vsel %vm543, %v573, 0.0
        %v575 = vadd.f32 %v568, %v574
        %s576 = scalar_lea.vmem %s112, 8 [#allocation1]
        %577 = vst [vmem:[%s576] sm:$0xff] %v575
        %s578 = scalar_lea.vmem %s104, 16 [#allocation0]
        %v579 = vld [vmem:[%s578] sm:$0xff]
        %s580 = scalar_lea.vmem %s112, 16 [#allocation1]
        %v581 = vld [vmem:[%s580] sm:$0xff]
        %v582 = vmul.f32 %v581, %v545
        %583 = vadd.xlane.f32.xlu0 %v582
        %v584 = vpop.xlane.xlu0 %583
        %v585 = vsub.f32 %v579, %v584
        %v586 = vmul.f32 %v585, %v552
        %v587 = vsel %vm543, %v586, 0.0
        %v588 = vadd.f32 %v581, %v587
        %s589 = scalar_lea.vmem %s112, 16 [#allocation1]
        %590 = vst [vmem:[%s589] sm:$0xff] %v588
        %s591 = scalar_lea.vmem %s104, 24 [#allocation0]
        %v592 = vld [vmem:[%s591] sm:$0xff]
        %s593 = scalar_lea.vmem %s112, 24 [#allocation1]
        %v594 = vld [vmem:[%s593] sm:$0xff]
        %v595 = vmul.f32 %v594, %v545
        %596 = vadd.xlane.f32.xlu0 %v595
        %v597 = vpop.xlane.xlu0 %596
        %v598 = vsub.f32 %v592, %v597
        %v599 = vmul.f32 %v598, %v552
        %v600 = vsel %vm543, %v599, 0.0
        %v601 = vadd.f32 %v594, %v600
        %s602 = scalar_lea.vmem %s112, 24 [#allocation1]
        %603 = vst [vmem:[%s602] sm:$0xff] %v601
        %vm604 = vcmask 72768
        %s605 = scalar_lea.vmem %s112, 8 [#allocation1]
        %v606 = vld [vmem:[%s605] ss:$0 sm:$0xff]
        %s607 = scalar_lea.vmem %s104, 8 [#allocation0]
        %v608 = vld [vmem:[%s607] ss:$0 sm:$0xff]
        %v609 = vmul.f32 %v606, %v606
        %610 = vadd.xlane.f32.xlu0 %v609
        %v611 = vpop.xlane.xlu0 %610
        %v612 = vsub.f32 %v608, %v611
        %v613 = vrsqrt.pop %v612
        %s614 = scalar_lea.vmem %s104, 8 [#allocation0]
        %v615 = vld [vmem:[%s614] sm:$0xff]
        %s616 = scalar_lea.vmem %s112, 8 [#allocation1]
        %v617 = vld [vmem:[%s616] sm:$0xff]
        %v618 = vmul.f32 %v617, %v606
        %619 = vadd.xlane.f32.xlu0 %v618
        %v620 = vpop.xlane.xlu0 %619
        %v621 = vsub.f32 %v615, %v620
        %v622 = vmul.f32 %v621, %v613
        %v623 = vsel %vm604, %v622, 0.0
        %v624 = vadd.f32 %v617, %v623
        %s625 = scalar_lea.vmem %s112, 8 [#allocation1]
        %626 = vst [vmem:[%s625] sm:$0xff] %v624
        %s627 = scalar_lea.vmem %s104, 16 [#allocation0]
        %v628 = vld [vmem:[%s627] sm:$0xff]
        %s629 = scalar_lea.vmem %s112, 16 [#allocation1]
        %v630 = vld [vmem:[%s629] sm:$0xff]
        %v631 = vmul.f32 %v630, %v606
        %632 = vadd.xlane.f32.xlu0 %v631
        %v633 = vpop.xlane.xlu0 %632
        %v634 = vsub.f32 %v628, %v633
        %v635 = vmul.f32 %v634, %v613
        %v636 = vsel %vm604, %v635, 0.0
        %v637 = vadd.f32 %v630, %v636
        %s638 = scalar_lea.vmem %s112, 16 [#allocation1]
        %639 = vst [vmem:[%s638] sm:$0xff] %v637
        %s640 = scalar_lea.vmem %s104, 24 [#allocation0]
        %v641 = vld [vmem:[%s640] sm:$0xff]
        %s642 = scalar_lea.vmem %s112, 24 [#allocation1]
        %v643 = vld [vmem:[%s642] sm:$0xff]
        %v644 = vmul.f32 %v643, %v606
        %645 = vadd.xlane.f32.xlu0 %v644
        %v646 = vpop.xlane.xlu0 %645
        %v647 = vsub.f32 %v641, %v646
        %v648 = vmul.f32 %v647, %v613
        %v649 = vsel %vm604, %v648, 0.0
        %v650 = vadd.f32 %v643, %v649
        %s651 = scalar_lea.vmem %s112, 24 [#allocation1]
        %652 = vst [vmem:[%s651] sm:$0xff] %v650
        %vm653 = vcmask 80968
        %s654 = scalar_lea.vmem %s112, 9 [#allocation1]
        %v655 = vld [vmem:[%s654] ss:$0 sm:$0xff]
        %s656 = scalar_lea.vmem %s104, 9 [#allocation0]
        %v657 = vld [vmem:[%s656] ss:$0 sm:$0xff]
        %v658 = vmul.f32 %v655, %v655
        %659 = vadd.xlane.f32.xlu0 %v658
        %v660 = vpop.xlane.xlu0 %659
        %v661 = vsub.f32 %v657, %v660
        %v662 = vrsqrt.pop %v661
        %s663 = scalar_lea.vmem %s104, 8 [#allocation0]
        %v664 = vld [vmem:[%s663] sm:$0xff]
        %s665 = scalar_lea.vmem %s112, 8 [#allocation1]
        %v666 = vld [vmem:[%s665] sm:$0xff]
        %v667 = vmul.f32 %v666, %v655
        %668 = vadd.xlane.f32.xlu0 %v667
        %v669 = vpop.xlane.xlu0 %668
        %v670 = vsub.f32 %v664, %v669
        %v671 = vmul.f32 %v670, %v662
        %vm672 = vcmask 1047553
        %vm673 = vmand %vm653, %vm672
        %v674 = vsel %vm673, %v671, 0.0
        %v675 = vadd.f32 %v666, %v674
        %s676 = scalar_lea.vmem %s112, 8 [#allocation1]
        %677 = vst [vmem:[%s676] sm:$0xff] %v675
        %s678 = scalar_lea.vmem %s104, 16 [#allocation0]
        %v679 = vld [vmem:[%s678] sm:$0xff]
        %s680 = scalar_lea.vmem %s112, 16 [#allocation1]
        %v681 = vld [vmem:[%s680] sm:$0xff]
        %v682 = vmul.f32 %v681, %v655
        %683 = vadd.xlane.f32.xlu0 %v682
        %v684 = vpop.xlane.xlu0 %683
        %v685 = vsub.f32 %v679, %v684
        %v686 = vmul.f32 %v685, %v662
        %v687 = vsel %vm653, %v686, 0.0
        %v688 = vadd.f32 %v681, %v687
        %s689 = scalar_lea.vmem %s112, 16 [#allocation1]
        %690 = vst [vmem:[%s689] sm:$0xff] %v688
        %s691 = scalar_lea.vmem %s104, 24 [#allocation0]
        %v692 = vld [vmem:[%s691] sm:$0xff]
        %s693 = scalar_lea.vmem %s112, 24 [#allocation1]
        %v694 = vld [vmem:[%s693] sm:$0xff]
        %v695 = vmul.f32 %v694, %v655
        %696 = vadd.xlane.f32.xlu0 %v695
        %v697 = vpop.xlane.xlu0 %696
        %v698 = vsub.f32 %v692, %v697
        %v699 = vmul.f32 %v698, %v662
        %v700 = vsel %vm653, %v699, 0.0
        %v701 = vadd.f32 %v694, %v700
        %s702 = scalar_lea.vmem %s112, 24 [#allocation1]
        %703 = vst [vmem:[%s702] sm:$0xff] %v701
        %vm704 = vcmask 89168
        %s705 = scalar_lea.vmem %s112, 10 [#allocation1]
        %v706 = vld [vmem:[%s705] ss:$0 sm:$0xff]
        %s707 = scalar_lea.vmem %s104, 10 [#allocation0]
        %v708 = vld [vmem:[%s707] ss:$0 sm:$0xff]
        %v709 = vmul.f32 %v706, %v706
        %710 = vadd.xlane.f32.xlu0 %v709
        %v711 = vpop.xlane.xlu0 %710
        %v712 = vsub.f32 %v708, %v711
        %v713 = vrsqrt.pop %v712
        %s714 = scalar_lea.vmem %s104, 8 [#allocation0]
        %v715 = vld [vmem:[%s714] sm:$0xff]
        %s716 = scalar_lea.vmem %s112, 8 [#allocation1]
        %v717 = vld [vmem:[%s716] sm:$0xff]
        %v718 = vmul.f32 %v717, %v706
        %719 = vadd.xlane.f32.xlu0 %v718
        %v720 = vpop.xlane.xlu0 %719
        %v721 = vsub.f32 %v715, %v720
        %v722 = vmul.f32 %v721, %v713
        %vm723 = vcmask 1047554
        %vm724 = vmand %vm704, %vm723
        %v725 = vsel %vm724, %v722, 0.0
        %v726 = vadd.f32 %v717, %v725
        %s727 = scalar_lea.vmem %s112, 8 [#allocation1]
        %728 = vst [vmem:[%s727] sm:$0xff] %v726
        %s729 = scalar_lea.vmem %s104, 16 [#allocation0]
        %v730 = vld [vmem:[%s729] sm:$0xff]
        %s731 = scalar_lea.vmem %s112, 16 [#allocation1]
        %v732 = vld [vmem:[%s731] sm:$0xff]
        %v733 = vmul.f32 %v732, %v706
        %734 = vadd.xlane.f32.xlu0 %v733
        %v735 = vpop.xlane.xlu0 %734
        %v736 = vsub.f32 %v730, %v735
        %v737 = vmul.f32 %v736, %v713
        %v738 = vsel %vm704, %v737, 0.0
        %v739 = vadd.f32 %v732, %v738
        %s740 = scalar_lea.vmem %s112, 16 [#allocation1]
        %741 = vst [vmem:[%s740] sm:$0xff] %v739
        %s742 = scalar_lea.vmem %s104, 24 [#allocation0]
        %v743 = vld [vmem:[%s742] sm:$0xff]
        %s744 = scalar_lea.vmem %s112, 24 [#allocation1]
        %v745 = vld [vmem:[%s744] sm:$0xff]
        %v746 = vmul.f32 %v745, %v706
        %747 = vadd.xlane.f32.xlu0 %v746
        %v748 = vpop.xlane.xlu0 %747
        %v749 = vsub.f32 %v743, %v748
        %v750 = vmul.f32 %v749, %v713
        %v751 = vsel %vm704, %v750, 0.0
        %v752 = vadd.f32 %v745, %v751
        %s753 = scalar_lea.vmem %s112, 24 [#allocation1]
        %754 = vst [vmem:[%s753] sm:$0xff] %v752
        %vm755 = vcmask 97368
        %s756 = scalar_lea.vmem %s112, 11 [#allocation1]
        %v757 = vld [vmem:[%s756] ss:$0 sm:$0xff]
        %s758 = scalar_lea.vmem %s104, 11 [#allocation0]
        %v759 = vld [vmem:[%s758] ss:$0 sm:$0xff]
        %v760 = vmul.f32 %v757, %v757
        %761 = vadd.xlane.f32.xlu0 %v760
        %v762 = vpop.xlane.xlu0 %761
        %v763 = vsub.f32 %v759, %v762
        %v764 = vrsqrt.pop %v763
        %s765 = scalar_lea.vmem %s104, 8 [#allocation0]
        %v766 = vld [vmem:[%s765] sm:$0xff]
        %s767 = scalar_lea.vmem %s112, 8 [#allocation1]
        %v768 = vld [vmem:[%s767] sm:$0xff]
        %v769 = vmul.f32 %v768, %v757
        %770 = vadd.xlane.f32.xlu0 %v769
        %v771 = vpop.xlane.xlu0 %770
        %v772 = vsub.f32 %v766, %v771
        %v773 = vmul.f32 %v772, %v764
        %vm774 = vcmask 1047555
        %vm775 = vmand %vm755, %vm774
        %v776 = vsel %vm775, %v773, 0.0
        %v777 = vadd.f32 %v768, %v776
        %s778 = scalar_lea.vmem %s112, 8 [#allocation1]
        %779 = vst [vmem:[%s778] sm:$0xff] %v777
        %s780 = scalar_lea.vmem %s104, 16 [#allocation0]
        %v781 = vld [vmem:[%s780] sm:$0xff]
        %s782 = scalar_lea.vmem %s112, 16 [#allocation1]
        %v783 = vld [vmem:[%s782] sm:$0xff]
        %v784 = vmul.f32 %v783, %v757
        %785 = vadd.xlane.f32.xlu0 %v784
        %v786 = vpop.xlane.xlu0 %785
        %v787 = vsub.f32 %v781, %v786
        %v788 = vmul.f32 %v787, %v764
        %v789 = vsel %vm755, %v788, 0.0
        %v790 = vadd.f32 %v783, %v789
        %s791 = scalar_lea.vmem %s112, 16 [#allocation1]
        %792 = vst [vmem:[%s791] sm:$0xff] %v790
        %s793 = scalar_lea.vmem %s104, 24 [#allocation0]
        %v794 = vld [vmem:[%s793] sm:$0xff]
        %s795 = scalar_lea.vmem %s112, 24 [#allocation1]
        %v796 = vld [vmem:[%s795] sm:$0xff]
        %v797 = vmul.f32 %v796, %v757
        %798 = vadd.xlane.f32.xlu0 %v797
        %v799 = vpop.xlane.xlu0 %798
        %v800 = vsub.f32 %v794, %v799
        %v801 = vmul.f32 %v800, %v764
        %v802 = vsel %vm755, %v801, 0.0
        %v803 = vadd.f32 %v796, %v802
        %s804 = scalar_lea.vmem %s112, 24 [#allocation1]
        %805 = vst [vmem:[%s804] sm:$0xff] %v803
        %vm806 = vcmask 105568
        %s807 = scalar_lea.vmem %s112, 12 [#allocation1]
        %v808 = vld [vmem:[%s807] ss:$0 sm:$0xff]
        %s809 = scalar_lea.vmem %s104, 12 [#allocation0]
        %v810 = vld [vmem:[%s809] ss:$0 sm:$0xff]
        %v811 = vmul.f32 %v808, %v808
        %812 = vadd.xlane.f32.xlu0 %v811
        %v813 = vpop.xlane.xlu0 %812
        %v814 = vsub.f32 %v810, %v813
        %v815 = vrsqrt.pop %v814
        %s816 = scalar_lea.vmem %s104, 8 [#allocation0]
        %v817 = vld [vmem:[%s816] sm:$0xff]
        %s818 = scalar_lea.vmem %s112, 8 [#allocation1]
        %v819 = vld [vmem:[%s818] sm:$0xff]
        %v820 = vmul.f32 %v819, %v808
        %821 = vadd.xlane.f32.xlu0 %v820
        %v822 = vpop.xlane.xlu0 %821
        %v823 = vsub.f32 %v817, %v822
        %v824 = vmul.f32 %v823, %v815
        %vm825 = vcmask 1047556
        %vm826 = vmand %vm806, %vm825
        %v827 = vsel %vm826, %v824, 0.0
        %v828 = vadd.f32 %v819, %v827
        %s829 = scalar_lea.vmem %s112, 8 [#allocation1]
        %830 = vst [vmem:[%s829] sm:$0xff] %v828
        %s831 = scalar_lea.vmem %s104, 16 [#allocation0]
        %v832 = vld [vmem:[%s831] sm:$0xff]
        %s833 = scalar_lea.vmem %s112, 16 [#allocation1]
        %v834 = vld [vmem:[%s833] sm:$0xff]
        %v835 = vmul.f32 %v834, %v808
        %836 = vadd.xlane.f32.xlu0 %v835
        %v837 = vpop.xlane.xlu0 %836
        %v838 = vsub.f32 %v832, %v837
        %v839 = vmul.f32 %v838, %v815
        %v840 = vsel %vm806, %v839, 0.0
        %v841 = vadd.f32 %v834, %v840
        %s842 = scalar_lea.vmem %s112, 16 [#allocation1]
        %843 = vst [vmem:[%s842] sm:$0xff] %v841
        %s844 = scalar_lea.vmem %s104, 24 [#allocation0]
        %v845 = vld [vmem:[%s844] sm:$0xff]
        %s846 = scalar_lea.vmem %s112, 24 [#allocation1]
        %v847 = vld [vmem:[%s846] sm:$0xff]
        %v848 = vmul.f32 %v847, %v808
        %849 = vadd.xlane.f32.xlu0 %v848
        %v850 = vpop.xlane.xlu0 %849
        %v851 = vsub.f32 %v845, %v850
        %v852 = vmul.f32 %v851, %v815
        %v853 = vsel %vm806, %v852, 0.0
        %v854 = vadd.f32 %v847, %v853
        %s855 = scalar_lea.vmem %s112, 24 [#allocation1]
        %856 = vst [vmem:[%s855] sm:$0xff] %v854
        %vm857 = vcmask 113768
        %s858 = scalar_lea.vmem %s112, 13 [#allocation1]
        %v859 = vld [vmem:[%s858] ss:$0 sm:$0xff]
        %s860 = scalar_lea.vmem %s104, 13 [#allocation0]
        %v861 = vld [vmem:[%s860] ss:$0 sm:$0xff]
        %v862 = vmul.f32 %v859, %v859
        %863 = vadd.xlane.f32.xlu0 %v862
        %v864 = vpop.xlane.xlu0 %863
        %v865 = vsub.f32 %v861, %v864
        %v866 = vrsqrt.pop %v865
        %s867 = scalar_lea.vmem %s104, 8 [#allocation0]
        %v868 = vld [vmem:[%s867] sm:$0xff]
        %s869 = scalar_lea.vmem %s112, 8 [#allocation1]
        %v870 = vld [vmem:[%s869] sm:$0xff]
        %v871 = vmul.f32 %v870, %v859
        %872 = vadd.xlane.f32.xlu0 %v871
        %v873 = vpop.xlane.xlu0 %872
        %v874 = vsub.f32 %v868, %v873
        %v875 = vmul.f32 %v874, %v866
        %vm876 = vcmask 1047557
        %vm877 = vmand %vm857, %vm876
        %v878 = vsel %vm877, %v875, 0.0
        %v879 = vadd.f32 %v870, %v878
        %s880 = scalar_lea.vmem %s112, 8 [#allocation1]
        %881 = vst [vmem:[%s880] sm:$0xff] %v879
        %s882 = scalar_lea.vmem %s104, 16 [#allocation0]
        %v883 = vld [vmem:[%s882] sm:$0xff]
        %s884 = scalar_lea.vmem %s112, 16 [#allocation1]
        %v885 = vld [vmem:[%s884] sm:$0xff]
        %v886 = vmul.f32 %v885, %v859
        %887 = vadd.xlane.f32.xlu0 %v886
        %v888 = vpop.xlane.xlu0 %887
        %v889 = vsub.f32 %v883, %v888
        %v890 = vmul.f32 %v889, %v866
        %v891 = vsel %vm857, %v890, 0.0
        %v892 = vadd.f32 %v885, %v891
        %s893 = scalar_lea.vmem %s112, 16 [#allocation1]
        %894 = vst [vmem:[%s893] sm:$0xff] %v892
        %s895 = scalar_lea.vmem %s104, 24 [#allocation0]
        %v896 = vld [vmem:[%s895] sm:$0xff]
        %s897 = scalar_lea.vmem %s112, 24 [#allocation1]
        %v898 = vld [vmem:[%s897] sm:$0xff]
        %v899 = vmul.f32 %v898, %v859
        %900 = vadd.xlane.f32.xlu0 %v899
        %v901 = vpop.xlane.xlu0 %900
        %v902 = vsub.f32 %v896, %v901
        %v903 = vmul.f32 %v902, %v866
        %v904 = vsel %vm857, %v903, 0.0
        %v905 = vadd.f32 %v898, %v904
        %s906 = scalar_lea.vmem %s112, 24 [#allocation1]
        %907 = vst [vmem:[%s906] sm:$0xff] %v905
        %vm908 = vcmask 121968
        %s909 = scalar_lea.vmem %s112, 14 [#allocation1]
        %v910 = vld [vmem:[%s909] ss:$0 sm:$0xff]
        %s911 = scalar_lea.vmem %s104, 14 [#allocation0]
        %v912 = vld [vmem:[%s911] ss:$0 sm:$0xff]
        %v913 = vmul.f32 %v910, %v910
        %914 = vadd.xlane.f32.xlu0 %v913
        %v915 = vpop.xlane.xlu0 %914
        %v916 = vsub.f32 %v912, %v915
        %v917 = vrsqrt.pop %v916
        %s918 = scalar_lea.vmem %s104, 8 [#allocation0]
        %v919 = vld [vmem:[%s918] sm:$0xff]
        %s920 = scalar_lea.vmem %s112, 8 [#allocation1]
        %v921 = vld [vmem:[%s920] sm:$0xff]
        %v922 = vmul.f32 %v921, %v910
        %923 = vadd.xlane.f32.xlu0 %v922
        %v924 = vpop.xlane.xlu0 %923
        %v925 = vsub.f32 %v919, %v924
        %v926 = vmul.f32 %v925, %v917
        %vm927 = vcmask 1047558
        %vm928 = vmand %vm908, %vm927
        %v929 = vsel %vm928, %v926, 0.0
        %v930 = vadd.f32 %v921, %v929
        %s931 = scalar_lea.vmem %s112, 8 [#allocation1]
        %932 = vst [vmem:[%s931] sm:$0xff] %v930
        %s933 = scalar_lea.vmem %s104, 16 [#allocation0]
        %v934 = vld [vmem:[%s933] sm:$0xff]
        %s935 = scalar_lea.vmem %s112, 16 [#allocation1]
        %v936 = vld [vmem:[%s935] sm:$0xff]
        %v937 = vmul.f32 %v936, %v910
        %938 = vadd.xlane.f32.xlu0 %v937
        %v939 = vpop.xlane.xlu0 %938
        %v940 = vsub.f32 %v934, %v939
        %v941 = vmul.f32 %v940, %v917
        %v942 = vsel %vm908, %v941, 0.0
        %v943 = vadd.f32 %v936, %v942
        %s944 = scalar_lea.vmem %s112, 16 [#allocation1]
        %945 = vst [vmem:[%s944] sm:$0xff] %v943
        %s946 = scalar_lea.vmem %s104, 24 [#allocation0]
        %v947 = vld [vmem:[%s946] sm:$0xff]
        %s948 = scalar_lea.vmem %s112, 24 [#allocation1]
        %v949 = vld [vmem:[%s948] sm:$0xff]
        %v950 = vmul.f32 %v949, %v910
        %951 = vadd.xlane.f32.xlu0 %v950
        %v952 = vpop.xlane.xlu0 %951
        %v953 = vsub.f32 %v947, %v952
        %v954 = vmul.f32 %v953, %v917
        %v955 = vsel %vm908, %v954, 0.0
        %v956 = vadd.f32 %v949, %v955
        %s957 = scalar_lea.vmem %s112, 24 [#allocation1]
        %958 = vst [vmem:[%s957] sm:$0xff] %v956
        %vm959 = vcmask 130168
        %s960 = scalar_lea.vmem %s112, 15 [#allocation1]
        %v961 = vld [vmem:[%s960] ss:$0 sm:$0xff]
        %s962 = scalar_lea.vmem %s104, 15 [#allocation0]
        %v963 = vld [vmem:[%s962] ss:$0 sm:$0xff]
        %v964 = vmul.f32 %v961, %v961
        %965 = vadd.xlane.f32.xlu0 %v964
        %v966 = vpop.xlane.xlu0 %965
        %v967 = vsub.f32 %v963, %v966
        %v968 = vrsqrt.pop %v967
        %s969 = scalar_lea.vmem %s104, 8 [#allocation0]
        %v970 = vld [vmem:[%s969] sm:$0xff]
        %s971 = scalar_lea.vmem %s112, 8 [#allocation1]
        %v972 = vld [vmem:[%s971] sm:$0xff]
        %v973 = vmul.f32 %v972, %v961
        %974 = vadd.xlane.f32.xlu0 %v973
        %v975 = vpop.xlane.xlu0 %974
        %v976 = vsub.f32 %v970, %v975
        %v977 = vmul.f32 %v976, %v968
        %vm978 = vcmask 1047559
        %vm979 = vmand %vm959, %vm978
        %v980 = vsel %vm979, %v977, 0.0
        %v981 = vadd.f32 %v972, %v980
        %s982 = scalar_lea.vmem %s112, 8 [#allocation1]
        %983 = vst [vmem:[%s982] sm:$0xff] %v981
        %s984 = scalar_lea.vmem %s104, 16 [#allocation0]
        %v985 = vld [vmem:[%s984] sm:$0xff]
        %s986 = scalar_lea.vmem %s112, 16 [#allocation1]
        %v987 = vld [vmem:[%s986] sm:$0xff]
        %v988 = vmul.f32 %v987, %v961
        %989 = vadd.xlane.f32.xlu0 %v988
        %v990 = vpop.xlane.xlu0 %989
        %v991 = vsub.f32 %v985, %v990
        %v992 = vmul.f32 %v991, %v968
        %v993 = vsel %vm959, %v992, 0.0
        %v994 = vadd.f32 %v987, %v993
        %s995 = scalar_lea.vmem %s112, 16 [#allocation1]
        %996 = vst [vmem:[%s995] sm:$0xff] %v994
        %s997 = scalar_lea.vmem %s104, 24 [#allocation0]
        %v998 = vld [vmem:[%s997] sm:$0xff]
        %s999 = scalar_lea.vmem %s112, 24 [#allocation1]
        %v1000 = vld [vmem:[%s999] sm:$0xff]
        %v1001 = vmul.f32 %v1000, %v961
        %1002 = vadd.xlane.f32.xlu0 %v1001
        %v1003 = vpop.xlane.xlu0 %1002
        %v1004 = vsub.f32 %v998, %v1003
        %v1005 = vmul.f32 %v1004, %v968
        %v1006 = vsel %vm959, %v1005, 0.0
        %v1007 = vadd.f32 %v1000, %v1006
        %s1008 = scalar_lea.vmem %s112, 24 [#allocation1]
        %1009 = vst [vmem:[%s1008] sm:$0xff] %v1007
        %vm1010 = vcmask 138368
        %s1011 = scalar_lea.vmem %s112, 16 [#allocation1]
        %v1012 = vld [vmem:[%s1011] ss:$0 sm:$0xff]
        %s1013 = scalar_lea.vmem %s104, 16 [#allocation0]
        %v1014 = vld [vmem:[%s1013] ss:$0 sm:$0xff]
        %v1015 = vmul.f32 %v1012, %v1012
        %1016 = vadd.xlane.f32.xlu0 %v1015
        %v1017 = vpop.xlane.xlu0 %1016
        %v1018 = vsub.f32 %v1014, %v1017
        %v1019 = vrsqrt.pop %v1018
        %s1020 = scalar_lea.vmem %s104, 16 [#allocation0]
        %v1021 = vld [vmem:[%s1020] sm:$0xff]
        %s1022 = scalar_lea.vmem %s112, 16 [#allocation1]
        %v1023 = vld [vmem:[%s1022] sm:$0xff]
        %v1024 = vmul.f32 %v1023, %v1012
        %1025 = vadd.xlane.f32.xlu0 %v1024
        %v1026 = vpop.xlane.xlu0 %1025
        %v1027 = vsub.f32 %v1021, %v1026
        %v1028 = vmul.f32 %v1027, %v1019
        %v1029 = vsel %vm1010, %v1028, 0.0
        %v1030 = vadd.f32 %v1023, %v1029
        %s1031 = scalar_lea.vmem %s112, 16 [#allocation1]
        %1032 = vst [vmem:[%s1031] sm:$0xff] %v1030
        %s1033 = scalar_lea.vmem %s104, 24 [#allocation0]
        %v1034 = vld [vmem:[%s1033] sm:$0xff]
        %s1035 = scalar_lea.vmem %s112, 24 [#allocation1]
        %v1036 = vld [vmem:[%s1035] sm:$0xff]
        %v1037 = vmul.f32 %v1036, %v1012
        %1038 = vadd.xlane.f32.xlu0 %v1037
        %v1039 = vpop.xlane.xlu0 %1038
        %v1040 = vsub.f32 %v1034, %v1039
        %v1041 = vmul.f32 %v1040, %v1019
        %v1042 = vsel %vm1010, %v1041, 0.0
        %v1043 = vadd.f32 %v1036, %v1042
        %s1044 = scalar_lea.vmem %s112, 24 [#allocation1]
        %1045 = vst [vmem:[%s1044] sm:$0xff] %v1043
        %vm1046 = vcmask 146568
        %s1047 = scalar_lea.vmem %s112, 17 [#allocation1]
        %v1048 = vld [vmem:[%s1047] ss:$0 sm:$0xff]
        %s1049 = scalar_lea.vmem %s104, 17 [#allocation0]
        %v1050 = vld [vmem:[%s1049] ss:$0 sm:$0xff]
        %v1051 = vmul.f32 %v1048, %v1048
        %1052 = vadd.xlane.f32.xlu0 %v1051
        %v1053 = vpop.xlane.xlu0 %1052
        %v1054 = vsub.f32 %v1050, %v1053
        %v1055 = vrsqrt.pop %v1054
        %s1056 = scalar_lea.vmem %s104, 16 [#allocation0]
        %v1057 = vld [vmem:[%s1056] sm:$0xff]
        %s1058 = scalar_lea.vmem %s112, 16 [#allocation1]
        %v1059 = vld [vmem:[%s1058] sm:$0xff]
        %v1060 = vmul.f32 %v1059, %v1048
        %1061 = vadd.xlane.f32.xlu0 %v1060
        %v1062 = vpop.xlane.xlu0 %1061
        %v1063 = vsub.f32 %v1057, %v1062
        %v1064 = vmul.f32 %v1063, %v1055
        %vm1065 = vcmask 1047553
        %vm1066 = vmand %vm1046, %vm1065
        %v1067 = vsel %vm1066, %v1064, 0.0
        %v1068 = vadd.f32 %v1059, %v1067
        %s1069 = scalar_lea.vmem %s112, 16 [#allocation1]
        %1070 = vst [vmem:[%s1069] sm:$0xff] %v1068
        %s1071 = scalar_lea.vmem %s104, 24 [#allocation0]
        %v1072 = vld [vmem:[%s1071] sm:$0xff]
        %s1073 = scalar_lea.vmem %s112, 24 [#allocation1]
        %v1074 = vld [vmem:[%s1073] sm:$0xff]
        %v1075 = vmul.f32 %v1074, %v1048
        %1076 = vadd.xlane.f32.xlu0 %v1075
        %v1077 = vpop.xlane.xlu0 %1076
        %v1078 = vsub.f32 %v1072, %v1077
        %v1079 = vmul.f32 %v1078, %v1055
        %v1080 = vsel %vm1046, %v1079, 0.0
        %v1081 = vadd.f32 %v1074, %v1080
        %s1082 = scalar_lea.vmem %s112, 24 [#allocation1]
        %1083 = vst [vmem:[%s1082] sm:$0xff] %v1081
        %vm1084 = vcmask 154768
        %s1085 = scalar_lea.vmem %s112, 18 [#allocation1]
        %v1086 = vld [vmem:[%s1085] ss:$0 sm:$0xff]
        %s1087 = scalar_lea.vmem %s104, 18 [#allocation0]
        %v1088 = vld [vmem:[%s1087] ss:$0 sm:$0xff]
        %v1089 = vmul.f32 %v1086, %v1086
        %1090 = vadd.xlane.f32.xlu0 %v1089
        %v1091 = vpop.xlane.xlu0 %1090
        %v1092 = vsub.f32 %v1088, %v1091
        %v1093 = vrsqrt.pop %v1092
        %s1094 = scalar_lea.vmem %s104, 16 [#allocation0]
        %v1095 = vld [vmem:[%s1094] sm:$0xff]
        %s1096 = scalar_lea.vmem %s112, 16 [#allocation1]
        %v1097 = vld [vmem:[%s1096] sm:$0xff]
        %v1098 = vmul.f32 %v1097, %v1086
        %1099 = vadd.xlane.f32.xlu0 %v1098
        %v1100 = vpop.xlane.xlu0 %1099
        %v1101 = vsub.f32 %v1095, %v1100
        %v1102 = vmul.f32 %v1101, %v1093
        %vm1103 = vcmask 1047554
        %vm1104 = vmand %vm1084, %vm1103
        %v1105 = vsel %vm1104, %v1102, 0.0
        %v1106 = vadd.f32 %v1097, %v1105
        %s1107 = scalar_lea.vmem %s112, 16 [#allocation1]
        %1108 = vst [vmem:[%s1107] sm:$0xff] %v1106
        %s1109 = scalar_lea.vmem %s104, 24 [#allocation0]
        %v1110 = vld [vmem:[%s1109] sm:$0xff]
        %s1111 = scalar_lea.vmem %s112, 24 [#allocation1]
        %v1112 = vld [vmem:[%s1111] sm:$0xff]
        %v1113 = vmul.f32 %v1112, %v1086
        %1114 = vadd.xlane.f32.xlu0 %v1113
        %v1115 = vpop.xlane.xlu0 %1114
        %v1116 = vsub.f32 %v1110, %v1115
        %v1117 = vmul.f32 %v1116, %v1093
        %v1118 = vsel %vm1084, %v1117, 0.0
        %v1119 = vadd.f32 %v1112, %v1118
        %s1120 = scalar_lea.vmem %s112, 24 [#allocation1]
        %1121 = vst [vmem:[%s1120] sm:$0xff] %v1119
        %vm1122 = vcmask 162968
        %s1123 = scalar_lea.vmem %s112, 19 [#allocation1]
        %v1124 = vld [vmem:[%s1123] ss:$0 sm:$0xff]
        %s1125 = scalar_lea.vmem %s104, 19 [#allocation0]
        %v1126 = vld [vmem:[%s1125] ss:$0 sm:$0xff]
        %v1127 = vmul.f32 %v1124, %v1124
        %1128 = vadd.xlane.f32.xlu0 %v1127
        %v1129 = vpop.xlane.xlu0 %1128
        %v1130 = vsub.f32 %v1126, %v1129
        %v1131 = vrsqrt.pop %v1130
        %s1132 = scalar_lea.vmem %s104, 16 [#allocation0]
        %v1133 = vld [vmem:[%s1132] sm:$0xff]
        %s1134 = scalar_lea.vmem %s112, 16 [#allocation1]
        %v1135 = vld [vmem:[%s1134] sm:$0xff]
        %v1136 = vmul.f32 %v1135, %v1124
        %1137 = vadd.xlane.f32.xlu0 %v1136
        %v1138 = vpop.xlane.xlu0 %1137
        %v1139 = vsub.f32 %v1133, %v1138
        %v1140 = vmul.f32 %v1139, %v1131
        %vm1141 = vcmask 1047555
        %vm1142 = vmand %vm1122, %vm1141
        %v1143 = vsel %vm1142, %v1140, 0.0
        %v1144 = vadd.f32 %v1135, %v1143
        %s1145 = scalar_lea.vmem %s112, 16 [#allocation1]
        %1146 = vst [vmem:[%s1145] sm:$0xff] %v1144
        %s1147 = scalar_lea.vmem %s104, 24 [#allocation0]
        %v1148 = vld [vmem:[%s1147] sm:$0xff]
        %s1149 = scalar_lea.vmem %s112, 24 [#allocation1]
        %v1150 = vld [vmem:[%s1149] sm:$0xff]
        %v1151 = vmul.f32 %v1150, %v1124
        %1152 = vadd.xlane.f32.xlu0 %v1151
        %v1153 = vpop.xlane.xlu0 %1152
        %v1154 = vsub.f32 %v1148, %v1153
        %v1155 = vmul.f32 %v1154, %v1131
        %v1156 = vsel %vm1122, %v1155, 0.0
        %v1157 = vadd.f32 %v1150, %v1156
        %s1158 = scalar_lea.vmem %s112, 24 [#allocation1]
        %1159 = vst [vmem:[%s1158] sm:$0xff] %v1157
        %vm1160 = vcmask 171168
        %s1161 = scalar_lea.vmem %s112, 20 [#allocation1]
        %v1162 = vld [vmem:[%s1161] ss:$0 sm:$0xff]
        %s1163 = scalar_lea.vmem %s104, 20 [#allocation0]
        %v1164 = vld [vmem:[%s1163] ss:$0 sm:$0xff]
        %v1165 = vmul.f32 %v1162, %v1162
        %1166 = vadd.xlane.f32.xlu0 %v1165
        %v1167 = vpop.xlane.xlu0 %1166
        %v1168 = vsub.f32 %v1164, %v1167
        %v1169 = vrsqrt.pop %v1168
        %s1170 = scalar_lea.vmem %s104, 16 [#allocation0]
        %v1171 = vld [vmem:[%s1170] sm:$0xff]
        %s1172 = scalar_lea.vmem %s112, 16 [#allocation1]
        %v1173 = vld [vmem:[%s1172] sm:$0xff]
        %v1174 = vmul.f32 %v1173, %v1162
        %1175 = vadd.xlane.f32.xlu0 %v1174
        %v1176 = vpop.xlane.xlu0 %1175
        %v1177 = vsub.f32 %v1171, %v1176
        %v1178 = vmul.f32 %v1177, %v1169
        %vm1179 = vcmask 1047556
        %vm1180 = vmand %vm1160, %vm1179
        %v1181 = vsel %vm1180, %v1178, 0.0
        %v1182 = vadd.f32 %v1173, %v1181
        %s1183 = scalar_lea.vmem %s112, 16 [#allocation1]
        %1184 = vst [vmem:[%s1183] sm:$0xff] %v1182
        %s1185 = scalar_lea.vmem %s104, 24 [#allocation0]
        %v1186 = vld [vmem:[%s1185] sm:$0xff]
        %s1187 = scalar_lea.vmem %s112, 24 [#allocation1]
        %v1188 = vld [vmem:[%s1187] sm:$0xff]
        %v1189 = vmul.f32 %v1188, %v1162
        %1190 = vadd.xlane.f32.xlu0 %v1189
        %v1191 = vpop.xlane.xlu0 %1190
        %v1192 = vsub.f32 %v1186, %v1191
        %v1193 = vmul.f32 %v1192, %v1169
        %v1194 = vsel %vm1160, %v1193, 0.0
        %v1195 = vadd.f32 %v1188, %v1194
        %s1196 = scalar_lea.vmem %s112, 24 [#allocation1]
        %1197 = vst [vmem:[%s1196] sm:$0xff] %v1195
        %vm1198 = vcmask 179368
        %s1199 = scalar_lea.vmem %s112, 21 [#allocation1]
        %v1200 = vld [vmem:[%s1199] ss:$0 sm:$0xff]
        %s1201 = scalar_lea.vmem %s104, 21 [#allocation0]
        %v1202 = vld [vmem:[%s1201] ss:$0 sm:$0xff]
        %v1203 = vmul.f32 %v1200, %v1200
        %1204 = vadd.xlane.f32.xlu0 %v1203
        %v1205 = vpop.xlane.xlu0 %1204
        %v1206 = vsub.f32 %v1202, %v1205
        %v1207 = vrsqrt.pop %v1206
        %s1208 = scalar_lea.vmem %s104, 16 [#allocation0]
        %v1209 = vld [vmem:[%s1208] sm:$0xff]
        %s1210 = scalar_lea.vmem %s112, 16 [#allocation1]
        %v1211 = vld [vmem:[%s1210] sm:$0xff]
        %v1212 = vmul.f32 %v1211, %v1200
        %1213 = vadd.xlane.f32.xlu0 %v1212
        %v1214 = vpop.xlane.xlu0 %1213
        %v1215 = vsub.f32 %v1209, %v1214
        %v1216 = vmul.f32 %v1215, %v1207
        %vm1217 = vcmask 1047557
        %vm1218 = vmand %vm1198, %vm1217
        %v1219 = vsel %vm1218, %v1216, 0.0
        %v1220 = vadd.f32 %v1211, %v1219
        %s1221 = scalar_lea.vmem %s112, 16 [#allocation1]
        %1222 = vst [vmem:[%s1221] sm:$0xff] %v1220
        %s1223 = scalar_lea.vmem %s104, 24 [#allocation0]
        %v1224 = vld [vmem:[%s1223] sm:$0xff]
        %s1225 = scalar_lea.vmem %s112, 24 [#allocation1]
        %v1226 = vld [vmem:[%s1225] sm:$0xff]
        %v1227 = vmul.f32 %v1226, %v1200
        %1228 = vadd.xlane.f32.xlu0 %v1227
        %v1229 = vpop.xlane.xlu0 %1228
        %v1230 = vsub.f32 %v1224, %v1229
        %v1231 = vmul.f32 %v1230, %v1207
        %v1232 = vsel %vm1198, %v1231, 0.0
        %v1233 = vadd.f32 %v1226, %v1232
        %s1234 = scalar_lea.vmem %s112, 24 [#allocation1]
        %1235 = vst [vmem:[%s1234] sm:$0xff] %v1233
        %vm1236 = vcmask 187568
        %s1237 = scalar_lea.vmem %s112, 22 [#allocation1]
        %v1238 = vld [vmem:[%s1237] ss:$0 sm:$0xff]
        %s1239 = scalar_lea.vmem %s104, 22 [#allocation0]
        %v1240 = vld [vmem:[%s1239] ss:$0 sm:$0xff]
        %v1241 = vmul.f32 %v1238, %v1238
        %1242 = vadd.xlane.f32.xlu0 %v1241
        %v1243 = vpop.xlane.xlu0 %1242
        %v1244 = vsub.f32 %v1240, %v1243
        %v1245 = vrsqrt.pop %v1244
        %s1246 = scalar_lea.vmem %s104, 16 [#allocation0]
        %v1247 = vld [vmem:[%s1246] sm:$0xff]
        %s1248 = scalar_lea.vmem %s112, 16 [#allocation1]
        %v1249 = vld [vmem:[%s1248] sm:$0xff]
        %v1250 = vmul.f32 %v1249, %v1238
        %1251 = vadd.xlane.f32.xlu0 %v1250
        %v1252 = vpop.xlane.xlu0 %1251
        %v1253 = vsub.f32 %v1247, %v1252
        %v1254 = vmul.f32 %v1253, %v1245
        %vm1255 = vcmask 1047558
        %vm1256 = vmand %vm1236, %vm1255
        %v1257 = vsel %vm1256, %v1254, 0.0
        %v1258 = vadd.f32 %v1249, %v1257
        %s1259 = scalar_lea.vmem %s112, 16 [#allocation1]
        %1260 = vst [vmem:[%s1259] sm:$0xff] %v1258
        %s1261 = scalar_lea.vmem %s104, 24 [#allocation0]
        %v1262 = vld [vmem:[%s1261] sm:$0xff]
        %s1263 = scalar_lea.vmem %s112, 24 [#allocation1]
        %v1264 = vld [vmem:[%s1263] sm:$0xff]
        %v1265 = vmul.f32 %v1264, %v1238
        %1266 = vadd.xlane.f32.xlu0 %v1265
        %v1267 = vpop.xlane.xlu0 %1266
        %v1268 = vsub.f32 %v1262, %v1267
        %v1269 = vmul.f32 %v1268, %v1245
        %v1270 = vsel %vm1236, %v1269, 0.0
        %v1271 = vadd.f32 %v1264, %v1270
        %s1272 = scalar_lea.vmem %s112, 24 [#allocation1]
        %1273 = vst [vmem:[%s1272] sm:$0xff] %v1271
        %vm1274 = vcmask 195768
        %s1275 = scalar_lea.vmem %s112, 23 [#allocation1]
        %v1276 = vld [vmem:[%s1275] ss:$0 sm:$0xff]
        %s1277 = scalar_lea.vmem %s104, 23 [#allocation0]
        %v1278 = vld [vmem:[%s1277] ss:$0 sm:$0xff]
        %v1279 = vmul.f32 %v1276, %v1276
        %1280 = vadd.xlane.f32.xlu0 %v1279
        %v1281 = vpop.xlane.xlu0 %1280
        %v1282 = vsub.f32 %v1278, %v1281
        %v1283 = vrsqrt.pop %v1282
        %s1284 = scalar_lea.vmem %s104, 16 [#allocation0]
        %v1285 = vld [vmem:[%s1284] sm:$0xff]
        %s1286 = scalar_lea.vmem %s112, 16 [#allocation1]
        %v1287 = vld [vmem:[%s1286] sm:$0xff]
        %v1288 = vmul.f32 %v1287, %v1276
        %1289 = vadd.xlane.f32.xlu0 %v1288
        %v1290 = vpop.xlane.xlu0 %1289
        %v1291 = vsub.f32 %v1285, %v1290
        %v1292 = vmul.f32 %v1291, %v1283
        %vm1293 = vcmask 1047559
        %vm1294 = vmand %vm1274, %vm1293
        %v1295 = vsel %vm1294, %v1292, 0.0
        %v1296 = vadd.f32 %v1287, %v1295
        %s1297 = scalar_lea.vmem %s112, 16 [#allocation1]
        %1298 = vst [vmem:[%s1297] sm:$0xff] %v1296
        %s1299 = scalar_lea.vmem %s104, 24 [#allocation0]
        %v1300 = vld [vmem:[%s1299] sm:$0xff]
        %s1301 = scalar_lea.vmem %s112, 24 [#allocation1]
        %v1302 = vld [vmem:[%s1301] sm:$0xff]
        %v1303 = vmul.f32 %v1302, %v1276
        %1304 = vadd.xlane.f32.xlu0 %v1303
        %v1305 = vpop.xlane.xlu0 %1304
        %v1306 = vsub.f32 %v1300, %v1305
        %v1307 = vmul.f32 %v1306, %v1283
        %v1308 = vsel %vm1274, %v1307, 0.0
        %v1309 = vadd.f32 %v1302, %v1308
        %s1310 = scalar_lea.vmem %s112, 24 [#allocation1]
        %1311 = vst [vmem:[%s1310] sm:$0xff] %v1309
        %vm1312 = vcmask 203968
        %s1313 = scalar_lea.vmem %s112, 24 [#allocation1]
        %v1314 = vld [vmem:[%s1313] ss:$0 sm:$0xff]
        %s1315 = scalar_lea.vmem %s104, 24 [#allocation0]
        %v1316 = vld [vmem:[%s1315] ss:$0 sm:$0xff]
        %v1317 = vmul.f32 %v1314, %v1314
        %1318 = vadd.xlane.f32.xlu0 %v1317
        %v1319 = vpop.xlane.xlu0 %1318
        %v1320 = vsub.f32 %v1316, %v1319
        %v1321 = vrsqrt.pop %v1320
        %s1322 = scalar_lea.vmem %s104, 24 [#allocation0]
        %v1323 = vld [vmem:[%s1322] sm:$0xff]
        %s1324 = scalar_lea.vmem %s112, 24 [#allocation1]
        %v1325 = vld [vmem:[%s1324] sm:$0xff]
        %v1326 = vmul.f32 %v1325, %v1314
        %1327 = vadd.xlane.f32.xlu0 %v1326
        %v1328 = vpop.xlane.xlu0 %1327
        %v1329 = vsub.f32 %v1323, %v1328
        %v1330 = vmul.f32 %v1329, %v1321
        %v1331 = vsel %vm1312, %v1330, 0.0
        %v1332 = vadd.f32 %v1325, %v1331
        %s1333 = scalar_lea.vmem %s112, 24 [#allocation1]
        %1334 = vst [vmem:[%s1333] sm:$0xff] %v1332
        %vm1335 = vcmask 212168
        %s1336 = scalar_lea.vmem %s112, 25 [#allocation1]
        %v1337 = vld [vmem:[%s1336] ss:$0 sm:$0xff]
        %s1338 = scalar_lea.vmem %s104, 25 [#allocation0]
        %v1339 = vld [vmem:[%s1338] ss:$0 sm:$0xff]
        %v1340 = vmul.f32 %v1337, %v1337
        %1341 = vadd.xlane.f32.xlu0 %v1340
        %v1342 = vpop.xlane.xlu0 %1341
        %v1343 = vsub.f32 %v1339, %v1342
        %v1344 = vrsqrt.pop %v1343
        %s1345 = scalar_lea.vmem %s104, 24 [#allocation0]
        %v1346 = vld [vmem:[%s1345] sm:$0xff]
        %s1347 = scalar_lea.vmem %s112, 24 [#allocation1]
        %v1348 = vld [vmem:[%s1347] sm:$0xff]
        %v1349 = vmul.f32 %v1348, %v1337
        %1350 = vadd.xlane.f32.xlu0 %v1349
        %v1351 = vpop.xlane.xlu0 %1350
        %v1352 = vsub.f32 %v1346, %v1351
        %v1353 = vmul.f32 %v1352, %v1344
        %vm1354 = vcmask 1047553
        %vm1355 = vmand %vm1335, %vm1354
        %v1356 = vsel %vm1355, %v1353, 0.0
        %v1357 = vadd.f32 %v1348, %v1356
        %s1358 = scalar_lea.vmem %s112, 24 [#allocation1]
        %1359 = vst [vmem:[%s1358] sm:$0xff] %v1357
        %vm1360 = vcmask 220368
        %s1361 = scalar_lea.vmem %s112, 26 [#allocation1]
        %v1362 = vld [vmem:[%s1361] ss:$0 sm:$0xff]
        %s1363 = scalar_lea.vmem %s104, 26 [#allocation0]
        %v1364 = vld [vmem:[%s1363] ss:$0 sm:$0xff]
        %v1365 = vmul.f32 %v1362, %v1362
        %1366 = vadd.xlane.f32.xlu0 %v1365
        %v1367 = vpop.xlane.xlu0 %1366
        %v1368 = vsub.f32 %v1364, %v1367
        %v1369 = vrsqrt.pop %v1368
        %s1370 = scalar_lea.vmem %s104, 24 [#allocation0]
        %v1371 = vld [vmem:[%s1370] sm:$0xff]
        %s1372 = scalar_lea.vmem %s112, 24 [#allocation1]
        %v1373 = vld [vmem:[%s1372] sm:$0xff]
        %v1374 = vmul.f32 %v1373, %v1362
        %1375 = vadd.xlane.f32.xlu0 %v1374
        %v1376 = vpop.xlane.xlu0 %1375
        %v1377 = vsub.f32 %v1371, %v1376
        %v1378 = vmul.f32 %v1377, %v1369
        %vm1379 = vcmask 1047554
        %vm1380 = vmand %vm1360, %vm1379
        %v1381 = vsel %vm1380, %v1378, 0.0
        %v1382 = vadd.f32 %v1373, %v1381
        %s1383 = scalar_lea.vmem %s112, 24 [#allocation1]
        %1384 = vst [vmem:[%s1383] sm:$0xff] %v1382
        %vm1385 = vcmask 228568
        %s1386 = scalar_lea.vmem %s112, 27 [#allocation1]
        %v1387 = vld [vmem:[%s1386] ss:$0 sm:$0xff]
        %s1388 = scalar_lea.vmem %s104, 27 [#allocation0]
        %v1389 = vld [vmem:[%s1388] ss:$0 sm:$0xff]
        %v1390 = vmul.f32 %v1387, %v1387
        %1391 = vadd.xlane.f32.xlu0 %v1390
        %v1392 = vpop.xlane.xlu0 %1391
        %v1393 = vsub.f32 %v1389, %v1392
        %v1394 = vrsqrt.pop %v1393
        %s1395 = scalar_lea.vmem %s104, 24 [#allocation0]
        %v1396 = vld [vmem:[%s1395] sm:$0xff]
        %s1397 = scalar_lea.vmem %s112, 24 [#allocation1]
        %v1398 = vld [vmem:[%s1397] sm:$0xff]
        %v1399 = vmul.f32 %v1398, %v1387
        %1400 = vadd.xlane.f32.xlu0 %v1399
        %v1401 = vpop.xlane.xlu0 %1400
        %v1402 = vsub.f32 %v1396, %v1401
        %v1403 = vmul.f32 %v1402, %v1394
        %vm1404 = vcmask 1047555
        %vm1405 = vmand %vm1385, %vm1404
        %v1406 = vsel %vm1405, %v1403, 0.0
        %v1407 = vadd.f32 %v1398, %v1406
        %s1408 = scalar_lea.vmem %s112, 24 [#allocation1]
        %1409 = vst [vmem:[%s1408] sm:$0xff] %v1407
        %vm1410 = vcmask 236768
        %s1411 = scalar_lea.vmem %s112, 28 [#allocation1]
        %v1412 = vld [vmem:[%s1411] ss:$0 sm:$0xff]
        %s1413 = scalar_lea.vmem %s104, 28 [#allocation0]
        %v1414 = vld [vmem:[%s1413] ss:$0 sm:$0xff]
        %v1415 = vmul.f32 %v1412, %v1412
        %1416 = vadd.xlane.f32.xlu0 %v1415
        %v1417 = vpop.xlane.xlu0 %1416
        %v1418 = vsub.f32 %v1414, %v1417
        %v1419 = vrsqrt.pop %v1418
        %s1420 = scalar_lea.vmem %s104, 24 [#allocation0]
        %v1421 = vld [vmem:[%s1420] sm:$0xff]
        %s1422 = scalar_lea.vmem %s112, 24 [#allocation1]
        %v1423 = vld [vmem:[%s1422] sm:$0xff]
        %v1424 = vmul.f32 %v1423, %v1412
        %1425 = vadd.xlane.f32.xlu0 %v1424
        %v1426 = vpop.xlane.xlu0 %1425
        %v1427 = vsub.f32 %v1421, %v1426
        %v1428 = vmul.f32 %v1427, %v1419
        %vm1429 = vcmask 1047556
        %vm1430 = vmand %vm1410, %vm1429
        %v1431 = vsel %vm1430, %v1428, 0.0
        %v1432 = vadd.f32 %v1423, %v1431
        %s1433 = scalar_lea.vmem %s112, 24 [#allocation1]
        %1434 = vst [vmem:[%s1433] sm:$0xff] %v1432
        %vm1435 = vcmask 244968
        %s1436 = scalar_lea.vmem %s112, 29 [#allocation1]
        %v1437 = vld [vmem:[%s1436] ss:$0 sm:$0xff]
        %s1438 = scalar_lea.vmem %s104, 29 [#allocation0]
        %v1439 = vld [vmem:[%s1438] ss:$0 sm:$0xff]
        %v1440 = vmul.f32 %v1437, %v1437
        %1441 = vadd.xlane.f32.xlu0 %v1440
        %v1442 = vpop.xlane.xlu0 %1441
        %v1443 = vsub.f32 %v1439, %v1442
        %v1444 = vrsqrt.pop %v1443
        %s1445 = scalar_lea.vmem %s104, 24 [#allocation0]
        %v1446 = vld [vmem:[%s1445] sm:$0xff]
        %s1447 = scalar_lea.vmem %s112, 24 [#allocation1]
        %v1448 = vld [vmem:[%s1447] sm:$0xff]
        %v1449 = vmul.f32 %v1448, %v1437
        %1450 = vadd.xlane.f32.xlu0 %v1449
        %v1451 = vpop.xlane.xlu0 %1450
        %v1452 = vsub.f32 %v1446, %v1451
        %v1453 = vmul.f32 %v1452, %v1444
        %vm1454 = vcmask 1047557
        %vm1455 = vmand %vm1435, %vm1454
        %v1456 = vsel %vm1455, %v1453, 0.0
        %v1457 = vadd.f32 %v1448, %v1456
        %s1458 = scalar_lea.vmem %s112, 24 [#allocation1]
        %1459 = vst [vmem:[%s1458] sm:$0xff] %v1457
        %vm1460 = vcmask 253168
        %s1461 = scalar_lea.vmem %s112, 30 [#allocation1]
        %v1462 = vld [vmem:[%s1461] ss:$0 sm:$0xff]
        %s1463 = scalar_lea.vmem %s104, 30 [#allocation0]
        %v1464 = vld [vmem:[%s1463] ss:$0 sm:$0xff]
        %v1465 = vmul.f32 %v1462, %v1462
        %1466 = vadd.xlane.f32.xlu0 %v1465
        %v1467 = vpop.xlane.xlu0 %1466
        %v1468 = vsub.f32 %v1464, %v1467
        %v1469 = vrsqrt.pop %v1468
        %s1470 = scalar_lea.vmem %s104, 24 [#allocation0]
        %v1471 = vld [vmem:[%s1470] sm:$0xff]
        %s1472 = scalar_lea.vmem %s112, 24 [#allocation1]
        %v1473 = vld [vmem:[%s1472] sm:$0xff]
        %v1474 = vmul.f32 %v1473, %v1462
        %1475 = vadd.xlane.f32.xlu0 %v1474
        %v1476 = vpop.xlane.xlu0 %1475
        %v1477 = vsub.f32 %v1471, %v1476
        %v1478 = vmul.f32 %v1477, %v1469
        %vm1479 = vcmask 1047558
        %vm1480 = vmand %vm1460, %vm1479
        %v1481 = vsel %vm1480, %v1478, 0.0
        %v1482 = vadd.f32 %v1473, %v1481
        %s1483 = scalar_lea.vmem %s112, 24 [#allocation1]
        %1484 = vst [vmem:[%s1483] sm:$0xff] %v1482
        %vm1485 = vcmask 261368
        %s1486 = scalar_lea.vmem %s112, 31 [#allocation1]
        %v1487 = vld [vmem:[%s1486] ss:$0 sm:$0xff]
        %s1488 = scalar_lea.vmem %s104, 31 [#allocation0]
        %v1489 = vld [vmem:[%s1488] ss:$0 sm:$0xff]
        %v1490 = vmul.f32 %v1487, %v1487
        %1491 = vadd.xlane.f32.xlu0 %v1490
        %v1492 = vpop.xlane.xlu0 %1491
        %v1493 = vsub.f32 %v1489, %v1492
        %v1494 = vrsqrt.pop %v1493
        %s1495 = scalar_lea.vmem %s104, 24 [#allocation0]
        %v1496 = vld [vmem:[%s1495] sm:$0xff]
        %s1497 = scalar_lea.vmem %s112, 24 [#allocation1]
        %v1498 = vld [vmem:[%s1497] sm:$0xff]
        %v1499 = vmul.f32 %v1498, %v1487
        %1500 = vadd.xlane.f32.xlu0 %v1499
        %v1501 = vpop.xlane.xlu0 %1500
        %v1502 = vsub.f32 %v1496, %v1501
        %v1503 = vmul.f32 %v1502, %v1494
        %vm1504 = vcmask 1047559
        %vm1505 = vmand %vm1485, %vm1504
        %v1506 = vsel %vm1505, %v1503, 0.0
        %v1507 = vadd.f32 %v1498, %v1506
        %s1508 = scalar_lea.vmem %s112, 24 [#allocation1]
        %1509 = vst [vmem:[%s1508] sm:$0xff] %v1507
        %s1510 = sand.u32 %s8, 1
        %s1511 = sand.u32 %s8, 1
        %s1512 = smul.addr %s1511, 32
        %s1513 = scalar_lea.vmem [#allocation1], %s1512
        %s1514 = sadd.s32 %s15, %s14
        %s1515 = smul.addr %s13, 4
        %s1516 = sadd.s32 %s1514, %s1515
        %s1517 = smul.addr %s1516, 8
        %s1518 = scalar_lea.vmem %s1, %s1517
        // Predicated region
        $region55: #{custom-call.55} parent=53 // pred_check
          _
        $region56: #{custom-call.55} parent=53 // pred_check_branch
          %1520 = sbr.rel (0) target = $region58
        $region57: #{custom-call.55} parent=53 // pred_region
          // Predicated region
          $region59: #{custom-call.55} parent=57 // pred_check
            _
          $region60: #{custom-call.55} parent=57 // pred_check_branch
            %1522 = sbr.rel (0) target = $region62
          $region61: #{custom-call.55} parent=57 // pred_region
            // Predicated region
            $region74: #{custom-call.55} parent=61 // pred_check
              _
            $region75: #{custom-call.55} parent=61 // pred_check_branch
              %1543 = sbr.rel (0) target = $region77
            $region76: #{custom-call.55} parent=61 // pred_region
              loop: start=0, step=1, limit=1
              $region78: #{custom-call.55} parent=76 // loop_pre_header
                _
              $region79: #{custom-call.55} parent=76 // loop_header
                %s1545 = sphi 0, %s1549
                %p1546 = scmp.ge.s32.totalorder %s1545, 1
                %s1550 = sphi %s1513, %s1513
                %s1551 = sphi %s1518, %s1518
              $region80: #{custom-call.55} parent=76 // loop_header_branch
                %1548 = sbr.rel (%p1546) target = $region84
              $region81: #{custom-call.55} parent=76 // loop_body
                %v1552 = vld [vmem:[%s1550] sm:$0xff]
                %1553 = vst [vmem:[%s1551] sm:$0xff] %v1552
                %v1554 = vld [vmem:[%s1550 + $0x8] sm:$0xff]
                %1555 = vst [vmem:[%s1551 + $0x8] sm:$0xff] %v1554
                %v1556 = vld [vmem:[%s1550 + $0x10] sm:$0xff]
                %1557 = vst [vmem:[%s1551 + $0x10] sm:$0xff] %v1556
                %v1558 = vld [vmem:[%s1550 + $0x18] sm:$0xff]
                %1559 = vst [vmem:[%s1551 + $0x18] sm:$0xff] %v1558
              $region82: #{custom-call.55} parent=76 // loop_footer
                %s1549 = sadd.s32 1, %s1545
              $region83: #{custom-call.55} parent=76 // loop_footer_branch
                %1544 = sbr.rel target = $region79
              $region84: #{custom-call.55} parent=76 // loop_exit
                _
            $region77: #{custom-call.55} parent=61 // pred_fallthru
              _
            // Predicated region
            $region85: #{custom-call.55} parent=61 // pred_check
              _
            $region86: #{custom-call.55} parent=61 // pred_check_branch
              %1561 = sbr.rel target = $region88
            $region87: #{custom-call.55} parent=61 // pred_region
              _
            $region88: #{custom-call.55} parent=61 // pred_fallthru
              _
          $region62: #{custom-call.55} parent=57 // pred_fallthru
            _
          // Predicated region
          $region63: #{custom-call.55} parent=57 // pred_check
            _
          $region64: #{custom-call.55} parent=57 // pred_check_branch
            %1524 = sbr.rel target = $region66
          $region65: #{custom-call.55} parent=57 // pred_region
            loop: start=0, step=1, limit=1
            $region67: #{custom-call.55} parent=65 // loop_pre_header
              _
            $region68: #{custom-call.55} parent=65 // loop_header
              %s1527 = sphi 0, %s1531
              %p1528 = scmp.ge.s32.totalorder %s1527, 1
              %s1532 = sphi %s1513, %s1513
              %s1533 = sphi %s1518, %s1518
            $region69: #{custom-call.55} parent=65 // loop_header_branch
              %1530 = sbr.rel (%p1528) target = $region73
            $region70: #{custom-call.55} parent=65 // loop_body
              %v1534 = vld [vmem:[%s1532] sm:$0xff]
              %1535 = vst [vmem:[%s1533] sm:$0xff] %v1534
              %v1536 = vld [vmem:[%s1532 + $0x8] sm:$0xff]
              %1537 = vst [vmem:[%s1533 + $0x8] sm:$0xff] %v1536
              %v1538 = vld [vmem:[%s1532 + $0x10] sm:$0xff]
              %1539 = vst [vmem:[%s1533 + $0x10] sm:$0xff] %v1538
              %v1540 = vld [vmem:[%s1532 + $0x18] sm:$0xff]
              %1541 = vst [vmem:[%s1533 + $0x18] sm:$0xff] %v1540
            $region71: #{custom-call.55} parent=65 // loop_footer
              %s1531 = sadd.s32 1, %s1527
            $region72: #{custom-call.55} parent=65 // loop_footer_branch
              %1526 = sbr.rel target = $region68
            $region73: #{custom-call.55} parent=65 // loop_exit
              _
          $region66: #{custom-call.55} parent=57 // pred_fallthru
            _
        $region58: #{custom-call.55} parent=53 // pred_fallthru
          _
        %1562 = vnop
      $region54: #{custom-call.55} parent=5 // pred_fallthru
        _
      %p1563 = scmp.le.s32.totalorder 2, %s3
      // Predicated region
      $region89: #{custom-call.55} parent=5 // pred_check
        %p1564 = pneg %p1563
      $region90: #{custom-call.55} parent=5 // pred_check_branch
        %1566 = sbr.rel (%p1564) target = $region92
      $region91: #{custom-call.55} parent=5 // pred_region
        %s1567 = ssub.s32 %s3, 2
        %s1568 = sand.u32 %s9, 1
        %s1569 = sand.u32 %s9, 1
        %s1570 = smul.addr %s1569, 32
        %s1571 = scalar_lea.vmem [#allocation1], %s1570
      $region92: #{custom-call.55} parent=5 // pred_fallthru
        _
    $region6: #{custom-call.55} parent=1 // loop_footer
      %s7 = sadd.s32 1, %s3
    $region7: #{custom-call.55} parent=1 // loop_footer_branch
      %2 = sbr.rel target = $region3
    $region8: #{custom-call.55} parent=1 // loop_exit
      _

// kernel: custom-call.56
$region0: #{custom-call.56}
  %s0 = inlined_call_operand.vmem [shape: f32[9,1,32,32], index: 0, kind: input, shape index: {}]
  %s1 = inlined_call_operand.vmem [shape: f32[9,1,32,32], index: 1, kind: output, shape index: {}]
  $region1: #{custom-call.56} parent=0
    #allocation0 [shape = 'u8[32768]{0}', space=vmem, size = 0x8000, scoped, tag = 'operand span for operand 0']
    #allocation1 [shape = 'u8[32768]{0}', space=vmem, size = 0x8000, scoped, tag = 'operand span for operand 1']
    loop: start=0, step=1, limit=11
    $region2: #{custom-call.56} parent=1 // loop_pre_header
      _
    $region3: #{custom-call.56} parent=1 // loop_header
      %s3 = sphi 0, %s7
      %p4 = scmp.ge.s32.totalorder %s3, 11
      %s10 = sphi 0, %s36
      %s11 = sphi 0, %s32
      %s12 = sphi 0, %s28
      %s13 = sphi 0, %s24
      %s14 = sphi 0, %s10
      %s15 = sphi 0, %s11
      %s16 = sphi 0, %s12
      %s17 = sphi 0, %s13
      %s18 = sphi 0, %s14
      %s19 = sphi 0, %s15
      %s20 = sphi 0, %s16
      %s21 = sphi 0, %s17
    $region4: #{custom-call.56} parent=1 // loop_header_branch
      %6 = sbr.rel (%p4) target = $region8
    $region5: #{custom-call.56} parent=1 // loop_body
      %s8 = ssub.s32 %s3, 1
      %s9 = ssub.s32 %s3, 2
      %s22 = sadd.s32 1, %s13
      %p23 = scmp.ge.s32.totalorder %s22, 1
      %s24 = scalar_select %p23, 0, %s22
      %s25 = sadd.s32 1, %s12
      %s26 = scalar_select %p23, %s25, %s12
      %p27 = scmp.ge.s32.totalorder %s26, 1
      %s28 = scalar_select %p27, 0, %s26
      %s29 = sadd.s32 1, %s11
      %s30 = scalar_select %p27, %s29, %s11
      %p31 = scmp.ge.s32.totalorder %s30, 1
      %s32 = scalar_select %p31, 0, %s30
      %s33 = sadd.s32 1, %s10
      %s34 = scalar_select %p31, %s33, %s10
      %p35 = scmp.ge.s32.totalorder %s34, 9
      %s36 = scalar_select %p35, 0, %s34
      %p37 = scmp.le.s32.totalorder 1, %s3
      %p38 = scmp.lt.s32.totalorder %s3, 10
      %p39 = pnand %p37, %p38
      %p40 = pneg %p39
      // Predicated region
      $region9: #{custom-call.56} parent=5 // pred_check
        _
      $region10: #{custom-call.56} parent=5 // pred_check_branch
        %42 = sbr.rel (%p39) target = $region12
      $region11: #{custom-call.56} parent=5 // pred_region
        %s43 = ssub.s32 %s3, 1
      $region12: #{custom-call.56} parent=5 // pred_fallthru
        _
      %p44 = scmp.lt.s32.totalorder %s3, 9
      // Predicated region
      $region13: #{custom-call.56} parent=5 // pred_check
        %p45 = pneg %p44
      $region14: #{custom-call.56} parent=5 // pred_check_branch
        %47 = sbr.rel (%p45) target = $region16
      $region15: #{custom-call.56} parent=5 // pred_region
        %s48 = sand.u32 %s3, 1
        %s49 = sand.u32 %s3, 1
        %s50 = smul.addr %s49, 32
        %s51 = scalar_lea.vmem [#allocation0], %s50
        %s52 = sadd.s32 %s13, %s12
        %s53 = smul.addr %s11, 4
        %s54 = sadd.s32 %s52, %s53
        %s55 = smul.addr %s10, 4
        %s56 = sadd.s32 %s54, %s55
        %s57 = smul.addr %s56, 8
        %s58 = scalar_lea.vmem %s0, %s57
        // Predicated region
        $region17: #{custom-call.56} parent=15 // pred_check
          _
        $region18: #{custom-call.56} parent=15 // pred_check_branch
          %60 = sbr.rel (0) target = $region20
        $region19: #{custom-call.56} parent=15 // pred_region
          // Predicated region
          $region21: #{custom-call.56} parent=19 // pred_check
            _
          $region22: #{custom-call.56} parent=19 // pred_check_branch
            %62 = sbr.rel (0) target = $region24
          $region23: #{custom-call.56} parent=19 // pred_region
            // Predicated region
            $region36: #{custom-call.56} parent=23 // pred_check
              _
            $region37: #{custom-call.56} parent=23 // pred_check_branch
              %83 = sbr.rel (0) target = $region39
            $region38: #{custom-call.56} parent=23 // pred_region
              loop: start=0, step=1, limit=1
              $region40: #{custom-call.56} parent=38 // loop_pre_header
                _
              $region41: #{custom-call.56} parent=38 // loop_header
                %s85 = sphi 0, %s89
                %p86 = scmp.ge.s32.totalorder %s85, 1
                %s90 = sphi %s58, %s58
                %s91 = sphi %s51, %s51
              $region42: #{custom-call.56} parent=38 // loop_header_branch
                %88 = sbr.rel (%p86) target = $region46
              $region43: #{custom-call.56} parent=38 // loop_body
                %v92 = vld [vmem:[%s90] sm:$0xff]
                %93 = vst [vmem:[%s91] sm:$0xff] %v92
                %v94 = vld [vmem:[%s90 + $0x8] sm:$0xff]
                %95 = vst [vmem:[%s91 + $0x8] sm:$0xff] %v94
                %v96 = vld [vmem:[%s90 + $0x10] sm:$0xff]
                %97 = vst [vmem:[%s91 + $0x10] sm:$0xff] %v96
                %v98 = vld [vmem:[%s90 + $0x18] sm:$0xff]
                %99 = vst [vmem:[%s91 + $0x18] sm:$0xff] %v98
              $region44: #{custom-call.56} parent=38 // loop_footer
                %s89 = sadd.s32 1, %s85
              $region45: #{custom-call.56} parent=38 // loop_footer_branch
                %84 = sbr.rel target = $region41
              $region46: #{custom-call.56} parent=38 // loop_exit
                _
            $region39: #{custom-call.56} parent=23 // pred_fallthru
              _
            // Predicated region
            $region47: #{custom-call.56} parent=23 // pred_check
              _
            $region48: #{custom-call.56} parent=23 // pred_check_branch
              %101 = sbr.rel target = $region50
            $region49: #{custom-call.56} parent=23 // pred_region
              _
            $region50: #{custom-call.56} parent=23 // pred_fallthru
              _
          $region24: #{custom-call.56} parent=19 // pred_fallthru
            _
          // Predicated region
          $region25: #{custom-call.56} parent=19 // pred_check
            _
          $region26: #{custom-call.56} parent=19 // pred_check_branch
            %64 = sbr.rel target = $region28
          $region27: #{custom-call.56} parent=19 // pred_region
            loop: start=0, step=1, limit=1
            $region29: #{custom-call.56} parent=27 // loop_pre_header
              _
            $region30: #{custom-call.56} parent=27 // loop_header
              %s67 = sphi 0, %s71
              %p68 = scmp.ge.s32.totalorder %s67, 1
              %s72 = sphi %s58, %s58
              %s73 = sphi %s51, %s51
            $region31: #{custom-call.56} parent=27 // loop_header_branch
              %70 = sbr.rel (%p68) target = $region35
            $region32: #{custom-call.56} parent=27 // loop_body
              %v74 = vld [vmem:[%s72] sm:$0xff]
              %75 = vst [vmem:[%s73] sm:$0xff] %v74
              %v76 = vld [vmem:[%s72 + $0x8] sm:$0xff]
              %77 = vst [vmem:[%s73 + $0x8] sm:$0xff] %v76
              %v78 = vld [vmem:[%s72 + $0x10] sm:$0xff]
              %79 = vst [vmem:[%s73 + $0x10] sm:$0xff] %v78
              %v80 = vld [vmem:[%s72 + $0x18] sm:$0xff]
              %81 = vst [vmem:[%s73 + $0x18] sm:$0xff] %v80
            $region33: #{custom-call.56} parent=27 // loop_footer
              %s71 = sadd.s32 1, %s67
            $region34: #{custom-call.56} parent=27 // loop_footer_branch
              %66 = sbr.rel target = $region30
            $region35: #{custom-call.56} parent=27 // loop_exit
              _
          $region28: #{custom-call.56} parent=19 // pred_fallthru
            _
        $region20: #{custom-call.56} parent=15 // pred_fallthru
          _
        %102 = vnop
      $region16: #{custom-call.56} parent=5 // pred_fallthru
        _
      %p103 = scmp.le.s32.totalorder 1, %s3
      %p104 = scmp.lt.s32.totalorder %s3, 10
      %p105 = pnand %p103, %p104
      %p106 = pneg %p105
      // Predicated region
      $region51: #{custom-call.56} parent=5 // pred_check
        _
      $region52: #{custom-call.56} parent=5 // pred_check_branch
        %108 = sbr.rel (%p105) target = $region54
      $region53: #{custom-call.56} parent=5 // pred_region
        #allocation2 [shape = 'f32[32,32]{1,0}', space=vmem, size = 0x4000, scoped, tag = 'rescaled input a']
        %s109 = ssub.s32 %s3, 1
        %s110 = sand.u32 %s8, 1
        %s111 = sand.u32 %s8, 1
        %s112 = smul.addr %s111, 32
        %s113 = scalar_lea.vmem [#allocation0], %s112
        %s114 = sand.u32 %s8, 1
        %s115 = sand.u32 %s8, 1
        %s116 = smul.addr %s115, 32
        %s117 = scalar_lea.vmem [#allocation0], %s116
        %s118 = sand.u32 %s8, 1
        %s119 = sand.u32 %s8, 1
        %s120 = smul.addr %s119, 32
        %s121 = scalar_lea.vmem [#allocation1], %s120
        %v122 = vlaneseq
        %v123 = vand.u32 %v122, 127
        %vm124 = vcmp.lt.s32.totalorder %v123, 32
        %v125 = vlaneseq
        %v126 = vshrl.u32 %v125, 7
        %vm128 = vcmp.eq.s32.totalorder %v126, %v123
        %v129 = vld [vmem:[%s113] sm:$0xff]
        %v130 = vsel %vm128, %v129, 0.0
        %131 = vadd.xlane.f32.xlu0 %v130
        %v132 = vpop.xlane.xlu0 %131
        %vm133 = vcmp.ge.s32.totalorder %v126, %v123
        %vm134 = vmand %vm133, %vm124
        %v135 = vsel %vm134, %v129, 0.0
        %v136 = vrcp.pop %v132
        %v137 = vmul.f32 %v135, %v136
        %138 = vst [vmem:[#allocation2] sm:$0xff] %v137
        %s139 = scalar_lea.vmem %s113, 8 [#allocation0]
        %s140 = scalar_lea.vmem [#allocation2], 8
        %v141 = vlaneseq
        %v142 = vshrl.u32 %v141, 7
        %v143 = vadd.s32 %v142, 8
        %vm144 = vcmp.eq.s32.totalorder %v143, %v123
        %v145 = vld [vmem:[%s139] sm:$0xff]
        %v146 = vsel %vm144, %v145, 0.0
        %147 = vadd.xlane.f32.xlu0 %v146
        %v148 = vpop.xlane.xlu0 %147
        %vm149 = vcmp.ge.s32.totalorder %v143, %v123
        %vm150 = vmand %vm149, %vm124
        %v151 = vsel %vm150, %v145, 0.0
        %v152 = vrcp.pop %v148
        %v153 = vmul.f32 %v151, %v152
        %154 = vst [vmem:[%s140] sm:$0xff] %v153
        %s155 = scalar_lea.vmem %s113, 16 [#allocation0]
        %s156 = scalar_lea.vmem [#allocation2], 16
        %v157 = vlaneseq
        %v158 = vshrl.u32 %v157, 7
        %v159 = vadd.s32 %v158, 16
        %vm160 = vcmp.eq.s32.totalorder %v159, %v123
        %v161 = vld [vmem:[%s155] sm:$0xff]
        %v162 = vsel %vm160, %v161, 0.0
        %163 = vadd.xlane.f32.xlu0 %v162
        %v164 = vpop.xlane.xlu0 %163
        %vm165 = vcmp.ge.s32.totalorder %v159, %v123
        %vm166 = vmand %vm165, %vm124
        %v167 = vsel %vm166, %v161, 0.0
        %v168 = vrcp.pop %v164
        %v169 = vmul.f32 %v167, %v168
        %170 = vst [vmem:[%s156] sm:$0xff] %v169
        %s171 = scalar_lea.vmem %s113, 24 [#allocation0]
        %s172 = scalar_lea.vmem [#allocation2], 24
        %v173 = vlaneseq
        %v174 = vshrl.u32 %v173, 7
        %v175 = vadd.s32 %v174, 24
        %vm176 = vcmp.eq.s32.totalorder %v175, %v123
        %v177 = vld [vmem:[%s171] sm:$0xff]
        %v178 = vsel %vm176, %v177, 0.0
        %179 = vadd.xlane.f32.xlu0 %v178
        %v180 = vpop.xlane.xlu0 %179
        %vm181 = vcmp.ge.s32.totalorder %v175, %v123
        %vm182 = vmand %vm181, %vm124
        %v183 = vsel %vm182, %v177, 0.0
        %v184 = vrcp.pop %v180
        %v185 = vmul.f32 %v183, %v184
        %186 = vst [vmem:[%s172] sm:$0xff] %v185
        %v187 = vlaneseq
        %v188 = vand.u32 %v187, 127
        %v189 = vlaneseq
        %v190 = vshrl.u32 %v189, 7
        %vm192 = vcmp.eq.s32.totalorder %v188, %v190
        %v193 = vlaneseq
        %v194 = vand.u32 %v193, 127
        %vm195 = vcmp.eq.s32.totalorder %v194, 0
        %v196 = vsel %vm195, 1.0, -1.0
        %v197 = vsel %vm192, %v196, 0.0
        %v198 = vlaneseq
        %v199 = vand.u32 %v198, 127
        %v200 = vlaneseq
        %v201 = vshrl.u32 %v200, 7
        %v202 = vadd.s32 %v201, 8
        %vm203 = vcmp.eq.s32.totalorder %v199, %v202
        %v204 = vsel %vm203, -1.0, 0.0
        %v205 = vlaneseq
        %v206 = vand.u32 %v205, 127
        %v207 = vlaneseq
        %v208 = vshrl.u32 %v207, 7
        %v209 = vadd.s32 %v208, 16
        %vm210 = vcmp.eq.s32.totalorder %v206, %v209
        %v211 = vsel %vm210, -1.0, 0.0
        %v212 = vlaneseq
        %v213 = vand.u32 %v212, 127
        %v214 = vlaneseq
        %v215 = vshrl.u32 %v214, 7
        %v216 = vadd.s32 %v215, 24
        %vm217 = vcmp.eq.s32.totalorder %v213, %v216
        %v218 = vsel %vm217, -1.0, 0.0
        %s219 = scalar_lea.vmem [#allocation2], 1
        %v220 = vld [vmem:[%s219] ss:$0 sm:$0xff]
        %v221 = vxor.u32 %v220, 2147483648
        %v222 = vlaneseq
        %v223 = vand.u32 %v222, 127
        %vm224 = vcmp.eq.s32.totalorder %v223, 1
        %v225 = vmul.f32 %v221, %v197
        %226 = vadd.xlane.f32.xlu0 %v225
        %v227 = vpop.xlane.xlu0 %226
        %v228 = vsel %vm224, %v227, %v197
        %s229 = scalar_lea.vmem [#allocation2], 2
        %v230 = vld [vmem:[%s229] ss:$0 sm:$0xff]
        %v231 = vxor.u32 %v230, 2147483648
        %v232 = vlaneseq
        %v233 = vand.u32 %v232, 127
        %vm234 = vcmp.eq.s32.totalorder %v233, 2
        %v235 = vmul.f32 %v231, %v228
        %236 = vadd.xlane.f32.xlu0 %v235
        %v237 = vpop.xlane.xlu0 %236
        %v238 = vsel %vm234, %v237, %v228
        %s239 = scalar_lea.vmem [#allocation2], 3
        %v240 = vld [vmem:[%s239] ss:$0 sm:$0xff]
        %v241 = vxor.u32 %v240, 2147483648
        %v242 = vlaneseq
        %v243 = vand.u32 %v242, 127
        %vm244 = vcmp.eq.s32.totalorder %v243, 3
        %v245 = vmul.f32 %v241, %v238
        %246 = vadd.xlane.f32.xlu0 %v245
        %v247 = vpop.xlane.xlu0 %246
        %v248 = vsel %vm244, %v247, %v238
        %s249 = scalar_lea.vmem [#allocation2], 4
        %v250 = vld [vmem:[%s249] ss:$0 sm:$0xff]
        %v251 = vxor.u32 %v250, 2147483648
        %v252 = vlaneseq
        %v253 = vand.u32 %v252, 127
        %vm254 = vcmp.eq.s32.totalorder %v253, 4
        %v255 = vmul.f32 %v251, %v248
        %256 = vadd.xlane.f32.xlu0 %v255
        %v257 = vpop.xlane.xlu0 %256
        %v258 = vsel %vm254, %v257, %v248
        %s259 = scalar_lea.vmem [#allocation2], 5
        %v260 = vld [vmem:[%s259] ss:$0 sm:$0xff]
        %v261 = vxor.u32 %v260, 2147483648
        %v262 = vlaneseq
        %v263 = vand.u32 %v262, 127
        %vm264 = vcmp.eq.s32.totalorder %v263, 5
        %v265 = vmul.f32 %v261, %v258
        %266 = vadd.xlane.f32.xlu0 %v265
        %v267 = vpop.xlane.xlu0 %266
        %v268 = vsel %vm264, %v267, %v258
        %s269 = scalar_lea.vmem [#allocation2], 6
        %v270 = vld [vmem:[%s269] ss:$0 sm:$0xff]
        %v271 = vxor.u32 %v270, 2147483648
        %v272 = vlaneseq
        %v273 = vand.u32 %v272, 127
        %vm274 = vcmp.eq.s32.totalorder %v273, 6
        %v275 = vmul.f32 %v271, %v268
        %276 = vadd.xlane.f32.xlu0 %v275
        %v277 = vpop.xlane.xlu0 %276
        %v278 = vsel %vm274, %v277, %v268
        %s279 = scalar_lea.vmem [#allocation2], 7
        %v280 = vld [vmem:[%s279] ss:$0 sm:$0xff]
        %v281 = vxor.u32 %v280, 2147483648
        %v282 = vlaneseq
        %v283 = vand.u32 %v282, 127
        %vm284 = vcmp.eq.s32.totalorder %v283, 7
        %v285 = vmul.f32 %v281, %v278
        %286 = vadd.xlane.f32.xlu0 %v285
        %v287 = vpop.xlane.xlu0 %286
        %v288 = vsel %vm284, %v287, %v278
        %s289 = scalar_lea.vmem [#allocation2], 8
        %v290 = vld [vmem:[%s289] ss:$0 sm:$0xff]
        %v291 = vxor.u32 %v290, 2147483648
        %v292 = vlaneseq
        %v293 = vand.u32 %v292, 127
        %vm294 = vcmp.eq.s32.totalorder %v293, 8
        %v295 = vmul.f32 %v291, %v288
        %296 = vadd.xlane.f32.xlu0 %v295
        %v297 = vpop.xlane.xlu0 %296
        %v298 = vsel %vm294, %v297, %v288
        %v299 = vmul.f32 %v291, %v204
        %300 = vadd.xlane.f32.xlu0 %v299
        %v301 = vpop.xlane.xlu0 %300
        %v302 = vsel %vm294, %v301, %v204
        %s303 = scalar_lea.vmem [#allocation2], 9
        %v304 = vld [vmem:[%s303] ss:$0 sm:$0xff]
        %v305 = vxor.u32 %v304, 2147483648
        %v306 = vlaneseq
        %v307 = vand.u32 %v306, 127
        %vm308 = vcmp.eq.s32.totalorder %v307, 9
        %v309 = vmul.f32 %v305, %v298
        %310 = vadd.xlane.f32.xlu0 %v309
        %v311 = vpop.xlane.xlu0 %310
        %v312 = vsel %vm308, %v311, %v298
        %v313 = vmul.f32 %v305, %v302
        %314 = vadd.xlane.f32.xlu0 %v313
        %v315 = vpop.xlane.xlu0 %314
        %v316 = vsel %vm308, %v315, %v302
        %s317 = scalar_lea.vmem [#allocation2], 10
        %v318 = vld [vmem:[%s317] ss:$0 sm:$0xff]
        %v319 = vxor.u32 %v318, 2147483648
        %v320 = vlaneseq
        %v321 = vand.u32 %v320, 127
        %vm322 = vcmp.eq.s32.totalorder %v321, 10
        %v323 = vmul.f32 %v319, %v312
        %324 = vadd.xlane.f32.xlu0 %v323
        %v325 = vpop.xlane.xlu0 %324
        %v326 = vsel %vm322, %v325, %v312
        %v327 = vmul.f32 %v319, %v316
        %328 = vadd.xlane.f32.xlu0 %v327
        %v329 = vpop.xlane.xlu0 %328
        %v330 = vsel %vm322, %v329, %v316
        %s331 = scalar_lea.vmem [#allocation2], 11
        %v332 = vld [vmem:[%s331] ss:$0 sm:$0xff]
        %v333 = vxor.u32 %v332, 2147483648
        %v334 = vlaneseq
        %v335 = vand.u32 %v334, 127
        %vm336 = vcmp.eq.s32.totalorder %v335, 11
        %v337 = vmul.f32 %v333, %v326
        %338 = vadd.xlane.f32.xlu0 %v337
        %v339 = vpop.xlane.xlu0 %338
        %v340 = vsel %vm336, %v339, %v326
        %v341 = vmul.f32 %v333, %v330
        %342 = vadd.xlane.f32.xlu0 %v341
        %v343 = vpop.xlane.xlu0 %342
        %v344 = vsel %vm336, %v343, %v330
        %s345 = scalar_lea.vmem [#allocation2], 12
        %v346 = vld [vmem:[%s345] ss:$0 sm:$0xff]
        %v347 = vxor.u32 %v346, 2147483648
        %v348 = vlaneseq
        %v349 = vand.u32 %v348, 127
        %vm350 = vcmp.eq.s32.totalorder %v349, 12
        %v351 = vmul.f32 %v347, %v340
        %352 = vadd.xlane.f32.xlu0 %v351
        %v353 = vpop.xlane.xlu0 %352
        %v354 = vsel %vm350, %v353, %v340
        %v355 = vmul.f32 %v347, %v344
        %356 = vadd.xlane.f32.xlu0 %v355
        %v357 = vpop.xlane.xlu0 %356
        %v358 = vsel %vm350, %v357, %v344
        %s359 = scalar_lea.vmem [#allocation2], 13
        %v360 = vld [vmem:[%s359] ss:$0 sm:$0xff]
        %v361 = vxor.u32 %v360, 2147483648
        %v362 = vlaneseq
        %v363 = vand.u32 %v362, 127
        %vm364 = vcmp.eq.s32.totalorder %v363, 13
        %v365 = vmul.f32 %v361, %v354
        %366 = vadd.xlane.f32.xlu0 %v365
        %v367 = vpop.xlane.xlu0 %366
        %v368 = vsel %vm364, %v367, %v354
        %v369 = vmul.f32 %v361, %v358
        %370 = vadd.xlane.f32.xlu0 %v369
        %v371 = vpop.xlane.xlu0 %370
        %v372 = vsel %vm364, %v371, %v358
        %s373 = scalar_lea.vmem [#allocation2], 14
        %v374 = vld [vmem:[%s373] ss:$0 sm:$0xff]
        %v375 = vxor.u32 %v374, 2147483648
        %v376 = vlaneseq
        %v377 = vand.u32 %v376, 127
        %vm378 = vcmp.eq.s32.totalorder %v377, 14
        %v379 = vmul.f32 %v375, %v368
        %380 = vadd.xlane.f32.xlu0 %v379
        %v381 = vpop.xlane.xlu0 %380
        %v382 = vsel %vm378, %v381, %v368
        %v383 = vmul.f32 %v375, %v372
        %384 = vadd.xlane.f32.xlu0 %v383
        %v385 = vpop.xlane.xlu0 %384
        %v386 = vsel %vm378, %v385, %v372
        %s387 = scalar_lea.vmem [#allocation2], 15
        %v388 = vld [vmem:[%s387] ss:$0 sm:$0xff]
        %v389 = vxor.u32 %v388, 2147483648
        %v390 = vlaneseq
        %v391 = vand.u32 %v390, 127
        %vm392 = vcmp.eq.s32.totalorder %v391, 15
        %v393 = vmul.f32 %v389, %v382
        %394 = vadd.xlane.f32.xlu0 %v393
        %v395 = vpop.xlane.xlu0 %394
        %v396 = vsel %vm392, %v395, %v382
        %v397 = vmul.f32 %v389, %v386
        %398 = vadd.xlane.f32.xlu0 %v397
        %v399 = vpop.xlane.xlu0 %398
        %v400 = vsel %vm392, %v399, %v386
        %s401 = scalar_lea.vmem [#allocation2], 16
        %v402 = vld [vmem:[%s401] ss:$0 sm:$0xff]
        %v403 = vxor.u32 %v402, 2147483648
        %v404 = vlaneseq
        %v405 = vand.u32 %v404, 127
        %vm406 = vcmp.eq.s32.totalorder %v405, 16
        %v407 = vmul.f32 %v403, %v396
        %408 = vadd.xlane.f32.xlu0 %v407
        %v409 = vpop.xlane.xlu0 %408
        %v410 = vsel %vm406, %v409, %v396
        %v411 = vmul.f32 %v403, %v400
        %412 = vadd.xlane.f32.xlu0 %v411
        %v413 = vpop.xlane.xlu0 %412
        %v414 = vsel %vm406, %v413, %v400
        %v415 = vmul.f32 %v403, %v211
        %416 = vadd.xlane.f32.xlu0 %v415
        %v417 = vpop.xlane.xlu0 %416
        %v418 = vsel %vm406, %v417, %v211
        %s419 = scalar_lea.vmem [#allocation2], 17
        %v420 = vld [vmem:[%s419] ss:$0 sm:$0xff]
        %v421 = vxor.u32 %v420, 2147483648
        %v422 = vlaneseq
        %v423 = vand.u32 %v422, 127
        %vm424 = vcmp.eq.s32.totalorder %v423, 17
        %v425 = vmul.f32 %v421, %v410
        %426 = vadd.xlane.f32.xlu0 %v425
        %v427 = vpop.xlane.xlu0 %426
        %v428 = vsel %vm424, %v427, %v410
        %v429 = vmul.f32 %v421, %v414
        %430 = vadd.xlane.f32.xlu0 %v429
        %v431 = vpop.xlane.xlu0 %430
        %v432 = vsel %vm424, %v431, %v414
        %v433 = vmul.f32 %v421, %v418
        %434 = vadd.xlane.f32.xlu0 %v433
        %v435 = vpop.xlane.xlu0 %434
        %v436 = vsel %vm424, %v435, %v418
        %s437 = scalar_lea.vmem [#allocation2], 18
        %v438 = vld [vmem:[%s437] ss:$0 sm:$0xff]
        %v439 = vxor.u32 %v438, 2147483648
        %v440 = vlaneseq
        %v441 = vand.u32 %v440, 127
        %vm442 = vcmp.eq.s32.totalorder %v441, 18
        %v443 = vmul.f32 %v439, %v428
        %444 = vadd.xlane.f32.xlu0 %v443
        %v445 = vpop.xlane.xlu0 %444
        %v446 = vsel %vm442, %v445, %v428
        %v447 = vmul.f32 %v439, %v432
        %448 = vadd.xlane.f32.xlu0 %v447
        %v449 = vpop.xlane.xlu0 %448
        %v450 = vsel %vm442, %v449, %v432
        %v451 = vmul.f32 %v439, %v436
        %452 = vadd.xlane.f32.xlu0 %v451
        %v453 = vpop.xlane.xlu0 %452
        %v454 = vsel %vm442, %v453, %v436
        %s455 = scalar_lea.vmem [#allocation2], 19
        %v456 = vld [vmem:[%s455] ss:$0 sm:$0xff]
        %v457 = vxor.u32 %v456, 2147483648
        %v458 = vlaneseq
        %v459 = vand.u32 %v458, 127
        %vm460 = vcmp.eq.s32.totalorder %v459, 19
        %v461 = vmul.f32 %v457, %v446
        %462 = vadd.xlane.f32.xlu0 %v461
        %v463 = vpop.xlane.xlu0 %462
        %v464 = vsel %vm460, %v463, %v446
        %v465 = vmul.f32 %v457, %v450
        %466 = vadd.xlane.f32.xlu0 %v465
        %v467 = vpop.xlane.xlu0 %466
        %v468 = vsel %vm460, %v467, %v450
        %v469 = vmul.f32 %v457, %v454
        %470 = vadd.xlane.f32.xlu0 %v469
        %v471 = vpop.xlane.xlu0 %470
        %v472 = vsel %vm460, %v471, %v454
        %s473 = scalar_lea.vmem [#allocation2], 20
        %v474 = vld [vmem:[%s473] ss:$0 sm:$0xff]
        %v475 = vxor.u32 %v474, 2147483648
        %v476 = vlaneseq
        %v477 = vand.u32 %v476, 127
        %vm478 = vcmp.eq.s32.totalorder %v477, 20
        %v479 = vmul.f32 %v475, %v464
        %480 = vadd.xlane.f32.xlu0 %v479
        %v481 = vpop.xlane.xlu0 %480
        %v482 = vsel %vm478, %v481, %v464
        %v483 = vmul.f32 %v475, %v468
        %484 = vadd.xlane.f32.xlu0 %v483
        %v485 = vpop.xlane.xlu0 %484
        %v486 = vsel %vm478, %v485, %v468
        %v487 = vmul.f32 %v475, %v472
        %488 = vadd.xlane.f32.xlu0 %v487
        %v489 = vpop.xlane.xlu0 %488
        %v490 = vsel %vm478, %v489, %v472
        %s491 = scalar_lea.vmem [#allocation2], 21
        %v492 = vld [vmem:[%s491] ss:$0 sm:$0xff]
        %v493 = vxor.u32 %v492, 2147483648
        %v494 = vlaneseq
        %v495 = vand.u32 %v494, 127
        %vm496 = vcmp.eq.s32.totalorder %v495, 21
        %v497 = vmul.f32 %v493, %v482
        %498 = vadd.xlane.f32.xlu0 %v497
        %v499 = vpop.xlane.xlu0 %498
        %v500 = vsel %vm496, %v499, %v482
        %v501 = vmul.f32 %v493, %v486
        %502 = vadd.xlane.f32.xlu0 %v501
        %v503 = vpop.xlane.xlu0 %502
        %v504 = vsel %vm496, %v503, %v486
        %v505 = vmul.f32 %v493, %v490
        %506 = vadd.xlane.f32.xlu0 %v505
        %v507 = vpop.xlane.xlu0 %506
        %v508 = vsel %vm496, %v507, %v490
        %s509 = scalar_lea.vmem [#allocation2], 22
        %v510 = vld [vmem:[%s509] ss:$0 sm:$0xff]
        %v511 = vxor.u32 %v510, 2147483648
        %v512 = vlaneseq
        %v513 = vand.u32 %v512, 127
        %vm514 = vcmp.eq.s32.totalorder %v513, 22
        %v515 = vmul.f32 %v511, %v500
        %516 = vadd.xlane.f32.xlu0 %v515
        %v517 = vpop.xlane.xlu0 %516
        %v518 = vsel %vm514, %v517, %v500
        %v519 = vmul.f32 %v511, %v504
        %520 = vadd.xlane.f32.xlu0 %v519
        %v521 = vpop.xlane.xlu0 %520
        %v522 = vsel %vm514, %v521, %v504
        %v523 = vmul.f32 %v511, %v508
        %524 = vadd.xlane.f32.xlu0 %v523
        %v525 = vpop.xlane.xlu0 %524
        %v526 = vsel %vm514, %v525, %v508
        %s527 = scalar_lea.vmem [#allocation2], 23
        %v528 = vld [vmem:[%s527] ss:$0 sm:$0xff]
        %v529 = vxor.u32 %v528, 2147483648
        %v530 = vlaneseq
        %v531 = vand.u32 %v530, 127
        %vm532 = vcmp.eq.s32.totalorder %v531, 23
        %v533 = vmul.f32 %v529, %v518
        %534 = vadd.xlane.f32.xlu0 %v533
        %v535 = vpop.xlane.xlu0 %534
        %v536 = vsel %vm532, %v535, %v518
        %v537 = vmul.f32 %v529, %v522
        %538 = vadd.xlane.f32.xlu0 %v537
        %v539 = vpop.xlane.xlu0 %538
        %v540 = vsel %vm532, %v539, %v522
        %v541 = vmul.f32 %v529, %v526
        %542 = vadd.xlane.f32.xlu0 %v541
        %v543 = vpop.xlane.xlu0 %542
        %v544 = vsel %vm532, %v543, %v526
        %s545 = scalar_lea.vmem [#allocation2], 24
        %v546 = vld [vmem:[%s545] ss:$0 sm:$0xff]
        %v547 = vxor.u32 %v546, 2147483648
        %v548 = vlaneseq
        %v549 = vand.u32 %v548, 127
        %vm550 = vcmp.eq.s32.totalorder %v549, 24
        %v551 = vmul.f32 %v547, %v536
        %552 = vadd.xlane.f32.xlu0 %v551
        %v553 = vpop.xlane.xlu0 %552
        %v554 = vsel %vm550, %v553, %v536
        %v555 = vmul.f32 %v547, %v540
        %556 = vadd.xlane.f32.xlu0 %v555
        %v557 = vpop.xlane.xlu0 %556
        %v558 = vsel %vm550, %v557, %v540
        %v559 = vmul.f32 %v547, %v544
        %560 = vadd.xlane.f32.xlu0 %v559
        %v561 = vpop.xlane.xlu0 %560
        %v562 = vsel %vm550, %v561, %v544
        %v563 = vmul.f32 %v547, %v218
        %564 = vadd.xlane.f32.xlu0 %v563
        %v565 = vpop.xlane.xlu0 %564
        %v566 = vsel %vm550, %v565, %v218
        %s567 = scalar_lea.vmem [#allocation2], 25
        %v568 = vld [vmem:[%s567] ss:$0 sm:$0xff]
        %v569 = vxor.u32 %v568, 2147483648
        %v570 = vlaneseq
        %v571 = vand.u32 %v570, 127
        %vm572 = vcmp.eq.s32.totalorder %v571, 25
        %v573 = vmul.f32 %v569, %v554
        %574 = vadd.xlane.f32.xlu0 %v573
        %v575 = vpop.xlane.xlu0 %574
        %v576 = vsel %vm572, %v575, %v554
        %v577 = vmul.f32 %v569, %v558
        %578 = vadd.xlane.f32.xlu0 %v577
        %v579 = vpop.xlane.xlu0 %578
        %v580 = vsel %vm572, %v579, %v558
        %v581 = vmul.f32 %v569, %v562
        %582 = vadd.xlane.f32.xlu0 %v581
        %v583 = vpop.xlane.xlu0 %582
        %v584 = vsel %vm572, %v583, %v562
        %v585 = vmul.f32 %v569, %v566
        %586 = vadd.xlane.f32.xlu0 %v585
        %v587 = vpop.xlane.xlu0 %586
        %v588 = vsel %vm572, %v587, %v566
        %s589 = scalar_lea.vmem [#allocation2], 26
        %v590 = vld [vmem:[%s589] ss:$0 sm:$0xff]
        %v591 = vxor.u32 %v590, 2147483648
        %v592 = vlaneseq
        %v593 = vand.u32 %v592, 127
        %vm594 = vcmp.eq.s32.totalorder %v593, 26
        %v595 = vmul.f32 %v591, %v576
        %596 = vadd.xlane.f32.xlu0 %v595
        %v597 = vpop.xlane.xlu0 %596
        %v598 = vsel %vm594, %v597, %v576
        %v599 = vmul.f32 %v591, %v580
        %600 = vadd.xlane.f32.xlu0 %v599
        %v601 = vpop.xlane.xlu0 %600
        %v602 = vsel %vm594, %v601, %v580
        %v603 = vmul.f32 %v591, %v584
        %604 = vadd.xlane.f32.xlu0 %v603
        %v605 = vpop.xlane.xlu0 %604
        %v606 = vsel %vm594, %v605, %v584
        %v607 = vmul.f32 %v591, %v588
        %608 = vadd.xlane.f32.xlu0 %v607
        %v609 = vpop.xlane.xlu0 %608
        %v610 = vsel %vm594, %v609, %v588
        %s611 = scalar_lea.vmem [#allocation2], 27
        %v612 = vld [vmem:[%s611] ss:$0 sm:$0xff]
        %v613 = vxor.u32 %v612, 2147483648
        %v614 = vlaneseq
        %v615 = vand.u32 %v614, 127
        %vm616 = vcmp.eq.s32.totalorder %v615, 27
        %v617 = vmul.f32 %v613, %v598
        %618 = vadd.xlane.f32.xlu0 %v617
        %v619 = vpop.xlane.xlu0 %618
        %v620 = vsel %vm616, %v619, %v598
        %v621 = vmul.f32 %v613, %v602
        %622 = vadd.xlane.f32.xlu0 %v621
        %v623 = vpop.xlane.xlu0 %622
        %v624 = vsel %vm616, %v623, %v602
        %v625 = vmul.f32 %v613, %v606
        %626 = vadd.xlane.f32.xlu0 %v625
        %v627 = vpop.xlane.xlu0 %626
        %v628 = vsel %vm616, %v627, %v606
        %v629 = vmul.f32 %v613, %v610
        %630 = vadd.xlane.f32.xlu0 %v629
        %v631 = vpop.xlane.xlu0 %630
        %v632 = vsel %vm616, %v631, %v610
        %s633 = scalar_lea.vmem [#allocation2], 28
        %v634 = vld [vmem:[%s633] ss:$0 sm:$0xff]
        %v635 = vxor.u32 %v634, 2147483648
        %v636 = vlaneseq
        %v637 = vand.u32 %v636, 127
        %vm638 = vcmp.eq.s32.totalorder %v637, 28
        %v639 = vmul.f32 %v635, %v620
        %640 = vadd.xlane.f32.xlu0 %v639
        %v641 = vpop.xlane.xlu0 %640
        %v642 = vsel %vm638, %v641, %v620
        %v643 = vmul.f32 %v635, %v624
        %644 = vadd.xlane.f32.xlu0 %v643
        %v645 = vpop.xlane.xlu0 %644
        %v646 = vsel %vm638, %v645, %v624
        %v647 = vmul.f32 %v635, %v628
        %648 = vadd.xlane.f32.xlu0 %v647
        %v649 = vpop.xlane.xlu0 %648
        %v650 = vsel %vm638, %v649, %v628
        %v651 = vmul.f32 %v635, %v632
        %652 = vadd.xlane.f32.xlu0 %v651
        %v653 = vpop.xlane.xlu0 %652
        %v654 = vsel %vm638, %v653, %v632
        %s655 = scalar_lea.vmem [#allocation2], 29
        %v656 = vld [vmem:[%s655] ss:$0 sm:$0xff]
        %v657 = vxor.u32 %v656, 2147483648
        %v658 = vlaneseq
        %v659 = vand.u32 %v658, 127
        %vm660 = vcmp.eq.s32.totalorder %v659, 29
        %v661 = vmul.f32 %v657, %v642
        %662 = vadd.xlane.f32.xlu0 %v661
        %v663 = vpop.xlane.xlu0 %662
        %v664 = vsel %vm660, %v663, %v642
        %v665 = vmul.f32 %v657, %v646
        %666 = vadd.xlane.f32.xlu0 %v665
        %v667 = vpop.xlane.xlu0 %666
        %v668 = vsel %vm660, %v667, %v646
        %v669 = vmul.f32 %v657, %v650
        %670 = vadd.xlane.f32.xlu0 %v669
        %v671 = vpop.xlane.xlu0 %670
        %v672 = vsel %vm660, %v671, %v650
        %v673 = vmul.f32 %v657, %v654
        %674 = vadd.xlane.f32.xlu0 %v673
        %v675 = vpop.xlane.xlu0 %674
        %v676 = vsel %vm660, %v675, %v654
        %s677 = scalar_lea.vmem [#allocation2], 30
        %v678 = vld [vmem:[%s677] ss:$0 sm:$0xff]
        %v679 = vxor.u32 %v678, 2147483648
        %v680 = vlaneseq
        %v681 = vand.u32 %v680, 127
        %vm682 = vcmp.eq.s32.totalorder %v681, 30
        %v683 = vmul.f32 %v679, %v664
        %684 = vadd.xlane.f32.xlu0 %v683
        %v685 = vpop.xlane.xlu0 %684
        %v686 = vsel %vm682, %v685, %v664
        %v687 = vmul.f32 %v679, %v668
        %688 = vadd.xlane.f32.xlu0 %v687
        %v689 = vpop.xlane.xlu0 %688
        %v690 = vsel %vm682, %v689, %v668
        %v691 = vmul.f32 %v679, %v672
        %692 = vadd.xlane.f32.xlu0 %v691
        %v693 = vpop.xlane.xlu0 %692
        %v694 = vsel %vm682, %v693, %v672
        %v695 = vmul.f32 %v679, %v676
        %696 = vadd.xlane.f32.xlu0 %v695
        %v697 = vpop.xlane.xlu0 %696
        %v698 = vsel %vm682, %v697, %v676
        %s699 = scalar_lea.vmem [#allocation2], 31
        %v700 = vld [vmem:[%s699] ss:$0 sm:$0xff]
        %v701 = vxor.u32 %v700, 2147483648
        %v702 = vlaneseq
        %v703 = vand.u32 %v702, 127
        %vm704 = vcmp.eq.s32.totalorder %v703, 31
        %v705 = vmul.f32 %v701, %v686
        %706 = vadd.xlane.f32.xlu0 %v705
        %v707 = vpop.xlane.xlu0 %706
        %v708 = vsel %vm704, %v707, %v686
        %v709 = vmul.f32 %v701, %v690
        %710 = vadd.xlane.f32.xlu0 %v709
        %v711 = vpop.xlane.xlu0 %710
        %v712 = vsel %vm704, %v711, %v690
        %v713 = vmul.f32 %v701, %v694
        %714 = vadd.xlane.f32.xlu0 %v713
        %v715 = vpop.xlane.xlu0 %714
        %v716 = vsel %vm704, %v715, %v694
        %v717 = vmul.f32 %v701, %v698
        %718 = vadd.xlane.f32.xlu0 %v717
        %v719 = vpop.xlane.xlu0 %718
        %v720 = vsel %vm704, %v719, %v698
        %v721 = vrcp.pop %v132
        %v722 = vmul.f32 %v708, %v721
        %vm723 = vweird.f32 %v132
        %v724 = vsel %vm723, %v708, %v722
        %725 = vst [vmem:[%s121] sm:$0xff] %v724
        %v726 = vrcp.pop %v148
        %v727 = vmul.f32 %v712, %v726
        %vm728 = vweird.f32 %v148
        %v729 = vsel %vm728, %v712, %v727
        %s730 = scalar_lea.vmem %s121, 8 [#allocation1]
        %731 = vst [vmem:[%s730] sm:$0xff] %v729
        %v732 = vrcp.pop %v164
        %v733 = vmul.f32 %v716, %v732
        %vm734 = vweird.f32 %v164
        %v735 = vsel %vm734, %v716, %v733
        %s736 = scalar_lea.vmem %s121, 16 [#allocation1]
        %737 = vst [vmem:[%s736] sm:$0xff] %v735
        %v738 = vrcp.pop %v180
        %v739 = vmul.f32 %v720, %v738
        %vm740 = vweird.f32 %v180
        %v741 = vsel %vm740, %v720, %v739
        %s742 = scalar_lea.vmem %s121, 24 [#allocation1]
        %743 = vst [vmem:[%s742] sm:$0xff] %v741
        %s744 = sand.u32 %s8, 1
        %s745 = sand.u32 %s8, 1
        %s746 = smul.addr %s745, 32
        %s747 = scalar_lea.vmem [#allocation1], %s746
        %s748 = sadd.s32 %s17, %s16
        %s749 = smul.addr %s15, 4
        %s750 = sadd.s32 %s748, %s749
        %s751 = smul.addr %s14, 4
        %s752 = sadd.s32 %s750, %s751
        %s753 = smul.addr %s752, 8
        %s754 = scalar_lea.vmem %s1, %s753
        // Predicated region
        $region55: #{custom-call.56} parent=53 // pred_check
          _
        $region56: #{custom-call.56} parent=53 // pred_check_branch
          %756 = sbr.rel (0) target = $region58
        $region57: #{custom-call.56} parent=53 // pred_region
          // Predicated region
          $region59: #{custom-call.56} parent=57 // pred_check
            _
          $region60: #{custom-call.56} parent=57 // pred_check_branch
            %758 = sbr.rel (0) target = $region62
          $region61: #{custom-call.56} parent=57 // pred_region
            // Predicated region
            $region74: #{custom-call.56} parent=61 // pred_check
              _
            $region75: #{custom-call.56} parent=61 // pred_check_branch
              %779 = sbr.rel (0) target = $region77
            $region76: #{custom-call.56} parent=61 // pred_region
              loop: start=0, step=1, limit=1
              $region78: #{custom-call.56} parent=76 // loop_pre_header
                _
              $region79: #{custom-call.56} parent=76 // loop_header
                %s781 = sphi 0, %s785
                %p782 = scmp.ge.s32.totalorder %s781, 1
                %s786 = sphi %s747, %s747
                %s787 = sphi %s754, %s754
              $region80: #{custom-call.56} parent=76 // loop_header_branch
                %784 = sbr.rel (%p782) target = $region84
              $region81: #{custom-call.56} parent=76 // loop_body
                %v788 = vld [vmem:[%s786] sm:$0xff]
                %789 = vst [vmem:[%s787] sm:$0xff] %v788
                %v790 = vld [vmem:[%s786 + $0x8] sm:$0xff]
                %791 = vst [vmem:[%s787 + $0x8] sm:$0xff] %v790
                %v792 = vld [vmem:[%s786 + $0x10] sm:$0xff]
                %793 = vst [vmem:[%s787 + $0x10] sm:$0xff] %v792
                %v794 = vld [vmem:[%s786 + $0x18] sm:$0xff]
                %795 = vst [vmem:[%s787 + $0x18] sm:$0xff] %v794
              $region82: #{custom-call.56} parent=76 // loop_footer
                %s785 = sadd.s32 1, %s781
              $region83: #{custom-call.56} parent=76 // loop_footer_branch
                %780 = sbr.rel target = $region79
              $region84: #{custom-call.56} parent=76 // loop_exit
                _
            $region77: #{custom-call.56} parent=61 // pred_fallthru
              _
            // Predicated region
            $region85: #{custom-call.56} parent=61 // pred_check
              _
            $region86: #{custom-call.56} parent=61 // pred_check_branch
              %797 = sbr.rel target = $region88
            $region87: #{custom-call.56} parent=61 // pred_region
              _
            $region88: #{custom-call.56} parent=61 // pred_fallthru
              _
          $region62: #{custom-call.56} parent=57 // pred_fallthru
            _
          // Predicated region
          $region63: #{custom-call.56} parent=57 // pred_check
            _
          $region64: #{custom-call.56} parent=57 // pred_check_branch
            %760 = sbr.rel target = $region66
          $region65: #{custom-call.56} parent=57 // pred_region
            loop: start=0, step=1, limit=1
            $region67: #{custom-call.56} parent=65 // loop_pre_header
              _
            $region68: #{custom-call.56} parent=65 // loop_header
              %s763 = sphi 0, %s767
              %p764 = scmp.ge.s32.totalorder %s763, 1
              %s768 = sphi %s747, %s747
              %s769 = sphi %s754, %s754
            $region69: #{custom-call.56} parent=65 // loop_header_branch
              %766 = sbr.rel (%p764) target = $region73
            $region70: #{custom-call.56} parent=65 // loop_body
              %v770 = vld [vmem:[%s768] sm:$0xff]
              %771 = vst [vmem:[%s769] sm:$0xff] %v770
              %v772 = vld [vmem:[%s768 + $0x8] sm:$0xff]
              %773 = vst [vmem:[%s769 + $0x8] sm:$0xff] %v772
              %v774 = vld [vmem:[%s768 + $0x10] sm:$0xff]
              %775 = vst [vmem:[%s769 + $0x10] sm:$0xff] %v774
              %v776 = vld [vmem:[%s768 + $0x18] sm:$0xff]
              %777 = vst [vmem:[%s769 + $0x18] sm:$0xff] %v776
            $region71: #{custom-call.56} parent=65 // loop_footer
              %s767 = sadd.s32 1, %s763
            $region72: #{custom-call.56} parent=65 // loop_footer_branch
              %762 = sbr.rel target = $region68
            $region73: #{custom-call.56} parent=65 // loop_exit
              _
          $region66: #{custom-call.56} parent=57 // pred_fallthru
            _
        $region58: #{custom-call.56} parent=53 // pred_fallthru
          _
        %798 = vnop
      $region54: #{custom-call.56} parent=5 // pred_fallthru
        _
      %p799 = scmp.le.s32.totalorder 2, %s3
      // Predicated region
      $region89: #{custom-call.56} parent=5 // pred_check
        %p800 = pneg %p799
      $region90: #{custom-call.56} parent=5 // pred_check_branch
        %802 = sbr.rel (%p800) target = $region92
      $region91: #{custom-call.56} parent=5 // pred_region
        %s803 = ssub.s32 %s3, 2
        %s804 = sand.u32 %s9, 1
        %s805 = sand.u32 %s9, 1
        %s806 = smul.addr %s805, 32
        %s807 = scalar_lea.vmem [#allocation1], %s806
      $region92: #{custom-call.56} parent=5 // pred_fallthru
        _
    $region6: #{custom-call.56} parent=1 // loop_footer
      %s7 = sadd.s32 1, %s3
    $region7: #{custom-call.56} parent=1 // loop_footer_branch
      %2 = sbr.rel target = $region3
    $region8: #{custom-call.56} parent=1 // loop_exit
      _

// kernel: custom-call.22
$region0: #{custom-call.22}
  %s0 = inlined_call_operand.vmem [shape: f32[9,16,16], index: 0, kind: input, shape index: {}]
  %s1 = inlined_call_operand.vmem [shape: f32[9,16,16], index: 1, kind: input, shape index: {}]
  %s2 = inlined_call_operand.vmem [shape: f32[9,16,16], index: 2, kind: input, shape index: {}]
  %s3 = inlined_call_operand.vmem [shape: f32[9,16,16], index: 3, kind: input, shape index: {}]
  %s4 = inlined_call_operand.vmem [shape: f32[9,16], index: 4, kind: output, shape index: {0}]
  %s5 = inlined_call_operand.vmem [shape: f32[9,16], index: 5, kind: output, shape index: {1}]
  %s6 = inlined_call_operand.vmem [shape: f32[9,16,16], index: 6, kind: output, shape index: {2}]
  %s7 = inlined_call_operand.vmem [shape: f32[9,16,16], index: 7, kind: output, shape index: {3}]
  %s8 = inlined_call_operand.vmem [shape: f32[9,16,16], index: 8, kind: output, shape index: {4}]
  %s9 = inlined_call_operand.vmem [shape: f32[9,16,16], index: 9, kind: output, shape index: {5}]
  %10 = xla_tuple %s4, %s5, %s6, %s7, %s8, %s9
  $region1: #{custom-call.22} parent=0
    #allocation0 [shape = 'u8[16384]{0}', space=vmem, size = 0x4000, scoped, tag = 'operand span for operand 0']
    #allocation1 [shape = 'u8[16384]{0}', space=vmem, size = 0x4000, scoped, tag = 'operand span for operand 1']
    #allocation2 [shape = 'u8[16384]{0}', space=vmem, size = 0x4000, scoped, tag = 'operand span for operand 2']
    #allocation3 [shape = 'u8[16384]{0}', space=vmem, size = 0x4000, scoped, tag = 'operand span for operand 3']
    #allocation4 [shape = 'u8[8192]{0}', space=vmem, size = 0x2000, scoped, tag = 'operand span for operand 4']
    #allocation5 [shape = 'u8[8192]{0}', space=vmem, size = 0x2000, scoped, tag = 'operand span for operand 5']
    #allocation6 [shape = 'u8[16384]{0}', space=vmem, size = 0x4000, scoped, tag = 'operand span for operand 6']
    #allocation7 [shape = 'u8[16384]{0}', space=vmem, size = 0x4000, scoped, tag = 'operand span for operand 7']
    #allocation8 [shape = 'u8[16384]{0}', space=vmem, size = 0x4000, scoped, tag = 'operand span for operand 8']
    #allocation9 [shape = 'u8[16384]{0}', space=vmem, size = 0x4000, scoped, tag = 'operand span for operand 9']
    loop: start=0, step=1, limit=11
    $region2: #{custom-call.22} parent=1 // loop_pre_header
      _
    $region3: #{custom-call.22} parent=1 // loop_header
      %s12 = sphi 0, %s16
      %p13 = scmp.ge.s32.totalorder %s12, 11
      %s24 = sphi 0, %s26
      %s27 = sphi 0, %s24
      %s28 = sphi 0, %s27
      %s44 = sphi 0, %s28
      %s52 = sphi 0, %s54
      %s55 = sphi 0, %s52
      %s56 = sphi 0, %s55
      %s72 = sphi 0, %s56
    $region4: #{custom-call.22} parent=1 // loop_header_branch
      %15 = sbr.rel (%p13) target = $region8
    $region5: #{custom-call.22} parent=1 // loop_body
      %s17 = ssub.s32 %s12, 1
      %s18 = ssub.s32 %s12, 2
      %s19 = sadd.s32 %s12, 1
      %s20 = sshrl.u32 %s12, 3
      %s21 = sshrl.u32 %s19, 3
      %s22 = ssub.s32 %s20, %s21
      %p23 = scmp.eq.s32.totalorder %s22, 0
      %s25 = sadd.s32 %s24, 1
      %s26 = scalar_select %p23, %s24, %s25
      %p29 = pneg %p23
      %p30 = scmp.eq.s32.totalorder %s12, 8
      %p31 = por %p29, %p30
      %p32 = scmp.ne.s32.totalorder %s24, %s27
      %p33 = scmp.eq.s32.totalorder %s12, 0
      %p34 = por %p32, %p33
      %p35 = scmp.ne.s32.totalorder %s24, %s27
      %p36 = scmp.eq.s32.totalorder %s17, 8
      %p37 = por %p35, %p36
      %p38 = scmp.ne.s32.totalorder %s27, %s28
      %p39 = scmp.eq.s32.totalorder %s17, 0
      %p40 = por %p38, %p39
      %p41 = scmp.ne.s32.totalorder %s27, %s28
      %p42 = scmp.eq.s32.totalorder %s18, 8
      %p43 = por %p41, %p42
      %p45 = scmp.ne.s32.totalorder %s28, %s44
      %p46 = scmp.eq.s32.totalorder %s18, 0
      %p47 = por %p45, %p46
      %s48 = sshrl.u32 %s12, 3
      %s49 = sshrl.u32 %s19, 3
      %s50 = ssub.s32 %s48, %s49
      %p51 = scmp.eq.s32.totalorder %s50, 0
      %s53 = sadd.s32 %s52, 1
      %s54 = scalar_select %p51, %s52, %s53
      %p57 = pneg %p51
      %p58 = scmp.eq.s32.totalorder %s12, 8
      %p59 = por %p57, %p58
      %p60 = scmp.ne.s32.totalorder %s52, %s55
      %p61 = scmp.eq.s32.totalorder %s12, 0
      %p62 = por %p60, %p61
      %p63 = scmp.ne.s32.totalorder %s52, %s55
      %p64 = scmp.eq.s32.totalorder %s17, 8
      %p65 = por %p63, %p64
      %p66 = scmp.ne.s32.totalorder %s55, %s56
      %p67 = scmp.eq.s32.totalorder %s17, 0
      %p68 = por %p66, %p67
      %p69 = scmp.ne.s32.totalorder %s55, %s56
      %p70 = scmp.eq.s32.totalorder %s18, 8
      %p71 = por %p69, %p70
      %p73 = scmp.ne.s32.totalorder %s56, %s72
      %p74 = scmp.eq.s32.totalorder %s18, 0
      %p75 = por %p73, %p74
      %p76 = scmp.le.s32.totalorder 1, %s12
      %p77 = scmp.lt.s32.totalorder %s12, 10
      %p78 = pnand %p76, %p77
      %p79 = pneg %p78
      // Predicated region
      $region9: #{custom-call.22} parent=5 // pred_check
        _
      $region10: #{custom-call.22} parent=5 // pred_check_branch
        %81 = sbr.rel (%p78) target = $region12
      $region11: #{custom-call.22} parent=5 // pred_region
        %s82 = ssub.s32 %s12, 1
      $region12: #{custom-call.22} parent=5 // pred_fallthru
        _
      %p83 = scmp.lt.s32.totalorder %s12, 9
      // Predicated region
      $region13: #{custom-call.22} parent=5 // pred_check
        %p84 = pneg %p83
      $region14: #{custom-call.22} parent=5 // pred_check_branch
        %86 = sbr.rel (%p84) target = $region16
      $region15: #{custom-call.22} parent=5 // pred_region
        %s87 = sand.u32 %s12, 1
        %s88 = sand.u32 %s12, 1
        %s89 = smul.addr %s88, 16
        %s90 = scalar_lea.vmem [#allocation0], %s89
        %s91 = smul.addr %s12, 16
        %s92 = scalar_lea.vmem %s0, %s91
        // Predicated region
        $region17: #{custom-call.22} parent=15 // pred_check
          _
        $region18: #{custom-call.22} parent=15 // pred_check_branch
          %94 = sbr.rel (0) target = $region20
        $region19: #{custom-call.22} parent=15 // pred_region
          // Predicated region
          $region21: #{custom-call.22} parent=19 // pred_check
            _
          $region22: #{custom-call.22} parent=19 // pred_check_branch
            %96 = sbr.rel (0) target = $region24
          $region23: #{custom-call.22} parent=19 // pred_region
            loop: start=0, step=1, limit=1
            $region25: #{custom-call.22} parent=23 // loop_pre_header
              _
            $region26: #{custom-call.22} parent=23 // loop_header
              %s98 = sphi 0, %s102
              %p99 = scmp.ge.s32.totalorder %s98, 1
              %s103 = sphi %s92, %s92
              %s104 = sphi %s90, %s90
            $region27: #{custom-call.22} parent=23 // loop_header_branch
              %101 = sbr.rel (%p99) target = $region31
            $region28: #{custom-call.22} parent=23 // loop_body
              %v105 = vld [vmem:[%s103] sm:$0xff]
              %106 = vst [vmem:[%s104] sm:$0xff] %v105
              %v107 = vld [vmem:[%s103 + $0x8] sm:$0xff]
              %108 = vst [vmem:[%s104 + $0x8] sm:$0xff] %v107
            $region29: #{custom-call.22} parent=23 // loop_footer
              %s102 = sadd.s32 1, %s98
            $region30: #{custom-call.22} parent=23 // loop_footer_branch
              %97 = sbr.rel target = $region26
            $region31: #{custom-call.22} parent=23 // loop_exit
              _
          $region24: #{custom-call.22} parent=19 // pred_fallthru
            _
          // Predicated region
          $region32: #{custom-call.22} parent=19 // pred_check
            _
          $region33: #{custom-call.22} parent=19 // pred_check_branch
            %110 = sbr.rel target = $region35
          $region34: #{custom-call.22} parent=19 // pred_region
            _
          $region35: #{custom-call.22} parent=19 // pred_fallthru
            _
        $region20: #{custom-call.22} parent=15 // pred_fallthru
          _
        %111 = vnop
        %s112 = sand.u32 %s12, 1
        %s113 = sand.u32 %s12, 1
        %s114 = smul.addr %s113, 16
        %s115 = scalar_lea.vmem [#allocation1], %s114
        %s116 = smul.addr %s12, 16
        %s117 = scalar_lea.vmem %s1, %s116
        // Predicated region
        $region36: #{custom-call.22} parent=15 // pred_check
          _
        $region37: #{custom-call.22} parent=15 // pred_check_branch
          %119 = sbr.rel (0) target = $region39
        $region38: #{custom-call.22} parent=15 // pred_region
          // Predicated region
          $region40: #{custom-call.22} parent=38 // pred_check
            _
          $region41: #{custom-call.22} parent=38 // pred_check_branch
            %121 = sbr.rel (0) target = $region43
          $region42: #{custom-call.22} parent=38 // pred_region
            loop: start=0, step=1, limit=1
            $region44: #{custom-call.22} parent=42 // loop_pre_header
              _
            $region45: #{custom-call.22} parent=42 // loop_header
              %s123 = sphi 0, %s127
              %p124 = scmp.ge.s32.totalorder %s123, 1
              %s128 = sphi %s117, %s117
              %s129 = sphi %s115, %s115
            $region46: #{custom-call.22} parent=42 // loop_header_branch
              %126 = sbr.rel (%p124) target = $region50
            $region47: #{custom-call.22} parent=42 // loop_body
              %v130 = vld [vmem:[%s128] sm:$0xff]
              %131 = vst [vmem:[%s129] sm:$0xff] %v130
              %v132 = vld [vmem:[%s128 + $0x8] sm:$0xff]
              %133 = vst [vmem:[%s129 + $0x8] sm:$0xff] %v132
            $region48: #{custom-call.22} parent=42 // loop_footer
              %s127 = sadd.s32 1, %s123
            $region49: #{custom-call.22} parent=42 // loop_footer_branch
              %122 = sbr.rel target = $region45
            $region50: #{custom-call.22} parent=42 // loop_exit
              _
          $region43: #{custom-call.22} parent=38 // pred_fallthru
            _
          // Predicated region
          $region51: #{custom-call.22} parent=38 // pred_check
            _
          $region52: #{custom-call.22} parent=38 // pred_check_branch
            %135 = sbr.rel target = $region54
          $region53: #{custom-call.22} parent=38 // pred_region
            _
          $region54: #{custom-call.22} parent=38 // pred_fallthru
            _
        $region39: #{custom-call.22} parent=15 // pred_fallthru
          _
        %136 = vnop
        %s137 = sand.u32 %s12, 1
        %s138 = sand.u32 %s12, 1
        %s139 = smul.addr %s138, 16
        %s140 = scalar_lea.vmem [#allocation2], %s139
        %s141 = smul.addr %s12, 16
        %s142 = scalar_lea.vmem %s2, %s141
        // Predicated region
        $region55: #{custom-call.22} parent=15 // pred_check
          _
        $region56: #{custom-call.22} parent=15 // pred_check_branch
          %144 = sbr.rel (0) target = $region58
        $region57: #{custom-call.22} parent=15 // pred_region
          // Predicated region
          $region59: #{custom-call.22} parent=57 // pred_check
            _
          $region60: #{custom-call.22} parent=57 // pred_check_branch
            %146 = sbr.rel (0) target = $region62
          $region61: #{custom-call.22} parent=57 // pred_region
            loop: start=0, step=1, limit=1
            $region63: #{custom-call.22} parent=61 // loop_pre_header
              _
            $region64: #{custom-call.22} parent=61 // loop_header
              %s148 = sphi 0, %s152
              %p149 = scmp.ge.s32.totalorder %s148, 1
              %s153 = sphi %s142, %s142
              %s154 = sphi %s140, %s140
            $region65: #{custom-call.22} parent=61 // loop_header_branch
              %151 = sbr.rel (%p149) target = $region69
            $region66: #{custom-call.22} parent=61 // loop_body
              %v155 = vld [vmem:[%s153] sm:$0xff]
              %156 = vst [vmem:[%s154] sm:$0xff] %v155
              %v157 = vld [vmem:[%s153 + $0x8] sm:$0xff]
              %158 = vst [vmem:[%s154 + $0x8] sm:$0xff] %v157
            $region67: #{custom-call.22} parent=61 // loop_footer
              %s152 = sadd.s32 1, %s148
            $region68: #{custom-call.22} parent=61 // loop_footer_branch
              %147 = sbr.rel target = $region64
            $region69: #{custom-call.22} parent=61 // loop_exit
              _
          $region62: #{custom-call.22} parent=57 // pred_fallthru
            _
          // Predicated region
          $region70: #{custom-call.22} parent=57 // pred_check
            _
          $region71: #{custom-call.22} parent=57 // pred_check_branch
            %160 = sbr.rel target = $region73
          $region72: #{custom-call.22} parent=57 // pred_region
            _
          $region73: #{custom-call.22} parent=57 // pred_fallthru
            _
        $region58: #{custom-call.22} parent=15 // pred_fallthru
          _
        %161 = vnop
        %s162 = sand.u32 %s12, 1
        %s163 = sand.u32 %s12, 1
        %s164 = smul.addr %s163, 16
        %s165 = scalar_lea.vmem [#allocation3], %s164
        %s166 = smul.addr %s12, 16
        %s167 = scalar_lea.vmem %s3, %s166
        // Predicated region
        $region74: #{custom-call.22} parent=15 // pred_check
          _
        $region75: #{custom-call.22} parent=15 // pred_check_branch
          %169 = sbr.rel (0) target = $region77
        $region76: #{custom-call.22} parent=15 // pred_region
          // Predicated region
          $region78: #{custom-call.22} parent=76 // pred_check
            _
          $region79: #{custom-call.22} parent=76 // pred_check_branch
            %171 = sbr.rel (0) target = $region81
          $region80: #{custom-call.22} parent=76 // pred_region
            loop: start=0, step=1, limit=1
            $region82: #{custom-call.22} parent=80 // loop_pre_header
              _
            $region83: #{custom-call.22} parent=80 // loop_header
              %s173 = sphi 0, %s177
              %p174 = scmp.ge.s32.totalorder %s173, 1
              %s178 = sphi %s167, %s167
              %s179 = sphi %s165, %s165
            $region84: #{custom-call.22} parent=80 // loop_header_branch
              %176 = sbr.rel (%p174) target = $region88
            $region85: #{custom-call.22} parent=80 // loop_body
              %v180 = vld [vmem:[%s178] sm:$0xff]
              %181 = vst [vmem:[%s179] sm:$0xff] %v180
              %v182 = vld [vmem:[%s178 + $0x8] sm:$0xff]
              %183 = vst [vmem:[%s179 + $0x8] sm:$0xff] %v182
            $region86: #{custom-call.22} parent=80 // loop_footer
              %s177 = sadd.s32 1, %s173
            $region87: #{custom-call.22} parent=80 // loop_footer_branch
              %172 = sbr.rel target = $region83
            $region88: #{custom-call.22} parent=80 // loop_exit
              _
          $region81: #{custom-call.22} parent=76 // pred_fallthru
            _
          // Predicated region
          $region89: #{custom-call.22} parent=76 // pred_check
            _
          $region90: #{custom-call.22} parent=76 // pred_check_branch
            %185 = sbr.rel target = $region92
          $region91: #{custom-call.22} parent=76 // pred_region
            _
          $region92: #{custom-call.22} parent=76 // pred_fallthru
            _
        $region77: #{custom-call.22} parent=15 // pred_fallthru
          _
        %186 = vnop
      $region16: #{custom-call.22} parent=5 // pred_fallthru
        _
      %p187 = scmp.le.s32.totalorder 1, %s12
      %p188 = scmp.lt.s32.totalorder %s12, 10
      %p189 = pnand %p187, %p188
      %p190 = pneg %p189
      // Predicated region
      $region93: #{custom-call.22} parent=5 // pred_check
        _
      $region94: #{custom-call.22} parent=5 // pred_check_branch
        %192 = sbr.rel (%p189) target = $region96
      $region95: #{custom-call.22} parent=5 // pred_region
        #allocation10 [shape = 'f32[16,16]{1,0}', space=vmem, size = 0x2000, scoped, tag = 'a top-left matrix']
        #allocation11 [shape = 'f32[16,16]{1,0}', space=vmem, size = 0x2000, scoped, tag = 'a top-right matrix']
        #allocation12 [shape = 'f32[16,16]{1,0}', space=vmem, size = 0x2000, scoped, tag = 'a bottom-left matrix']
        #allocation13 [shape = 'f32[16,16]{1,0}', space=vmem, size = 0x2000, scoped, tag = 'a bottom-right matrix']
        %s193 = ssub.s32 %s12, 1
        %s194 = sand.u32 %s17, 1
        %s195 = sand.u32 %s17, 1
        %s196 = smul.addr %s195, 16
        %s197 = scalar_lea.vmem [#allocation0], %s196
        %s198 = sand.u32 %s17, 1
        %s199 = sand.u32 %s17, 1
        %s200 = smul.addr %s199, 16
        %s201 = scalar_lea.vmem [#allocation1], %s200
        %s202 = sand.u32 %s17, 1
        %s203 = sand.u32 %s17, 1
        %s204 = smul.addr %s203, 16
        %s205 = scalar_lea.vmem [#allocation2], %s204
        %s206 = sand.u32 %s17, 1
        %s207 = sand.u32 %s17, 1
        %s208 = smul.addr %s207, 16
        %s209 = scalar_lea.vmem [#allocation3], %s208
        %s210 = sand.u32 %s17, 1
        %s211 = sand.u32 %s17, 1
        %s212 = smul.addr %s211, 16
        %s213 = scalar_lea.vmem [#allocation0], %s212
        %s214 = sand.u32 %s17, 1
        %s215 = sand.u32 %s17, 1
        %s216 = smul.addr %s215, 16
        %s217 = scalar_lea.vmem [#allocation1], %s216
        %s218 = sand.u32 %s17, 1
        %s219 = sand.u32 %s17, 1
        %s220 = smul.addr %s219, 16
        %s221 = scalar_lea.vmem [#allocation2], %s220
        %s222 = sand.u32 %s17, 1
        %s223 = sand.u32 %s17, 1
        %s224 = smul.addr %s223, 16
        %s225 = scalar_lea.vmem [#allocation3], %s224
        %p226 = pneg %p40
        %p227 = pneg %p37
        %s228 = sand.u32 %s27, 1
        %s229 = sand.u32 %s27, 1
        %s230 = smul.addr %s229, 8
        %s231 = scalar_lea.vmem [#allocation4], %s230
        %p232 = pneg %p68
        %p233 = pneg %p65
        %s234 = sand.u32 %s55, 1
        %s235 = sand.u32 %s55, 1
        %s236 = smul.addr %s235, 8
        %s237 = scalar_lea.vmem [#allocation5], %s236
        %s238 = sand.u32 %s17, 1
        %s239 = sand.u32 %s17, 1
        %s240 = smul.addr %s239, 16
        %s241 = scalar_lea.vmem [#allocation6], %s240
        %s242 = sand.u32 %s17, 1
        %s243 = sand.u32 %s17, 1
        %s244 = smul.addr %s243, 16
        %s245 = scalar_lea.vmem [#allocation7], %s244
        %s246 = sand.u32 %s17, 1
        %s247 = sand.u32 %s17, 1
        %s248 = smul.addr %s247, 16
        %s249 = scalar_lea.vmem [#allocation8], %s248
        %s250 = sand.u32 %s17, 1
        %s251 = sand.u32 %s17, 1
        %s252 = smul.addr %s251, 16
        %s253 = scalar_lea.vmem [#allocation9], %s252
        %s254 = sshrl.u32 %s17, 3
        %s255 = sshrl.u32 %s17, 3
        %s256 = smov [#allocation10]
        %v257 = vld [vmem:[%s197] sm:$0xff]
        %258 = vst [vmem:[%s256] sm:$0xff] %v257
        %s259 = scalar_lea.vmem %s256, 8
        %s260 = scalar_lea.vmem %s197, 8 [#allocation0]
        %v261 = vld [vmem:[%s260] sm:$0xff]
        %262 = vst [vmem:[%s259] sm:$0xff] %v261
        %s263 = smov [#allocation11]
        %v264 = vld [vmem:[%s201] sm:$0xff]
        %265 = vst [vmem:[%s263] sm:$0xff] %v264
        %s266 = scalar_lea.vmem %s263, 8
        %s267 = scalar_lea.vmem %s201, 8 [#allocation1]
        %v268 = vld [vmem:[%s267] sm:$0xff]
        %269 = vst [vmem:[%s266] sm:$0xff] %v268
        %s270 = smov [#allocation12]
        %v271 = vld [vmem:[%s205] sm:$0xff]
        %272 = vst [vmem:[%s270] sm:$0xff] %v271
        %s273 = scalar_lea.vmem %s270, 8
        %s274 = scalar_lea.vmem %s205, 8 [#allocation2]
        %v275 = vld [vmem:[%s274] sm:$0xff]
        %276 = vst [vmem:[%s273] sm:$0xff] %v275
        %s277 = smov [#allocation13]
        %v278 = vld [vmem:[%s209] sm:$0xff]
        %279 = vst [vmem:[%s277] sm:$0xff] %v278
        %s280 = scalar_lea.vmem %s277, 8
        %s281 = scalar_lea.vmem %s209, 8 [#allocation3]
        %v282 = vld [vmem:[%s281] sm:$0xff]
        %283 = vst [vmem:[%s280] sm:$0xff] %v282
        %284 = vst [vmem:[%s241] sm:$0xff] 0.0
        %s285 = scalar_lea.vmem %s241, 8 [#allocation6]
        %286 = vst [vmem:[%s285] sm:$0xff] 0.0
        %287 = vst [vmem:[%s245] sm:$0xff] 0.0
        %s288 = scalar_lea.vmem %s245, 8 [#allocation7]
        %289 = vst [vmem:[%s288] sm:$0xff] 0.0
        %290 = vst [vmem:[%s249] sm:$0xff] 0.0
        %s291 = scalar_lea.vmem %s249, 8 [#allocation8]
        %292 = vst [vmem:[%s291] sm:$0xff] 0.0
        %293 = vst [vmem:[%s253] sm:$0xff] 0.0
        %s294 = scalar_lea.vmem %s253, 8 [#allocation9]
        %295 = vst [vmem:[%s294] sm:$0xff] 0.0
        %s296 = smov %s241
        %v297 = vlaneseq
        %v298 = vand.u32 %v297, 127
        %v299 = vmov %v298
        %v300 = vlaneseq
        %v301 = vshrl.u32 %v300, 7
        %v302 = vmov %v301
        %v303 = vld [vmem:[%s296] sm:$0xff]
        %vm306 = vcmp.eq.s32.totalorder %v302, %v299
        %v307 = vsel %vm306, 1.0, %v303
        %308 = vst [vmem:[%s296] sm:$0xff] %v307
        %s309 = scalar_lea.vmem %s296, 8
        %v310 = vld [vmem:[%s309] sm:$0xff]
        %v312 = vadd.s32 %v302, 8
        %vm313 = vcmp.eq.s32.totalorder %v312, %v299
        %v314 = vsel %vm313, 1.0, %v310
        %315 = vst [vmem:[%s309] sm:$0xff] %v314
        %s316 = smov %s253
        %v317 = vlaneseq
        %v318 = vand.u32 %v317, 127
        %v319 = vmov %v318
        %v320 = vlaneseq
        %v321 = vshrl.u32 %v320, 7
        %v322 = vmov %v321
        %v323 = vld [vmem:[%s316] sm:$0xff]
        %vm326 = vcmp.eq.s32.totalorder %v322, %v319
        %v327 = vsel %vm326, 1.0, %v323
        %328 = vst [vmem:[%s316] sm:$0xff] %v327
        %s329 = scalar_lea.vmem %s316, 8
        %v330 = vld [vmem:[%s329] sm:$0xff]
        %v332 = vadd.s32 %v322, 8
        %vm333 = vcmp.eq.s32.totalorder %v332, %v319
        %v334 = vsel %vm333, 1.0, %v330
        %335 = vst [vmem:[%s329] sm:$0xff] %v334
        // While loop
        $region97: #{custom-call.22} parent=95 // loop_pre_header
          _
        $region98: #{custom-call.22} parent=95 // loop_header
          %s337 = sphi 0, %s1235
          %v338 = vlaneseq
          %v339 = vand.u32 %v338, 127
          %v340 = vmov %v339
          %v341 = vlaneseq
          %v342 = vshrl.u32 %v341, 7
          %v343 = vmov %v342
          %s344 = smov [#allocation10]
          %v345 = vlaneseq
          %v346 = vand.u32 %v345, 127
          %vm347 = vcmp.ge.s32.totalorder %v346, 0
          %vm348 = vcmp.lt.s32.totalorder %v346, 16
          %vm349 = vmand %vm347, %vm348
          %v350 = vld [vmem:[%s344] sm:$0xff]
          %v351 = vsel %vm349, %v350, 0.0
          %v352 = vmul.f32 %v351, %v351
          %vm355 = vcmp.eq.s32.totalorder %v343, %v340
          %v356 = vsel %vm355, 0.0, %v352
          %s357 = scalar_lea.vmem %s344, 8
          %v358 = vld [vmem:[%s357] sm:$0xff]
          %v359 = vsel %vm349, %v358, 0.0
          %v360 = vmul.f32 %v359, %v359
          %v362 = vadd.s32 %v343, 8
          %vm363 = vcmp.eq.s32.totalorder %v362, %v340
          %v364 = vsel %vm363, 0.0, %v360
          %v365 = vadd.f32 %v356, %v364
          %v366 = vadd.f32 %v352, %v360
          %v367 = vlaneseq
          %v368 = vand.u32 %v367, 127
          %v369 = vmov %v368
          %v370 = vlaneseq
          %v371 = vshrl.u32 %v370, 7
          %v372 = vmov %v371
          %s373 = smov [#allocation11]
          %v374 = vlaneseq
          %v375 = vand.u32 %v374, 127
          %vm376 = vcmp.ge.s32.totalorder %v375, 0
          %vm377 = vcmp.lt.s32.totalorder %v375, 16
          %vm378 = vmand %vm376, %vm377
          %v379 = vld [vmem:[%s373] sm:$0xff]
          %v380 = vsel %vm378, %v379, 0.0
          %v381 = vmul.f32 %v380, %v380
          %v382 = vadd.f32 %v365, %v381
          %v383 = vadd.f32 %v366, %v381
          %s384 = scalar_lea.vmem %s373, 8
          %v385 = vld [vmem:[%s384] sm:$0xff]
          %v386 = vsel %vm378, %v385, 0.0
          %v387 = vmul.f32 %v386, %v386
          %v388 = vadd.f32 %v382, %v387
          %v389 = vadd.f32 %v383, %v387
          %v390 = vlaneseq
          %v391 = vand.u32 %v390, 127
          %v392 = vmov %v391
          %v393 = vlaneseq
          %v394 = vshrl.u32 %v393, 7
          %v395 = vmov %v394
          %s396 = smov [#allocation12]
          %v397 = vlaneseq
          %v398 = vand.u32 %v397, 127
          %vm399 = vcmp.ge.s32.totalorder %v398, 0
          %vm400 = vcmp.lt.s32.totalorder %v398, 16
          %vm401 = vmand %vm399, %vm400
          %v402 = vld [vmem:[%s396] sm:$0xff]
          %v403 = vsel %vm401, %v402, 0.0
          %v404 = vmul.f32 %v403, %v403
          %v405 = vadd.f32 %v388, %v404
          %v406 = vadd.f32 %v389, %v404
          %s407 = scalar_lea.vmem %s396, 8
          %v408 = vld [vmem:[%s407] sm:$0xff]
          %v409 = vsel %vm401, %v408, 0.0
          %v410 = vmul.f32 %v409, %v409
          %v411 = vadd.f32 %v405, %v410
          %v412 = vadd.f32 %v406, %v410
          %v413 = vlaneseq
          %v414 = vand.u32 %v413, 127
          %v415 = vmov %v414
          %v416 = vlaneseq
          %v417 = vshrl.u32 %v416, 7
          %v418 = vmov %v417
          %s419 = smov [#allocation13]
          %v420 = vlaneseq
          %v421 = vand.u32 %v420, 127
          %vm422 = vcmp.ge.s32.totalorder %v421, 0
          %vm423 = vcmp.lt.s32.totalorder %v421, 16
          %vm424 = vmand %vm422, %vm423
          %v425 = vld [vmem:[%s419] sm:$0xff]
          %v426 = vsel %vm424, %v425, 0.0
          %v427 = vmul.f32 %v426, %v426
          %vm430 = vcmp.eq.s32.totalorder %v418, %v415
          %v431 = vsel %vm430, 0.0, %v427
          %v432 = vadd.f32 %v411, %v431
          %v433 = vadd.f32 %v412, %v427
          %s434 = scalar_lea.vmem %s419, 8
          %v435 = vld [vmem:[%s434] sm:$0xff]
          %v436 = vsel %vm424, %v435, 0.0
          %v437 = vmul.f32 %v436, %v436
          %v439 = vadd.s32 %v418, 8
          %vm440 = vcmp.eq.s32.totalorder %v439, %v415
          %v441 = vsel %vm440, 0.0, %v437
          %v442 = vadd.f32 %v432, %v441
          %v443 = vadd.f32 %v433, %v437
          %444 = vadd.xlane.f32.xlu0 %v443
          %v445 = vpop.xlane.xlu0 %444
          %v446 = vrot.slane %v445, 4
          %v447 = vadd.f32 %v445, %v446
          %v448 = vrot.slane %v447, 2
          %v449 = vadd.f32 %v447, %v448
          %v450 = vrot.slane %v449, 1
          %v451 = vadd.f32 %v449, %v450
          %452 = vadd.xlane.f32.xlu0 %v442
          %v453 = vpop.xlane.xlu0 %452
          %v454 = vrot.slane %v453, 4
          %v455 = vadd.f32 %v453, %v454
          %v456 = vrot.slane %v455, 2
          %v457 = vadd.f32 %v455, %v456
          %v458 = vrot.slane %v457, 1
          %v459 = vadd.f32 %v457, %v458
          %s460 = vtos %v459
          %s461 = vtos %v451
          %s462 = smul.f32 1e-10, %s461
          %p463 = scmp.le.f32.partialorder %s460, %s462
          %p464 = scmp.ge.s32.totalorder %s337, 15
          %p465 = por %p463, %p464
        $region99: #{custom-call.22} parent=95 // loop_header_branch
          %1237 = sbr.rel (%p465) target = $region103
        $region100: #{custom-call.22} parent=95 // loop_body
          loop: start=0, step=1, limit=31
          $region104: #{custom-call.22} parent=100 // loop_pre_header
            _
          $region105: #{custom-call.22} parent=100 // loop_header
            %s467 = sphi 0, %s471
            %p468 = scmp.ge.s32.totalorder %s467, 31
          $region106: #{custom-call.22} parent=100 // loop_header_branch
            %470 = sbr.rel (%p468) target = $region110
          $region107: #{custom-call.22} parent=100 // loop_body
            #allocation14 [shape = 'f32[1024]{0}', space=vmem, size = 0x1000, scoped, tag = 'a_tl_diag vmem']
            #allocation15 [shape = 'f32[1024]{0}', space=vmem, size = 0x1000, scoped, tag = 'a_tr_diag vmem']
            #allocation16 [shape = 'f32[1024]{0}', space=vmem, size = 0x1000, scoped, tag = 'a_br_diag vmem']
            #allocation17 [shape = 'f32[1024]{0}', space=vmem, size = 0x1000, scoped, tag = 'rt1 vmem']
            #allocation18 [shape = 'f32[1024]{0}', space=vmem, size = 0x1000, scoped, tag = 'rt2 vmem']
            #allocation19 [shape = 'f32[1024]{0}', space=vmem, size = 0x1000, scoped, tag = 'c vmem']
            #allocation20 [shape = 'f32[1024]{0}', space=vmem, size = 0x1000, scoped, tag = 's vmem']
            #allocation21 [shape = 'f32[8192]{0}', space=vmem, size = 0x8000, scoped, tag = 'c broadcast']
            #allocation22 [shape = 'f32[8192]{0}', space=vmem, size = 0x8000, scoped, tag = 's broadcast']
            %s472 = smov [#allocation10]
            %s473 = smov [#allocation14]
            %v474 = vlaneseq
            %v475 = vand.u32 %v474, 127
            %v476 = vmov %v475
            %v477 = vlaneseq
            %v478 = vshrl.u32 %v477, 7
            %v479 = vmov %v478
            %v480 = vld [vmem:[%s472] sm:$0xff]
            %vm483 = vcmp.eq.s32.totalorder %v479, %v476
            %v484 = vsel %vm483, %v480, 0.0
            %s485 = scalar_lea.vmem %s472, 8
            %v486 = vld [vmem:[%s485] sm:$0xff]
            %v488 = vadd.s32 %v479, 8
            %vm489 = vcmp.eq.s32.totalorder %v488, %v476
            %v490 = vsel %vm489, %v486, %v484
            %v491 = vrot.slane %v490, 4
            %v492 = vadd.f32 %v490, %v491
            %v493 = vrot.slane %v492, 2
            %v494 = vadd.f32 %v492, %v493
            %v495 = vrot.slane %v494, 1
            %v496 = vadd.f32 %v494, %v495
            %497 = vst [vmem:[%s473] sm:$0x1] %v496
            %s498 = smov [#allocation11]
            %s499 = smov [#allocation15]
            %v500 = vlaneseq
            %v501 = vand.u32 %v500, 127
            %v502 = vmov %v501
            %v503 = vlaneseq
            %v504 = vshrl.u32 %v503, 7
            %v505 = vmov %v504
            %v506 = vld [vmem:[%s498] sm:$0xff]
            %vm509 = vcmp.eq.s32.totalorder %v505, %v502
            %v510 = vsel %vm509, %v506, 0.0
            %s511 = scalar_lea.vmem %s498, 8
            %v512 = vld [vmem:[%s511] sm:$0xff]
            %v514 = vadd.s32 %v505, 8
            %vm515 = vcmp.eq.s32.totalorder %v514, %v502
            %v516 = vsel %vm515, %v512, %v510
            %v517 = vrot.slane %v516, 4
            %v518 = vadd.f32 %v516, %v517
            %v519 = vrot.slane %v518, 2
            %v520 = vadd.f32 %v518, %v519
            %v521 = vrot.slane %v520, 1
            %v522 = vadd.f32 %v520, %v521
            %523 = vst [vmem:[%s499] sm:$0x1] %v522
            %s524 = smov [#allocation13]
            %s525 = smov [#allocation16]
            %v526 = vlaneseq
            %v527 = vand.u32 %v526, 127
            %v528 = vmov %v527
            %v529 = vlaneseq
            %v530 = vshrl.u32 %v529, 7
            %v531 = vmov %v530
            %v532 = vld [vmem:[%s524] sm:$0xff]
            %vm535 = vcmp.eq.s32.totalorder %v531, %v528
            %v536 = vsel %vm535, %v532, 0.0
            %s537 = scalar_lea.vmem %s524, 8
            %v538 = vld [vmem:[%s537] sm:$0xff]
            %v540 = vadd.s32 %v531, 8
            %vm541 = vcmp.eq.s32.totalorder %v540, %v528
            %v542 = vsel %vm541, %v538, %v536
            %v543 = vrot.slane %v542, 4
            %v544 = vadd.f32 %v542, %v543
            %v545 = vrot.slane %v544, 2
            %v546 = vadd.f32 %v544, %v545
            %v547 = vrot.slane %v546, 1
            %v548 = vadd.f32 %v546, %v547
            %549 = vst [vmem:[%s525] sm:$0x1] %v548
            %s550 = smov [#allocation19]
            %s551 = smov [#allocation20]
            %s552 = smov [#allocation14]
            %v553 = vld [vmem:[%s552] sm:$0xff]
            %s554 = smov [#allocation15]
            %v555 = vld [vmem:[%s554] sm:$0xff]
            %s556 = smov [#allocation16]
            %v557 = vld [vmem:[%s556] sm:$0xff]
            %v558 = vsub.f32 %v557, %v553
            %v559 = vmul.f32 2.0, %v555
            %v560 = vrcp.pop %v559
            %v561 = vmul.f32 %v558, %v560
            %vm562 = vcmp.ge.f32.partialorder %v561, 0.0
            %v563 = vmul.f32 %v561, %v561
            %v564 = vadd.f32 1.0, %v563
            %v565 = vrsqrt.pop %v564
            %v566 = vmul.f32 %v564, %v565
            %vm567 = vcmp.eq.f32.partialorder %v564, inf
            %v568 = vsel %vm567, %v564, %v566
            %vm569 = vcmp.eq.f32.partialorder %v564, 0.0
            %v570 = vand.u32 %v564, 2147483648
            %v571 = vsel %vm569, %v570, %v568
            %v572 = vxor.u32 %v571, 2147483648
            %v573 = vsel %vm562, %v571, %v572
            %v574 = vadd.f32 %v561, %v573
            %v575 = vrcp.pop %v574
            %v576 = vand.u32 2147483647, %v553
            %v577 = vand.u32 2147483647, %v555
            %v578 = vand.u32 2147483647, %v557
            %v579 = vmin.f32 %v576, %v578
            %v580 = vmul.f32 1.1920929e-08, %v579
            %vm581 = vcmp.le.f32.partialorder %v577, %v580
            %v582 = vsel %vm581, 0.0, %v575
            %v583 = vmul.f32 %v582, %v582
            %v584 = vadd.f32 1.0, %v583
            %v585 = vrsqrt.pop %v584
            %v586 = vmul.f32 %v582, %v585
            %v587 = vmul.f32 %v582, %v555
            %v588 = vsub.f32 %v553, %v587
            %v589 = vmul.f32 %v582, %v555
            %v590 = vadd.f32 %v557, %v589
            %s591 = smov [#allocation17]
            %592 = vst [vmem:[%s591] sm:$0xff] %v588
            %s593 = smov [#allocation18]
            %594 = vst [vmem:[%s593] sm:$0xff] %v590
            %s595 = smov %s550
            %596 = vst [vmem:[%s595] sm:$0xff] %v585
            %s597 = smov %s551
            %598 = vst [vmem:[%s597] sm:$0xff] %v586
            %s599 = smov [#allocation19]
            %v600 = vld [vmem:[%s599] ss:$0 sm:$0xff]
            %v601 = vlaneseq
            %v602 = vand.u32 %v601, 127
            %v603 = vmov %v602
            %v604 = vlaneseq
            %v605 = vshrl.u32 %v604, 7
            %v606 = vmov %v605
            %vm608 = vcmp.eq.s32.totalorder %v606, %v603
            %v609 = vsel %vm608, %v600, 0.0
            %610 = vadd.xlane.f32.xlu0 %v609
            %v611 = vpop.xlane.xlu0 %610
            %s612 = smov [#allocation21]
            %613 = vst [vmem:[%s612] sm:$0xff] %v611
            %s614 = smov [#allocation19]
            %v615 = vld [vmem:[%s614] ss:$0 sm:$0xff]
            %v616 = vlaneseq
            %v617 = vand.u32 %v616, 127
            %v618 = vmov %v617
            %v619 = vlaneseq
            %v620 = vshrl.u32 %v619, 7
            %v621 = vmov %v620
            %v622 = vadd.s32 %v621, 8
            %vm623 = vcmp.eq.s32.totalorder %v622, %v618
            %v624 = vsel %vm623, %v615, 0.0
            %625 = vadd.xlane.f32.xlu0 %v624
            %v626 = vpop.xlane.xlu0 %625
            %s627 = smov [#allocation21]
            %s628 = scalar_lea.vmem %s627, 8
            %629 = vst [vmem:[%s628] sm:$0xff] %v626
            %s630 = smov [#allocation20]
            %v631 = vld [vmem:[%s630] ss:$0 sm:$0xff]
            %v632 = vlaneseq
            %v633 = vand.u32 %v632, 127
            %v634 = vmov %v633
            %v635 = vlaneseq
            %v636 = vshrl.u32 %v635, 7
            %v637 = vmov %v636
            %vm639 = vcmp.eq.s32.totalorder %v637, %v634
            %v640 = vsel %vm639, %v631, 0.0
            %641 = vadd.xlane.f32.xlu0 %v640
            %v642 = vpop.xlane.xlu0 %641
            %s643 = smov [#allocation22]
            %644 = vst [vmem:[%s643] sm:$0xff] %v642
            %s645 = smov [#allocation20]
            %v646 = vld [vmem:[%s645] ss:$0 sm:$0xff]
            %v647 = vlaneseq
            %v648 = vand.u32 %v647, 127
            %v649 = vmov %v648
            %v650 = vlaneseq
            %v651 = vshrl.u32 %v650, 7
            %v652 = vmov %v651
            %v653 = vadd.s32 %v652, 8
            %vm654 = vcmp.eq.s32.totalorder %v653, %v649
            %v655 = vsel %vm654, %v646, 0.0
            %656 = vadd.xlane.f32.xlu0 %v655
            %v657 = vpop.xlane.xlu0 %656
            %s658 = smov [#allocation22]
            %s659 = scalar_lea.vmem %s658, 8
            %660 = vst [vmem:[%s659] sm:$0xff] %v657
            %s661 = smov [#allocation21]
            %v662 = vld [vmem:[%s661] sm:$0xff]
            %s663 = smov [#allocation22]
            %v664 = vld [vmem:[%s663] sm:$0xff]
            %s665 = smov [#allocation10]
            %s666 = smov [#allocation11]
            %s667 = smov [#allocation12]
            %s668 = smov [#allocation13]
            %v669 = vld [vmem:[%s665] sm:$0xff]
            %v670 = vld [vmem:[%s666] sm:$0xff]
            %v671 = vld [vmem:[%s667] sm:$0xff]
            %v672 = vld [vmem:[%s668] sm:$0xff]
            %v673 = vmul.f32 %v662, %v669
            %v674 = vmul.f32 %v664, %v671
            %v675 = vsub.f32 %v673, %v674
            %v676 = vmul.f32 %v662, %v670
            %v677 = vmul.f32 %v664, %v672
            %v678 = vsub.f32 %v676, %v677
            %v679 = vmul.f32 %v664, %v669
            %v680 = vmul.f32 %v662, %v671
            %v681 = vadd.f32 %v679, %v680
            %v682 = vmul.f32 %v664, %v670
            %v683 = vmul.f32 %v662, %v672
            %v684 = vadd.f32 %v682, %v683
            %685 = vst [vmem:[%s665] sm:$0xff] %v675
            %686 = vst [vmem:[%s666] sm:$0xff] %v678
            %687 = vst [vmem:[%s667] sm:$0xff] %v681
            %688 = vst [vmem:[%s668] sm:$0xff] %v684
            %s689 = smov [#allocation21]
            %s690 = scalar_lea.vmem %s689, 8
            %v691 = vld [vmem:[%s690] sm:$0xff]
            %s692 = smov [#allocation22]
            %s693 = scalar_lea.vmem %s692, 8
            %v694 = vld [vmem:[%s693] sm:$0xff]
            %s695 = smov [#allocation10]
            %s696 = scalar_lea.vmem %s695, 8
            %s697 = smov [#allocation11]
            %s698 = scalar_lea.vmem %s697, 8
            %s699 = smov [#allocation12]
            %s700 = scalar_lea.vmem %s699, 8
            %s701 = smov [#allocation13]
            %s702 = scalar_lea.vmem %s701, 8
            %v703 = vld [vmem:[%s696] sm:$0xff]
            %v704 = vld [vmem:[%s698] sm:$0xff]
            %v705 = vld [vmem:[%s700] sm:$0xff]
            %v706 = vld [vmem:[%s702] sm:$0xff]
            %v707 = vmul.f32 %v691, %v703
            %v708 = vmul.f32 %v694, %v705
            %v709 = vsub.f32 %v707, %v708
            %v710 = vmul.f32 %v691, %v704
            %v711 = vmul.f32 %v694, %v706
            %v712 = vsub.f32 %v710, %v711
            %v713 = vmul.f32 %v694, %v703
            %v714 = vmul.f32 %v691, %v705
            %v715 = vadd.f32 %v713, %v714
            %v716 = vmul.f32 %v694, %v704
            %v717 = vmul.f32 %v691, %v706
            %v718 = vadd.f32 %v716, %v717
            %719 = vst [vmem:[%s696] sm:$0xff] %v709
            %720 = vst [vmem:[%s698] sm:$0xff] %v712
            %721 = vst [vmem:[%s700] sm:$0xff] %v715
            %722 = vst [vmem:[%s702] sm:$0xff] %v718
            %s723 = smov [#allocation19]
            %v724 = vld [vmem:[%s723] ss:$0 sm:$0xff]
            %s725 = smov [#allocation20]
            %v726 = vld [vmem:[%s725] ss:$0 sm:$0xff]
            %s727 = smov [#allocation10]
            %s728 = smov [#allocation11]
            %s729 = smov [#allocation12]
            %s730 = smov [#allocation13]
            %v731 = vld [vmem:[%s727] sm:$0xff]
            %v732 = vld [vmem:[%s728] sm:$0xff]
            %v733 = vld [vmem:[%s729] sm:$0xff]
            %v734 = vld [vmem:[%s730] sm:$0xff]
            %v735 = vmul.f32 %v724, %v731
            %v736 = vmul.f32 %v726, %v732
            %v737 = vsub.f32 %v735, %v736
            %v738 = vmul.f32 %v726, %v731
            %v739 = vmul.f32 %v724, %v732
            %v740 = vadd.f32 %v738, %v739
            %v741 = vmul.f32 %v724, %v733
            %v742 = vmul.f32 %v726, %v734
            %v743 = vsub.f32 %v741, %v742
            %v744 = vmul.f32 %v726, %v733
            %v745 = vmul.f32 %v724, %v734
            %v746 = vadd.f32 %v744, %v745
            %747 = vst [vmem:[%s727] sm:$0xff] %v737
            %748 = vst [vmem:[%s728] sm:$0xff] %v740
            %749 = vst [vmem:[%s729] sm:$0xff] %v743
            %750 = vst [vmem:[%s730] sm:$0xff] %v746
            %s751 = smov [#allocation10]
            %s752 = scalar_lea.vmem %s751, 8
            %s753 = smov [#allocation11]
            %s754 = scalar_lea.vmem %s753, 8
            %s755 = smov [#allocation12]
            %s756 = scalar_lea.vmem %s755, 8
            %s757 = smov [#allocation13]
            %s758 = scalar_lea.vmem %s757, 8
            %v759 = vld [vmem:[%s752] sm:$0xff]
            %v760 = vld [vmem:[%s754] sm:$0xff]
            %v761 = vld [vmem:[%s756] sm:$0xff]
            %v762 = vld [vmem:[%s758] sm:$0xff]
            %v763 = vmul.f32 %v724, %v759
            %v764 = vmul.f32 %v726, %v760
            %v765 = vsub.f32 %v763, %v764
            %v766 = vmul.f32 %v726, %v759
            %v767 = vmul.f32 %v724, %v760
            %v768 = vadd.f32 %v766, %v767
            %v769 = vmul.f32 %v724, %v761
            %v770 = vmul.f32 %v726, %v762
            %v771 = vsub.f32 %v769, %v770
            %v772 = vmul.f32 %v726, %v761
            %v773 = vmul.f32 %v724, %v762
            %v774 = vadd.f32 %v772, %v773
            %775 = vst [vmem:[%s752] sm:$0xff] %v765
            %776 = vst [vmem:[%s754] sm:$0xff] %v768
            %777 = vst [vmem:[%s756] sm:$0xff] %v771
            %778 = vst [vmem:[%s758] sm:$0xff] %v774
            %s779 = smov [#allocation10]
            %s780 = smov [#allocation17]
            %v781 = vlaneseq
            %v782 = vand.u32 %v781, 127
            %v783 = vmov %v782
            %v784 = vlaneseq
            %v785 = vshrl.u32 %v784, 7
            %v786 = vmov %v785
            %v787 = vld [vmem:[%s780] ss:$0 sm:$0xff]
            %v788 = vld [vmem:[%s779] sm:$0xff]
            %vm791 = vcmp.eq.s32.totalorder %v786, %v783
            %v792 = vsel %vm791, %v787, %v788
            %793 = vst [vmem:[%s779] sm:$0xff] %v792
            %v794 = vld [vmem:[%s780] ss:$0 sm:$0xff]
            %s795 = scalar_lea.vmem %s779, 8
            %v796 = vld [vmem:[%s795] sm:$0xff]
            %v798 = vadd.s32 %v786, 8
            %vm799 = vcmp.eq.s32.totalorder %v798, %v783
            %v800 = vsel %vm799, %v794, %v796
            %801 = vst [vmem:[%s795] sm:$0xff] %v800
            %s802 = smov [#allocation11]
            %v803 = vlaneseq
            %v804 = vand.u32 %v803, 127
            %v805 = vmov %v804
            %v806 = vlaneseq
            %v807 = vshrl.u32 %v806, 7
            %v808 = vmov %v807
            %v809 = vld [vmem:[%s802] sm:$0xff]
            %vm812 = vcmp.eq.s32.totalorder %v808, %v805
            %v813 = vsel %vm812, 0.0, %v809
            %814 = vst [vmem:[%s802] sm:$0xff] %v813
            %s815 = scalar_lea.vmem %s802, 8
            %v816 = vld [vmem:[%s815] sm:$0xff]
            %v818 = vadd.s32 %v808, 8
            %vm819 = vcmp.eq.s32.totalorder %v818, %v805
            %v820 = vsel %vm819, 0.0, %v816
            %821 = vst [vmem:[%s815] sm:$0xff] %v820
            %s822 = smov [#allocation12]
            %v823 = vlaneseq
            %v824 = vand.u32 %v823, 127
            %v825 = vmov %v824
            %v826 = vlaneseq
            %v827 = vshrl.u32 %v826, 7
            %v828 = vmov %v827
            %v829 = vld [vmem:[%s822] sm:$0xff]
            %vm832 = vcmp.eq.s32.totalorder %v828, %v825
            %v833 = vsel %vm832, 0.0, %v829
            %834 = vst [vmem:[%s822] sm:$0xff] %v833
            %s835 = scalar_lea.vmem %s822, 8
            %v836 = vld [vmem:[%s835] sm:$0xff]
            %v838 = vadd.s32 %v828, 8
            %vm839 = vcmp.eq.s32.totalorder %v838, %v825
            %v840 = vsel %vm839, 0.0, %v836
            %841 = vst [vmem:[%s835] sm:$0xff] %v840
            %s842 = smov [#allocation13]
            %s843 = smov [#allocation18]
            %v844 = vlaneseq
            %v845 = vand.u32 %v844, 127
            %v846 = vmov %v845
            %v847 = vlaneseq
            %v848 = vshrl.u32 %v847, 7
            %v849 = vmov %v848
            %v850 = vld [vmem:[%s843] ss:$0 sm:$0xff]
            %v851 = vld [vmem:[%s842] sm:$0xff]
            %vm854 = vcmp.eq.s32.totalorder %v849, %v846
            %v855 = vsel %vm854, %v850, %v851
            %856 = vst [vmem:[%s842] sm:$0xff] %v855
            %v857 = vld [vmem:[%s843] ss:$0 sm:$0xff]
            %s858 = scalar_lea.vmem %s842, 8
            %v859 = vld [vmem:[%s858] sm:$0xff]
            %v861 = vadd.s32 %v849, 8
            %vm862 = vcmp.eq.s32.totalorder %v861, %v846
            %v863 = vsel %vm862, %v857, %v859
            %864 = vst [vmem:[%s858] sm:$0xff] %v863
            %s865 = smov [#allocation10]
            %s866 = smov [#allocation11]
            %v867 = vld [vmem:[%s866] sm:$0xff]
            %868 = vrot.lane.b32.xlu0 %v867, 1
            %v869 = vpop.permute.xlu0 %868
            %v870 = vld [vmem:[%s865] sm:$0xff]
            %v871 = vld [vmem:[%s865] sm:$0xff]
            %872 = vrot.lane.b32.xlu0 %v871, 1
            %v873 = vpop.permute.xlu0 %872
            %v874 = vlaneseq
            %v875 = vand.u32 %v874, 127
            %vm876 = vcmp.eq.s32.totalorder %v875, 0
            %v877 = vsel %vm876, %v871, %v873
            %v878 = vlaneseq
            %v879 = vand.u32 %v878, 127
            %vm880 = vcmp.eq.s32.totalorder %v879, 1
            %v881 = vsel %vm880, %v869, %v877
            %v882 = vlaneseq
            %v883 = vand.u32 %v882, 127
            %vm884 = vcmp.ge.s32.totalorder %v883, 0
            %vm885 = vcmp.lt.s32.totalorder %v883, 16
            %vm886 = vmand %vm884, %vm885
            %v887 = vsel %vm886, %v881, 0.0
            %v888 = vld [vmem:[%s866] sm:$0xff]
            %889 = vrot.lane.b32.xlu0 %v888, 127
            %v890 = vpop.permute.xlu0 %889
            %v891 = vlaneseq
            %v892 = vand.u32 %v891, 127
            %vm893 = vcmp.eq.s32.totalorder %v892, 15
            %v894 = vsel %vm893, %v870, %v890
            %s895 = smov [#allocation10]
            %s896 = scalar_lea.vmem %s895, 8
            %s897 = smov [#allocation11]
            %s898 = scalar_lea.vmem %s897, 8
            %v899 = vld [vmem:[%s898] sm:$0xff]
            %900 = vrot.lane.b32.xlu0 %v899, 1
            %v901 = vpop.permute.xlu0 %900
            %v902 = vld [vmem:[%s896] sm:$0xff]
            %v903 = vld [vmem:[%s896] sm:$0xff]
            %904 = vrot.lane.b32.xlu0 %v903, 1
            %v905 = vpop.permute.xlu0 %904
            %v906 = vlaneseq
            %v907 = vand.u32 %v906, 127
            %vm908 = vcmp.eq.s32.totalorder %v907, 0
            %v909 = vsel %vm908, %v903, %v905
            %v910 = vlaneseq
            %v911 = vand.u32 %v910, 127
            %vm912 = vcmp.eq.s32.totalorder %v911, 1
            %v913 = vsel %vm912, %v901, %v909
            %v914 = vlaneseq
            %v915 = vand.u32 %v914, 127
            %vm916 = vcmp.ge.s32.totalorder %v915, 0
            %vm917 = vcmp.lt.s32.totalorder %v915, 16
            %vm918 = vmand %vm916, %vm917
            %v919 = vsel %vm918, %v913, 0.0
            %v920 = vld [vmem:[%s898] sm:$0xff]
            %921 = vrot.lane.b32.xlu0 %v920, 127
            %v922 = vpop.permute.xlu0 %921
            %v923 = vlaneseq
            %v924 = vand.u32 %v923, 127
            %vm925 = vcmp.eq.s32.totalorder %v924, 15
            %v926 = vsel %vm925, %v902, %v922
            %927 = vst [vmem:[%s865] sm:$0xff] %v887
            %928 = vst [vmem:[%s866] sm:$0xff] %v894
            %929 = vst [vmem:[%s896] sm:$0xff] %v919
            %930 = vst [vmem:[%s898] sm:$0xff] %v926
            %s931 = smov [#allocation12]
            %s932 = smov [#allocation13]
            %v933 = vld [vmem:[%s932] sm:$0xff]
            %934 = vrot.lane.b32.xlu0 %v933, 1
            %v935 = vpop.permute.xlu0 %934
            %v936 = vld [vmem:[%s931] sm:$0xff]
            %v937 = vld [vmem:[%s931] sm:$0xff]
            %938 = vrot.lane.b32.xlu0 %v937, 1
            %v939 = vpop.permute.xlu0 %938
            %v940 = vlaneseq
            %v941 = vand.u32 %v940, 127
            %vm942 = vcmp.eq.s32.totalorder %v941, 0
            %v943 = vsel %vm942, %v937, %v939
            %v944 = vlaneseq
            %v945 = vand.u32 %v944, 127
            %vm946 = vcmp.eq.s32.totalorder %v945, 1
            %v947 = vsel %vm946, %v935, %v943
            %v948 = vlaneseq
            %v949 = vand.u32 %v948, 127
            %vm950 = vcmp.ge.s32.totalorder %v949, 0
            %vm951 = vcmp.lt.s32.totalorder %v949, 16
            %vm952 = vmand %vm950, %vm951
            %v953 = vsel %vm952, %v947, 0.0
            %v954 = vld [vmem:[%s932] sm:$0xff]
            %955 = vrot.lane.b32.xlu0 %v954, 127
            %v956 = vpop.permute.xlu0 %955
            %v957 = vlaneseq
            %v958 = vand.u32 %v957, 127
            %vm959 = vcmp.eq.s32.totalorder %v958, 15
            %v960 = vsel %vm959, %v936, %v956
            %s961 = smov [#allocation12]
            %s962 = scalar_lea.vmem %s961, 8
            %s963 = smov [#allocation13]
            %s964 = scalar_lea.vmem %s963, 8
            %v965 = vld [vmem:[%s964] sm:$0xff]
            %966 = vrot.lane.b32.xlu0 %v965, 1
            %v967 = vpop.permute.xlu0 %966
            %v968 = vld [vmem:[%s962] sm:$0xff]
            %v969 = vld [vmem:[%s962] sm:$0xff]
            %970 = vrot.lane.b32.xlu0 %v969, 1
            %v971 = vpop.permute.xlu0 %970
            %v972 = vlaneseq
            %v973 = vand.u32 %v972, 127
            %vm974 = vcmp.eq.s32.totalorder %v973, 0
            %v975 = vsel %vm974, %v969, %v971
            %v976 = vlaneseq
            %v977 = vand.u32 %v976, 127
            %vm978 = vcmp.eq.s32.totalorder %v977, 1
            %v979 = vsel %vm978, %v967, %v975
            %v980 = vlaneseq
            %v981 = vand.u32 %v980, 127
            %vm982 = vcmp.ge.s32.totalorder %v981, 0
            %vm983 = vcmp.lt.s32.totalorder %v981, 16
            %vm984 = vmand %vm982, %vm983
            %v985 = vsel %vm984, %v979, 0.0
            %v986 = vld [vmem:[%s964] sm:$0xff]
            %987 = vrot.lane.b32.xlu0 %v986, 127
            %v988 = vpop.permute.xlu0 %987
            %v989 = vlaneseq
            %v990 = vand.u32 %v989, 127
            %vm991 = vcmp.eq.s32.totalorder %v990, 15
            %v992 = vsel %vm991, %v968, %v988
            %993 = vst [vmem:[%s931] sm:$0xff] %v953
            %994 = vst [vmem:[%s932] sm:$0xff] %v960
            %995 = vst [vmem:[%s962] sm:$0xff] %v985
            %996 = vst [vmem:[%s964] sm:$0xff] %v992
            %s997 = smov [#allocation10]
            %s998 = smov [#allocation12]
            %v999 = vld [vmem:[%s997] ss:$0 sm:$0xff]
            %s1001 = scalar_lea.vmem %s997, 4294967295
            %v1002 = vld [vmem:[%s1001] sm:$0xfe]
            %v1003 = vlaneseq
            %v1004 = vshrl.u32 %v1003, 7
            %vm1005 = vcmp.eq.s32.totalorder %v1004, 0
            %v1006 = vsel %vm1005, %v999, %v1002
            %s1007 = scalar_lea.vmem %s997, 7
            %v1008 = vld [vmem:[%s1007] ss:$0 sm:$0xff]
            %1009 = vst [vmem:[%s997] sm:$0xff] %v1006
            %s1010 = scalar_lea.vmem %s997, 8
            %s1012 = scalar_lea.vmem %s1010, 4294967295
            %v1013 = vld [vmem:[%s1012] sm:$0xfe]
            %v1014 = vlaneseq
            %v1015 = vshrl.u32 %v1014, 7
            %vm1016 = vcmp.eq.s32.totalorder %v1015, 0
            %v1017 = vsel %vm1016, %v1008, %v1013
            %s1018 = scalar_lea.vmem %s1010, 7
            %v1019 = vld [vmem:[%s1018] ss:$0 sm:$0xff]
            %1020 = vst [vmem:[%s1010] sm:$0xff] %v1017
            %v1021 = vld [vmem:[%s998] ss:$0 sm:$0xff]
            %s1022 = scalar_lea.vmem %s997, 1
            %1023 = vst [vmem:[%s1022] sm:$0x1] %v1021
            %s1024 = scalar_lea.vmem %s998, 8
            %s1025 = scalar_lea.vmem %s1024, 1
            %v1026 = vld [vmem:[%s1025] sm:$0x7f]
            %v1027 = vlaneseq
            %v1028 = vshrl.u32 %v1027, 7
            %vm1029 = vcmp.eq.s32.totalorder %v1028, 7
            %v1030 = vsel %vm1029, %v1019, %v1026
            %v1031 = vld [vmem:[%s1024] ss:$0 sm:$0xff]
            %1032 = vst [vmem:[%s1024] sm:$0xff] %v1030
            %s1033 = scalar_lea.vmem %s998, 1
            %v1034 = vld [vmem:[%s1033] sm:$0x7f]
            %v1035 = vlaneseq
            %v1036 = vshrl.u32 %v1035, 7
            %vm1037 = vcmp.eq.s32.totalorder %v1036, 7
            %v1038 = vsel %vm1037, %v1031, %v1034
            %v1039 = vld [vmem:[%s998] ss:$0 sm:$0xff]
            %1040 = vst [vmem:[%s998] sm:$0xff] %v1038
            %s1041 = smov [#allocation11]
            %s1042 = smov [#allocation13]
            %v1043 = vld [vmem:[%s1041] ss:$0 sm:$0xff]
            %s1045 = scalar_lea.vmem %s1041, 4294967295
            %v1046 = vld [vmem:[%s1045] sm:$0xfe]
            %v1047 = vlaneseq
            %v1048 = vshrl.u32 %v1047, 7
            %vm1049 = vcmp.eq.s32.totalorder %v1048, 0
            %v1050 = vsel %vm1049, %v1043, %v1046
            %s1051 = scalar_lea.vmem %s1041, 7
            %v1052 = vld [vmem:[%s1051] ss:$0 sm:$0xff]
            %1053 = vst [vmem:[%s1041] sm:$0xff] %v1050
            %s1054 = scalar_lea.vmem %s1041, 8
            %s1056 = scalar_lea.vmem %s1054, 4294967295
            %v1057 = vld [vmem:[%s1056] sm:$0xfe]
            %v1058 = vlaneseq
            %v1059 = vshrl.u32 %v1058, 7
            %vm1060 = vcmp.eq.s32.totalorder %v1059, 0
            %v1061 = vsel %vm1060, %v1052, %v1057
            %s1062 = scalar_lea.vmem %s1054, 7
            %v1063 = vld [vmem:[%s1062] ss:$0 sm:$0xff]
            %1064 = vst [vmem:[%s1054] sm:$0xff] %v1061
            %v1065 = vld [vmem:[%s1042] ss:$0 sm:$0xff]
            %s1066 = scalar_lea.vmem %s1041, 1
            %1067 = vst [vmem:[%s1066] sm:$0x1] %v1065
            %s1068 = scalar_lea.vmem %s1042, 8
            %s1069 = scalar_lea.vmem %s1068, 1
            %v1070 = vld [vmem:[%s1069] sm:$0x7f]
            %v1071 = vlaneseq
            %v1072 = vshrl.u32 %v1071, 7
            %vm1073 = vcmp.eq.s32.totalorder %v1072, 7
            %v1074 = vsel %vm1073, %v1063, %v1070
            %v1075 = vld [vmem:[%s1068] ss:$0 sm:$0xff]
            %1076 = vst [vmem:[%s1068] sm:$0xff] %v1074
            %s1077 = scalar_lea.vmem %s1042, 1
            %v1078 = vld [vmem:[%s1077] sm:$0x7f]
            %v1079 = vlaneseq
            %v1080 = vshrl.u32 %v1079, 7
            %vm1081 = vcmp.eq.s32.totalorder %v1080, 7
            %v1082 = vsel %vm1081, %v1075, %v1078
            %v1083 = vld [vmem:[%s1042] ss:$0 sm:$0xff]
            %1084 = vst [vmem:[%s1042] sm:$0xff] %v1082
            %s1085 = smov [#allocation21]
            %v1086 = vld [vmem:[%s1085] sm:$0xff]
            %s1087 = smov [#allocation22]
            %v1088 = vld [vmem:[%s1087] sm:$0xff]
            %s1089 = smov %s241
            %s1090 = smov %s245
            %s1091 = smov %s249
            %s1092 = smov %s253
            %v1093 = vld [vmem:[%s1089] sm:$0xff]
            %v1094 = vld [vmem:[%s1090] sm:$0xff]
            %v1095 = vld [vmem:[%s1091] sm:$0xff]
            %v1096 = vld [vmem:[%s1092] sm:$0xff]
            %v1097 = vmul.f32 %v1086, %v1093
            %v1098 = vmul.f32 %v1088, %v1095
            %v1099 = vsub.f32 %v1097, %v1098
            %v1100 = vmul.f32 %v1086, %v1094
            %v1101 = vmul.f32 %v1088, %v1096
            %v1102 = vsub.f32 %v1100, %v1101
            %v1103 = vmul.f32 %v1088, %v1093
            %v1104 = vmul.f32 %v1086, %v1095
            %v1105 = vadd.f32 %v1103, %v1104
            %v1106 = vmul.f32 %v1088, %v1094
            %v1107 = vmul.f32 %v1086, %v1096
            %v1108 = vadd.f32 %v1106, %v1107
            %1109 = vst [vmem:[%s1089] sm:$0xff] %v1099
            %1110 = vst [vmem:[%s1090] sm:$0xff] %v1102
            %1111 = vst [vmem:[%s1091] sm:$0xff] %v1105
            %1112 = vst [vmem:[%s1092] sm:$0xff] %v1108
            %s1113 = smov [#allocation21]
            %s1114 = scalar_lea.vmem %s1113, 8
            %v1115 = vld [vmem:[%s1114] sm:$0xff]
            %s1116 = smov [#allocation22]
            %s1117 = scalar_lea.vmem %s1116, 8
            %v1118 = vld [vmem:[%s1117] sm:$0xff]
            %s1119 = smov %s241
            %s1120 = scalar_lea.vmem %s1119, 8
            %s1121 = smov %s245
            %s1122 = scalar_lea.vmem %s1121, 8
            %s1123 = smov %s249
            %s1124 = scalar_lea.vmem %s1123, 8
            %s1125 = smov %s253
            %s1126 = scalar_lea.vmem %s1125, 8
            %v1127 = vld [vmem:[%s1120] sm:$0xff]
            %v1128 = vld [vmem:[%s1122] sm:$0xff]
            %v1129 = vld [vmem:[%s1124] sm:$0xff]
            %v1130 = vld [vmem:[%s1126] sm:$0xff]
            %v1131 = vmul.f32 %v1115, %v1127
            %v1132 = vmul.f32 %v1118, %v1129
            %v1133 = vsub.f32 %v1131, %v1132
            %v1134 = vmul.f32 %v1115, %v1128
            %v1135 = vmul.f32 %v1118, %v1130
            %v1136 = vsub.f32 %v1134, %v1135
            %v1137 = vmul.f32 %v1118, %v1127
            %v1138 = vmul.f32 %v1115, %v1129
            %v1139 = vadd.f32 %v1137, %v1138
            %v1140 = vmul.f32 %v1118, %v1128
            %v1141 = vmul.f32 %v1115, %v1130
            %v1142 = vadd.f32 %v1140, %v1141
            %1143 = vst [vmem:[%s1120] sm:$0xff] %v1133
            %1144 = vst [vmem:[%s1122] sm:$0xff] %v1136
            %1145 = vst [vmem:[%s1124] sm:$0xff] %v1139
            %1146 = vst [vmem:[%s1126] sm:$0xff] %v1142
            %s1147 = smov %s241
            %s1148 = smov %s249
            %v1149 = vld [vmem:[%s1147] ss:$0 sm:$0xff]
            %s1151 = scalar_lea.vmem %s1147, 4294967295
            %v1152 = vld [vmem:[%s1151] sm:$0xfe]
            %v1153 = vlaneseq
            %v1154 = vshrl.u32 %v1153, 7
            %vm1155 = vcmp.eq.s32.totalorder %v1154, 0
            %v1156 = vsel %vm1155, %v1149, %v1152
            %s1157 = scalar_lea.vmem %s1147, 7
            %v1158 = vld [vmem:[%s1157] ss:$0 sm:$0xff]
            %1159 = vst [vmem:[%s1147] sm:$0xff] %v1156
            %s1160 = scalar_lea.vmem %s1147, 8
            %s1162 = scalar_lea.vmem %s1160, 4294967295
            %v1163 = vld [vmem:[%s1162] sm:$0xfe]
            %v1164 = vlaneseq
            %v1165 = vshrl.u32 %v1164, 7
            %vm1166 = vcmp.eq.s32.totalorder %v1165, 0
            %v1167 = vsel %vm1166, %v1158, %v1163
            %s1168 = scalar_lea.vmem %s1160, 7
            %v1169 = vld [vmem:[%s1168] ss:$0 sm:$0xff]
            %1170 = vst [vmem:[%s1160] sm:$0xff] %v1167
            %v1171 = vld [vmem:[%s1148] ss:$0 sm:$0xff]
            %s1172 = scalar_lea.vmem %s1147, 1
            %1173 = vst [vmem:[%s1172] sm:$0x1] %v1171
            %s1174 = scalar_lea.vmem %s1148, 8
            %s1175 = scalar_lea.vmem %s1174, 1
            %v1176 = vld [vmem:[%s1175] sm:$0x7f]
            %v1177 = vlaneseq
            %v1178 = vshrl.u32 %v1177, 7
            %vm1179 = vcmp.eq.s32.totalorder %v1178, 7
            %v1180 = vsel %vm1179, %v1169, %v1176
            %v1181 = vld [vmem:[%s1174] ss:$0 sm:$0xff]
            %1182 = vst [vmem:[%s1174] sm:$0xff] %v1180
            %s1183 = scalar_lea.vmem %s1148, 1
            %v1184 = vld [vmem:[%s1183] sm:$0x7f]
            %v1185 = vlaneseq
            %v1186 = vshrl.u32 %v1185, 7
            %vm1187 = vcmp.eq.s32.totalorder %v1186, 7
            %v1188 = vsel %vm1187, %v1181, %v1184
            %v1189 = vld [vmem:[%s1148] ss:$0 sm:$0xff]
            %1190 = vst [vmem:[%s1148] sm:$0xff] %v1188
            %s1191 = smov %s245
            %s1192 = smov %s253
            %v1193 = vld [vmem:[%s1191] ss:$0 sm:$0xff]
            %s1195 = scalar_lea.vmem %s1191, 4294967295
            %v1196 = vld [vmem:[%s1195] sm:$0xfe]
            %v1197 = vlaneseq
            %v1198 = vshrl.u32 %v1197, 7
            %vm1199 = vcmp.eq.s32.totalorder %v1198, 0
            %v1200 = vsel %vm1199, %v1193, %v1196
            %s1201 = scalar_lea.vmem %s1191, 7
            %v1202 = vld [vmem:[%s1201] ss:$0 sm:$0xff]
            %1203 = vst [vmem:[%s1191] sm:$0xff] %v1200
            %s1204 = scalar_lea.vmem %s1191, 8
            %s1206 = scalar_lea.vmem %s1204, 4294967295
            %v1207 = vld [vmem:[%s1206] sm:$0xfe]
            %v1208 = vlaneseq
            %v1209 = vshrl.u32 %v1208, 7
            %vm1210 = vcmp.eq.s32.totalorder %v1209, 0
            %v1211 = vsel %vm1210, %v1202, %v1207
            %s1212 = scalar_lea.vmem %s1204, 7
            %v1213 = vld [vmem:[%s1212] ss:$0 sm:$0xff]
            %1214 = vst [vmem:[%s1204] sm:$0xff] %v1211
            %v1215 = vld [vmem:[%s1192] ss:$0 sm:$0xff]
            %s1216 = scalar_lea.vmem %s1191, 1
            %1217 = vst [vmem:[%s1216] sm:$0x1] %v1215
            %s1218 = scalar_lea.vmem %s1192, 8
            %s1219 = scalar_lea.vmem %s1218, 1
            %v1220 = vld [vmem:[%s1219] sm:$0x7f]
            %v1221 = vlaneseq
            %v1222 = vshrl.u32 %v1221, 7
            %vm1223 = vcmp.eq.s32.totalorder %v1222, 7
            %v1224 = vsel %vm1223, %v1213, %v1220
            %v1225 = vld [vmem:[%s1218] ss:$0 sm:$0xff]
            %1226 = vst [vmem:[%s1218] sm:$0xff] %v1224
            %s1227 = scalar_lea.vmem %s1192, 1
            %v1228 = vld [vmem:[%s1227] sm:$0x7f]
            %v1229 = vlaneseq
            %v1230 = vshrl.u32 %v1229, 7
            %vm1231 = vcmp.eq.s32.totalorder %v1230, 7
            %v1232 = vsel %vm1231, %v1225, %v1228
            %v1233 = vld [vmem:[%s1192] ss:$0 sm:$0xff]
            %1234 = vst [vmem:[%s1192] sm:$0xff] %v1232
          $region108: #{custom-call.22} parent=100 // loop_footer
            %s471 = sadd.s32 1, %s467
          $region109: #{custom-call.22} parent=100 // loop_footer_branch
            %466 = sbr.rel target = $region105
          $region110: #{custom-call.22} parent=100 // loop_exit
            _
          %s1235 = sadd.s32 %s337, 1
        $region101: #{custom-call.22} parent=95 // loop_footer
          _
        $region102: #{custom-call.22} parent=95 // loop_footer_branch
          %336 = sbr.rel target = $region98
        $region103: #{custom-call.22} parent=95 // loop_exit
          _
        %s1238 = sand.u32 %s17, 7
        %s1239 = scalar_lea.vmem %s231, %s1238 [#allocation4]
        %s1240 = sand.u32 %s17, 7
        %s1241 = scalar_lea.vmem %s237, %s1240 [#allocation5]
        %s1242 = smov [#allocation10]
        %s1243 = smov %s1239
        %v1244 = vlaneseq
        %v1245 = vand.u32 %v1244, 127
        %v1246 = vmov %v1245
        %v1247 = vlaneseq
        %v1248 = vshrl.u32 %v1247, 7
        %v1249 = vmov %v1248
        %v1250 = vld [vmem:[%s1242] sm:$0xff]
        %vm1253 = vcmp.eq.s32.totalorder %v1249, %v1246
        %v1254 = vsel %vm1253, %v1250, 0.0
        %s1255 = scalar_lea.vmem %s1242, 8
        %v1256 = vld [vmem:[%s1255] sm:$0xff]
        %v1258 = vadd.s32 %v1249, 8
        %vm1259 = vcmp.eq.s32.totalorder %v1258, %v1246
        %v1260 = vsel %vm1259, %v1256, %v1254
        %v1261 = vrot.slane %v1260, 4
        %v1262 = vadd.f32 %v1260, %v1261
        %v1263 = vrot.slane %v1262, 2
        %v1264 = vadd.f32 %v1262, %v1263
        %v1265 = vrot.slane %v1264, 1
        %v1266 = vadd.f32 %v1264, %v1265
        %1267 = vst [vmem:[%s1243] sm:$0x1] %v1266
        %s1268 = smov [#allocation13]
        %s1269 = smov %s1241
        %v1270 = vlaneseq
        %v1271 = vand.u32 %v1270, 127
        %v1272 = vmov %v1271
        %v1273 = vlaneseq
        %v1274 = vshrl.u32 %v1273, 7
        %v1275 = vmov %v1274
        %v1276 = vld [vmem:[%s1268] sm:$0xff]
        %vm1279 = vcmp.eq.s32.totalorder %v1275, %v1272
        %v1280 = vsel %vm1279, %v1276, 0.0
        %s1281 = scalar_lea.vmem %s1268, 8
        %v1282 = vld [vmem:[%s1281] sm:$0xff]
        %v1284 = vadd.s32 %v1275, 8
        %vm1285 = vcmp.eq.s32.totalorder %v1284, %v1272
        %v1286 = vsel %vm1285, %v1282, %v1280
        %v1287 = vrot.slane %v1286, 4
        %v1288 = vadd.f32 %v1286, %v1287
        %v1289 = vrot.slane %v1288, 2
        %v1290 = vadd.f32 %v1288, %v1289
        %v1291 = vrot.slane %v1290, 1
        %v1292 = vadd.f32 %v1290, %v1291
        %1293 = vst [vmem:[%s1269] sm:$0x1] %v1292
        %s1294 = sand.u32 %s27, 1
        %s1295 = sand.u32 %s27, 1
        %s1296 = smul.addr %s1295, 8
        %s1297 = scalar_lea.vmem [#allocation4], %s1296
        %s1298 = sand.u32 %s55, 1
        %s1299 = sand.u32 %s55, 1
        %s1300 = smul.addr %s1299, 8
        %s1301 = scalar_lea.vmem [#allocation5], %s1300
        %s1302 = sand.u32 %s17, 1
        %s1303 = sand.u32 %s17, 1
        %s1304 = smul.addr %s1303, 16
        %s1305 = scalar_lea.vmem [#allocation6], %s1304
        %s1306 = sand.u32 %s17, 1
        %s1307 = sand.u32 %s17, 1
        %s1308 = smul.addr %s1307, 16
        %s1309 = scalar_lea.vmem [#allocation7], %s1308
        %s1310 = sand.u32 %s17, 1
        %s1311 = sand.u32 %s17, 1
        %s1312 = smul.addr %s1311, 16
        %s1313 = scalar_lea.vmem [#allocation8], %s1312
        %s1314 = sand.u32 %s17, 1
        %s1315 = sand.u32 %s17, 1
        %s1316 = smul.addr %s1315, 16
        %s1317 = scalar_lea.vmem [#allocation9], %s1316
        // Predicated region
        $region111: #{custom-call.22} parent=95 // pred_check
          %p1318 = pneg %p37
        $region112: #{custom-call.22} parent=95 // pred_check_branch
          %1320 = sbr.rel (%p1318) target = $region114
        $region113: #{custom-call.22} parent=95 // pred_region
          %s1321 = sshrl.u32 %s17, 3
          %s1322 = smul.addr %s1321, 8
          %s1323 = scalar_lea.vmem %s4, %s1322
          // Predicated region
          $region115: #{custom-call.22} parent=113 // pred_check
            _
          $region116: #{custom-call.22} parent=113 // pred_check_branch
            %1325 = sbr.rel (0) target = $region118
          $region117: #{custom-call.22} parent=113 // pred_region
            // Predicated region
            $region119: #{custom-call.22} parent=117 // pred_check
              _
            $region120: #{custom-call.22} parent=117 // pred_check_branch
              %1327 = sbr.rel (0) target = $region122
            $region121: #{custom-call.22} parent=117 // pred_region
              // Predicated region
              $region134: #{custom-call.22} parent=121 // pred_check
                _
              $region135: #{custom-call.22} parent=121 // pred_check_branch
                %1342 = sbr.rel (0) target = $region137
              $region136: #{custom-call.22} parent=121 // pred_region
                loop: start=0, step=1, limit=1
                $region138: #{custom-call.22} parent=136 // loop_pre_header
                  _
                $region139: #{custom-call.22} parent=136 // loop_header
                  %s1344 = sphi 0, %s1348
                  %p1345 = scmp.ge.s32.totalorder %s1344, 1
                  %s1349 = sphi %s1297, %s1297
                  %s1350 = sphi %s1323, %s1323
                $region140: #{custom-call.22} parent=136 // loop_header_branch
                  %1347 = sbr.rel (%p1345) target = $region144
                $region141: #{custom-call.22} parent=136 // loop_body
                  %v1351 = vld [vmem:[%s1349] sm:$0xff]
                  %1352 = vst [vmem:[%s1350] sm:$0xff] %v1351
                $region142: #{custom-call.22} parent=136 // loop_footer
                  %s1348 = sadd.s32 1, %s1344
                $region143: #{custom-call.22} parent=136 // loop_footer_branch
                  %1343 = sbr.rel target = $region139
                $region144: #{custom-call.22} parent=136 // loop_exit
                  _
              $region137: #{custom-call.22} parent=121 // pred_fallthru
                _
              // Predicated region
              $region145: #{custom-call.22} parent=121 // pred_check
                _
              $region146: #{custom-call.22} parent=121 // pred_check_branch
                %1354 = sbr.rel target = $region148
              $region147: #{custom-call.22} parent=121 // pred_region
                _
              $region148: #{custom-call.22} parent=121 // pred_fallthru
                _
            $region122: #{custom-call.22} parent=117 // pred_fallthru
              _
            // Predicated region
            $region123: #{custom-call.22} parent=117 // pred_check
              _
            $region124: #{custom-call.22} parent=117 // pred_check_branch
              %1329 = sbr.rel target = $region126
            $region125: #{custom-call.22} parent=117 // pred_region
              loop: start=0, step=1, limit=1
              $region127: #{custom-call.22} parent=125 // loop_pre_header
                _
              $region128: #{custom-call.22} parent=125 // loop_header
                %s1332 = sphi 0, %s1336
                %p1333 = scmp.ge.s32.totalorder %s1332, 1
                %s1337 = sphi %s1297, %s1297
                %s1338 = sphi %s1323, %s1323
              $region129: #{custom-call.22} parent=125 // loop_header_branch
                %1335 = sbr.rel (%p1333) target = $region133
              $region130: #{custom-call.22} parent=125 // loop_body
                %v1339 = vld [vmem:[%s1337] sm:$0xff]
                %1340 = vst [vmem:[%s1338] sm:$0xff] %v1339
              $region131: #{custom-call.22} parent=125 // loop_footer
                %s1336 = sadd.s32 1, %s1332
              $region132: #{custom-call.22} parent=125 // loop_footer_branch
                %1331 = sbr.rel target = $region128
              $region133: #{custom-call.22} parent=125 // loop_exit
                _
            $region126: #{custom-call.22} parent=117 // pred_fallthru
              _
          $region118: #{custom-call.22} parent=113 // pred_fallthru
            _
          %1355 = vnop
        $region114: #{custom-call.22} parent=95 // pred_fallthru
          _
        // Predicated region
        $region149: #{custom-call.22} parent=95 // pred_check
          %p1356 = pneg %p65
        $region150: #{custom-call.22} parent=95 // pred_check_branch
          %1358 = sbr.rel (%p1356) target = $region152
        $region151: #{custom-call.22} parent=95 // pred_region
          %s1359 = sshrl.u32 %s17, 3
          %s1360 = smul.addr %s1359, 8
          %s1361 = scalar_lea.vmem %s5, %s1360
          // Predicated region
          $region153: #{custom-call.22} parent=151 // pred_check
            _
          $region154: #{custom-call.22} parent=151 // pred_check_branch
            %1363 = sbr.rel (0) target = $region156
          $region155: #{custom-call.22} parent=151 // pred_region
            // Predicated region
            $region157: #{custom-call.22} parent=155 // pred_check
              _
            $region158: #{custom-call.22} parent=155 // pred_check_branch
              %1365 = sbr.rel (0) target = $region160
            $region159: #{custom-call.22} parent=155 // pred_region
              // Predicated region
              $region172: #{custom-call.22} parent=159 // pred_check
                _
              $region173: #{custom-call.22} parent=159 // pred_check_branch
                %1380 = sbr.rel (0) target = $region175
              $region174: #{custom-call.22} parent=159 // pred_region
                loop: start=0, step=1, limit=1
                $region176: #{custom-call.22} parent=174 // loop_pre_header
                  _
                $region177: #{custom-call.22} parent=174 // loop_header
                  %s1382 = sphi 0, %s1386
                  %p1383 = scmp.ge.s32.totalorder %s1382, 1
                  %s1387 = sphi %s1301, %s1301
                  %s1388 = sphi %s1361, %s1361
                $region178: #{custom-call.22} parent=174 // loop_header_branch
                  %1385 = sbr.rel (%p1383) target = $region182
                $region179: #{custom-call.22} parent=174 // loop_body
                  %v1389 = vld [vmem:[%s1387] sm:$0xff]
                  %1390 = vst [vmem:[%s1388] sm:$0xff] %v1389
                $region180: #{custom-call.22} parent=174 // loop_footer
                  %s1386 = sadd.s32 1, %s1382
                $region181: #{custom-call.22} parent=174 // loop_footer_branch
                  %1381 = sbr.rel target = $region177
                $region182: #{custom-call.22} parent=174 // loop_exit
                  _
              $region175: #{custom-call.22} parent=159 // pred_fallthru
                _
              // Predicated region
              $region183: #{custom-call.22} parent=159 // pred_check
                _
              $region184: #{custom-call.22} parent=159 // pred_check_branch
                %1392 = sbr.rel target = $region186
              $region185: #{custom-call.22} parent=159 // pred_region
                _
              $region186: #{custom-call.22} parent=159 // pred_fallthru
                _
            $region160: #{custom-call.22} parent=155 // pred_fallthru
              _
            // Predicated region
            $region161: #{custom-call.22} parent=155 // pred_check
              _
            $region162: #{custom-call.22} parent=155 // pred_check_branch
              %1367 = sbr.rel target = $region164
            $region163: #{custom-call.22} parent=155 // pred_region
              loop: start=0, step=1, limit=1
              $region165: #{custom-call.22} parent=163 // loop_pre_header
                _
              $region166: #{custom-call.22} parent=163 // loop_header
                %s1370 = sphi 0, %s1374
                %p1371 = scmp.ge.s32.totalorder %s1370, 1
                %s1375 = sphi %s1301, %s1301
                %s1376 = sphi %s1361, %s1361
              $region167: #{custom-call.22} parent=163 // loop_header_branch
                %1373 = sbr.rel (%p1371) target = $region171
              $region168: #{custom-call.22} parent=163 // loop_body
                %v1377 = vld [vmem:[%s1375] sm:$0xff]
                %1378 = vst [vmem:[%s1376] sm:$0xff] %v1377
              $region169: #{custom-call.22} parent=163 // loop_footer
                %s1374 = sadd.s32 1, %s1370
              $region170: #{custom-call.22} parent=163 // loop_footer_branch
                %1369 = sbr.rel target = $region166
              $region171: #{custom-call.22} parent=163 // loop_exit
                _
            $region164: #{custom-call.22} parent=155 // pred_fallthru
              _
          $region156: #{custom-call.22} parent=151 // pred_fallthru
            _
          %1393 = vnop
        $region152: #{custom-call.22} parent=95 // pred_fallthru
          _
        %s1394 = smul.addr %s17, 16
        %s1395 = scalar_lea.vmem %s6, %s1394
        // Predicated region
        $region187: #{custom-call.22} parent=95 // pred_check
          _
        $region188: #{custom-call.22} parent=95 // pred_check_branch
          %1397 = sbr.rel (0) target = $region190
        $region189: #{custom-call.22} parent=95 // pred_region
          // Predicated region
          $region191: #{custom-call.22} parent=189 // pred_check
            _
          $region192: #{custom-call.22} parent=189 // pred_check_branch
            %1399 = sbr.rel (0) target = $region194
          $region193: #{custom-call.22} parent=189 // pred_region
            loop: start=0, step=1, limit=1
            $region195: #{custom-call.22} parent=193 // loop_pre_header
              _
            $region196: #{custom-call.22} parent=193 // loop_header
              %s1401 = sphi 0, %s1405
              %p1402 = scmp.ge.s32.totalorder %s1401, 1
              %s1406 = sphi %s1305, %s1305
              %s1407 = sphi %s1395, %s1395
            $region197: #{custom-call.22} parent=193 // loop_header_branch
              %1404 = sbr.rel (%p1402) target = $region201
            $region198: #{custom-call.22} parent=193 // loop_body
              %v1408 = vld [vmem:[%s1406] sm:$0xff]
              %1409 = vst [vmem:[%s1407] sm:$0xff] %v1408
              %v1410 = vld [vmem:[%s1406 + $0x8] sm:$0xff]
              %1411 = vst [vmem:[%s1407 + $0x8] sm:$0xff] %v1410
            $region199: #{custom-call.22} parent=193 // loop_footer
              %s1405 = sadd.s32 1, %s1401
            $region200: #{custom-call.22} parent=193 // loop_footer_branch
              %1400 = sbr.rel target = $region196
            $region201: #{custom-call.22} parent=193 // loop_exit
              _
          $region194: #{custom-call.22} parent=189 // pred_fallthru
            _
          // Predicated region
          $region202: #{custom-call.22} parent=189 // pred_check
            _
          $region203: #{custom-call.22} parent=189 // pred_check_branch
            %1413 = sbr.rel target = $region205
          $region204: #{custom-call.22} parent=189 // pred_region
            _
          $region205: #{custom-call.22} parent=189 // pred_fallthru
            _
        $region190: #{custom-call.22} parent=95 // pred_fallthru
          _
        %1414 = vnop
        %s1415 = smul.addr %s17, 16
        %s1416 = scalar_lea.vmem %s7, %s1415
        // Predicated region
        $region206: #{custom-call.22} parent=95 // pred_check
          _
        $region207: #{custom-call.22} parent=95 // pred_check_branch
          %1418 = sbr.rel (0) target = $region209
        $region208: #{custom-call.22} parent=95 // pred_region
          // Predicated region
          $region210: #{custom-call.22} parent=208 // pred_check
            _
          $region211: #{custom-call.22} parent=208 // pred_check_branch
            %1420 = sbr.rel (0) target = $region213
          $region212: #{custom-call.22} parent=208 // pred_region
            loop: start=0, step=1, limit=1
            $region214: #{custom-call.22} parent=212 // loop_pre_header
              _
            $region215: #{custom-call.22} parent=212 // loop_header
              %s1422 = sphi 0, %s1426
              %p1423 = scmp.ge.s32.totalorder %s1422, 1
              %s1427 = sphi %s1309, %s1309
              %s1428 = sphi %s1416, %s1416
            $region216: #{custom-call.22} parent=212 // loop_header_branch
              %1425 = sbr.rel (%p1423) target = $region220
            $region217: #{custom-call.22} parent=212 // loop_body
              %v1429 = vld [vmem:[%s1427] sm:$0xff]
              %1430 = vst [vmem:[%s1428] sm:$0xff] %v1429
              %v1431 = vld [vmem:[%s1427 + $0x8] sm:$0xff]
              %1432 = vst [vmem:[%s1428 + $0x8] sm:$0xff] %v1431
            $region218: #{custom-call.22} parent=212 // loop_footer
              %s1426 = sadd.s32 1, %s1422
            $region219: #{custom-call.22} parent=212 // loop_footer_branch
              %1421 = sbr.rel target = $region215
            $region220: #{custom-call.22} parent=212 // loop_exit
              _
          $region213: #{custom-call.22} parent=208 // pred_fallthru
            _
          // Predicated region
          $region221: #{custom-call.22} parent=208 // pred_check
            _
          $region222: #{custom-call.22} parent=208 // pred_check_branch
            %1434 = sbr.rel target = $region224
          $region223: #{custom-call.22} parent=208 // pred_region
            _
          $region224: #{custom-call.22} parent=208 // pred_fallthru
            _
        $region209: #{custom-call.22} parent=95 // pred_fallthru
          _
        %1435 = vnop
        %s1436 = smul.addr %s17, 16
        %s1437 = scalar_lea.vmem %s8, %s1436
        // Predicated region
        $region225: #{custom-call.22} parent=95 // pred_check
          _
        $region226: #{custom-call.22} parent=95 // pred_check_branch
          %1439 = sbr.rel (0) target = $region228
        $region227: #{custom-call.22} parent=95 // pred_region
          // Predicated region
          $region229: #{custom-call.22} parent=227 // pred_check
            _
          $region230: #{custom-call.22} parent=227 // pred_check_branch
            %1441 = sbr.rel (0) target = $region232
          $region231: #{custom-call.22} parent=227 // pred_region
            loop: start=0, step=1, limit=1
            $region233: #{custom-call.22} parent=231 // loop_pre_header
              _
            $region234: #{custom-call.22} parent=231 // loop_header
              %s1443 = sphi 0, %s1447
              %p1444 = scmp.ge.s32.totalorder %s1443, 1
              %s1448 = sphi %s1313, %s1313
              %s1449 = sphi %s1437, %s1437
            $region235: #{custom-call.22} parent=231 // loop_header_branch
              %1446 = sbr.rel (%p1444) target = $region239
            $region236: #{custom-call.22} parent=231 // loop_body
              %v1450 = vld [vmem:[%s1448] sm:$0xff]
              %1451 = vst [vmem:[%s1449] sm:$0xff] %v1450
              %v1452 = vld [vmem:[%s1448 + $0x8] sm:$0xff]
              %1453 = vst [vmem:[%s1449 + $0x8] sm:$0xff] %v1452
            $region237: #{custom-call.22} parent=231 // loop_footer
              %s1447 = sadd.s32 1, %s1443
            $region238: #{custom-call.22} parent=231 // loop_footer_branch
              %1442 = sbr.rel target = $region234
            $region239: #{custom-call.22} parent=231 // loop_exit
              _
          $region232: #{custom-call.22} parent=227 // pred_fallthru
            _
          // Predicated region
          $region240: #{custom-call.22} parent=227 // pred_check
            _
          $region241: #{custom-call.22} parent=227 // pred_check_branch
            %1455 = sbr.rel target = $region243
          $region242: #{custom-call.22} parent=227 // pred_region
            _
          $region243: #{custom-call.22} parent=227 // pred_fallthru
            _
        $region228: #{custom-call.22} parent=95 // pred_fallthru
          _
        %1456 = vnop
        %s1457 = smul.addr %s17, 16
        %s1458 = scalar_lea.vmem %s9, %s1457
        // Predicated region
        $region244: #{custom-call.22} parent=95 // pred_check
          _
        $region245: #{custom-call.22} parent=95 // pred_check_branch
          %1460 = sbr.rel (0) target = $region247
        $region246: #{custom-call.22} parent=95 // pred_region
          // Predicated region
          $region248: #{custom-call.22} parent=246 // pred_check
            _
          $region249: #{custom-call.22} parent=246 // pred_check_branch
            %1462 = sbr.rel (0) target = $region251
          $region250: #{custom-call.22} parent=246 // pred_region
            loop: start=0, step=1, limit=1
            $region252: #{custom-call.22} parent=250 // loop_pre_header
              _
            $region253: #{custom-call.22} parent=250 // loop_header
              %s1464 = sphi 0, %s1468
              %p1465 = scmp.ge.s32.totalorder %s1464, 1
              %s1469 = sphi %s1317, %s1317
              %s1470 = sphi %s1458, %s1458
            $region254: #{custom-call.22} parent=250 // loop_header_branch
              %1467 = sbr.rel (%p1465) target = $region258
            $region255: #{custom-call.22} parent=250 // loop_body
              %v1471 = vld [vmem:[%s1469] sm:$0xff]
              %1472 = vst [vmem:[%s1470] sm:$0xff] %v1471
              %v1473 = vld [vmem:[%s1469 + $0x8] sm:$0xff]
              %1474 = vst [vmem:[%s1470 + $0x8] sm:$0xff] %v1473
            $region256: #{custom-call.22} parent=250 // loop_footer
              %s1468 = sadd.s32 1, %s1464
            $region257: #{custom-call.22} parent=250 // loop_footer_branch
              %1463 = sbr.rel target = $region253
            $region258: #{custom-call.22} parent=250 // loop_exit
              _
          $region251: #{custom-call.22} parent=246 // pred_fallthru
            _
          // Predicated region
          $region259: #{custom-call.22} parent=246 // pred_check
            _
          $region260: #{custom-call.22} parent=246 // pred_check_branch
            %1476 = sbr.rel target = $region262
          $region261: #{custom-call.22} parent=246 // pred_region
            _
          $region262: #{custom-call.22} parent=246 // pred_fallthru
            _
        $region247: #{custom-call.22} parent=95 // pred_fallthru
          _
        %1477 = vnop
      $region96: #{custom-call.22} parent=5 // pred_fallthru
        _
      %p1478 = scmp.le.s32.totalorder 2, %s12
      // Predicated region
      $region263: #{custom-call.22} parent=5 // pred_check
        %p1479 = pneg %p1478
      $region264: #{custom-call.22} parent=5 // pred_check_branch
        %1481 = sbr.rel (%p1479) target = $region266
      $region265: #{custom-call.22} parent=5 // pred_region
        %s1482 = ssub.s32 %s12, 2
        // Predicated region
        $region267: #{custom-call.22} parent=265 // pred_check
          %p1483 = pneg %p43
        $region268: #{custom-call.22} parent=265 // pred_check_branch
          %1485 = sbr.rel (%p1483) target = $region270
        $region269: #{custom-call.22} parent=265 // pred_region
          %s1486 = sand.u32 %s28, 1
          %s1487 = sand.u32 %s28, 1
          %s1488 = smul.addr %s1487, 8
          %s1489 = scalar_lea.vmem [#allocation4], %s1488
        $region270: #{custom-call.22} parent=265 // pred_fallthru
          _
        // Predicated region
        $region271: #{custom-call.22} parent=265 // pred_check
          %p1490 = pneg %p71
        $region272: #{custom-call.22} parent=265 // pred_check_branch
          %1492 = sbr.rel (%p1490) target = $region274
        $region273: #{custom-call.22} parent=265 // pred_region
          %s1493 = sand.u32 %s56, 1
          %s1494 = sand.u32 %s56, 1
          %s1495 = smul.addr %s1494, 8
          %s1496 = scalar_lea.vmem [#allocation5], %s1495
        $region274: #{custom-call.22} parent=265 // pred_fallthru
          _
        %s1497 = sand.u32 %s18, 1
        %s1498 = sand.u32 %s18, 1
        %s1499 = smul.addr %s1498, 16
        %s1500 = scalar_lea.vmem [#allocation6], %s1499
        %s1501 = sand.u32 %s18, 1
        %s1502 = sand.u32 %s18, 1
        %s1503 = smul.addr %s1502, 16
        %s1504 = scalar_lea.vmem [#allocation7], %s1503
        %s1505 = sand.u32 %s18, 1
        %s1506 = sand.u32 %s18, 1
        %s1507 = smul.addr %s1506, 16
        %s1508 = scalar_lea.vmem [#allocation8], %s1507
        %s1509 = sand.u32 %s18, 1
        %s1510 = sand.u32 %s18, 1
        %s1511 = smul.addr %s1510, 16
        %s1512 = scalar_lea.vmem [#allocation9], %s1511
      $region266: #{custom-call.22} parent=5 // pred_fallthru
        _
    $region6: #{custom-call.22} parent=1 // loop_footer
      %s16 = sadd.s32 1, %s12
    $region7: #{custom-call.22} parent=1 // loop_footer_branch
      %11 = sbr.rel target = $region3
    $region8: #{custom-call.22} parent=1 // loop_exit
      _

// kernel: reverse
$region0: #{reverse}
  %s0 = inlined_call_operand.vmem [shape: f32[9,32], index: 0, kind: input, shape index: {}]
  %s1 = inlined_call_operand.vmem [shape: f32[9,32], index: 1, kind: output, shape index: {}]
  %v2 = vlaneseq
  %v3 = vsub.s32 31, %v2
  %4 = vset.pattern.permute.xlu0 %v3
  $region1: #{reverse} parent=0
    #allocation0 [shape = 'u8[8192]{0}', space=vmem, size = 0x2000, scoped, tag = 'operand span for operand 0']
    #allocation1 [shape = 'u8[8192]{0}', space=vmem, size = 0x2000, scoped, tag = 'operand span for operand 1']
    // Predicated region
    $region2: #{reverse} parent=1 // pred_check
      _
    $region3: #{reverse} parent=1 // pred_check_branch
      %6 = sbr.rel (0) target = $region5
    $region4: #{reverse} parent=1 // pred_region
      // Predicated region
      $region6: #{reverse} parent=4 // pred_check
        _
      $region7: #{reverse} parent=4 // pred_check_branch
        %8 = sbr.rel (0) target = $region9
      $region8: #{reverse} parent=4 // pred_region
        // Predicated region
        $region21: #{reverse} parent=8 // pred_check
          _
        $region22: #{reverse} parent=8 // pred_check_branch
          %25 = sbr.rel (0) target = $region24
        $region23: #{reverse} parent=8 // pred_region
          loop: start=0, step=1, limit=1
          $region25: #{reverse} parent=23 // loop_pre_header
            _
          $region26: #{reverse} parent=23 // loop_header
            %s27 = sphi 0, %s31
            %p28 = scmp.ge.s32.totalorder %s27, 1
            %s32 = sphi %s0, %s0
            %s33 = sphi [#allocation0], [#allocation0]
          $region27: #{reverse} parent=23 // loop_header_branch
            %30 = sbr.rel (%p28) target = $region31
          $region28: #{reverse} parent=23 // loop_body
            %v34 = vld [vmem:[%s32] sm:$0xff]
            %35 = vst [vmem:[%s33] sm:$0xff] %v34
            %v36 = vld [vmem:[%s32 + $0x8] sm:$0xff]
            %37 = vst [vmem:[%s33 + $0x8] sm:$0xff] %v36
          $region29: #{reverse} parent=23 // loop_footer
            %s31 = sadd.s32 1, %s27
          $region30: #{reverse} parent=23 // loop_footer_branch
            %26 = sbr.rel target = $region26
          $region31: #{reverse} parent=23 // loop_exit
            _
        $region24: #{reverse} parent=8 // pred_fallthru
          _
        // Predicated region
        $region32: #{reverse} parent=8 // pred_check
          _
        $region33: #{reverse} parent=8 // pred_check_branch
          %39 = sbr.rel target = $region35
        $region34: #{reverse} parent=8 // pred_region
          _
        $region35: #{reverse} parent=8 // pred_fallthru
          _
      $region9: #{reverse} parent=4 // pred_fallthru
        _
      // Predicated region
      $region10: #{reverse} parent=4 // pred_check
        _
      $region11: #{reverse} parent=4 // pred_check_branch
        %10 = sbr.rel target = $region13
      $region12: #{reverse} parent=4 // pred_region
        loop: start=0, step=1, limit=1
        $region14: #{reverse} parent=12 // loop_pre_header
          _
        $region15: #{reverse} parent=12 // loop_header
          %s13 = sphi 0, %s17
          %p14 = scmp.ge.s32.totalorder %s13, 1
          %s18 = sphi %s0, %s0
          %s19 = sphi [#allocation0], [#allocation0]
        $region16: #{reverse} parent=12 // loop_header_branch
          %16 = sbr.rel (%p14) target = $region20
        $region17: #{reverse} parent=12 // loop_body
          %v20 = vld [vmem:[%s18] sm:$0xff]
          %21 = vst [vmem:[%s19] sm:$0xff] %v20
          %v22 = vld [vmem:[%s18 + $0x8] sm:$0xff]
          %23 = vst [vmem:[%s19 + $0x8] sm:$0xff] %v22
        $region18: #{reverse} parent=12 // loop_footer
          %s17 = sadd.s32 1, %s13
        $region19: #{reverse} parent=12 // loop_footer_branch
          %12 = sbr.rel target = $region15
        $region20: #{reverse} parent=12 // loop_exit
          _
      $region13: #{reverse} parent=4 // pred_fallthru
        _
    $region5: #{reverse} parent=1 // pred_fallthru
      _
    %40 = vnop
    %v41 = vld [vmem:[#allocation0] sm:$0xff]
    %42 = vperm.xlu0 %4, %v41
    %v43 = vpop.permute.xlu0 %42
    %44 = vst [vmem:[#allocation1] sm:$0xff] %v43
    %s45 = scalar_lea.vmem [#allocation1], 8
    %s46 = scalar_lea.vmem [#allocation0], 8
    %v47 = vld [vmem:[%s46] sm:$0xff]
    %48 = vperm.xlu0 %4, %v47
    %v49 = vpop.permute.xlu0 %48
    %50 = vst [vmem:[%s45] sm:$0xff] %v49
    // Predicated region
    $region36: #{reverse} parent=1 // pred_check
      _
    $region37: #{reverse} parent=1 // pred_check_branch
      %52 = sbr.rel (0) target = $region39
    $region38: #{reverse} parent=1 // pred_region
      // Predicated region
      $region40: #{reverse} parent=38 // pred_check
        _
      $region41: #{reverse} parent=38 // pred_check_branch
        %54 = sbr.rel (0) target = $region43
      $region42: #{reverse} parent=38 // pred_region
        // Predicated region
        $region55: #{reverse} parent=42 // pred_check
          _
        $region56: #{reverse} parent=42 // pred_check_branch
          %71 = sbr.rel (0) target = $region58
        $region57: #{reverse} parent=42 // pred_region
          loop: start=0, step=1, limit=1
          $region59: #{reverse} parent=57 // loop_pre_header
            _
          $region60: #{reverse} parent=57 // loop_header
            %s73 = sphi 0, %s77
            %p74 = scmp.ge.s32.totalorder %s73, 1
            %s78 = sphi [#allocation1], [#allocation1]
            %s79 = sphi %s1, %s1
          $region61: #{reverse} parent=57 // loop_header_branch
            %76 = sbr.rel (%p74) target = $region65
          $region62: #{reverse} parent=57 // loop_body
            %v80 = vld [vmem:[%s78] sm:$0xff]
            %81 = vst [vmem:[%s79] sm:$0xff] %v80
            %v82 = vld [vmem:[%s78 + $0x8] sm:$0xff]
            %83 = vst [vmem:[%s79 + $0x8] sm:$0xff] %v82
          $region63: #{reverse} parent=57 // loop_footer
            %s77 = sadd.s32 1, %s73
          $region64: #{reverse} parent=57 // loop_footer_branch
            %72 = sbr.rel target = $region60
          $region65: #{reverse} parent=57 // loop_exit
            _
        $region58: #{reverse} parent=42 // pred_fallthru
          _
        // Predicated region
        $region66: #{reverse} parent=42 // pred_check
          _
        $region67: #{reverse} parent=42 // pred_check_branch
          %85 = sbr.rel target = $region69
        $region68: #{reverse} parent=42 // pred_region
          _
        $region69: #{reverse} parent=42 // pred_fallthru
          _
      $region43: #{reverse} parent=38 // pred_fallthru
        _
      // Predicated region
      $region44: #{reverse} parent=38 // pred_check
        _
      $region45: #{reverse} parent=38 // pred_check_branch
        %56 = sbr.rel target = $region47
      $region46: #{reverse} parent=38 // pred_region
        loop: start=0, step=1, limit=1
        $region48: #{reverse} parent=46 // loop_pre_header
          _
        $region49: #{reverse} parent=46 // loop_header
          %s59 = sphi 0, %s63
          %p60 = scmp.ge.s32.totalorder %s59, 1
          %s64 = sphi [#allocation1], [#allocation1]
          %s65 = sphi %s1, %s1
        $region50: #{reverse} parent=46 // loop_header_branch
          %62 = sbr.rel (%p60) target = $region54
        $region51: #{reverse} parent=46 // loop_body
          %v66 = vld [vmem:[%s64] sm:$0xff]
          %67 = vst [vmem:[%s65] sm:$0xff] %v66
          %v68 = vld [vmem:[%s64 + $0x8] sm:$0xff]
          %69 = vst [vmem:[%s65 + $0x8] sm:$0xff] %v68
        $region52: #{reverse} parent=46 // loop_footer
          %s63 = sadd.s32 1, %s59
        $region53: #{reverse} parent=46 // loop_footer_branch
          %58 = sbr.rel target = $region49
        $region54: #{reverse} parent=46 // loop_exit
          _
      $region47: #{reverse} parent=38 // pred_fallthru
        _
    $region39: #{reverse} parent=1 // pred_fallthru
      _
    %86 = vnop

// kernel: custom-call.16
$region0: #{custom-call.16}
  %s0 = inlined_call_operand.vmem [shape: f32[9,32,32], index: 0, kind: input, shape index: {}]
  %s1 = inlined_call_operand.vmem [shape: f32[9,32,32], index: 1, kind: output, shape index: {0}]
  %s2 = inlined_call_operand.vmem [shape: f32[9,32], index: 2, kind: output, shape index: {1}]
  %3 = xla_tuple %s1, %s2
  $region1: #{custom-call.16} parent=0
    #allocation0 [shape = 'u8[32768]{0}', space=vmem, size = 0x8000, scoped, tag = 'operand span for operand 0']
    #allocation1 [shape = 'u8[32768]{0}', space=vmem, size = 0x8000, scoped, tag = 'operand span for operand 1']
    #allocation2 [shape = 'u8[8192]{0}', space=vmem, size = 0x2000, scoped, tag = 'operand span for operand 2']
    loop: start=0, step=1, limit=11
    $region2: #{custom-call.16} parent=1 // loop_pre_header
      _
    $region3: #{custom-call.16} parent=1 // loop_header
      %s5 = sphi 0, %s9
      %p6 = scmp.ge.s32.totalorder %s5, 11
      %s12 = sphi 0, %s31
      %s13 = sphi 0, %s27
      %s14 = sphi 0, %s23
      %s15 = sphi 0, %s12
      %s16 = sphi 0, %s13
      %s17 = sphi 0, %s14
      %s18 = sphi 0, %s15
      %s19 = sphi 0, %s16
      %s20 = sphi 0, %s17
      %s46 = sphi 0, %s48
      %s49 = sphi 0, %s46
      %s50 = sphi 0, %s49
      %s66 = sphi 0, %s50
    $region4: #{custom-call.16} parent=1 // loop_header_branch
      %8 = sbr.rel (%p6) target = $region8
    $region5: #{custom-call.16} parent=1 // loop_body
      %s10 = ssub.s32 %s5, 1
      %s11 = ssub.s32 %s5, 2
      %s21 = sadd.s32 1, %s14
      %p22 = scmp.ge.s32.totalorder %s21, 1
      %s23 = scalar_select %p22, 0, %s21
      %s24 = sadd.s32 1, %s13
      %s25 = scalar_select %p22, %s24, %s13
      %p26 = scmp.ge.s32.totalorder %s25, 1
      %s27 = scalar_select %p26, 0, %s25
      %s28 = sadd.s32 1, %s12
      %s29 = scalar_select %p26, %s28, %s12
      %p30 = scmp.ge.s32.totalorder %s29, 9
      %s31 = scalar_select %p30, 0, %s29
      %p32 = scmp.lt.s32.totalorder %s12, 0
      %s33 = ssub.s32 0, %s12
      %s34 = scalar_select %p32, %s33, %s12
      %s35 = sshrl.u32 %s34, 3
      %s36 = ssub.s32 0, %s35
      %s37 = scalar_select %p32, %s36, %s35
      %p38 = scmp.lt.s32.totalorder %s31, 0
      %s39 = ssub.s32 0, %s31
      %s40 = scalar_select %p38, %s39, %s31
      %s41 = sshrl.u32 %s40, 3
      %s42 = ssub.s32 0, %s41
      %s43 = scalar_select %p38, %s42, %s41
      %s44 = ssub.s32 %s37, %s43
      %p45 = scmp.eq.s32.totalorder %s44, 0
      %s47 = sadd.s32 %s46, 1
      %s48 = scalar_select %p45, %s46, %s47
      %p51 = pneg %p45
      %p52 = scmp.eq.s32.totalorder %s5, 8
      %p53 = por %p51, %p52
      %p54 = scmp.ne.s32.totalorder %s46, %s49
      %p55 = scmp.eq.s32.totalorder %s5, 0
      %p56 = por %p54, %p55
      %p57 = scmp.ne.s32.totalorder %s46, %s49
      %p58 = scmp.eq.s32.totalorder %s10, 8
      %p59 = por %p57, %p58
      %p60 = scmp.ne.s32.totalorder %s49, %s50
      %p61 = scmp.eq.s32.totalorder %s10, 0
      %p62 = por %p60, %p61
      %p63 = scmp.ne.s32.totalorder %s49, %s50
      %p64 = scmp.eq.s32.totalorder %s11, 8
      %p65 = por %p63, %p64
      %p67 = scmp.ne.s32.totalorder %s50, %s66
      %p68 = scmp.eq.s32.totalorder %s11, 0
      %p69 = por %p67, %p68
      %p70 = scmp.le.s32.totalorder 1, %s5
      %p71 = scmp.lt.s32.totalorder %s5, 10
      %p72 = pnand %p70, %p71
      %p73 = pneg %p72
      // Predicated region
      $region9: #{custom-call.16} parent=5 // pred_check
        _
      $region10: #{custom-call.16} parent=5 // pred_check_branch
        %75 = sbr.rel (%p72) target = $region12
      $region11: #{custom-call.16} parent=5 // pred_region
        %s76 = ssub.s32 %s5, 1
      $region12: #{custom-call.16} parent=5 // pred_fallthru
        _
      %p77 = scmp.lt.s32.totalorder %s5, 9
      // Predicated region
      $region13: #{custom-call.16} parent=5 // pred_check
        %p78 = pneg %p77
      $region14: #{custom-call.16} parent=5 // pred_check_branch
        %80 = sbr.rel (%p78) target = $region16
      $region15: #{custom-call.16} parent=5 // pred_region
        %s81 = sand.u32 %s5, 1
        %s82 = sand.u32 %s5, 1
        %s83 = smul.addr %s82, 32
        %s84 = scalar_lea.vmem [#allocation0], %s83
        %s85 = smul.u32 4, %s13
        %s86 = sadd.s32 %s14, %s85
        %s87 = smul.addr %s12, 4
        %s88 = sadd.s32 %s86, %s87
        %s89 = smul.addr %s88, 8
        %s90 = scalar_lea.vmem %s0, %s89
        // Predicated region
        $region17: #{custom-call.16} parent=15 // pred_check
          _
        $region18: #{custom-call.16} parent=15 // pred_check_branch
          %92 = sbr.rel (0) target = $region20
        $region19: #{custom-call.16} parent=15 // pred_region
          // Predicated region
          $region21: #{custom-call.16} parent=19 // pred_check
            _
          $region22: #{custom-call.16} parent=19 // pred_check_branch
            %94 = sbr.rel (0) target = $region24
          $region23: #{custom-call.16} parent=19 // pred_region
            // Predicated region
            $region36: #{custom-call.16} parent=23 // pred_check
              _
            $region37: #{custom-call.16} parent=23 // pred_check_branch
              %115 = sbr.rel (0) target = $region39
            $region38: #{custom-call.16} parent=23 // pred_region
              loop: start=0, step=1, limit=1
              $region40: #{custom-call.16} parent=38 // loop_pre_header
                _
              $region41: #{custom-call.16} parent=38 // loop_header
                %s117 = sphi 0, %s121
                %p118 = scmp.ge.s32.totalorder %s117, 1
                %s122 = sphi %s90, %s90
                %s123 = sphi %s84, %s84
              $region42: #{custom-call.16} parent=38 // loop_header_branch
                %120 = sbr.rel (%p118) target = $region46
              $region43: #{custom-call.16} parent=38 // loop_body
                %v124 = vld [vmem:[%s122] sm:$0xff]
                %125 = vst [vmem:[%s123] sm:$0xff] %v124
                %v126 = vld [vmem:[%s122 + $0x8] sm:$0xff]
                %127 = vst [vmem:[%s123 + $0x8] sm:$0xff] %v126
                %v128 = vld [vmem:[%s122 + $0x10] sm:$0xff]
                %129 = vst [vmem:[%s123 + $0x10] sm:$0xff] %v128
                %v130 = vld [vmem:[%s122 + $0x18] sm:$0xff]
                %131 = vst [vmem:[%s123 + $0x18] sm:$0xff] %v130
              $region44: #{custom-call.16} parent=38 // loop_footer
                %s121 = sadd.s32 1, %s117
              $region45: #{custom-call.16} parent=38 // loop_footer_branch
                %116 = sbr.rel target = $region41
              $region46: #{custom-call.16} parent=38 // loop_exit
                _
            $region39: #{custom-call.16} parent=23 // pred_fallthru
              _
            // Predicated region
            $region47: #{custom-call.16} parent=23 // pred_check
              _
            $region48: #{custom-call.16} parent=23 // pred_check_branch
              %133 = sbr.rel target = $region50
            $region49: #{custom-call.16} parent=23 // pred_region
              _
            $region50: #{custom-call.16} parent=23 // pred_fallthru
              _
          $region24: #{custom-call.16} parent=19 // pred_fallthru
            _
          // Predicated region
          $region25: #{custom-call.16} parent=19 // pred_check
            _
          $region26: #{custom-call.16} parent=19 // pred_check_branch
            %96 = sbr.rel target = $region28
          $region27: #{custom-call.16} parent=19 // pred_region
            loop: start=0, step=1, limit=1
            $region29: #{custom-call.16} parent=27 // loop_pre_header
              _
            $region30: #{custom-call.16} parent=27 // loop_header
              %s99 = sphi 0, %s103
              %p100 = scmp.ge.s32.totalorder %s99, 1
              %s104 = sphi %s90, %s90
              %s105 = sphi %s84, %s84
            $region31: #{custom-call.16} parent=27 // loop_header_branch
              %102 = sbr.rel (%p100) target = $region35
            $region32: #{custom-call.16} parent=27 // loop_body
              %v106 = vld [vmem:[%s104] sm:$0xff]
              %107 = vst [vmem:[%s105] sm:$0xff] %v106
              %v108 = vld [vmem:[%s104 + $0x8] sm:$0xff]
              %109 = vst [vmem:[%s105 + $0x8] sm:$0xff] %v108
              %v110 = vld [vmem:[%s104 + $0x10] sm:$0xff]
              %111 = vst [vmem:[%s105 + $0x10] sm:$0xff] %v110
              %v112 = vld [vmem:[%s104 + $0x18] sm:$0xff]
              %113 = vst [vmem:[%s105 + $0x18] sm:$0xff] %v112
            $region33: #{custom-call.16} parent=27 // loop_footer
              %s103 = sadd.s32 1, %s99
            $region34: #{custom-call.16} parent=27 // loop_footer_branch
              %98 = sbr.rel target = $region30
            $region35: #{custom-call.16} parent=27 // loop_exit
              _
          $region28: #{custom-call.16} parent=19 // pred_fallthru
            _
        $region20: #{custom-call.16} parent=15 // pred_fallthru
          _
        %134 = vnop
      $region16: #{custom-call.16} parent=5 // pred_fallthru
        _
      %p135 = scmp.le.s32.totalorder 1, %s5
      %p136 = scmp.lt.s32.totalorder %s5, 10
      %p137 = pnand %p135, %p136
      %p138 = pneg %p137
      // Predicated region
      $region51: #{custom-call.16} parent=5 // pred_check
        _
      $region52: #{custom-call.16} parent=5 // pred_check_branch
        %140 = sbr.rel (%p137) target = $region54
      $region53: #{custom-call.16} parent=5 // pred_region
        #allocation3 [shape = 'f32[32,128]{1,0}', space=vmem, size = 0x4000, scoped, tag = 'scratch for Householder reflectors']
        %s141 = ssub.s32 %s5, 1
        %s142 = sand.u32 %s10, 1
        %s143 = sand.u32 %s10, 1
        %s144 = smul.addr %s143, 32
        %s145 = scalar_lea.vmem [#allocation0], %s144
        %s146 = sand.u32 %s10, 1
        %s147 = sand.u32 %s10, 1
        %s148 = smul.addr %s147, 32
        %s149 = scalar_lea.vmem [#allocation0], %s148
        %s150 = sand.u32 %s10, 1
        %s151 = sand.u32 %s10, 1
        %s152 = smul.addr %s151, 32
        %s153 = scalar_lea.vmem [#allocation1], %s152
        %p154 = pneg %p62
        %p155 = pneg %p59
        %s156 = sand.u32 %s49, 1
        %s157 = sand.u32 %s49, 1
        %s158 = smul.addr %s157, 8
        %s159 = scalar_lea.vmem [#allocation2], %s158
        %s160 = smul.u32 4, %s16
        %s161 = smul.u32 4, %s16
        %p162 = scmp.lt.s32.totalorder %s15, 0
        %s163 = ssub.s32 0, %s15
        %s164 = scalar_select %p162, %s163, %s15
        %s165 = sshrl.u32 %s164, 3
        %s166 = ssub.s32 0, %s165
        %s167 = scalar_select %p162, %s166, %s165
        %s168 = sand.u32 %s15, 7
        %s169 = scalar_lea.vmem %s159, %s168 [#allocation2]
        %v170 = vld [vmem:[%s145] sm:$0xff]
        %171 = vst [vmem:[%s153] sm:$0xff] %v170
        %s172 = scalar_lea.vmem %s153, 8 [#allocation1]
        %s173 = scalar_lea.vmem %s145, 8 [#allocation0]
        %v174 = vld [vmem:[%s173] sm:$0xff]
        %175 = vst [vmem:[%s172] sm:$0xff] %v174
        %s176 = scalar_lea.vmem %s153, 16 [#allocation1]
        %s177 = scalar_lea.vmem %s145, 16 [#allocation0]
        %v178 = vld [vmem:[%s177] sm:$0xff]
        %179 = vst [vmem:[%s176] sm:$0xff] %v178
        %s180 = scalar_lea.vmem %s153, 24 [#allocation1]
        %s181 = scalar_lea.vmem %s145, 24 [#allocation0]
        %v182 = vld [vmem:[%s181] sm:$0xff]
        %183 = vst [vmem:[%s180] sm:$0xff] %v182
        %184 = vst [vmem:[%s169] sm:$0x1] 0.0
        loop: start=0, step=1, limit=32
        $region55: #{custom-call.16} parent=53 // loop_pre_header
          _
        $region56: #{custom-call.16} parent=53 // loop_header
          %s186 = sphi 0, %s190
          %p187 = scmp.ge.s32.totalorder %s186, 32
        $region57: #{custom-call.16} parent=53 // loop_header_branch
          %189 = sbr.rel (%p187) target = $region61
        $region58: #{custom-call.16} parent=53 // loop_body
          %v191 = vld [vmem:[%s153] sm:$0xff]
          %v192 = vlaneseq
          %v193 = vshrl.u32 %v192, 7
          %v195 = vstv %s186
          %vm196 = vcmp.gt.s32.totalorder %v193, %v195
          %v197 = vsel %vm196, %v191, 0.0
          %v198 = vmul.f32 %v197, %v197
          %s199 = scalar_lea.vmem %s153, 8 [#allocation1]
          %v200 = vld [vmem:[%s199] sm:$0xff]
          %v201 = vlaneseq
          %v202 = vshrl.u32 %v201, 7
          %v203 = vadd.s32 %v202, 8
          %v204 = vstv %s186
          %vm205 = vcmp.gt.s32.totalorder %v203, %v204
          %v206 = vsel %vm205, %v200, 0.0
          %v207 = vmul.f32 %v206, %v206
          %v208 = vadd.f32 %v198, %v207
          %s209 = scalar_lea.vmem %s153, 16 [#allocation1]
          %v210 = vld [vmem:[%s209] sm:$0xff]
          %v211 = vlaneseq
          %v212 = vshrl.u32 %v211, 7
          %v213 = vadd.s32 %v212, 16
          %v214 = vstv %s186
          %vm215 = vcmp.gt.s32.totalorder %v213, %v214
          %v216 = vsel %vm215, %v210, 0.0
          %v217 = vmul.f32 %v216, %v216
          %v218 = vadd.f32 %v208, %v217
          %s219 = scalar_lea.vmem %s153, 24 [#allocation1]
          %v220 = vld [vmem:[%s219] sm:$0xff]
          %v221 = vlaneseq
          %v222 = vshrl.u32 %v221, 7
          %v223 = vadd.s32 %v222, 24
          %v224 = vstv %s186
          %vm225 = vcmp.gt.s32.totalorder %v223, %v224
          %vm226 = vcmp.lt.s32.totalorder %v223, 32
          %vm227 = vmand %vm225, %vm226
          %v228 = vsel %vm227, %v220, 0.0
          %v229 = vmul.f32 %v228, %v228
          %v230 = vadd.f32 %v218, %v229
          %v231 = vrot.slane %v230, 4
          %v232 = vadd.f32 %v230, %v231
          %v233 = vrot.slane %v232, 2
          %v234 = vadd.f32 %v232, %v233
          %v235 = vrot.slane %v234, 1
          %v236 = vadd.f32 %v234, %v235
          %v237 = vrsqrt.pop %v236
          %v238 = vmul.f32 %v236, %v237
          %vm239 = vcmp.eq.f32.partialorder %v236, inf
          %v240 = vsel %vm239, %v236, %v238
          %vm241 = vcmp.eq.f32.partialorder %v236, 0.0
          %v242 = vand.u32 %v236, 2147483648
          %v243 = vsel %vm241, %v242, %v240
          %vm244 = vcmp.eq.f32.partialorder %v236, 0.0
          %s245 = sshrl.u32 %s186, 3
          %s246 = sand.u32 %s186, 7
          %s247 = smul.addr %s245, 8
          %s248 = sadd.s32 %s246, %s247
          %s249 = scalar_lea.vmem %s153, %s248 [#allocation1]
          %v250 = vld [vmem:[%s249] ss:$0 sm:$0xff]
          %v251 = vand.u32 2147483647, %v250
          %v252 = vmax.f32 %v251, 0.0
          %v253 = vand.u32 2147483647, %v243
          %v254 = vmax.f32 %v252, %v253
          %v255 = vrcp.pop %v254
          %v256 = vmul.f32 %v251, %v255
          %v257 = vmul.f32 %v256, %v256
          %v258 = vrcp.pop %v254
          %v259 = vmul.f32 0.0, %v258
          %v260 = vmul.f32 %v259, %v259
          %v261 = vadd.f32 %v257, %v260
          %v262 = vrcp.pop %v254
          %v263 = vmul.f32 %v253, %v262
          %v264 = vmul.f32 %v263, %v263
          %v265 = vadd.f32 %v261, %v264
          %vm266 = vcmp.eq.f32.partialorder %v254, 0.0
          %v267 = vrsqrt.pop %v265
          %v268 = vmul.f32 %v265, %v267
          %vm269 = vcmp.eq.f32.partialorder %v265, inf
          %v270 = vsel %vm269, %v265, %v268
          %vm271 = vcmp.eq.f32.partialorder %v265, 0.0
          %v272 = vand.u32 %v265, 2147483648
          %v273 = vsel %vm271, %v272, %v270
          %v274 = vmul.f32 %v254, %v273
          %v275 = vsel %vm266, 0.0, %v274
          %vm276 = vcmp.lt.f32.partialorder %v250, 0.0
          %v277 = vxor.u32 %v275, 2147483648
          %v278 = vsel %vm276, %v275, %v277
          %v279 = vsub.f32 %v278, %v250
          %v280 = vrcp.pop %v278
          %v281 = vmul.f32 %v279, %v280
          %v282 = vsel %vm244, %v250, %v278
          %v283 = vsel %vm244, 0.0, %v281
          %v284 = vsub.f32 %v250, %v282
          %s285 = smov %s153
          %v286 = vlaneseq
          %v287 = vshrl.u32 %v286, 7
          %v288 = vmov %v287
          %v289 = vld [vmem:[%s285] sm:$0xff]
          %v291 = vstv %s186
          %vm292 = vcmp.gt.s32.totalorder %v288, %v291
          %v293 = vsel %vm292, %v289, 0.0
          %v294 = vrcp.pop %v284
          %v295 = vmul.f32 %v293, %v294
          %v296 = vsel %vm244, 0.0, %v295
          %v297 = vstv %s186
          %v298 = vlaneseq
          %v299 = vand.u32 %v298, 127
          %vm300 = vcmp.eq.s32.totalorder %v299, %v297
          %v301 = vsel %vm300, %v296, 0.0
          %302 = vadd.xlane.f32.xlu0 %v301
          %v303 = vpop.xlane.xlu0 %302
          %304 = vst [vmem:[#allocation3] sm:$0xff] %v303
          %s305 = scalar_lea.vmem %s285, 8
          %v306 = vld [vmem:[%s305] sm:$0xff]
          %v307 = vadd.s32 %v288, 8
          %v308 = vstv %s186
          %vm309 = vcmp.gt.s32.totalorder %v307, %v308
          %v310 = vsel %vm309, %v306, 0.0
          %v311 = vrcp.pop %v284
          %v312 = vmul.f32 %v310, %v311
          %v313 = vsel %vm244, 0.0, %v312
          %v314 = vstv %s186
          %v315 = vlaneseq
          %v316 = vand.u32 %v315, 127
          %vm317 = vcmp.eq.s32.totalorder %v316, %v314
          %v318 = vsel %vm317, %v313, 0.0
          %319 = vadd.xlane.f32.xlu0 %v318
          %v320 = vpop.xlane.xlu0 %319
          %s321 = scalar_lea.vmem [#allocation3], 8
          %322 = vst [vmem:[%s321] sm:$0xff] %v320
          %s323 = scalar_lea.vmem %s285, 16
          %v324 = vld [vmem:[%s323] sm:$0xff]
          %v325 = vadd.s32 %v288, 16
          %v326 = vstv %s186
          %vm327 = vcmp.gt.s32.totalorder %v325, %v326
          %v328 = vsel %vm327, %v324, 0.0
          %v329 = vrcp.pop %v284
          %v330 = vmul.f32 %v328, %v329
          %v331 = vsel %vm244, 0.0, %v330
          %v332 = vstv %s186
          %v333 = vlaneseq
          %v334 = vand.u32 %v333, 127
          %vm335 = vcmp.eq.s32.totalorder %v334, %v332
          %v336 = vsel %vm335, %v331, 0.0
          %337 = vadd.xlane.f32.xlu0 %v336
          %v338 = vpop.xlane.xlu0 %337
          %s339 = scalar_lea.vmem [#allocation3], 16
          %340 = vst [vmem:[%s339] sm:$0xff] %v338
          %s341 = scalar_lea.vmem %s285, 24
          %v342 = vld [vmem:[%s341] sm:$0xff]
          %v343 = vadd.s32 %v288, 24
          %v344 = vstv %s186
          %vm345 = vcmp.gt.s32.totalorder %v343, %v344
          %vm346 = vcmp.lt.s32.totalorder %v343, 32
          %vm347 = vmand %vm345, %vm346
          %v348 = vsel %vm347, %v342, 0.0
          %v349 = vrcp.pop %v284
          %v350 = vmul.f32 %v348, %v349
          %v351 = vsel %vm244, 0.0, %v350
          %v352 = vstv %s186
          %v353 = vlaneseq
          %v354 = vand.u32 %v353, 127
          %vm355 = vcmp.eq.s32.totalorder %v354, %v352
          %v356 = vsel %vm355, %v351, 0.0
          %357 = vadd.xlane.f32.xlu0 %v356
          %v358 = vpop.xlane.xlu0 %357
          %s359 = scalar_lea.vmem [#allocation3], 24
          %360 = vst [vmem:[%s359] sm:$0xff] %v358
          %s361 = scalar_lea.vmem [#allocation3], %s186
          %362 = vst [vmem:[%s361] sm:$0x1] 1.0
          %v363 = vstv %s186
          %v364 = vlaneseq
          %v365 = vand.u32 %v364, 127
          %vm366 = vcmp.eq.s32.totalorder %v365, %v363
          %v367 = vsel %vm366, %v283, 0.0
          %368 = vadd.xlane.f32.xlu0 %v367
          %v369 = vpop.xlane.xlu0 %368
          %v370 = vstv %s186
          %v371 = vlaneseq
          %v372 = vand.u32 %v371, 127
          %vm373 = vcmp.eq.s32.totalorder %v372, %v370
          %v374 = vld [vmem:[%s169] ss:$0 sm:$0xff]
          %v375 = vsel %vm373, %v369, %v374
          %376 = vst [vmem:[%s169] sm:$0x1] %v375
          %s377 = smov %s153
          %s378 = smov [#allocation3]
          %v379 = vlaneseq
          %v380 = vshrl.u32 %v379, 7
          %v381 = vmov %v380
          %v383 = vld [vmem:[%s378] sm:$0xff]
          %v384 = vld [vmem:[%s377] sm:$0xff]
          %v385 = vmul.f32 %v383, %v384
          %v386 = vadd.s32 %v381, 8
          %s387 = scalar_lea.vmem %s378, 8
          %v388 = vld [vmem:[%s387] sm:$0xff]
          %s389 = scalar_lea.vmem %s377, 8
          %v390 = vld [vmem:[%s389] sm:$0xff]
          %v391 = vmul.f32 %v388, %v390
          %v392 = vadd.f32 %v385, %v391
          %v393 = vadd.s32 %v381, 16
          %s394 = scalar_lea.vmem %s378, 16
          %v395 = vld [vmem:[%s394] sm:$0xff]
          %s396 = scalar_lea.vmem %s377, 16
          %v397 = vld [vmem:[%s396] sm:$0xff]
          %v398 = vmul.f32 %v395, %v397
          %v399 = vadd.f32 %v392, %v398
          %v400 = vadd.s32 %v381, 24
          %s401 = scalar_lea.vmem %s378, 24
          %v402 = vld [vmem:[%s401] sm:$0xff]
          %s403 = scalar_lea.vmem %s377, 24
          %v404 = vld [vmem:[%s403] sm:$0xff]
          %v405 = vmul.f32 %v402, %v404
          %vm406 = vcmp.lt.s32.totalorder %v400, 32
          %v407 = vsel %vm406, %v405, 0.0
          %v408 = vadd.f32 %v399, %v407
          %v409 = vrot.slane %v408, 4
          %v410 = vadd.f32 %v408, %v409
          %v411 = vrot.slane %v410, 2
          %v412 = vadd.f32 %v410, %v411
          %v413 = vrot.slane %v412, 1
          %v414 = vadd.f32 %v412, %v413
          %s415 = smov %s377
          %s416 = smov %s378
          %v417 = vlaneseq
          %v418 = vshrl.u32 %v417, 7
          %v419 = vmov %v418
          %v420 = vmul.f32 %v414, %v369
          %v422 = vlaneseq
          %v423 = vand.u32 %v422, 127
          %v424 = vld [vmem:[%s416] sm:$0xff]
          %v425 = vmul.f32 %v424, %v420
          %v426 = vld [vmem:[%s415] sm:$0xff]
          %v427 = vstv %s186
          %vm428 = vcmp.gt.s32.totalorder %v423, %v427
          %v429 = vsub.f32 %v426, %v425
          %v430 = vsel %vm428, %v429, %v426
          %v431 = vstv %s186
          %v432 = vlaneseq
          %v433 = vand.u32 %v432, 127
          %vm434 = vcmp.eq.s32.totalorder %v433, %v431
          %v435 = vstv %s186
          %vm436 = vcmp.ge.s32.totalorder %v419, %v435
          %vm437 = vmand %vm434, %vm436
          %v438 = vsel %vm437, %v424, %v430
          %439 = vst [vmem:[%s415] sm:$0xff] %v438
          %v440 = vadd.s32 %v419, 8
          %v441 = vlaneseq
          %v442 = vand.u32 %v441, 127
          %s443 = scalar_lea.vmem %s416, 8
          %v444 = vld [vmem:[%s443] sm:$0xff]
          %v445 = vmul.f32 %v444, %v420
          %s446 = scalar_lea.vmem %s415, 8
          %v447 = vld [vmem:[%s446] sm:$0xff]
          %v448 = vstv %s186
          %vm449 = vcmp.gt.s32.totalorder %v442, %v448
          %v450 = vsub.f32 %v447, %v445
          %v451 = vsel %vm449, %v450, %v447
          %v452 = vstv %s186
          %v453 = vlaneseq
          %v454 = vand.u32 %v453, 127
          %vm455 = vcmp.eq.s32.totalorder %v454, %v452
          %v456 = vstv %s186
          %vm457 = vcmp.ge.s32.totalorder %v440, %v456
          %vm458 = vmand %vm455, %vm457
          %v459 = vsel %vm458, %v444, %v451
          %460 = vst [vmem:[%s446] sm:$0xff] %v459
          %v461 = vadd.s32 %v419, 16
          %v462 = vlaneseq
          %v463 = vand.u32 %v462, 127
          %s464 = scalar_lea.vmem %s416, 16
          %v465 = vld [vmem:[%s464] sm:$0xff]
          %v466 = vmul.f32 %v465, %v420
          %s467 = scalar_lea.vmem %s415, 16
          %v468 = vld [vmem:[%s467] sm:$0xff]
          %v469 = vstv %s186
          %vm470 = vcmp.gt.s32.totalorder %v463, %v469
          %v471 = vsub.f32 %v468, %v466
          %v472 = vsel %vm470, %v471, %v468
          %v473 = vstv %s186
          %v474 = vlaneseq
          %v475 = vand.u32 %v474, 127
          %vm476 = vcmp.eq.s32.totalorder %v475, %v473
          %v477 = vstv %s186
          %vm478 = vcmp.ge.s32.totalorder %v461, %v477
          %vm479 = vmand %vm476, %vm478
          %v480 = vsel %vm479, %v465, %v472
          %481 = vst [vmem:[%s467] sm:$0xff] %v480
          %v482 = vadd.s32 %v419, 24
          %v483 = vlaneseq
          %v484 = vand.u32 %v483, 127
          %s485 = scalar_lea.vmem %s416, 24
          %v486 = vld [vmem:[%s485] sm:$0xff]
          %v487 = vmul.f32 %v486, %v420
          %s488 = scalar_lea.vmem %s415, 24
          %v489 = vld [vmem:[%s488] sm:$0xff]
          %v490 = vstv %s186
          %vm491 = vcmp.gt.s32.totalorder %v484, %v490
          %v492 = vsub.f32 %v489, %v487
          %v493 = vsel %vm491, %v492, %v489
          %v494 = vstv %s186
          %v495 = vlaneseq
          %v496 = vand.u32 %v495, 127
          %vm497 = vcmp.eq.s32.totalorder %v496, %v494
          %v498 = vstv %s186
          %vm499 = vcmp.ge.s32.totalorder %v482, %v498
          %vm500 = vmand %vm497, %vm499
          %v501 = vsel %vm500, %v486, %v493
          %502 = vst [vmem:[%s488] sm:$0xff] %v501
          %s503 = scalar_lea.vmem %s415, %s186
          %v504 = vld [vmem:[%s503] ss:$0 sm:$0xff]
          %v505 = vstv %s186
          %v506 = vlaneseq
          %v507 = vand.u32 %v506, 127
          %vm508 = vcmp.eq.s32.totalorder %v507, %v505
          %v509 = vsel %vm508, %v282, %v504
          %510 = vst [vmem:[%s503] sm:$0x1] %v509
        $region59: #{custom-call.16} parent=53 // loop_footer
          %s190 = sadd.s32 1, %s186
        $region60: #{custom-call.16} parent=53 // loop_footer_branch
          %185 = sbr.rel target = $region56
        $region61: #{custom-call.16} parent=53 // loop_exit
          _
        %s511 = sand.u32 %s10, 1
        %s512 = sand.u32 %s10, 1
        %s513 = smul.addr %s512, 32
        %s514 = scalar_lea.vmem [#allocation1], %s513
        %s515 = sand.u32 %s49, 1
        %s516 = sand.u32 %s49, 1
        %s517 = smul.addr %s516, 8
        %s518 = scalar_lea.vmem [#allocation2], %s517
        %s519 = smul.u32 4, %s16
        %s520 = sadd.s32 %s17, %s519
        %s521 = smul.addr %s15, 4
        %s522 = sadd.s32 %s520, %s521
        %s523 = smul.addr %s522, 8
        %s524 = scalar_lea.vmem %s1, %s523
        // Predicated region
        $region62: #{custom-call.16} parent=53 // pred_check
          _
        $region63: #{custom-call.16} parent=53 // pred_check_branch
          %526 = sbr.rel (0) target = $region65
        $region64: #{custom-call.16} parent=53 // pred_region
          // Predicated region
          $region66: #{custom-call.16} parent=64 // pred_check
            _
          $region67: #{custom-call.16} parent=64 // pred_check_branch
            %528 = sbr.rel (0) target = $region69
          $region68: #{custom-call.16} parent=64 // pred_region
            // Predicated region
            $region81: #{custom-call.16} parent=68 // pred_check
              _
            $region82: #{custom-call.16} parent=68 // pred_check_branch
              %549 = sbr.rel (0) target = $region84
            $region83: #{custom-call.16} parent=68 // pred_region
              loop: start=0, step=1, limit=1
              $region85: #{custom-call.16} parent=83 // loop_pre_header
                _
              $region86: #{custom-call.16} parent=83 // loop_header
                %s551 = sphi 0, %s555
                %p552 = scmp.ge.s32.totalorder %s551, 1
                %s556 = sphi %s514, %s514
                %s557 = sphi %s524, %s524
              $region87: #{custom-call.16} parent=83 // loop_header_branch
                %554 = sbr.rel (%p552) target = $region91
              $region88: #{custom-call.16} parent=83 // loop_body
                %v558 = vld [vmem:[%s556] sm:$0xff]
                %559 = vst [vmem:[%s557] sm:$0xff] %v558
                %v560 = vld [vmem:[%s556 + $0x8] sm:$0xff]
                %561 = vst [vmem:[%s557 + $0x8] sm:$0xff] %v560
                %v562 = vld [vmem:[%s556 + $0x10] sm:$0xff]
                %563 = vst [vmem:[%s557 + $0x10] sm:$0xff] %v562
                %v564 = vld [vmem:[%s556 + $0x18] sm:$0xff]
                %565 = vst [vmem:[%s557 + $0x18] sm:$0xff] %v564
              $region89: #{custom-call.16} parent=83 // loop_footer
                %s555 = sadd.s32 1, %s551
              $region90: #{custom-call.16} parent=83 // loop_footer_branch
                %550 = sbr.rel target = $region86
              $region91: #{custom-call.16} parent=83 // loop_exit
                _
            $region84: #{custom-call.16} parent=68 // pred_fallthru
              _
            // Predicated region
            $region92: #{custom-call.16} parent=68 // pred_check
              _
            $region93: #{custom-call.16} parent=68 // pred_check_branch
              %567 = sbr.rel target = $region95
            $region94: #{custom-call.16} parent=68 // pred_region
              _
            $region95: #{custom-call.16} parent=68 // pred_fallthru
              _
          $region69: #{custom-call.16} parent=64 // pred_fallthru
            _
          // Predicated region
          $region70: #{custom-call.16} parent=64 // pred_check
            _
          $region71: #{custom-call.16} parent=64 // pred_check_branch
            %530 = sbr.rel target = $region73
          $region72: #{custom-call.16} parent=64 // pred_region
            loop: start=0, step=1, limit=1
            $region74: #{custom-call.16} parent=72 // loop_pre_header
              _
            $region75: #{custom-call.16} parent=72 // loop_header
              %s533 = sphi 0, %s537
              %p534 = scmp.ge.s32.totalorder %s533, 1
              %s538 = sphi %s514, %s514
              %s539 = sphi %s524, %s524
            $region76: #{custom-call.16} parent=72 // loop_header_branch
              %536 = sbr.rel (%p534) target = $region80
            $region77: #{custom-call.16} parent=72 // loop_body
              %v540 = vld [vmem:[%s538] sm:$0xff]
              %541 = vst [vmem:[%s539] sm:$0xff] %v540
              %v542 = vld [vmem:[%s538 + $0x8] sm:$0xff]
              %543 = vst [vmem:[%s539 + $0x8] sm:$0xff] %v542
              %v544 = vld [vmem:[%s538 + $0x10] sm:$0xff]
              %545 = vst [vmem:[%s539 + $0x10] sm:$0xff] %v544
              %v546 = vld [vmem:[%s538 + $0x18] sm:$0xff]
              %547 = vst [vmem:[%s539 + $0x18] sm:$0xff] %v546
            $region78: #{custom-call.16} parent=72 // loop_footer
              %s537 = sadd.s32 1, %s533
            $region79: #{custom-call.16} parent=72 // loop_footer_branch
              %532 = sbr.rel target = $region75
            $region80: #{custom-call.16} parent=72 // loop_exit
              _
          $region73: #{custom-call.16} parent=64 // pred_fallthru
            _
        $region65: #{custom-call.16} parent=53 // pred_fallthru
          _
        %568 = vnop
        // Predicated region
        $region96: #{custom-call.16} parent=53 // pred_check
          %p569 = pneg %p59
        $region97: #{custom-call.16} parent=53 // pred_check_branch
          %571 = sbr.rel (%p569) target = $region99
        $region98: #{custom-call.16} parent=53 // pred_region
          %p572 = scmp.lt.s32.totalorder %s15, 0
          %s573 = ssub.s32 0, %s15
          %s574 = scalar_select %p572, %s573, %s15
          %s575 = sshrl.u32 %s574, 3
          %s576 = ssub.s32 0, %s575
          %s577 = scalar_select %p572, %s576, %s575
          %s578 = smul.addr %s577, 8
          %s579 = scalar_lea.vmem %s2, %s578
          // Predicated region
          $region100: #{custom-call.16} parent=98 // pred_check
            _
          $region101: #{custom-call.16} parent=98 // pred_check_branch
            %581 = sbr.rel (0) target = $region103
          $region102: #{custom-call.16} parent=98 // pred_region
            // Predicated region
            $region104: #{custom-call.16} parent=102 // pred_check
              _
            $region105: #{custom-call.16} parent=102 // pred_check_branch
              %583 = sbr.rel (0) target = $region107
            $region106: #{custom-call.16} parent=102 // pred_region
              // Predicated region
              $region119: #{custom-call.16} parent=106 // pred_check
                _
              $region120: #{custom-call.16} parent=106 // pred_check_branch
                %598 = sbr.rel (0) target = $region122
              $region121: #{custom-call.16} parent=106 // pred_region
                loop: start=0, step=1, limit=1
                $region123: #{custom-call.16} parent=121 // loop_pre_header
                  _
                $region124: #{custom-call.16} parent=121 // loop_header
                  %s600 = sphi 0, %s604
                  %p601 = scmp.ge.s32.totalorder %s600, 1
                  %s605 = sphi %s518, %s518
                  %s606 = sphi %s579, %s579
                $region125: #{custom-call.16} parent=121 // loop_header_branch
                  %603 = sbr.rel (%p601) target = $region129
                $region126: #{custom-call.16} parent=121 // loop_body
                  %v607 = vld [vmem:[%s605] sm:$0xff]
                  %608 = vst [vmem:[%s606] sm:$0xff] %v607
                $region127: #{custom-call.16} parent=121 // loop_footer
                  %s604 = sadd.s32 1, %s600
                $region128: #{custom-call.16} parent=121 // loop_footer_branch
                  %599 = sbr.rel target = $region124
                $region129: #{custom-call.16} parent=121 // loop_exit
                  _
              $region122: #{custom-call.16} parent=106 // pred_fallthru
                _
              // Predicated region
              $region130: #{custom-call.16} parent=106 // pred_check
                _
              $region131: #{custom-call.16} parent=106 // pred_check_branch
                %610 = sbr.rel target = $region133
              $region132: #{custom-call.16} parent=106 // pred_region
                _
              $region133: #{custom-call.16} parent=106 // pred_fallthru
                _
            $region107: #{custom-call.16} parent=102 // pred_fallthru
              _
            // Predicated region
            $region108: #{custom-call.16} parent=102 // pred_check
              _
            $region109: #{custom-call.16} parent=102 // pred_check_branch
              %585 = sbr.rel target = $region111
            $region110: #{custom-call.16} parent=102 // pred_region
              loop: start=0, step=1, limit=1
              $region112: #{custom-call.16} parent=110 // loop_pre_header
                _
              $region113: #{custom-call.16} parent=110 // loop_header
                %s588 = sphi 0, %s592
                %p589 = scmp.ge.s32.totalorder %s588, 1
                %s593 = sphi %s518, %s518
                %s594 = sphi %s579, %s579
              $region114: #{custom-call.16} parent=110 // loop_header_branch
                %591 = sbr.rel (%p589) target = $region118
              $region115: #{custom-call.16} parent=110 // loop_body
                %v595 = vld [vmem:[%s593] sm:$0xff]
                %596 = vst [vmem:[%s594] sm:$0xff] %v595
              $region116: #{custom-call.16} parent=110 // loop_footer
                %s592 = sadd.s32 1, %s588
              $region117: #{custom-call.16} parent=110 // loop_footer_branch
                %587 = sbr.rel target = $region113
              $region118: #{custom-call.16} parent=110 // loop_exit
                _
            $region111: #{custom-call.16} parent=102 // pred_fallthru
              _
          $region103: #{custom-call.16} parent=98 // pred_fallthru
            _
          %611 = vnop
        $region99: #{custom-call.16} parent=53 // pred_fallthru
          _
      $region54: #{custom-call.16} parent=5 // pred_fallthru
        _
      %p612 = scmp.le.s32.totalorder 2, %s5
      // Predicated region
      $region134: #{custom-call.16} parent=5 // pred_check
        %p613 = pneg %p612
      $region135: #{custom-call.16} parent=5 // pred_check_branch
        %615 = sbr.rel (%p613) target = $region137
      $region136: #{custom-call.16} parent=5 // pred_region
        %s616 = ssub.s32 %s5, 2
        %s617 = sand.u32 %s11, 1
        %s618 = sand.u32 %s11, 1
        %s619 = smul.addr %s618, 32
        %s620 = scalar_lea.vmem [#allocation1], %s619
        // Predicated region
        $region138: #{custom-call.16} parent=136 // pred_check
          %p621 = pneg %p65
        $region139: #{custom-call.16} parent=136 // pred_check_branch
          %623 = sbr.rel (%p621) target = $region141
        $region140: #{custom-call.16} parent=136 // pred_region
          %s624 = sand.u32 %s50, 1
          %s625 = sand.u32 %s50, 1
          %s626 = smul.addr %s625, 8
          %s627 = scalar_lea.vmem [#allocation2], %s626
        $region141: #{custom-call.16} parent=136 // pred_fallthru
          _
      $region137: #{custom-call.16} parent=5 // pred_fallthru
        _
    $region6: #{custom-call.16} parent=1 // loop_footer
      %s9 = sadd.s32 1, %s5
    $region7: #{custom-call.16} parent=1 // loop_footer_branch
      %4 = sbr.rel target = $region3
    $region8: #{custom-call.16} parent=1 // loop_exit
      _

// kernel: snn_forward.3
$region0: #{snn_forward.3}
  #allocation0 [shape = 'u32[]', space=smem, size = 0x4, offset = 0x4, fixed_abs, tag = 'smem constant byte address 0x4 - core index']
  #allocation1 [shape = 'u32[144,128]{1,0:T(1,128)}', space=vmem, size = 0x12000, scoped, tag = 'internal scratch']
  %s0 = inlined_call_operand.vmem [shape: f32[32,384], index: 0, kind: input, shape index: {}]
  %s1 = inlined_call_operand.vmem [shape: f32[384,32], index: 1, kind: input, shape index: {}]
  %s2 = inlined_call_operand.vmem [shape: f32[1,384], index: 2, kind: input, shape index: {}]
  %s3 = inlined_call_operand.vmem [shape: f32[1,384], index: 3, kind: input, shape index: {}]
  %s4 = inlined_call_operand.hbm [shape: f32[32,32], index: 4, kind: output, shape index: {}]
  %s5 = sld [smem:[#allocation0]]
  $region26: #{snn_forward.3} parent=0
    _
  %s7 = ssub.s32 1, %s5
  %s8 = scalar_select 0, %s7, %s5
  $region1: #{snn_forward.3} parent=0
    #allocation2 [shape = 'u8[16384]{0}', space=vmem, size = 0x4000, scoped, tag = 'output window, operand 0, single buffered']
    #allocation3 [shape = 's32[1]{0}', space=sflag, size = 0x4, scoped, tag = 'scoped memory for snn_forward.3']
    %9 = vsyncpa [#allocation3], 0
    // Predicated region
    $region2: #{snn_forward.3} parent=1 // pred_check
      _
    $region3: #{snn_forward.3} parent=1 // pred_check_branch
      %11 = sbr.rel (0) target = $region5
    $region4: #{snn_forward.3} parent=1 // pred_region
      _
    $region5: #{snn_forward.3} parent=1 // pred_fallthru
      _
    // Predicated region
    $region6: #{snn_forward.3} parent=1 // pred_check
      _
    $region7: #{snn_forward.3} parent=1 // pred_check_branch
      %13 = sbr.rel (0) target = $region9
    $region8: #{snn_forward.3} parent=1 // pred_region
      _
    $region9: #{snn_forward.3} parent=1 // pred_fallthru
      _
    // Predicated region
    $region10: #{snn_forward.3} parent=1 // pred_check
      _
    $region11: #{snn_forward.3} parent=1 // pred_check_branch
      %15 = sbr.rel (0) target = $region13
    $region12: #{snn_forward.3} parent=1 // pred_region
      _
    $region13: #{snn_forward.3} parent=1 // pred_fallthru
      _
    // Predicated region
    $region14: #{snn_forward.3} parent=1 // pred_check
      _
    $region15: #{snn_forward.3} parent=1 // pred_check_branch
      %17 = sbr.rel (0) target = $region17
    $region16: #{snn_forward.3} parent=1 // pred_region
      _
    $region17: #{snn_forward.3} parent=1 // pred_fallthru
      _
    %v18 = vld [vmem:[%s3] sm:$0x7]
    %v19 = vld [vmem:[%s2] sm:$0x7]
    %v20 = vxor.u32 %v19, 2147483648
    %v21 = vmul.f32 %v20, 1.442695
    %v22 = vpow.pop %v21
    %v23 = vadd.f32 %v22, 1.0
    %v24 = vrcp.pop %v23
    %v25 = vmul.f32 1.0, %v24
    %v26 = vmul.f32 %v18, %v25
    %v27 = vld [vmem:[%s0] sm:$0xff]
    %v28 = vld [vmem:[%s0 + $0x8] sm:$0xff]
    %v29 = vld [vmem:[%s0 + $0x10] sm:$0xff]
    %v30 = vld [vmem:[%s0 + $0x18] sm:$0xff]
    %v31 = vld [vmem:[%s0 + $0x20] sm:$0xff]
    %v32 = vld [vmem:[%s0 + $0x28] sm:$0xff]
    %v33 = vld [vmem:[%s0 + $0x30] sm:$0xff]
    %v34 = vld [vmem:[%s0 + $0x38] sm:$0xff]
    %v35 = vld [vmem:[%s0 + $0x40] sm:$0xff]
    %v36 = vld [vmem:[%s0 + $0x48] sm:$0xff]
    %v37 = vld [vmem:[%s0 + $0x50] sm:$0xff]
    %v38 = vld [vmem:[%s0 + $0x58] sm:$0xff]
    %v40 = vlaneseq
    %v41 = vshrl.u32 %v40, 7
    %v42 = vsub.s32 0, %v41
    %v43 = vrot.slane %v26, %v42
    %v44 = vlaneseq
    %v45 = vshrl.u32 %v44, 7
    %v46 = vsub.s32 1, %v45
    %v47 = vrot.slane %v26, %v46
    %v48 = vlaneseq
    %v49 = vshrl.u32 %v48, 7
    %v50 = vsub.s32 2, %v49
    %v51 = vrot.slane %v26, %v50
    %v55 = vmul.f32 %v27, %v43
    %v56 = vmul.f32 %v28, %v47
    %v57 = vmul.f32 %v29, %v51
    %v58 = vmul.f32 %v30, %v43
    %v59 = vmul.f32 %v31, %v47
    %v60 = vmul.f32 %v32, %v51
    %v61 = vmul.f32 %v33, %v43
    %v62 = vmul.f32 %v34, %v47
    %v63 = vmul.f32 %v35, %v51
    %v64 = vmul.f32 %v36, %v43
    %v65 = vmul.f32 %v37, %v47
    %v66 = vmul.f32 %v38, %v51
    %v67 = vld [vmem:[%s1] sm:$0xff]
    %v68 = vld [vmem:[%s1 + $0x8] sm:$0xff]
    %v69 = vld [vmem:[%s1 + $0x10] sm:$0xff]
    %v70 = vld [vmem:[%s1 + $0x18] sm:$0xff]
    %v71 = vld [vmem:[%s1 + $0x20] sm:$0xff]
    %v72 = vld [vmem:[%s1 + $0x28] sm:$0xff]
    %v73 = vld [vmem:[%s1 + $0x30] sm:$0xff]
    %v74 = vld [vmem:[%s1 + $0x38] sm:$0xff]
    %v75 = vld [vmem:[%s1 + $0x40] sm:$0xff]
    %v76 = vld [vmem:[%s1 + $0x48] sm:$0xff]
    %v77 = vld [vmem:[%s1 + $0x50] sm:$0xff]
    %v78 = vld [vmem:[%s1 + $0x58] sm:$0xff]
    %v79 = vld [vmem:[%s1 + $0x60] sm:$0xff]
    %v80 = vld [vmem:[%s1 + $0x68] sm:$0xff]
    %v81 = vld [vmem:[%s1 + $0x70] sm:$0xff]
    %v82 = vld [vmem:[%s1 + $0x78] sm:$0xff]
    %v83 = vld [vmem:[%s1 + $0x80] sm:$0xff]
    %v84 = vld [vmem:[%s1 + $0x88] sm:$0xff]
    %v85 = vld [vmem:[%s1 + $0x90] sm:$0xff]
    %v86 = vld [vmem:[%s1 + $0x98] sm:$0xff]
    %v87 = vld [vmem:[%s1 + $0xa0] sm:$0xff]
    %v88 = vld [vmem:[%s1 + $0xa8] sm:$0xff]
    %v89 = vld [vmem:[%s1 + $0xb0] sm:$0xff]
    %v90 = vld [vmem:[%s1 + $0xb8] sm:$0xff]
    %v91 = vld [vmem:[%s1 + $0xc0] sm:$0xff]
    %v92 = vld [vmem:[%s1 + $0xc8] sm:$0xff]
    %v93 = vld [vmem:[%s1 + $0xd0] sm:$0xff]
    %v94 = vld [vmem:[%s1 + $0xd8] sm:$0xff]
    %v95 = vld [vmem:[%s1 + $0xe0] sm:$0xff]
    %v96 = vld [vmem:[%s1 + $0xe8] sm:$0xff]
    %v97 = vld [vmem:[%s1 + $0xf0] sm:$0xff]
    %v98 = vld [vmem:[%s1 + $0xf8] sm:$0xff]
    %v99 = vld [vmem:[%s1 + $0x100] sm:$0xff]
    %v100 = vld [vmem:[%s1 + $0x108] sm:$0xff]
    %v101 = vld [vmem:[%s1 + $0x110] sm:$0xff]
    %v102 = vld [vmem:[%s1 + $0x118] sm:$0xff]
    %v103 = vld [vmem:[%s1 + $0x120] sm:$0xff]
    %v104 = vld [vmem:[%s1 + $0x128] sm:$0xff]
    %v105 = vld [vmem:[%s1 + $0x130] sm:$0xff]
    %v106 = vld [vmem:[%s1 + $0x138] sm:$0xff]
    %v107 = vld [vmem:[%s1 + $0x140] sm:$0xff]
    %v108 = vld [vmem:[%s1 + $0x148] sm:$0xff]
    %v109 = vld [vmem:[%s1 + $0x150] sm:$0xff]
    %v110 = vld [vmem:[%s1 + $0x158] sm:$0xff]
    %v111 = vld [vmem:[%s1 + $0x160] sm:$0xff]
    %v112 = vld [vmem:[%s1 + $0x168] sm:$0xff]
    %v113 = vld [vmem:[%s1 + $0x170] sm:$0xff]
    %v114 = vld [vmem:[%s1 + $0x178] sm:$0xff]
    %115 = vmatprep.subr.mxu0 0.0
    %116 = vmatpush1.msra.mxu0 %v67
    %117 = vmatprep.subr.mxu0 0.0
    %118 = vmatpush1.msra.mxu0 %v68
    %119 = vmatprep.subr.mxu0 0.0
    %120 = vmatpush1.msra.mxu0 %v69
    %121 = vmatprep.subr.mxu0 0.0
    %122 = vmatpush1.msra.mxu0 %v70
    %123 = vmatprep.subr.mxu0 0.0
    %124 = vmatpush1.msra.mxu0 %v71
    %125 = vmatprep.subr.mxu0 0.0
    %126 = vmatpush1.msra.mxu0 %v72
    %127 = vmatprep.subr.mxu0 0.0
    %128 = vmatpush1.msra.mxu0 %v73
    %129 = vmatprep.subr.mxu0 0.0
    %130 = vmatpush1.msra.mxu0 %v74
    %131 = vmatprep.subr.mxu0 0.0
    %132 = vmatpush1.msra.mxu0 %v75
    %133 = vmatprep.subr.mxu0 0.0
    %134 = vmatpush1.msra.mxu0 %v76
    %135 = vmatprep.subr.mxu0 0.0
    %136 = vmatpush1.msra.mxu0 %v77
    %137 = vmatprep.subr.mxu0 0.0
    %138 = vmatpush1.msra.mxu0 %v78
    %139 = vmatprep.subr.mxu0 0.0
    %140 = vmatpush1.msra.mxu0 %v79
    %141 = vmatprep.subr.mxu0 0.0
    %142 = vmatpush1.msra.mxu0 %v80
    %143 = vmatprep.subr.mxu0 0.0
    %144 = vmatpush1.msra.mxu0 %v81
    %145 = vmatprep.subr.mxu0 0.0
    %146 = vmatpush1.msra.mxu0 %v82
    %147 = vmatprep.subr.mxu0 0.0
    %148 = vmatpush1.msra.mxu0 %v83
    %149 = vmatprep.subr.mxu0 0.0
    %150 = vmatpush1.msra.mxu0 %v84
    %151 = vmatprep.subr.mxu0 0.0
    %152 = vmatpush1.msra.mxu0 %v85
    %153 = vmatprep.subr.mxu0 0.0
    %154 = vmatpush1.msra.mxu0 %v86
    %155 = vmatprep.subr.mxu0 0.0
    %156 = vmatpush1.msra.mxu0 %v87
    %157 = vmatprep.subr.mxu0 0.0
    %158 = vmatpush1.msra.mxu0 %v88
    %159 = vmatprep.subr.mxu0 0.0
    %160 = vmatpush1.msra.mxu0 %v89
    %161 = vmatprep.subr.mxu0 0.0
    %162 = vmatpush1.msra.mxu0 %v90
    %163 = vmatprep.subr.mxu0 0.0
    %164 = vmatpush1.msra.mxu0 %v91
    %165 = vmatprep.subr.mxu0 0.0
    %166 = vmatpush1.msra.mxu0 %v92
    %167 = vmatprep.subr.mxu0 0.0
    %168 = vmatpush1.msra.mxu0 %v93
    %169 = vmatprep.subr.mxu0 0.0
    %170 = vmatpush1.msra.mxu0 %v94
    %171 = vmatprep.subr.mxu0 0.0
    %172 = vmatpush1.msra.mxu0 %v95
    %173 = vmatprep.subr.mxu0 0.0
    %174 = vmatpush1.msra.mxu0 %v96
    %175 = vmatprep.subr.mxu0 0.0
    %176 = vmatpush1.msra.mxu0 %v97
    %177 = vmatprep.subr.mxu0 0.0
    %178 = vmatpush1.msra.mxu0 %v98
    %179 = vmatprep.mubr.f32.mxu0 %v56
    %180 = vmatmul.mubr.f32.gmra.mrb[0].mxu0 %v55
    %v181 = vpop.f32.mrb[0].mxu0
    %v182 = vadd.f32 0.0, %v181
    %v183 = vpop.f32.mrb[0].mxu0
    %184 = vmatprep.mubr.f32.mxu0 %v59
    %185 = vmatmul.mubr.f32.gmra.mrb[0].mxu0 %v58
    %v186 = vpop.f32.mrb[0].mxu0
    %v187 = vadd.f32 0.0, %v186
    %v188 = vpop.f32.mrb[0].mxu0
    %189 = vmatprep.mubr.f32.mxu0 %v62
    %190 = vmatmul.mubr.f32.gmra.mrb[0].mxu0 %v61
    %v191 = vpop.f32.mrb[0].mxu0
    %v192 = vadd.f32 0.0, %v191
    %v193 = vpop.f32.mrb[0].mxu0
    %194 = vmatprep.mubr.f32.mxu0 %v65
    %195 = vmatmul.mubr.f32.gmra.mrb[0].mxu0 %v64
    %v196 = vpop.f32.mrb[0].mxu0
    %v197 = vadd.f32 0.0, %v196
    %v198 = vpop.f32.mrb[0].mxu0
    %199 = vdwg.mxu0
    %200 = vmatprep.subr.mxu0 0.0
    %201 = vmatpush1.msra.mxu0 %v99
    %202 = vmatprep.subr.mxu0 0.0
    %203 = vmatpush1.msra.mxu0 %v100
    %204 = vmatprep.subr.mxu0 0.0
    %205 = vmatpush1.msra.mxu0 %v101
    %206 = vmatprep.subr.mxu0 0.0
    %207 = vmatpush1.msra.mxu0 %v102
    %208 = vmatprep.subr.mxu0 0.0
    %209 = vmatpush1.msra.mxu0 %v103
    %210 = vmatprep.subr.mxu0 0.0
    %211 = vmatpush1.msra.mxu0 %v104
    %212 = vmatprep.subr.mxu0 0.0
    %213 = vmatpush1.msra.mxu0 %v105
    %214 = vmatprep.subr.mxu0 0.0
    %215 = vmatpush1.msra.mxu0 %v106
    %216 = vmatprep.subr.mxu0 0.0
    %217 = vmatpush1.msra.mxu0 %v107
    %218 = vmatprep.subr.mxu0 0.0
    %219 = vmatpush1.msra.mxu0 %v108
    %220 = vmatprep.subr.mxu0 0.0
    %221 = vmatpush1.msra.mxu0 %v109
    %222 = vmatprep.subr.mxu0 0.0
    %223 = vmatpush1.msra.mxu0 %v110
    %224 = vmatprep.subr.mxu0 0.0
    %225 = vmatpush1.msra.mxu0 %v111
    %226 = vmatprep.subr.mxu0 0.0
    %227 = vmatpush1.msra.mxu0 %v112
    %228 = vmatprep.subr.mxu0 0.0
    %229 = vmatpush1.msra.mxu0 %v113
    %230 = vmatprep.subr.mxu0 0.0
    %231 = vmatpush1.msra.mxu0 %v114
    %232 = vmatprep.subr.mxu0 0.0
    %233 = vmatpush1.msra.mxu0 0.0
    %234 = vmatprep.subr.mxu0 0.0
    %235 = vmatpush1.msra.mxu0 0.0
    %236 = vmatprep.subr.mxu0 0.0
    %237 = vmatpush1.msra.mxu0 0.0
    %238 = vmatprep.subr.mxu0 0.0
    %239 = vmatpush1.msra.mxu0 0.0
    %240 = vmatprep.subr.mxu0 0.0
    %241 = vmatpush1.msra.mxu0 0.0
    %242 = vmatprep.subr.mxu0 0.0
    %243 = vmatpush1.msra.mxu0 0.0
    %244 = vmatprep.subr.mxu0 0.0
    %245 = vmatpush1.msra.mxu0 0.0
    %246 = vmatprep.subr.mxu0 0.0
    %247 = vmatpush1.msra.mxu0 0.0
    %248 = vmatprep.subr.mxu0 0.0
    %249 = vmatpush1.msra.mxu0 0.0
    %250 = vmatprep.subr.mxu0 0.0
    %251 = vmatpush1.msra.mxu0 0.0
    %252 = vmatprep.subr.mxu0 0.0
    %253 = vmatpush1.msra.mxu0 0.0
    %254 = vmatprep.subr.mxu0 0.0
    %255 = vmatpush1.msra.mxu0 0.0
    %256 = vmatprep.subr.mxu0 0.0
    %257 = vmatpush1.msra.mxu0 0.0
    %258 = vmatprep.subr.mxu0 0.0
    %259 = vmatpush1.msra.mxu0 0.0
    %260 = vmatprep.subr.mxu0 0.0
    %261 = vmatpush1.msra.mxu0 0.0
    %262 = vmatprep.subr.mxu0 0.0
    %263 = vmatpush1.msra.mxu0 0.0
    %264 = vmatprep.mubr.f32.mxu0 0.0
    %265 = vmatmul.mubr.f32.gmra.mrb[0].mxu0 %v57
    %v266 = vpop.f32.mrb[0].mxu0
    %v267 = vadd.f32 %v182, %v266
    %v268 = vpop.f32.mrb[0].mxu0
    %269 = vmatprep.mubr.f32.mxu0 0.0
    %270 = vmatmul.mubr.f32.gmra.mrb[0].mxu0 %v60
    %v271 = vpop.f32.mrb[0].mxu0
    %v272 = vadd.f32 %v187, %v271
    %v273 = vpop.f32.mrb[0].mxu0
    %274 = vmatprep.mubr.f32.mxu0 0.0
    %275 = vmatmul.mubr.f32.gmra.mrb[0].mxu0 %v63
    %v276 = vpop.f32.mrb[0].mxu0
    %v277 = vadd.f32 %v192, %v276
    %v278 = vpop.f32.mrb[0].mxu0
    %279 = vmatprep.mubr.f32.mxu0 0.0
    %280 = vmatmul.mubr.f32.gmra.mrb[0].mxu0 %v66
    %v281 = vpop.f32.mrb[0].mxu0
    %v282 = vadd.f32 %v197, %v281
    %v283 = vpop.f32.mrb[0].mxu0
    %284 = vdwg.mxu0
    %vm285 = vcmask 261120
    %286 = vst.msk [vmem:[#allocation2] sm:$0xff] %vm285, %v267
    %287 = vst.msk [vmem:[#allocation2 + $0x8] sm:$0xff] %vm285, %v272
    %288 = vst.msk [vmem:[#allocation2 + $0x10] sm:$0xff] %vm285, %v277
    %289 = vst.msk [vmem:[#allocation2 + $0x18] sm:$0xff] %vm285, %v282
    // Predicated region
    $region18: #{snn_forward.3} parent=1 // pred_check
      _
    $region19: #{snn_forward.3} parent=1 // pred_check_branch
      %291 = sbr.rel (0) target = $region21
    $region20: #{snn_forward.3} parent=1 // pred_region
      %s293 = ssub.s32 512, 512
      %294 = vsyncadd [#allocation3], %s293
      %s295 = sshll.u32 [#allocation2], 4
      %s296 = int_to_ptr.vmem [resolvable:$true] %s295
      %301 = dma.vmem_to_hbm [thread:$0]  %s296, 512, %s4, [#allocation3], 128, 128, 8
    $region21: #{snn_forward.3} parent=1 // pred_fallthru
      _
    // Predicated region
    $region22: #{snn_forward.3} parent=1 // pred_check
      _
    $region23: #{snn_forward.3} parent=1 // pred_check_branch
      %303 = sbr.rel (0) target = $region25
    $region24: #{snn_forward.3} parent=1 // pred_region
      %304 = dma.done [#allocation3], 512
    $region25: #{snn_forward.3} parent=1 // pred_fallthru
      _
    %305 = vsyncpa [#allocation3], 1

</llo_original>
